<compile_context>
chip_gen: v7x
topology: tpu7x:2x2x1
jax: 0.10.0
libtpu: 0.0.40
codegen_flags: <defaults>
</compile_context>

<pallas_src>
import functools
import math

import jax
import jax.numpy as jnp
from jax import lax
from jax.experimental import pallas as pl
from jax.experimental.pallas import tpu as pltpu


def _sap_kernel(x_ref, u_ref, o_ref, cdf_ref, lo_ref, hv_ref, samp_ref, *,
                rate, n_chunks):
    """Grid = (row_blocks, draw_chunks). One row block = 8 rows x N lanes."""
    c = pl.program_id(1)

    # ---- once per row block: probabilities, CDF, keep-scale --------------
    @pl.when(c == 0)
    def _init():
        h = x_ref[...].astype(jnp.float32)                 # (R, N)
        R, N = h.shape
        nb = N // 128

        habs = jnp.abs(h)
        s = jnp.sum(habs, axis=-1, keepdims=True)          # (R, 1)
        p = habs / (s + 1e-10)                             # (R, N)

        # Inclusive prefix sum of p: per-128-lane block matmul against a
        # constant triangular matrix, plus a scalar-per-row carry chain.
        row = lax.broadcasted_iota(jnp.int32, (128, 128), 0)
        col = lax.broadcasted_iota(jnp.int32, (128, 128), 1)
        tri = (row <= col).astype(jnp.float32)             # (128, 128), built once

        carry = jnp.zeros((R, 1), jnp.float32)
        for b in range(nb):                                # static unroll, small nb
            pb = p[:, b * 128:(b + 1) * 128]               # (R, 128) static slice
            incb = jnp.dot(pb, tri, preferred_element_type=jnp.float32) + carry
            cdf_ref[:, b * 128:(b + 1) * 128] = incb
            carry = incb[:, 127:128]

        cdf = cdf_ref[...]
        lo_ref[...] = cdf - p                              # lower interval edges

        # keep-probability scale 1/(1-(1-p)^rate) with the torch-style
        # fallback 1/(rate*p) where the direct formula blows up; made finite
        # everywhere so 0*inf NaNs cannot appear in the masked branch.
        # TODO(synk): could use -expm1(rate*log1p(-p)) for better small-p accuracy.
        rate_f = jnp.float32(rate)
        denom = 1.0 - jnp.exp(rate_f * jnp.log(1.0 - p))
        inv = 1.0 / jnp.where(denom > 0, denom, 1.0)
        fb = 1.0 / jnp.where(p > 0, rate_f * p, 1.0)
        pre = jnp.where(denom > 0, inv, jnp.where(p > 0, fb, 0.0))
        hv_ref[...] = h * pre                              # value if sampled

        samp_ref[...] = jnp.zeros_like(samp_ref)

    # ---- every chunk: 128 draws vs all intervals, OR-accumulate ----------
    cdf = cdf_ref[...]
    lo = lo_ref[...]
    total = cdf[:, -1:]                                    # sum of p per row
    # Rescale u in [0,1) to [0,total) so no probability mass is dropped at the
    # tail; padded draws (2.0) land above total and never hit.
    u = u_ref[...].astype(jnp.float32) * total             # (R, 128)

    samp = samp_ref[...]
    for k in range(128):                                   # unrolled over draws
        uk = u[:, k:k + 1]                                 # (R, 1)
        hit = jnp.logical_and(uk >= lo, uk < cdf)          # (R, N)
        samp = jnp.where(hit, 1.0, samp)
    samp_ref[...] = samp

    # ---- finalize on the last chunk ---------------------------------------
    @pl.when(c == n_chunks - 1)
    def _fin():
        o_ref[...] = jnp.where(samp_ref[...] > 0.5, hv_ref[...], 0.0
                               ).astype(o_ref.dtype)


def sap_unit(x, r, *, seed=0, training=False):
    """JAX/Pallas equivalent of SapUnit(r).forward(x). x is NCHW (or any >=2D)."""
    if training:
        return x  # training path is identity in the PyTorch module

    B = x.shape[0]
    N = int(math.prod(x.shape[1:]))
    rate = int(r * N)
    assert rate >= 1, "rate must be >= 1 (r * prod(shape[1:]))"

    R = 8                                    # rows per grid step (vreg sublanes)
    CH = 128                                 # draws per chunk (one lane tile)
    Bp = -(-B // R) * R
    Np = -(-N // 128) * 128
    n_chunks = -(-rate // CH)
    rate_p = n_chunks * CH

    # Flatten + pad. Zero-padded rows/lanes get p == 0 -> never sampled -> 0 out.
    xf = jnp.pad(x.reshape(B, N), ((0, Bp - B), (0, Np - N)))

    # Dense uniforms: exactly `rate` draws per row; pad with 2.0 (never hits).
    key = jax.random.PRNGKey(seed)
    u = jax.random.uniform(key, (Bp, rate), dtype=jnp.float32)
    u = jnp.pad(u, ((0, 0), (0, rate_p - rate)), constant_values=2.0)

    out = pl.pallas_call(
        functools.partial(_sap_kernel, rate=rate, n_chunks=n_chunks),
        out_shape=jax.ShapeDtypeStruct((Bp, Np), x.dtype),
        grid=(Bp // R, n_chunks),
        in_specs=[
            pl.BlockSpec((R, Np), lambda i, c: (i, 0)),    # x rows (constant over c)
            pl.BlockSpec((R, CH), lambda i, c: (i, c)),    # uniform draw chunk
        ],
        out_specs=pl.BlockSpec((R, Np), lambda i, c: (i, 0)),
        scratch_shapes=[pltpu.VMEM((R, Np), jnp.float32)] * 4,   # cdf, lo, hv, samp
        compiler_params=pltpu.CompilerParams(
            dimension_semantics=("parallel", "arbitrary"),
            vmem_limit_bytes=32 << 20,
        ),
    )(xf, u)

    return out[:B, :N].reshape(x.shape)


if __name__ == "__main__":
    key = jax.random.PRNGKey(0)
    x = jax.random.normal(key, (2, 4, 16, 16), dtype=jnp.float32)  # NCHW
    r = 0.5

    y = sap_unit(x, r, seed=0, training=False)
    y = jax.block_until_ready(y)

    assert y.shape == x.shape and y.dtype == x.dtype
    assert bool(jnp.all(jnp.isfinite(y)))
    # sampled positions are scaled copies of x, unsampled positions are zero
    nonzero_frac = float(jnp.mean((y != 0).astype(jnp.float32)))
    assert 0.0 < nonzero_frac < 1.0
    # kept values have |y| >= |x| (scale = 1/P(kept) >= 1)
    kept = y != 0
    assert bool(jnp.all(jnp.where(kept, jnp.abs(y) + 1e-6 >= jnp.abs(x), True)))

    print("KERNEL_OK")
</pallas_src>

<mosaic_0001>
module attributes {stable_mosaic.version = 11 : i64} {
  func.func @_sap_kernel(%arg0: i32, %arg1: i32, %arg2: memref<8x1024xf32, #tpu.memory_space<vmem>>, %arg3: memref<8x128xf32, #tpu.memory_space<vmem>>, %arg4: memref<8x1024xf32, #tpu.memory_space<vmem>>, %arg5: memref<8x1024xf32, #tpu.memory_space<vmem>>, %arg6: memref<8x1024xf32, #tpu.memory_space<vmem>>, %arg7: memref<8x1024xf32, #tpu.memory_space<vmem>>, %arg8: memref<8x1024xf32, #tpu.memory_space<vmem>>) attributes {dimension_semantics = [#tpu.dimension_semantics<parallel>, #tpu.dimension_semantics<arbitrary>], iteration_bounds = array<i64: 1, 4>, scalar_prefetch = 0 : i64, scratch_operands = 4 : i64, tpu.core_type = #tpu.core_type<tc>, window_params = [{transform_indices = @transform_0, window_bounds = array<i64: 8, 1024>}, {transform_indices = @transform_1, window_bounds = array<i64: 8, 128>}, {transform_indices = @transform_2, window_bounds = array<i64: 8, 1024>}]} {
    %c0_i32 = arith.constant 0 : i32
    %0 = arith.cmpi eq, %arg1, %c0_i32 : i32
    %1 = arith.extui %0 : i1 to i32
    %c0_i32_0 = arith.constant 0 : i32
    %2 = arith.cmpi ne, %1, %c0_i32_0 : i32
    scf.if %2 {
      %c0_138 = arith.constant 0 : index
      %c0_139 = arith.constant 0 : index
      %1038 = vector.load %arg2[%c0_138, %c0_139] : memref<8x1024xf32, #tpu.memory_space<vmem>>, vector<8x1024xf32>
      %1039 = math.absf %1038 : vector<8x1024xf32>
      %cst_140 = arith.constant dense<0.000000e+00> : vector<8xf32>
      %1040 = vector.multi_reduction <add>, %1039, %cst_140 [1] : vector<8x1024xf32> to vector<8xf32>
      %1041 = vector.shape_cast %1040 : vector<8xf32> to vector<8x1xf32>
      %cst_141 = arith.constant 1.000000e-10 : f32
      %1042 = vector.broadcast %cst_141 : f32 to vector<8x1xf32>
      %1043 = arith.addf %1041, %1042 : vector<8x1xf32>
      %1044 = vector.broadcast %1043 : vector<8x1xf32> to vector<8x1024xf32>
      %1045 = arith.divf %1039, %1044 : vector<8x1024xf32>
      %1046 = tpu.iota {dimensions = array<i32: 0>} : vector<128x128xi32>
      %1047 = tpu.iota {dimensions = array<i32: 1>} : vector<128x128xi32>
      %1048 = arith.cmpi sle, %1046, %1047 : vector<128x128xi32>
      %1049 = arith.extui %1048 : vector<128x128xi1> to vector<128x128xi32>
      %1050 = arith.sitofp %1049 : vector<128x128xi32> to vector<128x128xf32>
      %cst_142 = arith.constant 0.000000e+00 : f32
      %1051 = vector.broadcast %cst_142 : f32 to vector<8x1xf32>
      %1052 = vector.extract_strided_slice %1045 {offsets = [0, 0], sizes = [8, 128], strides = [1, 1]} : vector<8x1024xf32> to vector<8x128xf32>
      %cst_143 = arith.constant dense<0.000000e+00> : vector<8x128xf32>
      %1053 = tpu.matmul %1052, %1050, %cst_143 {dimension_numbers = #tpu.dot_dimension_numbers<[1], [0], [0], [1], [0, 0, 1, 1], [], []>} : vector<8x128xf32>, vector<128x128xf32>, vector<8x128xf32> -> vector<8x128xf32>
      %1054 = vector.broadcast %1051 : vector<8x1xf32> to vector<8x128xf32>
      %1055 = arith.addf %1053, %1054 : vector<8x128xf32>
      %c0_144 = arith.constant 0 : index
      %c0_145 = arith.constant 0 : index
      %1056 = vector.load %arg5[%c0_144, %c0_145] : memref<8x1024xf32, #tpu.memory_space<vmem>>, vector<8x128xf32>
      tpu.vector_store %arg5[%c0_144, %c0_145], %1055 {strides = array<i32>} : memref<8x1024xf32, #tpu.memory_space<vmem>>, vector<8x128xf32>,
      %1057 = vector.extract_strided_slice %1055 {offsets = [0, 127], sizes = [8, 1], strides = [1, 1]} : vector<8x128xf32> to vector<8x1xf32>
      %1058 = vector.extract_strided_slice %1045 {offsets = [0, 128], sizes = [8, 128], strides = [1, 1]} : vector<8x1024xf32> to vector<8x128xf32>
      %cst_146 = arith.constant dense<0.000000e+00> : vector<8x128xf32>
      %1059 = tpu.matmul %1058, %1050, %cst_146 {dimension_numbers = #tpu.dot_dimension_numbers<[1], [0], [0], [1], [0, 0, 1, 1], [], []>} : vector<8x128xf32>, vector<128x128xf32>, vector<8x128xf32> -> vector<8x128xf32>
      %1060 = vector.broadcast %1057 : vector<8x1xf32> to vector<8x128xf32>
      %1061 = arith.addf %1059, %1060 : vector<8x128xf32>
      %c0_147 = arith.constant 0 : index
      %c128 = arith.constant 128 : index
      %1062 = vector.load %arg5[%c0_147, %c128] : memref<8x1024xf32, #tpu.memory_space<vmem>>, vector<8x128xf32>
      tpu.vector_store %arg5[%c0_147, %c128], %1061 {strides = array<i32>} : memref<8x1024xf32, #tpu.memory_space<vmem>>, vector<8x128xf32>,
      %1063 = vector.extract_strided_slice %1061 {offsets = [0, 127], sizes = [8, 1], strides = [1, 1]} : vector<8x128xf32> to vector<8x1xf32>
      %1064 = vector.extract_strided_slice %1045 {offsets = [0, 256], sizes = [8, 128], strides = [1, 1]} : vector<8x1024xf32> to vector<8x128xf32>
      %cst_148 = arith.constant dense<0.000000e+00> : vector<8x128xf32>
      %1065 = tpu.matmul %1064, %1050, %cst_148 {dimension_numbers = #tpu.dot_dimension_numbers<[1], [0], [0], [1], [0, 0, 1, 1], [], []>} : vector<8x128xf32>, vector<128x128xf32>, vector<8x128xf32> -> vector<8x128xf32>
      %1066 = vector.broadcast %1063 : vector<8x1xf32> to vector<8x128xf32>
      %1067 = arith.addf %1065, %1066 : vector<8x128xf32>
      %c0_149 = arith.constant 0 : index
      %c256 = arith.constant 256 : index
      %1068 = vector.load %arg5[%c0_149, %c256] : memref<8x1024xf32, #tpu.memory_space<vmem>>, vector<8x128xf32>
      tpu.vector_store %arg5[%c0_149, %c256], %1067 {strides = array<i32>} : memref<8x1024xf32, #tpu.memory_space<vmem>>, vector<8x128xf32>,
      %1069 = vector.extract_strided_slice %1067 {offsets = [0, 127], sizes = [8, 1], strides = [1, 1]} : vector<8x128xf32> to vector<8x1xf32>
      %1070 = vector.extract_strided_slice %1045 {offsets = [0, 384], sizes = [8, 128], strides = [1, 1]} : vector<8x1024xf32> to vector<8x128xf32>
      %cst_150 = arith.constant dense<0.000000e+00> : vector<8x128xf32>
      %1071 = tpu.matmul %1070, %1050, %cst_150 {dimension_numbers = #tpu.dot_dimension_numbers<[1], [0], [0], [1], [0, 0, 1, 1], [], []>} : vector<8x128xf32>, vector<128x128xf32>, vector<8x128xf32> -> vector<8x128xf32>
      %1072 = vector.broadcast %1069 : vector<8x1xf32> to vector<8x128xf32>
      %1073 = arith.addf %1071, %1072 : vector<8x128xf32>
      %c0_151 = arith.constant 0 : index
      %c384 = arith.constant 384 : index
      %1074 = vector.load %arg5[%c0_151, %c384] : memref<8x1024xf32, #tpu.memory_space<vmem>>, vector<8x128xf32>
      tpu.vector_store %arg5[%c0_151, %c384], %1073 {strides = array<i32>} : memref<8x1024xf32, #tpu.memory_space<vmem>>, vector<8x128xf32>,
      %1075 = vector.extract_strided_slice %1073 {offsets = [0, 127], sizes = [8, 1], strides = [1, 1]} : vector<8x128xf32> to vector<8x1xf32>
      %1076 = vector.extract_strided_slice %1045 {offsets = [0, 512], sizes = [8, 128], strides = [1, 1]} : vector<8x1024xf32> to vector<8x128xf32>
      %cst_152 = arith.constant dense<0.000000e+00> : vector<8x128xf32>
      %1077 = tpu.matmul %1076, %1050, %cst_152 {dimension_numbers = #tpu.dot_dimension_numbers<[1], [0], [0], [1], [0, 0, 1, 1], [], []>} : vector<8x128xf32>, vector<128x128xf32>, vector<8x128xf32> -> vector<8x128xf32>
      %1078 = vector.broadcast %1075 : vector<8x1xf32> to vector<8x128xf32>
      %1079 = arith.addf %1077, %1078 : vector<8x128xf32>
      %c0_153 = arith.constant 0 : index
      %c512 = arith.constant 512 : index
      %1080 = vector.load %arg5[%c0_153, %c512] : memref<8x1024xf32, #tpu.memory_space<vmem>>, vector<8x128xf32>
      tpu.vector_store %arg5[%c0_153, %c512], %1079 {strides = array<i32>} : memref<8x1024xf32, #tpu.memory_space<vmem>>, vector<8x128xf32>,
      %1081 = vector.extract_strided_slice %1079 {offsets = [0, 127], sizes = [8, 1], strides = [1, 1]} : vector<8x128xf32> to vector<8x1xf32>
      %1082 = vector.extract_strided_slice %1045 {offsets = [0, 640], sizes = [8, 128], strides = [1, 1]} : vector<8x1024xf32> to vector<8x128xf32>
      %cst_154 = arith.constant dense<0.000000e+00> : vector<8x128xf32>
      %1083 = tpu.matmul %1082, %1050, %cst_154 {dimension_numbers = #tpu.dot_dimension_numbers<[1], [0], [0], [1], [0, 0, 1, 1], [], []>} : vector<8x128xf32>, vector<128x128xf32>, vector<8x128xf32> -> vector<8x128xf32>
      %1084 = vector.broadcast %1081 : vector<8x1xf32> to vector<8x128xf32>
      %1085 = arith.addf %1083, %1084 : vector<8x128xf32>
      %c0_155 = arith.constant 0 : index
      %c640 = arith.constant 640 : index
      %1086 = vector.load %arg5[%c0_155, %c640] : memref<8x1024xf32, #tpu.memory_space<vmem>>, vector<8x128xf32>
      tpu.vector_store %arg5[%c0_155, %c640], %1085 {strides = array<i32>} : memref<8x1024xf32, #tpu.memory_space<vmem>>, vector<8x128xf32>,
      %1087 = vector.extract_strided_slice %1085 {offsets = [0, 127], sizes = [8, 1], strides = [1, 1]} : vector<8x128xf32> to vector<8x1xf32>
      %1088 = vector.extract_strided_slice %1045 {offsets = [0, 768], sizes = [8, 128], strides = [1, 1]} : vector<8x1024xf32> to vector<8x128xf32>
      %cst_156 = arith.constant dense<0.000000e+00> : vector<8x128xf32>
      %1089 = tpu.matmul %1088, %1050, %cst_156 {dimension_numbers = #tpu.dot_dimension_numbers<[1], [0], [0], [1], [0, 0, 1, 1], [], []>} : vector<8x128xf32>, vector<128x128xf32>, vector<8x128xf32> -> vector<8x128xf32>
      %1090 = vector.broadcast %1087 : vector<8x1xf32> to vector<8x128xf32>
      %1091 = arith.addf %1089, %1090 : vector<8x128xf32>
      %c0_157 = arith.constant 0 : index
      %c768 = arith.constant 768 : index
      %1092 = vector.load %arg5[%c0_157, %c768] : memref<8x1024xf32, #tpu.memory_space<vmem>>, vector<8x128xf32>
      tpu.vector_store %arg5[%c0_157, %c768], %1091 {strides = array<i32>} : memref<8x1024xf32, #tpu.memory_space<vmem>>, vector<8x128xf32>,
      %1093 = vector.extract_strided_slice %1091 {offsets = [0, 127], sizes = [8, 1], strides = [1, 1]} : vector<8x128xf32> to vector<8x1xf32>
      %1094 = vector.extract_strided_slice %1045 {offsets = [0, 896], sizes = [8, 128], strides = [1, 1]} : vector<8x1024xf32> to vector<8x128xf32>
      %cst_158 = arith.constant dense<0.000000e+00> : vector<8x128xf32>
      %1095 = tpu.matmul %1094, %1050, %cst_158 {dimension_numbers = #tpu.dot_dimension_numbers<[1], [0], [0], [1], [0, 0, 1, 1], [], []>} : vector<8x128xf32>, vector<128x128xf32>, vector<8x128xf32> -> vector<8x128xf32>
      %1096 = vector.broadcast %1093 : vector<8x1xf32> to vector<8x128xf32>
      %1097 = arith.addf %1095, %1096 : vector<8x128xf32>
      %c0_159 = arith.constant 0 : index
      %c896 = arith.constant 896 : index
      %1098 = vector.load %arg5[%c0_159, %c896] : memref<8x1024xf32, #tpu.memory_space<vmem>>, vector<8x128xf32>
      tpu.vector_store %arg5[%c0_159, %c896], %1097 {strides = array<i32>} : memref<8x1024xf32, #tpu.memory_space<vmem>>, vector<8x128xf32>,
      %c0_160 = arith.constant 0 : index
      %c0_161 = arith.constant 0 : index
      %1099 = vector.load %arg5[%c0_160, %c0_161] : memref<8x1024xf32, #tpu.memory_space<vmem>>, vector<8x1024xf32>
      %1100 = arith.subf %1099, %1045 : vector<8x1024xf32>
      %c0_162 = arith.constant 0 : index
      %c0_163 = arith.constant 0 : index
      %1101 = vector.load %arg6[%c0_162, %c0_163] : memref<8x1024xf32, #tpu.memory_space<vmem>>, vector<8x1024xf32>
      tpu.vector_store %arg6[%c0_162, %c0_163], %1100 {strides = array<i32>} : memref<8x1024xf32, #tpu.memory_space<vmem>>, vector<8x1024xf32>,
      %cst_164 = arith.constant 1.000000e+00 : f32
      %1102 = vector.broadcast %cst_164 : f32 to vector<8x1024xf32>
      %1103 = arith.subf %1102, %1045 : vector<8x1024xf32>
      %1104 = math.log %1103 : vector<8x1024xf32>
      %cst_165 = arith.constant 5.120000e+02 : f32
      %1105 = vector.broadcast %cst_165 : f32 to vector<8x1024xf32>
      %1106 = arith.mulf %1105, %1104 : vector<8x1024xf32>
      %1107 = math.exp %1106 : vector<8x1024xf32>
      %cst_166 = arith.constant 1.000000e+00 : f32
      %1108 = vector.broadcast %cst_166 : f32 to vector<8x1024xf32>
      %1109 = arith.subf %1108, %1107 : vector<8x1024xf32>
      %cst_167 = arith.constant 0.000000e+00 : f32
      %1110 = vector.broadcast %cst_167 : f32 to vector<8x1024xf32>
      %1111 = arith.cmpf ogt, %1109, %1110 : vector<8x1024xf32>
      %cst_168 = arith.constant 1.000000e+00 : f32
      %1112 = vector.broadcast %cst_168 : f32 to vector<8x1024xf32>
      %1113 = arith.select %1111, %1109, %1112 : vector<8x1024xi1>, vector<8x1024xf32>
      %cst_169 = arith.constant 1.000000e+00 : f32
      %1114 = vector.broadcast %cst_169 : f32 to vector<8x1024xf32>
      %1115 = arith.divf %1114, %1113 : vector<8x1024xf32>
      %cst_170 = arith.constant 0.000000e+00 : f32
      %1116 = vector.broadcast %cst_170 : f32 to vector<8x1024xf32>
      %1117 = arith.cmpf ogt, %1045, %1116 : vector<8x1024xf32>
      %cst_171 = arith.constant 5.120000e+02 : f32
      %1118 = vector.broadcast %cst_171 : f32 to vector<8x1024xf32>
      %1119 = arith.mulf %1118, %1045 : vector<8x1024xf32>
      %cst_172 = arith.constant 1.000000e+00 : f32
      %1120 = vector.broadcast %cst_172 : f32 to vector<8x1024xf32>
      %1121 = arith.select %1117, %1119, %1120 : vector<8x1024xi1>, vector<8x1024xf32>
      %cst_173 = arith.constant 1.000000e+00 : f32
      %1122 = vector.broadcast %cst_173 : f32 to vector<8x1024xf32>
      %1123 = arith.divf %1122, %1121 : vector<8x1024xf32>
      %cst_174 = arith.constant 0.000000e+00 : f32
      %1124 = vector.broadcast %cst_174 : f32 to vector<8x1024xf32>
      %1125 = arith.cmpf ogt, %1109, %1124 : vector<8x1024xf32>
      %cst_175 = arith.constant 0.000000e+00 : f32
      %1126 = vector.broadcast %cst_175 : f32 to vector<8x1024xf32>
      %1127 = arith.cmpf ogt, %1045, %1126 : vector<8x1024xf32>
      %cst_176 = arith.constant 0.000000e+00 : f32
      %1128 = vector.broadcast %cst_176 : f32 to vector<8x1024xf32>
      %1129 = arith.select %1127, %1123, %1128 : vector<8x1024xi1>, vector<8x1024xf32>
      %1130 = arith.select %1125, %1115, %1129 : vector<8x1024xi1>, vector<8x1024xf32>
      %1131 = arith.mulf %1038, %1130 : vector<8x1024xf32>
      %c0_177 = arith.constant 0 : index
      %c0_178 = arith.constant 0 : index
      %1132 = vector.load %arg7[%c0_177, %c0_178] : memref<8x1024xf32, #tpu.memory_space<vmem>>, vector<8x1024xf32>
      tpu.vector_store %arg7[%c0_177, %c0_178], %1131 {strides = array<i32>} : memref<8x1024xf32, #tpu.memory_space<vmem>>, vector<8x1024xf32>,
      %cst_179 = arith.constant 0.000000e+00 : f32
      %1133 = vector.broadcast %cst_179 : f32 to vector<8x1024xf32>
      %c0_180 = arith.constant 0 : index
      %c0_181 = arith.constant 0 : index
      %1134 = vector.load %arg8[%c0_180, %c0_181] : memref<8x1024xf32, #tpu.memory_space<vmem>>, vector<8x1024xf32>
      tpu.vector_store %arg8[%c0_180, %c0_181], %1133 {strides = array<i32>} : memref<8x1024xf32, #tpu.memory_space<vmem>>, vector<8x1024xf32>,
    } else {
    }
    %c0 = arith.constant 0 : index
    %c0_1 = arith.constant 0 : index
    %3 = vector.load %arg5[%c0, %c0_1] : memref<8x1024xf32, #tpu.memory_space<vmem>>, vector<8x1024xf32>
    %c0_2 = arith.constant 0 : index
    %c0_3 = arith.constant 0 : index
    %4 = vector.load %arg6[%c0_2, %c0_3] : memref<8x1024xf32, #tpu.memory_space<vmem>>, vector<8x1024xf32>
    %5 = vector.extract_strided_slice %3 {offsets = [0, 1023], sizes = [8, 1], strides = [1, 1]} : vector<8x1024xf32> to vector<8x1xf32>
    %c0_4 = arith.constant 0 : index
    %c0_5 = arith.constant 0 : index
    %6 = vector.load %arg3[%c0_4, %c0_5] : memref<8x128xf32, #tpu.memory_space<vmem>>, vector<8x128xf32>
    %7 = vector.broadcast %5 : vector<8x1xf32> to vector<8x128xf32>
    %8 = arith.mulf %6, %7 : vector<8x128xf32>
    %c0_6 = arith.constant 0 : index
    %c0_7 = arith.constant 0 : index
    %9 = vector.load %arg8[%c0_6, %c0_7] : memref<8x1024xf32, #tpu.memory_space<vmem>>, vector<8x1024xf32>
    %10 = vector.extract_strided_slice %8 {offsets = [0, 0], sizes = [8, 1], strides = [1, 1]} : vector<8x128xf32> to vector<8x1xf32>
    %11 = vector.broadcast %10 : vector<8x1xf32> to vector<8x1024xf32>
    %12 = arith.cmpf oge, %11, %4 : vector<8x1024xf32>
    %13 = vector.broadcast %10 : vector<8x1xf32> to vector<8x1024xf32>
    %14 = arith.cmpf olt, %13, %3 : vector<8x1024xf32>
    %15 = arith.andi %12, %14 : vector<8x1024xi1>
    %cst = arith.constant 1.000000e+00 : f32
    %16 = vector.broadcast %cst : f32 to vector<8x1024xf32>
    %17 = arith.select %15, %16, %9 : vector<8x1024xi1>, vector<8x1024xf32>
    %18 = vector.extract_strided_slice %8 {offsets = [0, 1], sizes = [8, 1], strides = [1, 1]} : vector<8x128xf32> to vector<8x1xf32>
    %19 = vector.broadcast %18 : vector<8x1xf32> to vector<8x1024xf32>
    %20 = arith.cmpf oge, %19, %4 : vector<8x1024xf32>
    %21 = vector.broadcast %18 : vector<8x1xf32> to vector<8x1024xf32>
    %22 = arith.cmpf olt, %21, %3 : vector<8x1024xf32>
    %23 = arith.andi %20, %22 : vector<8x1024xi1>
    %cst_8 = arith.constant 1.000000e+00 : f32
    %24 = vector.broadcast %cst_8 : f32 to vector<8x1024xf32>
    %25 = arith.select %23, %24, %17 : vector<8x1024xi1>, vector<8x1024xf32>
    %26 = vector.extract_strided_slice %8 {offsets = [0, 2], sizes = [8, 1], strides = [1, 1]} : vector<8x128xf32> to vector<8x1xf32>
    %27 = vector.broadcast %26 : vector<8x1xf32> to vector<8x1024xf32>
    %28 = arith.cmpf oge, %27, %4 : vector<8x1024xf32>
    %29 = vector.broadcast %26 : vector<8x1xf32> to vector<8x1024xf32>
    %30 = arith.cmpf olt, %29, %3 : vector<8x1024xf32>
    %31 = arith.andi %28, %30 : vector<8x1024xi1>
    %cst_9 = arith.constant 1.000000e+00 : f32
    %32 = vector.broadcast %cst_9 : f32 to vector<8x1024xf32>
    %33 = arith.select %31, %32, %25 : vector<8x1024xi1>, vector<8x1024xf32>
    %34 = vector.extract_strided_slice %8 {offsets = [0, 3], sizes = [8, 1], strides = [1, 1]} : vector<8x128xf32> to vector<8x1xf32>
    %35 = vector.broadcast %34 : vector<8x1xf32> to vector<8x1024xf32>
    %36 = arith.cmpf oge, %35, %4 : vector<8x1024xf32>
    %37 = vector.broadcast %34 : vector<8x1xf32> to vector<8x1024xf32>
    %38 = arith.cmpf olt, %37, %3 : vector<8x1024xf32>
    %39 = arith.andi %36, %38 : vector<8x1024xi1>
    %cst_10 = arith.constant 1.000000e+00 : f32
    %40 = vector.broadcast %cst_10 : f32 to vector<8x1024xf32>
    %41 = arith.select %39, %40, %33 : vector<8x1024xi1>, vector<8x1024xf32>
    %42 = vector.extract_strided_slice %8 {offsets = [0, 4], sizes = [8, 1], strides = [1, 1]} : vector<8x128xf32> to vector<8x1xf32>
    %43 = vector.broadcast %42 : vector<8x1xf32> to vector<8x1024xf32>
    %44 = arith.cmpf oge, %43, %4 : vector<8x1024xf32>
    %45 = vector.broadcast %42 : vector<8x1xf32> to vector<8x1024xf32>
    %46 = arith.cmpf olt, %45, %3 : vector<8x1024xf32>
    %47 = arith.andi %44, %46 : vector<8x1024xi1>
    %cst_11 = arith.constant 1.000000e+00 : f32
    %48 = vector.broadcast %cst_11 : f32 to vector<8x1024xf32>
    %49 = arith.select %47, %48, %41 : vector<8x1024xi1>, vector<8x1024xf32>
    %50 = vector.extract_strided_slice %8 {offsets = [0, 5], sizes = [8, 1], strides = [1, 1]} : vector<8x128xf32> to vector<8x1xf32>
    %51 = vector.broadcast %50 : vector<8x1xf32> to vector<8x1024xf32>
    %52 = arith.cmpf oge, %51, %4 : vector<8x1024xf32>
    %53 = vector.broadcast %50 : vector<8x1xf32> to vector<8x1024xf32>
    %54 = arith.cmpf olt, %53, %3 : vector<8x1024xf32>
    %55 = arith.andi %52, %54 : vector<8x1024xi1>
    %cst_12 = arith.constant 1.000000e+00 : f32
    %56 = vector.broadcast %cst_12 : f32 to vector<8x1024xf32>
    %57 = arith.select %55, %56, %49 : vector<8x1024xi1>, vector<8x1024xf32>
    %58 = vector.extract_strided_slice %8 {offsets = [0, 6], sizes = [8, 1], strides = [1, 1]} : vector<8x128xf32> to vector<8x1xf32>
    %59 = vector.broadcast %58 : vector<8x1xf32> to vector<8x1024xf32>
    %60 = arith.cmpf oge, %59, %4 : vector<8x1024xf32>
    %61 = vector.broadcast %58 : vector<8x1xf32> to vector<8x1024xf32>
    %62 = arith.cmpf olt, %61, %3 : vector<8x1024xf32>
    %63 = arith.andi %60, %62 : vector<8x1024xi1>
    %cst_13 = arith.constant 1.000000e+00 : f32
    %64 = vector.broadcast %cst_13 : f32 to vector<8x1024xf32>
    %65 = arith.select %63, %64, %57 : vector<8x1024xi1>, vector<8x1024xf32>
    %66 = vector.extract_strided_slice %8 {offsets = [0, 7], sizes = [8, 1], strides = [1, 1]} : vector<8x128xf32> to vector<8x1xf32>
    %67 = vector.broadcast %66 : vector<8x1xf32> to vector<8x1024xf32>
    %68 = arith.cmpf oge, %67, %4 : vector<8x1024xf32>
    %69 = vector.broadcast %66 : vector<8x1xf32> to vector<8x1024xf32>
    %70 = arith.cmpf olt, %69, %3 : vector<8x1024xf32>
    %71 = arith.andi %68, %70 : vector<8x1024xi1>
    %cst_14 = arith.constant 1.000000e+00 : f32
    %72 = vector.broadcast %cst_14 : f32 to vector<8x1024xf32>
    %73 = arith.select %71, %72, %65 : vector<8x1024xi1>, vector<8x1024xf32>
    %74 = vector.extract_strided_slice %8 {offsets = [0, 8], sizes = [8, 1], strides = [1, 1]} : vector<8x128xf32> to vector<8x1xf32>
    %75 = vector.broadcast %74 : vector<8x1xf32> to vector<8x1024xf32>
    %76 = arith.cmpf oge, %75, %4 : vector<8x1024xf32>
    %77 = vector.broadcast %74 : vector<8x1xf32> to vector<8x1024xf32>
    %78 = arith.cmpf olt, %77, %3 : vector<8x1024xf32>
    %79 = arith.andi %76, %78 : vector<8x1024xi1>
    %cst_15 = arith.constant 1.000000e+00 : f32
    %80 = vector.broadcast %cst_15 : f32 to vector<8x1024xf32>
    %81 = arith.select %79, %80, %73 : vector<8x1024xi1>, vector<8x1024xf32>
    %82 = vector.extract_strided_slice %8 {offsets = [0, 9], sizes = [8, 1], strides = [1, 1]} : vector<8x128xf32> to vector<8x1xf32>
    %83 = vector.broadcast %82 : vector<8x1xf32> to vector<8x1024xf32>
    %84 = arith.cmpf oge, %83, %4 : vector<8x1024xf32>
    %85 = vector.broadcast %82 : vector<8x1xf32> to vector<8x1024xf32>
    %86 = arith.cmpf olt, %85, %3 : vector<8x1024xf32>
    %87 = arith.andi %84, %86 : vector<8x1024xi1>
    %cst_16 = arith.constant 1.000000e+00 : f32
    %88 = vector.broadcast %cst_16 : f32 to vector<8x1024xf32>
    %89 = arith.select %87, %88, %81 : vector<8x1024xi1>, vector<8x1024xf32>
    %90 = vector.extract_strided_slice %8 {offsets = [0, 10], sizes = [8, 1], strides = [1, 1]} : vector<8x128xf32> to vector<8x1xf32>
    %91 = vector.broadcast %90 : vector<8x1xf32> to vector<8x1024xf32>
    %92 = arith.cmpf oge, %91, %4 : vector<8x1024xf32>
    %93 = vector.broadcast %90 : vector<8x1xf32> to vector<8x1024xf32>
    %94 = arith.cmpf olt, %93, %3 : vector<8x1024xf32>
    %95 = arith.andi %92, %94 : vector<8x1024xi1>
    %cst_17 = arith.constant 1.000000e+00 : f32
    %96 = vector.broadcast %cst_17 : f32 to vector<8x1024xf32>
    %97 = arith.select %95, %96, %89 : vector<8x1024xi1>, vector<8x1024xf32>
    %98 = vector.extract_strided_slice %8 {offsets = [0, 11], sizes = [8, 1], strides = [1, 1]} : vector<8x128xf32> to vector<8x1xf32>
    %99 = vector.broadcast %98 : vector<8x1xf32> to vector<8x1024xf32>
    %100 = arith.cmpf oge, %99, %4 : vector<8x1024xf32>
    %101 = vector.broadcast %98 : vector<8x1xf32> to vector<8x1024xf32>
    %102 = arith.cmpf olt, %101, %3 : vector<8x1024xf32>
    %103 = arith.andi %100, %102 : vector<8x1024xi1>
    %cst_18 = arith.constant 1.000000e+00 : f32
    %104 = vector.broadcast %cst_18 : f32 to vector<8x1024xf32>
    %105 = arith.select %103, %104, %97 : vector<8x1024xi1>, vector<8x1024xf32>
    %106 = vector.extract_strided_slice %8 {offsets = [0, 12], sizes = [8, 1], strides = [1, 1]} : vector<8x128xf32> to vector<8x1xf32>
    %107 = vector.broadcast %106 : vector<8x1xf32> to vector<8x1024xf32>
    %108 = arith.cmpf oge, %107, %4 : vector<8x1024xf32>
    %109 = vector.broadcast %106 : vector<8x1xf32> to vector<8x1024xf32>
    %110 = arith.cmpf olt, %109, %3 : vector<8x1024xf32>
    %111 = arith.andi %108, %110 : vector<8x1024xi1>
    %cst_19 = arith.constant 1.000000e+00 : f32
    %112 = vector.broadcast %cst_19 : f32 to vector<8x1024xf32>
    %113 = arith.select %111, %112, %105 : vector<8x1024xi1>, vector<8x1024xf32>
    %114 = vector.extract_strided_slice %8 {offsets = [0, 13], sizes = [8, 1], strides = [1, 1]} : vector<8x128xf32> to vector<8x1xf32>
    %115 = vector.broadcast %114 : vector<8x1xf32> to vector<8x1024xf32>
    %116 = arith.cmpf oge, %115, %4 : vector<8x1024xf32>
    %117 = vector.broadcast %114 : vector<8x1xf32> to vector<8x1024xf32>
    %118 = arith.cmpf olt, %117, %3 : vector<8x1024xf32>
    %119 = arith.andi %116, %118 : vector<8x1024xi1>
    %cst_20 = arith.constant 1.000000e+00 : f32
    %120 = vector.broadcast %cst_20 : f32 to vector<8x1024xf32>
    %121 = arith.select %119, %120, %113 : vector<8x1024xi1>, vector<8x1024xf32>
    %122 = vector.extract_strided_slice %8 {offsets = [0, 14], sizes = [8, 1], strides = [1, 1]} : vector<8x128xf32> to vector<8x1xf32>
    %123 = vector.broadcast %122 : vector<8x1xf32> to vector<8x1024xf32>
    %124 = arith.cmpf oge, %123, %4 : vector<8x1024xf32>
    %125 = vector.broadcast %122 : vector<8x1xf32> to vector<8x1024xf32>
    %126 = arith.cmpf olt, %125, %3 : vector<8x1024xf32>
    %127 = arith.andi %124, %126 : vector<8x1024xi1>
    %cst_21 = arith.constant 1.000000e+00 : f32
    %128 = vector.broadcast %cst_21 : f32 to vector<8x1024xf32>
    %129 = arith.select %127, %128, %121 : vector<8x1024xi1>, vector<8x1024xf32>
    %130 = vector.extract_strided_slice %8 {offsets = [0, 15], sizes = [8, 1], strides = [1, 1]} : vector<8x128xf32> to vector<8x1xf32>
    %131 = vector.broadcast %130 : vector<8x1xf32> to vector<8x1024xf32>
    %132 = arith.cmpf oge, %131, %4 : vector<8x1024xf32>
    %133 = vector.broadcast %130 : vector<8x1xf32> to vector<8x1024xf32>
    %134 = arith.cmpf olt, %133, %3 : vector<8x1024xf32>
    %135 = arith.andi %132, %134 : vector<8x1024xi1>
    %cst_22 = arith.constant 1.000000e+00 : f32
    %136 = vector.broadcast %cst_22 : f32 to vector<8x1024xf32>
    %137 = arith.select %135, %136, %129 : vector<8x1024xi1>, vector<8x1024xf32>
    %138 = vector.extract_strided_slice %8 {offsets = [0, 16], sizes = [8, 1], strides = [1, 1]} : vector<8x128xf32> to vector<8x1xf32>
    %139 = vector.broadcast %138 : vector<8x1xf32> to vector<8x1024xf32>
    %140 = arith.cmpf oge, %139, %4 : vector<8x1024xf32>
    %141 = vector.broadcast %138 : vector<8x1xf32> to vector<8x1024xf32>
    %142 = arith.cmpf olt, %141, %3 : vector<8x1024xf32>
    %143 = arith.andi %140, %142 : vector<8x1024xi1>
    %cst_23 = arith.constant 1.000000e+00 : f32
    %144 = vector.broadcast %cst_23 : f32 to vector<8x1024xf32>
    %145 = arith.select %143, %144, %137 : vector<8x1024xi1>, vector<8x1024xf32>
    %146 = vector.extract_strided_slice %8 {offsets = [0, 17], sizes = [8, 1], strides = [1, 1]} : vector<8x128xf32> to vector<8x1xf32>
    %147 = vector.broadcast %146 : vector<8x1xf32> to vector<8x1024xf32>
    %148 = arith.cmpf oge, %147, %4 : vector<8x1024xf32>
    %149 = vector.broadcast %146 : vector<8x1xf32> to vector<8x1024xf32>
    %150 = arith.cmpf olt, %149, %3 : vector<8x1024xf32>
    %151 = arith.andi %148, %150 : vector<8x1024xi1>
    %cst_24 = arith.constant 1.000000e+00 : f32
    %152 = vector.broadcast %cst_24 : f32 to vector<8x1024xf32>
    %153 = arith.select %151, %152, %145 : vector<8x1024xi1>, vector<8x1024xf32>
    %154 = vector.extract_strided_slice %8 {offsets = [0, 18], sizes = [8, 1], strides = [1, 1]} : vector<8x128xf32> to vector<8x1xf32>
    %155 = vector.broadcast %154 : vector<8x1xf32> to vector<8x1024xf32>
    %156 = arith.cmpf oge, %155, %4 : vector<8x1024xf32>
    %157 = vector.broadcast %154 : vector<8x1xf32> to vector<8x1024xf32>
    %158 = arith.cmpf olt, %157, %3 : vector<8x1024xf32>
    %159 = arith.andi %156, %158 : vector<8x1024xi1>
    %cst_25 = arith.constant 1.000000e+00 : f32
    %160 = vector.broadcast %cst_25 : f32 to vector<8x1024xf32>
    %161 = arith.select %159, %160, %153 : vector<8x1024xi1>, vector<8x1024xf32>
    %162 = vector.extract_strided_slice %8 {offsets = [0, 19], sizes = [8, 1], strides = [1, 1]} : vector<8x128xf32> to vector<8x1xf32>
    %163 = vector.broadcast %162 : vector<8x1xf32> to vector<8x1024xf32>
    %164 = arith.cmpf oge, %163, %4 : vector<8x1024xf32>
    %165 = vector.broadcast %162 : vector<8x1xf32> to vector<8x1024xf32>
    %166 = arith.cmpf olt, %165, %3 : vector<8x1024xf32>
    %167 = arith.andi %164, %166 : vector<8x1024xi1>
    %cst_26 = arith.constant 1.000000e+00 : f32
    %168 = vector.broadcast %cst_26 : f32 to vector<8x1024xf32>
    %169 = arith.select %167, %168, %161 : vector<8x1024xi1>, vector<8x1024xf32>
    %170 = vector.extract_strided_slice %8 {offsets = [0, 20], sizes = [8, 1], strides = [1, 1]} : vector<8x128xf32> to vector<8x1xf32>
    %171 = vector.broadcast %170 : vector<8x1xf32> to vector<8x1024xf32>
    %172 = arith.cmpf oge, %171, %4 : vector<8x1024xf32>
    %173 = vector.broadcast %170 : vector<8x1xf32> to vector<8x1024xf32>
    %174 = arith.cmpf olt, %173, %3 : vector<8x1024xf32>
    %175 = arith.andi %172, %174 : vector<8x1024xi1>
    %cst_27 = arith.constant 1.000000e+00 : f32
    %176 = vector.broadcast %cst_27 : f32 to vector<8x1024xf32>
    %177 = arith.select %175, %176, %169 : vector<8x1024xi1>, vector<8x1024xf32>
    %178 = vector.extract_strided_slice %8 {offsets = [0, 21], sizes = [8, 1], strides = [1, 1]} : vector<8x128xf32> to vector<8x1xf32>
    %179 = vector.broadcast %178 : vector<8x1xf32> to vector<8x1024xf32>
    %180 = arith.cmpf oge, %179, %4 : vector<8x1024xf32>
    %181 = vector.broadcast %178 : vector<8x1xf32> to vector<8x1024xf32>
    %182 = arith.cmpf olt, %181, %3 : vector<8x1024xf32>
    %183 = arith.andi %180, %182 : vector<8x1024xi1>
    %cst_28 = arith.constant 1.000000e+00 : f32
    %184 = vector.broadcast %cst_28 : f32 to vector<8x1024xf32>
    %185 = arith.select %183, %184, %177 : vector<8x1024xi1>, vector<8x1024xf32>
    %186 = vector.extract_strided_slice %8 {offsets = [0, 22], sizes = [8, 1], strides = [1, 1]} : vector<8x128xf32> to vector<8x1xf32>
    %187 = vector.broadcast %186 : vector<8x1xf32> to vector<8x1024xf32>
    %188 = arith.cmpf oge, %187, %4 : vector<8x1024xf32>
    %189 = vector.broadcast %186 : vector<8x1xf32> to vector<8x1024xf32>
    %190 = arith.cmpf olt, %189, %3 : vector<8x1024xf32>
    %191 = arith.andi %188, %190 : vector<8x1024xi1>
    %cst_29 = arith.constant 1.000000e+00 : f32
    %192 = vector.broadcast %cst_29 : f32 to vector<8x1024xf32>
    %193 = arith.select %191, %192, %185 : vector<8x1024xi1>, vector<8x1024xf32>
    %194 = vector.extract_strided_slice %8 {offsets = [0, 23], sizes = [8, 1], strides = [1, 1]} : vector<8x128xf32> to vector<8x1xf32>
    %195 = vector.broadcast %194 : vector<8x1xf32> to vector<8x1024xf32>
    %196 = arith.cmpf oge, %195, %4 : vector<8x1024xf32>
    %197 = vector.broadcast %194 : vector<8x1xf32> to vector<8x1024xf32>
    %198 = arith.cmpf olt, %197, %3 : vector<8x1024xf32>
    %199 = arith.andi %196, %198 : vector<8x1024xi1>
    %cst_30 = arith.constant 1.000000e+00 : f32
    %200 = vector.broadcast %cst_30 : f32 to vector<8x1024xf32>
    %201 = arith.select %199, %200, %193 : vector<8x1024xi1>, vector<8x1024xf32>
    %202 = vector.extract_strided_slice %8 {offsets = [0, 24], sizes = [8, 1], strides = [1, 1]} : vector<8x128xf32> to vector<8x1xf32>
    %203 = vector.broadcast %202 : vector<8x1xf32> to vector<8x1024xf32>
    %204 = arith.cmpf oge, %203, %4 : vector<8x1024xf32>
    %205 = vector.broadcast %202 : vector<8x1xf32> to vector<8x1024xf32>
    %206 = arith.cmpf olt, %205, %3 : vector<8x1024xf32>
    %207 = arith.andi %204, %206 : vector<8x1024xi1>
    %cst_31 = arith.constant 1.000000e+00 : f32
    %208 = vector.broadcast %cst_31 : f32 to vector<8x1024xf32>
    %209 = arith.select %207, %208, %201 : vector<8x1024xi1>, vector<8x1024xf32>
    %210 = vector.extract_strided_slice %8 {offsets = [0, 25], sizes = [8, 1], strides = [1, 1]} : vector<8x128xf32> to vector<8x1xf32>
    %211 = vector.broadcast %210 : vector<8x1xf32> to vector<8x1024xf32>
    %212 = arith.cmpf oge, %211, %4 : vector<8x1024xf32>
    %213 = vector.broadcast %210 : vector<8x1xf32> to vector<8x1024xf32>
    %214 = arith.cmpf olt, %213, %3 : vector<8x1024xf32>
    %215 = arith.andi %212, %214 : vector<8x1024xi1>
    %cst_32 = arith.constant 1.000000e+00 : f32
    %216 = vector.broadcast %cst_32 : f32 to vector<8x1024xf32>
    %217 = arith.select %215, %216, %209 : vector<8x1024xi1>, vector<8x1024xf32>
    %218 = vector.extract_strided_slice %8 {offsets = [0, 26], sizes = [8, 1], strides = [1, 1]} : vector<8x128xf32> to vector<8x1xf32>
    %219 = vector.broadcast %218 : vector<8x1xf32> to vector<8x1024xf32>
    %220 = arith.cmpf oge, %219, %4 : vector<8x1024xf32>
    %221 = vector.broadcast %218 : vector<8x1xf32> to vector<8x1024xf32>
    %222 = arith.cmpf olt, %221, %3 : vector<8x1024xf32>
    %223 = arith.andi %220, %222 : vector<8x1024xi1>
    %cst_33 = arith.constant 1.000000e+00 : f32
    %224 = vector.broadcast %cst_33 : f32 to vector<8x1024xf32>
    %225 = arith.select %223, %224, %217 : vector<8x1024xi1>, vector<8x1024xf32>
    %226 = vector.extract_strided_slice %8 {offsets = [0, 27], sizes = [8, 1], strides = [1, 1]} : vector<8x128xf32> to vector<8x1xf32>
    %227 = vector.broadcast %226 : vector<8x1xf32> to vector<8x1024xf32>
    %228 = arith.cmpf oge, %227, %4 : vector<8x1024xf32>
    %229 = vector.broadcast %226 : vector<8x1xf32> to vector<8x1024xf32>
    %230 = arith.cmpf olt, %229, %3 : vector<8x1024xf32>
    %231 = arith.andi %228, %230 : vector<8x1024xi1>
    %cst_34 = arith.constant 1.000000e+00 : f32
    %232 = vector.broadcast %cst_34 : f32 to vector<8x1024xf32>
    %233 = arith.select %231, %232, %225 : vector<8x1024xi1>, vector<8x1024xf32>
    %234 = vector.extract_strided_slice %8 {offsets = [0, 28], sizes = [8, 1], strides = [1, 1]} : vector<8x128xf32> to vector<8x1xf32>
    %235 = vector.broadcast %234 : vector<8x1xf32> to vector<8x1024xf32>
    %236 = arith.cmpf oge, %235, %4 : vector<8x1024xf32>
    %237 = vector.broadcast %234 : vector<8x1xf32> to vector<8x1024xf32>
    %238 = arith.cmpf olt, %237, %3 : vector<8x1024xf32>
    %239 = arith.andi %236, %238 : vector<8x1024xi1>
    %cst_35 = arith.constant 1.000000e+00 : f32
    %240 = vector.broadcast %cst_35 : f32 to vector<8x1024xf32>
    %241 = arith.select %239, %240, %233 : vector<8x1024xi1>, vector<8x1024xf32>
    %242 = vector.extract_strided_slice %8 {offsets = [0, 29], sizes = [8, 1], strides = [1, 1]} : vector<8x128xf32> to vector<8x1xf32>
    %243 = vector.broadcast %242 : vector<8x1xf32> to vector<8x1024xf32>
    %244 = arith.cmpf oge, %243, %4 : vector<8x1024xf32>
    %245 = vector.broadcast %242 : vector<8x1xf32> to vector<8x1024xf32>
    %246 = arith.cmpf olt, %245, %3 : vector<8x1024xf32>
    %247 = arith.andi %244, %246 : vector<8x1024xi1>
    %cst_36 = arith.constant 1.000000e+00 : f32
    %248 = vector.broadcast %cst_36 : f32 to vector<8x1024xf32>
    %249 = arith.select %247, %248, %241 : vector<8x1024xi1>, vector<8x1024xf32>
    %250 = vector.extract_strided_slice %8 {offsets = [0, 30], sizes = [8, 1], strides = [1, 1]} : vector<8x128xf32> to vector<8x1xf32>
    %251 = vector.broadcast %250 : vector<8x1xf32> to vector<8x1024xf32>
    %252 = arith.cmpf oge, %251, %4 : vector<8x1024xf32>
    %253 = vector.broadcast %250 : vector<8x1xf32> to vector<8x1024xf32>
    %254 = arith.cmpf olt, %253, %3 : vector<8x1024xf32>
    %255 = arith.andi %252, %254 : vector<8x1024xi1>
    %cst_37 = arith.constant 1.000000e+00 : f32
    %256 = vector.broadcast %cst_37 : f32 to vector<8x1024xf32>
    %257 = arith.select %255, %256, %249 : vector<8x1024xi1>, vector<8x1024xf32>
    %258 = vector.extract_strided_slice %8 {offsets = [0, 31], sizes = [8, 1], strides = [1, 1]} : vector<8x128xf32> to vector<8x1xf32>
    %259 = vector.broadcast %258 : vector<8x1xf32> to vector<8x1024xf32>
    %260 = arith.cmpf oge, %259, %4 : vector<8x1024xf32>
    %261 = vector.broadcast %258 : vector<8x1xf32> to vector<8x1024xf32>
    %262 = arith.cmpf olt, %261, %3 : vector<8x1024xf32>
    %263 = arith.andi %260, %262 : vector<8x1024xi1>
    %cst_38 = arith.constant 1.000000e+00 : f32
    %264 = vector.broadcast %cst_38 : f32 to vector<8x1024xf32>
    %265 = arith.select %263, %264, %257 : vector<8x1024xi1>, vector<8x1024xf32>
    %266 = vector.extract_strided_slice %8 {offsets = [0, 32], sizes = [8, 1], strides = [1, 1]} : vector<8x128xf32> to vector<8x1xf32>
    %267 = vector.broadcast %266 : vector<8x1xf32> to vector<8x1024xf32>
    %268 = arith.cmpf oge, %267, %4 : vector<8x1024xf32>
    %269 = vector.broadcast %266 : vector<8x1xf32> to vector<8x1024xf32>
    %270 = arith.cmpf olt, %269, %3 : vector<8x1024xf32>
    %271 = arith.andi %268, %270 : vector<8x1024xi1>
    %cst_39 = arith.constant 1.000000e+00 : f32
    %272 = vector.broadcast %cst_39 : f32 to vector<8x1024xf32>
    %273 = arith.select %271, %272, %265 : vector<8x1024xi1>, vector<8x1024xf32>
    %274 = vector.extract_strided_slice %8 {offsets = [0, 33], sizes = [8, 1], strides = [1, 1]} : vector<8x128xf32> to vector<8x1xf32>
    %275 = vector.broadcast %274 : vector<8x1xf32> to vector<8x1024xf32>
    %276 = arith.cmpf oge, %275, %4 : vector<8x1024xf32>
    %277 = vector.broadcast %274 : vector<8x1xf32> to vector<8x1024xf32>
    %278 = arith.cmpf olt, %277, %3 : vector<8x1024xf32>
    %279 = arith.andi %276, %278 : vector<8x1024xi1>
    %cst_40 = arith.constant 1.000000e+00 : f32
    %280 = vector.broadcast %cst_40 : f32 to vector<8x1024xf32>
    %281 = arith.select %279, %280, %273 : vector<8x1024xi1>, vector<8x1024xf32>
    %282 = vector.extract_strided_slice %8 {offsets = [0, 34], sizes = [8, 1], strides = [1, 1]} : vector<8x128xf32> to vector<8x1xf32>
    %283 = vector.broadcast %282 : vector<8x1xf32> to vector<8x1024xf32>
    %284 = arith.cmpf oge, %283, %4 : vector<8x1024xf32>
    %285 = vector.broadcast %282 : vector<8x1xf32> to vector<8x1024xf32>
    %286 = arith.cmpf olt, %285, %3 : vector<8x1024xf32>
    %287 = arith.andi %284, %286 : vector<8x1024xi1>
    %cst_41 = arith.constant 1.000000e+00 : f32
    %288 = vector.broadcast %cst_41 : f32 to vector<8x1024xf32>
    %289 = arith.select %287, %288, %281 : vector<8x1024xi1>, vector<8x1024xf32>
    %290 = vector.extract_strided_slice %8 {offsets = [0, 35], sizes = [8, 1], strides = [1, 1]} : vector<8x128xf32> to vector<8x1xf32>
    %291 = vector.broadcast %290 : vector<8x1xf32> to vector<8x1024xf32>
    %292 = arith.cmpf oge, %291, %4 : vector<8x1024xf32>
    %293 = vector.broadcast %290 : vector<8x1xf32> to vector<8x1024xf32>
    %294 = arith.cmpf olt, %293, %3 : vector<8x1024xf32>
    %295 = arith.andi %292, %294 : vector<8x1024xi1>
    %cst_42 = arith.constant 1.000000e+00 : f32
    %296 = vector.broadcast %cst_42 : f32 to vector<8x1024xf32>
    %297 = arith.select %295, %296, %289 : vector<8x1024xi1>, vector<8x1024xf32>
    %298 = vector.extract_strided_slice %8 {offsets = [0, 36], sizes = [8, 1], strides = [1, 1]} : vector<8x128xf32> to vector<8x1xf32>
    %299 = vector.broadcast %298 : vector<8x1xf32> to vector<8x1024xf32>
    %300 = arith.cmpf oge, %299, %4 : vector<8x1024xf32>
    %301 = vector.broadcast %298 : vector<8x1xf32> to vector<8x1024xf32>
    %302 = arith.cmpf olt, %301, %3 : vector<8x1024xf32>
    %303 = arith.andi %300, %302 : vector<8x1024xi1>
    %cst_43 = arith.constant 1.000000e+00 : f32
    %304 = vector.broadcast %cst_43 : f32 to vector<8x1024xf32>
    %305 = arith.select %303, %304, %297 : vector<8x1024xi1>, vector<8x1024xf32>
    %306 = vector.extract_strided_slice %8 {offsets = [0, 37], sizes = [8, 1], strides = [1, 1]} : vector<8x128xf32> to vector<8x1xf32>
    %307 = vector.broadcast %306 : vector<8x1xf32> to vector<8x1024xf32>
    %308 = arith.cmpf oge, %307, %4 : vector<8x1024xf32>
    %309 = vector.broadcast %306 : vector<8x1xf32> to vector<8x1024xf32>
    %310 = arith.cmpf olt, %309, %3 : vector<8x1024xf32>
    %311 = arith.andi %308, %310 : vector<8x1024xi1>
    %cst_44 = arith.constant 1.000000e+00 : f32
    %312 = vector.broadcast %cst_44 : f32 to vector<8x1024xf32>
    %313 = arith.select %311, %312, %305 : vector<8x1024xi1>, vector<8x1024xf32>
    %314 = vector.extract_strided_slice %8 {offsets = [0, 38], sizes = [8, 1], strides = [1, 1]} : vector<8x128xf32> to vector<8x1xf32>
    %315 = vector.broadcast %314 : vector<8x1xf32> to vector<8x1024xf32>
    %316 = arith.cmpf oge, %315, %4 : vector<8x1024xf32>
    %317 = vector.broadcast %314 : vector<8x1xf32> to vector<8x1024xf32>
    %318 = arith.cmpf olt, %317, %3 : vector<8x1024xf32>
    %319 = arith.andi %316, %318 : vector<8x1024xi1>
    %cst_45 = arith.constant 1.000000e+00 : f32
    %320 = vector.broadcast %cst_45 : f32 to vector<8x1024xf32>
    %321 = arith.select %319, %320, %313 : vector<8x1024xi1>, vector<8x1024xf32>
    %322 = vector.extract_strided_slice %8 {offsets = [0, 39], sizes = [8, 1], strides = [1, 1]} : vector<8x128xf32> to vector<8x1xf32>
    %323 = vector.broadcast %322 : vector<8x1xf32> to vector<8x1024xf32>
    %324 = arith.cmpf oge, %323, %4 : vector<8x1024xf32>
    %325 = vector.broadcast %322 : vector<8x1xf32> to vector<8x1024xf32>
    %326 = arith.cmpf olt, %325, %3 : vector<8x1024xf32>
    %327 = arith.andi %324, %326 : vector<8x1024xi1>
    %cst_46 = arith.constant 1.000000e+00 : f32
    %328 = vector.broadcast %cst_46 : f32 to vector<8x1024xf32>
    %329 = arith.select %327, %328, %321 : vector<8x1024xi1>, vector<8x1024xf32>
    %330 = vector.extract_strided_slice %8 {offsets = [0, 40], sizes = [8, 1], strides = [1, 1]} : vector<8x128xf32> to vector<8x1xf32>
    %331 = vector.broadcast %330 : vector<8x1xf32> to vector<8x1024xf32>
    %332 = arith.cmpf oge, %331, %4 : vector<8x1024xf32>
    %333 = vector.broadcast %330 : vector<8x1xf32> to vector<8x1024xf32>
    %334 = arith.cmpf olt, %333, %3 : vector<8x1024xf32>
    %335 = arith.andi %332, %334 : vector<8x1024xi1>
    %cst_47 = arith.constant 1.000000e+00 : f32
    %336 = vector.broadcast %cst_47 : f32 to vector<8x1024xf32>
    %337 = arith.select %335, %336, %329 : vector<8x1024xi1>, vector<8x1024xf32>
    %338 = vector.extract_strided_slice %8 {offsets = [0, 41], sizes = [8, 1], strides = [1, 1]} : vector<8x128xf32> to vector<8x1xf32>
    %339 = vector.broadcast %338 : vector<8x1xf32> to vector<8x1024xf32>
    %340 = arith.cmpf oge, %339, %4 : vector<8x1024xf32>
    %341 = vector.broadcast %338 : vector<8x1xf32> to vector<8x1024xf32>
    %342 = arith.cmpf olt, %341, %3 : vector<8x1024xf32>
    %343 = arith.andi %340, %342 : vector<8x1024xi1>
    %cst_48 = arith.constant 1.000000e+00 : f32
    %344 = vector.broadcast %cst_48 : f32 to vector<8x1024xf32>
    %345 = arith.select %343, %344, %337 : vector<8x1024xi1>, vector<8x1024xf32>
    %346 = vector.extract_strided_slice %8 {offsets = [0, 42], sizes = [8, 1], strides = [1, 1]} : vector<8x128xf32> to vector<8x1xf32>
    %347 = vector.broadcast %346 : vector<8x1xf32> to vector<8x1024xf32>
    %348 = arith.cmpf oge, %347, %4 : vector<8x1024xf32>
    %349 = vector.broadcast %346 : vector<8x1xf32> to vector<8x1024xf32>
    %350 = arith.cmpf olt, %349, %3 : vector<8x1024xf32>
    %351 = arith.andi %348, %350 : vector<8x1024xi1>
    %cst_49 = arith.constant 1.000000e+00 : f32
    %352 = vector.broadcast %cst_49 : f32 to vector<8x1024xf32>
    %353 = arith.select %351, %352, %345 : vector<8x1024xi1>, vector<8x1024xf32>
    %354 = vector.extract_strided_slice %8 {offsets = [0, 43], sizes = [8, 1], strides = [1, 1]} : vector<8x128xf32> to vector<8x1xf32>
    %355 = vector.broadcast %354 : vector<8x1xf32> to vector<8x1024xf32>
    %356 = arith.cmpf oge, %355, %4 : vector<8x1024xf32>
    %357 = vector.broadcast %354 : vector<8x1xf32> to vector<8x1024xf32>
    %358 = arith.cmpf olt, %357, %3 : vector<8x1024xf32>
    %359 = arith.andi %356, %358 : vector<8x1024xi1>
    %cst_50 = arith.constant 1.000000e+00 : f32
    %360 = vector.broadcast %cst_50 : f32 to vector<8x1024xf32>
    %361 = arith.select %359, %360, %353 : vector<8x1024xi1>, vector<8x1024xf32>
    %362 = vector.extract_strided_slice %8 {offsets = [0, 44], sizes = [8, 1], strides = [1, 1]} : vector<8x128xf32> to vector<8x1xf32>
    %363 = vector.broadcast %362 : vector<8x1xf32> to vector<8x1024xf32>
    %364 = arith.cmpf oge, %363, %4 : vector<8x1024xf32>
    %365 = vector.broadcast %362 : vector<8x1xf32> to vector<8x1024xf32>
    %366 = arith.cmpf olt, %365, %3 : vector<8x1024xf32>
    %367 = arith.andi %364, %366 : vector<8x1024xi1>
    %cst_51 = arith.constant 1.000000e+00 : f32
    %368 = vector.broadcast %cst_51 : f32 to vector<8x1024xf32>
    %369 = arith.select %367, %368, %361 : vector<8x1024xi1>, vector<8x1024xf32>
    %370 = vector.extract_strided_slice %8 {offsets = [0, 45], sizes = [8, 1], strides = [1, 1]} : vector<8x128xf32> to vector<8x1xf32>
    %371 = vector.broadcast %370 : vector<8x1xf32> to vector<8x1024xf32>
    %372 = arith.cmpf oge, %371, %4 : vector<8x1024xf32>
    %373 = vector.broadcast %370 : vector<8x1xf32> to vector<8x1024xf32>
    %374 = arith.cmpf olt, %373, %3 : vector<8x1024xf32>
    %375 = arith.andi %372, %374 : vector<8x1024xi1>
    %cst_52 = arith.constant 1.000000e+00 : f32
    %376 = vector.broadcast %cst_52 : f32 to vector<8x1024xf32>
    %377 = arith.select %375, %376, %369 : vector<8x1024xi1>, vector<8x1024xf32>
    %378 = vector.extract_strided_slice %8 {offsets = [0, 46], sizes = [8, 1], strides = [1, 1]} : vector<8x128xf32> to vector<8x1xf32>
    %379 = vector.broadcast %378 : vector<8x1xf32> to vector<8x1024xf32>
    %380 = arith.cmpf oge, %379, %4 : vector<8x1024xf32>
    %381 = vector.broadcast %378 : vector<8x1xf32> to vector<8x1024xf32>
    %382 = arith.cmpf olt, %381, %3 : vector<8x1024xf32>
    %383 = arith.andi %380, %382 : vector<8x1024xi1>
    %cst_53 = arith.constant 1.000000e+00 : f32
    %384 = vector.broadcast %cst_53 : f32 to vector<8x1024xf32>
    %385 = arith.select %383, %384, %377 : vector<8x1024xi1>, vector<8x1024xf32>
    %386 = vector.extract_strided_slice %8 {offsets = [0, 47], sizes = [8, 1], strides = [1, 1]} : vector<8x128xf32> to vector<8x1xf32>
    %387 = vector.broadcast %386 : vector<8x1xf32> to vector<8x1024xf32>
    %388 = arith.cmpf oge, %387, %4 : vector<8x1024xf32>
    %389 = vector.broadcast %386 : vector<8x1xf32> to vector<8x1024xf32>
    %390 = arith.cmpf olt, %389, %3 : vector<8x1024xf32>
    %391 = arith.andi %388, %390 : vector<8x1024xi1>
    %cst_54 = arith.constant 1.000000e+00 : f32
    %392 = vector.broadcast %cst_54 : f32 to vector<8x1024xf32>
    %393 = arith.select %391, %392, %385 : vector<8x1024xi1>, vector<8x1024xf32>
    %394 = vector.extract_strided_slice %8 {offsets = [0, 48], sizes = [8, 1], strides = [1, 1]} : vector<8x128xf32> to vector<8x1xf32>
    %395 = vector.broadcast %394 : vector<8x1xf32> to vector<8x1024xf32>
    %396 = arith.cmpf oge, %395, %4 : vector<8x1024xf32>
    %397 = vector.broadcast %394 : vector<8x1xf32> to vector<8x1024xf32>
    %398 = arith.cmpf olt, %397, %3 : vector<8x1024xf32>
    %399 = arith.andi %396, %398 : vector<8x1024xi1>
    %cst_55 = arith.constant 1.000000e+00 : f32
    %400 = vector.broadcast %cst_55 : f32 to vector<8x1024xf32>
    %401 = arith.select %399, %400, %393 : vector<8x1024xi1>, vector<8x1024xf32>
    %402 = vector.extract_strided_slice %8 {offsets = [0, 49], sizes = [8, 1], strides = [1, 1]} : vector<8x128xf32> to vector<8x1xf32>
    %403 = vector.broadcast %402 : vector<8x1xf32> to vector<8x1024xf32>
    %404 = arith.cmpf oge, %403, %4 : vector<8x1024xf32>
    %405 = vector.broadcast %402 : vector<8x1xf32> to vector<8x1024xf32>
    %406 = arith.cmpf olt, %405, %3 : vector<8x1024xf32>
    %407 = arith.andi %404, %406 : vector<8x1024xi1>
    %cst_56 = arith.constant 1.000000e+00 : f32
    %408 = vector.broadcast %cst_56 : f32 to vector<8x1024xf32>
    %409 = arith.select %407, %408, %401 : vector<8x1024xi1>, vector<8x1024xf32>
    %410 = vector.extract_strided_slice %8 {offsets = [0, 50], sizes = [8, 1], strides = [1, 1]} : vector<8x128xf32> to vector<8x1xf32>
    %411 = vector.broadcast %410 : vector<8x1xf32> to vector<8x1024xf32>
    %412 = arith.cmpf oge, %411, %4 : vector<8x1024xf32>
    %413 = vector.broadcast %410 : vector<8x1xf32> to vector<8x1024xf32>
    %414 = arith.cmpf olt, %413, %3 : vector<8x1024xf32>
    %415 = arith.andi %412, %414 : vector<8x1024xi1>
    %cst_57 = arith.constant 1.000000e+00 : f32
    %416 = vector.broadcast %cst_57 : f32 to vector<8x1024xf32>
    %417 = arith.select %415, %416, %409 : vector<8x1024xi1>, vector<8x1024xf32>
    %418 = vector.extract_strided_slice %8 {offsets = [0, 51], sizes = [8, 1], strides = [1, 1]} : vector<8x128xf32> to vector<8x1xf32>
    %419 = vector.broadcast %418 : vector<8x1xf32> to vector<8x1024xf32>
    %420 = arith.cmpf oge, %419, %4 : vector<8x1024xf32>
    %421 = vector.broadcast %418 : vector<8x1xf32> to vector<8x1024xf32>
    %422 = arith.cmpf olt, %421, %3 : vector<8x1024xf32>
    %423 = arith.andi %420, %422 : vector<8x1024xi1>
    %cst_58 = arith.constant 1.000000e+00 : f32
    %424 = vector.broadcast %cst_58 : f32 to vector<8x1024xf32>
    %425 = arith.select %423, %424, %417 : vector<8x1024xi1>, vector<8x1024xf32>
    %426 = vector.extract_strided_slice %8 {offsets = [0, 52], sizes = [8, 1], strides = [1, 1]} : vector<8x128xf32> to vector<8x1xf32>
    %427 = vector.broadcast %426 : vector<8x1xf32> to vector<8x1024xf32>
    %428 = arith.cmpf oge, %427, %4 : vector<8x1024xf32>
    %429 = vector.broadcast %426 : vector<8x1xf32> to vector<8x1024xf32>
    %430 = arith.cmpf olt, %429, %3 : vector<8x1024xf32>
    %431 = arith.andi %428, %430 : vector<8x1024xi1>
    %cst_59 = arith.constant 1.000000e+00 : f32
    %432 = vector.broadcast %cst_59 : f32 to vector<8x1024xf32>
    %433 = arith.select %431, %432, %425 : vector<8x1024xi1>, vector<8x1024xf32>
    %434 = vector.extract_strided_slice %8 {offsets = [0, 53], sizes = [8, 1], strides = [1, 1]} : vector<8x128xf32> to vector<8x1xf32>
    %435 = vector.broadcast %434 : vector<8x1xf32> to vector<8x1024xf32>
    %436 = arith.cmpf oge, %435, %4 : vector<8x1024xf32>
    %437 = vector.broadcast %434 : vector<8x1xf32> to vector<8x1024xf32>
    %438 = arith.cmpf olt, %437, %3 : vector<8x1024xf32>
    %439 = arith.andi %436, %438 : vector<8x1024xi1>
    %cst_60 = arith.constant 1.000000e+00 : f32
    %440 = vector.broadcast %cst_60 : f32 to vector<8x1024xf32>
    %441 = arith.select %439, %440, %433 : vector<8x1024xi1>, vector<8x1024xf32>
    %442 = vector.extract_strided_slice %8 {offsets = [0, 54], sizes = [8, 1], strides = [1, 1]} : vector<8x128xf32> to vector<8x1xf32>
    %443 = vector.broadcast %442 : vector<8x1xf32> to vector<8x1024xf32>
    %444 = arith.cmpf oge, %443, %4 : vector<8x1024xf32>
    %445 = vector.broadcast %442 : vector<8x1xf32> to vector<8x1024xf32>
    %446 = arith.cmpf olt, %445, %3 : vector<8x1024xf32>
    %447 = arith.andi %444, %446 : vector<8x1024xi1>
    %cst_61 = arith.constant 1.000000e+00 : f32
    %448 = vector.broadcast %cst_61 : f32 to vector<8x1024xf32>
    %449 = arith.select %447, %448, %441 : vector<8x1024xi1>, vector<8x1024xf32>
    %450 = vector.extract_strided_slice %8 {offsets = [0, 55], sizes = [8, 1], strides = [1, 1]} : vector<8x128xf32> to vector<8x1xf32>
    %451 = vector.broadcast %450 : vector<8x1xf32> to vector<8x1024xf32>
    %452 = arith.cmpf oge, %451, %4 : vector<8x1024xf32>
    %453 = vector.broadcast %450 : vector<8x1xf32> to vector<8x1024xf32>
    %454 = arith.cmpf olt, %453, %3 : vector<8x1024xf32>
    %455 = arith.andi %452, %454 : vector<8x1024xi1>
    %cst_62 = arith.constant 1.000000e+00 : f32
    %456 = vector.broadcast %cst_62 : f32 to vector<8x1024xf32>
    %457 = arith.select %455, %456, %449 : vector<8x1024xi1>, vector<8x1024xf32>
    %458 = vector.extract_strided_slice %8 {offsets = [0, 56], sizes = [8, 1], strides = [1, 1]} : vector<8x128xf32> to vector<8x1xf32>
    %459 = vector.broadcast %458 : vector<8x1xf32> to vector<8x1024xf32>
    %460 = arith.cmpf oge, %459, %4 : vector<8x1024xf32>
    %461 = vector.broadcast %458 : vector<8x1xf32> to vector<8x1024xf32>
    %462 = arith.cmpf olt, %461, %3 : vector<8x1024xf32>
    %463 = arith.andi %460, %462 : vector<8x1024xi1>
    %cst_63 = arith.constant 1.000000e+00 : f32
    %464 = vector.broadcast %cst_63 : f32 to vector<8x1024xf32>
    %465 = arith.select %463, %464, %457 : vector<8x1024xi1>, vector<8x1024xf32>
    %466 = vector.extract_strided_slice %8 {offsets = [0, 57], sizes = [8, 1], strides = [1, 1]} : vector<8x128xf32> to vector<8x1xf32>
    %467 = vector.broadcast %466 : vector<8x1xf32> to vector<8x1024xf32>
    %468 = arith.cmpf oge, %467, %4 : vector<8x1024xf32>
    %469 = vector.broadcast %466 : vector<8x1xf32> to vector<8x1024xf32>
    %470 = arith.cmpf olt, %469, %3 : vector<8x1024xf32>
    %471 = arith.andi %468, %470 : vector<8x1024xi1>
    %cst_64 = arith.constant 1.000000e+00 : f32
    %472 = vector.broadcast %cst_64 : f32 to vector<8x1024xf32>
    %473 = arith.select %471, %472, %465 : vector<8x1024xi1>, vector<8x1024xf32>
    %474 = vector.extract_strided_slice %8 {offsets = [0, 58], sizes = [8, 1], strides = [1, 1]} : vector<8x128xf32> to vector<8x1xf32>
    %475 = vector.broadcast %474 : vector<8x1xf32> to vector<8x1024xf32>
    %476 = arith.cmpf oge, %475, %4 : vector<8x1024xf32>
    %477 = vector.broadcast %474 : vector<8x1xf32> to vector<8x1024xf32>
    %478 = arith.cmpf olt, %477, %3 : vector<8x1024xf32>
    %479 = arith.andi %476, %478 : vector<8x1024xi1>
    %cst_65 = arith.constant 1.000000e+00 : f32
    %480 = vector.broadcast %cst_65 : f32 to vector<8x1024xf32>
    %481 = arith.select %479, %480, %473 : vector<8x1024xi1>, vector<8x1024xf32>
    %482 = vector.extract_strided_slice %8 {offsets = [0, 59], sizes = [8, 1], strides = [1, 1]} : vector<8x128xf32> to vector<8x1xf32>
    %483 = vector.broadcast %482 : vector<8x1xf32> to vector<8x1024xf32>
    %484 = arith.cmpf oge, %483, %4 : vector<8x1024xf32>
    %485 = vector.broadcast %482 : vector<8x1xf32> to vector<8x1024xf32>
    %486 = arith.cmpf olt, %485, %3 : vector<8x1024xf32>
    %487 = arith.andi %484, %486 : vector<8x1024xi1>
    %cst_66 = arith.constant 1.000000e+00 : f32
    %488 = vector.broadcast %cst_66 : f32 to vector<8x1024xf32>
    %489 = arith.select %487, %488, %481 : vector<8x1024xi1>, vector<8x1024xf32>
    %490 = vector.extract_strided_slice %8 {offsets = [0, 60], sizes = [8, 1], strides = [1, 1]} : vector<8x128xf32> to vector<8x1xf32>
    %491 = vector.broadcast %490 : vector<8x1xf32> to vector<8x1024xf32>
    %492 = arith.cmpf oge, %491, %4 : vector<8x1024xf32>
    %493 = vector.broadcast %490 : vector<8x1xf32> to vector<8x1024xf32>
    %494 = arith.cmpf olt, %493, %3 : vector<8x1024xf32>
    %495 = arith.andi %492, %494 : vector<8x1024xi1>
    %cst_67 = arith.constant 1.000000e+00 : f32
    %496 = vector.broadcast %cst_67 : f32 to vector<8x1024xf32>
    %497 = arith.select %495, %496, %489 : vector<8x1024xi1>, vector<8x1024xf32>
    %498 = vector.extract_strided_slice %8 {offsets = [0, 61], sizes = [8, 1], strides = [1, 1]} : vector<8x128xf32> to vector<8x1xf32>
    %499 = vector.broadcast %498 : vector<8x1xf32> to vector<8x1024xf32>
    %500 = arith.cmpf oge, %499, %4 : vector<8x1024xf32>
    %501 = vector.broadcast %498 : vector<8x1xf32> to vector<8x1024xf32>
    %502 = arith.cmpf olt, %501, %3 : vector<8x1024xf32>
    %503 = arith.andi %500, %502 : vector<8x1024xi1>
    %cst_68 = arith.constant 1.000000e+00 : f32
    %504 = vector.broadcast %cst_68 : f32 to vector<8x1024xf32>
    %505 = arith.select %503, %504, %497 : vector<8x1024xi1>, vector<8x1024xf32>
    %506 = vector.extract_strided_slice %8 {offsets = [0, 62], sizes = [8, 1], strides = [1, 1]} : vector<8x128xf32> to vector<8x1xf32>
    %507 = vector.broadcast %506 : vector<8x1xf32> to vector<8x1024xf32>
    %508 = arith.cmpf oge, %507, %4 : vector<8x1024xf32>
    %509 = vector.broadcast %506 : vector<8x1xf32> to vector<8x1024xf32>
    %510 = arith.cmpf olt, %509, %3 : vector<8x1024xf32>
    %511 = arith.andi %508, %510 : vector<8x1024xi1>
    %cst_69 = arith.constant 1.000000e+00 : f32
    %512 = vector.broadcast %cst_69 : f32 to vector<8x1024xf32>
    %513 = arith.select %511, %512, %505 : vector<8x1024xi1>, vector<8x1024xf32>
    %514 = vector.extract_strided_slice %8 {offsets = [0, 63], sizes = [8, 1], strides = [1, 1]} : vector<8x128xf32> to vector<8x1xf32>
    %515 = vector.broadcast %514 : vector<8x1xf32> to vector<8x1024xf32>
    %516 = arith.cmpf oge, %515, %4 : vector<8x1024xf32>
    %517 = vector.broadcast %514 : vector<8x1xf32> to vector<8x1024xf32>
    %518 = arith.cmpf olt, %517, %3 : vector<8x1024xf32>
    %519 = arith.andi %516, %518 : vector<8x1024xi1>
    %cst_70 = arith.constant 1.000000e+00 : f32
    %520 = vector.broadcast %cst_70 : f32 to vector<8x1024xf32>
    %521 = arith.select %519, %520, %513 : vector<8x1024xi1>, vector<8x1024xf32>
    %522 = vector.extract_strided_slice %8 {offsets = [0, 64], sizes = [8, 1], strides = [1, 1]} : vector<8x128xf32> to vector<8x1xf32>
    %523 = vector.broadcast %522 : vector<8x1xf32> to vector<8x1024xf32>
    %524 = arith.cmpf oge, %523, %4 : vector<8x1024xf32>
    %525 = vector.broadcast %522 : vector<8x1xf32> to vector<8x1024xf32>
    %526 = arith.cmpf olt, %525, %3 : vector<8x1024xf32>
    %527 = arith.andi %524, %526 : vector<8x1024xi1>
    %cst_71 = arith.constant 1.000000e+00 : f32
    %528 = vector.broadcast %cst_71 : f32 to vector<8x1024xf32>
    %529 = arith.select %527, %528, %521 : vector<8x1024xi1>, vector<8x1024xf32>
    %530 = vector.extract_strided_slice %8 {offsets = [0, 65], sizes = [8, 1], strides = [1, 1]} : vector<8x128xf32> to vector<8x1xf32>
    %531 = vector.broadcast %530 : vector<8x1xf32> to vector<8x1024xf32>
    %532 = arith.cmpf oge, %531, %4 : vector<8x1024xf32>
    %533 = vector.broadcast %530 : vector<8x1xf32> to vector<8x1024xf32>
    %534 = arith.cmpf olt, %533, %3 : vector<8x1024xf32>
    %535 = arith.andi %532, %534 : vector<8x1024xi1>
    %cst_72 = arith.constant 1.000000e+00 : f32
    %536 = vector.broadcast %cst_72 : f32 to vector<8x1024xf32>
    %537 = arith.select %535, %536, %529 : vector<8x1024xi1>, vector<8x1024xf32>
    %538 = vector.extract_strided_slice %8 {offsets = [0, 66], sizes = [8, 1], strides = [1, 1]} : vector<8x128xf32> to vector<8x1xf32>
    %539 = vector.broadcast %538 : vector<8x1xf32> to vector<8x1024xf32>
    %540 = arith.cmpf oge, %539, %4 : vector<8x1024xf32>
    %541 = vector.broadcast %538 : vector<8x1xf32> to vector<8x1024xf32>
    %542 = arith.cmpf olt, %541, %3 : vector<8x1024xf32>
    %543 = arith.andi %540, %542 : vector<8x1024xi1>
    %cst_73 = arith.constant 1.000000e+00 : f32
    %544 = vector.broadcast %cst_73 : f32 to vector<8x1024xf32>
    %545 = arith.select %543, %544, %537 : vector<8x1024xi1>, vector<8x1024xf32>
    %546 = vector.extract_strided_slice %8 {offsets = [0, 67], sizes = [8, 1], strides = [1, 1]} : vector<8x128xf32> to vector<8x1xf32>
    %547 = vector.broadcast %546 : vector<8x1xf32> to vector<8x1024xf32>
    %548 = arith.cmpf oge, %547, %4 : vector<8x1024xf32>
    %549 = vector.broadcast %546 : vector<8x1xf32> to vector<8x1024xf32>
    %550 = arith.cmpf olt, %549, %3 : vector<8x1024xf32>
    %551 = arith.andi %548, %550 : vector<8x1024xi1>
    %cst_74 = arith.constant 1.000000e+00 : f32
    %552 = vector.broadcast %cst_74 : f32 to vector<8x1024xf32>
    %553 = arith.select %551, %552, %545 : vector<8x1024xi1>, vector<8x1024xf32>
    %554 = vector.extract_strided_slice %8 {offsets = [0, 68], sizes = [8, 1], strides = [1, 1]} : vector<8x128xf32> to vector<8x1xf32>
    %555 = vector.broadcast %554 : vector<8x1xf32> to vector<8x1024xf32>
    %556 = arith.cmpf oge, %555, %4 : vector<8x1024xf32>
    %557 = vector.broadcast %554 : vector<8x1xf32> to vector<8x1024xf32>
    %558 = arith.cmpf olt, %557, %3 : vector<8x1024xf32>
    %559 = arith.andi %556, %558 : vector<8x1024xi1>
    %cst_75 = arith.constant 1.000000e+00 : f32
    %560 = vector.broadcast %cst_75 : f32 to vector<8x1024xf32>
    %561 = arith.select %559, %560, %553 : vector<8x1024xi1>, vector<8x1024xf32>
    %562 = vector.extract_strided_slice %8 {offsets = [0, 69], sizes = [8, 1], strides = [1, 1]} : vector<8x128xf32> to vector<8x1xf32>
    %563 = vector.broadcast %562 : vector<8x1xf32> to vector<8x1024xf32>
    %564 = arith.cmpf oge, %563, %4 : vector<8x1024xf32>
    %565 = vector.broadcast %562 : vector<8x1xf32> to vector<8x1024xf32>
    %566 = arith.cmpf olt, %565, %3 : vector<8x1024xf32>
    %567 = arith.andi %564, %566 : vector<8x1024xi1>
    %cst_76 = arith.constant 1.000000e+00 : f32
    %568 = vector.broadcast %cst_76 : f32 to vector<8x1024xf32>
    %569 = arith.select %567, %568, %561 : vector<8x1024xi1>, vector<8x1024xf32>
    %570 = vector.extract_strided_slice %8 {offsets = [0, 70], sizes = [8, 1], strides = [1, 1]} : vector<8x128xf32> to vector<8x1xf32>
    %571 = vector.broadcast %570 : vector<8x1xf32> to vector<8x1024xf32>
    %572 = arith.cmpf oge, %571, %4 : vector<8x1024xf32>
    %573 = vector.broadcast %570 : vector<8x1xf32> to vector<8x1024xf32>
    %574 = arith.cmpf olt, %573, %3 : vector<8x1024xf32>
    %575 = arith.andi %572, %574 : vector<8x1024xi1>
    %cst_77 = arith.constant 1.000000e+00 : f32
    %576 = vector.broadcast %cst_77 : f32 to vector<8x1024xf32>
    %577 = arith.select %575, %576, %569 : vector<8x1024xi1>, vector<8x1024xf32>
    %578 = vector.extract_strided_slice %8 {offsets = [0, 71], sizes = [8, 1], strides = [1, 1]} : vector<8x128xf32> to vector<8x1xf32>
    %579 = vector.broadcast %578 : vector<8x1xf32> to vector<8x1024xf32>
    %580 = arith.cmpf oge, %579, %4 : vector<8x1024xf32>
    %581 = vector.broadcast %578 : vector<8x1xf32> to vector<8x1024xf32>
    %582 = arith.cmpf olt, %581, %3 : vector<8x1024xf32>
    %583 = arith.andi %580, %582 : vector<8x1024xi1>
    %cst_78 = arith.constant 1.000000e+00 : f32
    %584 = vector.broadcast %cst_78 : f32 to vector<8x1024xf32>
    %585 = arith.select %583, %584, %577 : vector<8x1024xi1>, vector<8x1024xf32>
    %586 = vector.extract_strided_slice %8 {offsets = [0, 72], sizes = [8, 1], strides = [1, 1]} : vector<8x128xf32> to vector<8x1xf32>
    %587 = vector.broadcast %586 : vector<8x1xf32> to vector<8x1024xf32>
    %588 = arith.cmpf oge, %587, %4 : vector<8x1024xf32>
    %589 = vector.broadcast %586 : vector<8x1xf32> to vector<8x1024xf32>
    %590 = arith.cmpf olt, %589, %3 : vector<8x1024xf32>
    %591 = arith.andi %588, %590 : vector<8x1024xi1>
    %cst_79 = arith.constant 1.000000e+00 : f32
    %592 = vector.broadcast %cst_79 : f32 to vector<8x1024xf32>
    %593 = arith.select %591, %592, %585 : vector<8x1024xi1>, vector<8x1024xf32>
    %594 = vector.extract_strided_slice %8 {offsets = [0, 73], sizes = [8, 1], strides = [1, 1]} : vector<8x128xf32> to vector<8x1xf32>
    %595 = vector.broadcast %594 : vector<8x1xf32> to vector<8x1024xf32>
    %596 = arith.cmpf oge, %595, %4 : vector<8x1024xf32>
    %597 = vector.broadcast %594 : vector<8x1xf32> to vector<8x1024xf32>
    %598 = arith.cmpf olt, %597, %3 : vector<8x1024xf32>
    %599 = arith.andi %596, %598 : vector<8x1024xi1>
    %cst_80 = arith.constant 1.000000e+00 : f32
    %600 = vector.broadcast %cst_80 : f32 to vector<8x1024xf32>
    %601 = arith.select %599, %600, %593 : vector<8x1024xi1>, vector<8x1024xf32>
    %602 = vector.extract_strided_slice %8 {offsets = [0, 74], sizes = [8, 1], strides = [1, 1]} : vector<8x128xf32> to vector<8x1xf32>
    %603 = vector.broadcast %602 : vector<8x1xf32> to vector<8x1024xf32>
    %604 = arith.cmpf oge, %603, %4 : vector<8x1024xf32>
    %605 = vector.broadcast %602 : vector<8x1xf32> to vector<8x1024xf32>
    %606 = arith.cmpf olt, %605, %3 : vector<8x1024xf32>
    %607 = arith.andi %604, %606 : vector<8x1024xi1>
    %cst_81 = arith.constant 1.000000e+00 : f32
    %608 = vector.broadcast %cst_81 : f32 to vector<8x1024xf32>
    %609 = arith.select %607, %608, %601 : vector<8x1024xi1>, vector<8x1024xf32>
    %610 = vector.extract_strided_slice %8 {offsets = [0, 75], sizes = [8, 1], strides = [1, 1]} : vector<8x128xf32> to vector<8x1xf32>
    %611 = vector.broadcast %610 : vector<8x1xf32> to vector<8x1024xf32>
    %612 = arith.cmpf oge, %611, %4 : vector<8x1024xf32>
    %613 = vector.broadcast %610 : vector<8x1xf32> to vector<8x1024xf32>
    %614 = arith.cmpf olt, %613, %3 : vector<8x1024xf32>
    %615 = arith.andi %612, %614 : vector<8x1024xi1>
    %cst_82 = arith.constant 1.000000e+00 : f32
    %616 = vector.broadcast %cst_82 : f32 to vector<8x1024xf32>
    %617 = arith.select %615, %616, %609 : vector<8x1024xi1>, vector<8x1024xf32>
    %618 = vector.extract_strided_slice %8 {offsets = [0, 76], sizes = [8, 1], strides = [1, 1]} : vector<8x128xf32> to vector<8x1xf32>
    %619 = vector.broadcast %618 : vector<8x1xf32> to vector<8x1024xf32>
    %620 = arith.cmpf oge, %619, %4 : vector<8x1024xf32>
    %621 = vector.broadcast %618 : vector<8x1xf32> to vector<8x1024xf32>
    %622 = arith.cmpf olt, %621, %3 : vector<8x1024xf32>
    %623 = arith.andi %620, %622 : vector<8x1024xi1>
    %cst_83 = arith.constant 1.000000e+00 : f32
    %624 = vector.broadcast %cst_83 : f32 to vector<8x1024xf32>
    %625 = arith.select %623, %624, %617 : vector<8x1024xi1>, vector<8x1024xf32>
    %626 = vector.extract_strided_slice %8 {offsets = [0, 77], sizes = [8, 1], strides = [1, 1]} : vector<8x128xf32> to vector<8x1xf32>
    %627 = vector.broadcast %626 : vector<8x1xf32> to vector<8x1024xf32>
    %628 = arith.cmpf oge, %627, %4 : vector<8x1024xf32>
    %629 = vector.broadcast %626 : vector<8x1xf32> to vector<8x1024xf32>
    %630 = arith.cmpf olt, %629, %3 : vector<8x1024xf32>
    %631 = arith.andi %628, %630 : vector<8x1024xi1>
    %cst_84 = arith.constant 1.000000e+00 : f32
    %632 = vector.broadcast %cst_84 : f32 to vector<8x1024xf32>
    %633 = arith.select %631, %632, %625 : vector<8x1024xi1>, vector<8x1024xf32>
    %634 = vector.extract_strided_slice %8 {offsets = [0, 78], sizes = [8, 1], strides = [1, 1]} : vector<8x128xf32> to vector<8x1xf32>
    %635 = vector.broadcast %634 : vector<8x1xf32> to vector<8x1024xf32>
    %636 = arith.cmpf oge, %635, %4 : vector<8x1024xf32>
    %637 = vector.broadcast %634 : vector<8x1xf32> to vector<8x1024xf32>
    %638 = arith.cmpf olt, %637, %3 : vector<8x1024xf32>
    %639 = arith.andi %636, %638 : vector<8x1024xi1>
    %cst_85 = arith.constant 1.000000e+00 : f32
    %640 = vector.broadcast %cst_85 : f32 to vector<8x1024xf32>
    %641 = arith.select %639, %640, %633 : vector<8x1024xi1>, vector<8x1024xf32>
    %642 = vector.extract_strided_slice %8 {offsets = [0, 79], sizes = [8, 1], strides = [1, 1]} : vector<8x128xf32> to vector<8x1xf32>
    %643 = vector.broadcast %642 : vector<8x1xf32> to vector<8x1024xf32>
    %644 = arith.cmpf oge, %643, %4 : vector<8x1024xf32>
    %645 = vector.broadcast %642 : vector<8x1xf32> to vector<8x1024xf32>
    %646 = arith.cmpf olt, %645, %3 : vector<8x1024xf32>
    %647 = arith.andi %644, %646 : vector<8x1024xi1>
    %cst_86 = arith.constant 1.000000e+00 : f32
    %648 = vector.broadcast %cst_86 : f32 to vector<8x1024xf32>
    %649 = arith.select %647, %648, %641 : vector<8x1024xi1>, vector<8x1024xf32>
    %650 = vector.extract_strided_slice %8 {offsets = [0, 80], sizes = [8, 1], strides = [1, 1]} : vector<8x128xf32> to vector<8x1xf32>
    %651 = vector.broadcast %650 : vector<8x1xf32> to vector<8x1024xf32>
    %652 = arith.cmpf oge, %651, %4 : vector<8x1024xf32>
    %653 = vector.broadcast %650 : vector<8x1xf32> to vector<8x1024xf32>
    %654 = arith.cmpf olt, %653, %3 : vector<8x1024xf32>
    %655 = arith.andi %652, %654 : vector<8x1024xi1>
    %cst_87 = arith.constant 1.000000e+00 : f32
    %656 = vector.broadcast %cst_87 : f32 to vector<8x1024xf32>
    %657 = arith.select %655, %656, %649 : vector<8x1024xi1>, vector<8x1024xf32>
    %658 = vector.extract_strided_slice %8 {offsets = [0, 81], sizes = [8, 1], strides = [1, 1]} : vector<8x128xf32> to vector<8x1xf32>
    %659 = vector.broadcast %658 : vector<8x1xf32> to vector<8x1024xf32>
    %660 = arith.cmpf oge, %659, %4 : vector<8x1024xf32>
    %661 = vector.broadcast %658 : vector<8x1xf32> to vector<8x1024xf32>
    %662 = arith.cmpf olt, %661, %3 : vector<8x1024xf32>
    %663 = arith.andi %660, %662 : vector<8x1024xi1>
    %cst_88 = arith.constant 1.000000e+00 : f32
    %664 = vector.broadcast %cst_88 : f32 to vector<8x1024xf32>
    %665 = arith.select %663, %664, %657 : vector<8x1024xi1>, vector<8x1024xf32>
    %666 = vector.extract_strided_slice %8 {offsets = [0, 82], sizes = [8, 1], strides = [1, 1]} : vector<8x128xf32> to vector<8x1xf32>
    %667 = vector.broadcast %666 : vector<8x1xf32> to vector<8x1024xf32>
    %668 = arith.cmpf oge, %667, %4 : vector<8x1024xf32>
    %669 = vector.broadcast %666 : vector<8x1xf32> to vector<8x1024xf32>
    %670 = arith.cmpf olt, %669, %3 : vector<8x1024xf32>
    %671 = arith.andi %668, %670 : vector<8x1024xi1>
    %cst_89 = arith.constant 1.000000e+00 : f32
    %672 = vector.broadcast %cst_89 : f32 to vector<8x1024xf32>
    %673 = arith.select %671, %672, %665 : vector<8x1024xi1>, vector<8x1024xf32>
    %674 = vector.extract_strided_slice %8 {offsets = [0, 83], sizes = [8, 1], strides = [1, 1]} : vector<8x128xf32> to vector<8x1xf32>
    %675 = vector.broadcast %674 : vector<8x1xf32> to vector<8x1024xf32>
    %676 = arith.cmpf oge, %675, %4 : vector<8x1024xf32>
    %677 = vector.broadcast %674 : vector<8x1xf32> to vector<8x1024xf32>
    %678 = arith.cmpf olt, %677, %3 : vector<8x1024xf32>
    %679 = arith.andi %676, %678 : vector<8x1024xi1>
    %cst_90 = arith.constant 1.000000e+00 : f32
    %680 = vector.broadcast %cst_90 : f32 to vector<8x1024xf32>
    %681 = arith.select %679, %680, %673 : vector<8x1024xi1>, vector<8x1024xf32>
    %682 = vector.extract_strided_slice %8 {offsets = [0, 84], sizes = [8, 1], strides = [1, 1]} : vector<8x128xf32> to vector<8x1xf32>
    %683 = vector.broadcast %682 : vector<8x1xf32> to vector<8x1024xf32>
    %684 = arith.cmpf oge, %683, %4 : vector<8x1024xf32>
    %685 = vector.broadcast %682 : vector<8x1xf32> to vector<8x1024xf32>
    %686 = arith.cmpf olt, %685, %3 : vector<8x1024xf32>
    %687 = arith.andi %684, %686 : vector<8x1024xi1>
    %cst_91 = arith.constant 1.000000e+00 : f32
    %688 = vector.broadcast %cst_91 : f32 to vector<8x1024xf32>
    %689 = arith.select %687, %688, %681 : vector<8x1024xi1>, vector<8x1024xf32>
    %690 = vector.extract_strided_slice %8 {offsets = [0, 85], sizes = [8, 1], strides = [1, 1]} : vector<8x128xf32> to vector<8x1xf32>
    %691 = vector.broadcast %690 : vector<8x1xf32> to vector<8x1024xf32>
    %692 = arith.cmpf oge, %691, %4 : vector<8x1024xf32>
    %693 = vector.broadcast %690 : vector<8x1xf32> to vector<8x1024xf32>
    %694 = arith.cmpf olt, %693, %3 : vector<8x1024xf32>
    %695 = arith.andi %692, %694 : vector<8x1024xi1>
    %cst_92 = arith.constant 1.000000e+00 : f32
    %696 = vector.broadcast %cst_92 : f32 to vector<8x1024xf32>
    %697 = arith.select %695, %696, %689 : vector<8x1024xi1>, vector<8x1024xf32>
    %698 = vector.extract_strided_slice %8 {offsets = [0, 86], sizes = [8, 1], strides = [1, 1]} : vector<8x128xf32> to vector<8x1xf32>
    %699 = vector.broadcast %698 : vector<8x1xf32> to vector<8x1024xf32>
    %700 = arith.cmpf oge, %699, %4 : vector<8x1024xf32>
    %701 = vector.broadcast %698 : vector<8x1xf32> to vector<8x1024xf32>
    %702 = arith.cmpf olt, %701, %3 : vector<8x1024xf32>
    %703 = arith.andi %700, %702 : vector<8x1024xi1>
    %cst_93 = arith.constant 1.000000e+00 : f32
    %704 = vector.broadcast %cst_93 : f32 to vector<8x1024xf32>
    %705 = arith.select %703, %704, %697 : vector<8x1024xi1>, vector<8x1024xf32>
    %706 = vector.extract_strided_slice %8 {offsets = [0, 87], sizes = [8, 1], strides = [1, 1]} : vector<8x128xf32> to vector<8x1xf32>
    %707 = vector.broadcast %706 : vector<8x1xf32> to vector<8x1024xf32>
    %708 = arith.cmpf oge, %707, %4 : vector<8x1024xf32>
    %709 = vector.broadcast %706 : vector<8x1xf32> to vector<8x1024xf32>
    %710 = arith.cmpf olt, %709, %3 : vector<8x1024xf32>
    %711 = arith.andi %708, %710 : vector<8x1024xi1>
    %cst_94 = arith.constant 1.000000e+00 : f32
    %712 = vector.broadcast %cst_94 : f32 to vector<8x1024xf32>
    %713 = arith.select %711, %712, %705 : vector<8x1024xi1>, vector<8x1024xf32>
    %714 = vector.extract_strided_slice %8 {offsets = [0, 88], sizes = [8, 1], strides = [1, 1]} : vector<8x128xf32> to vector<8x1xf32>
    %715 = vector.broadcast %714 : vector<8x1xf32> to vector<8x1024xf32>
    %716 = arith.cmpf oge, %715, %4 : vector<8x1024xf32>
    %717 = vector.broadcast %714 : vector<8x1xf32> to vector<8x1024xf32>
    %718 = arith.cmpf olt, %717, %3 : vector<8x1024xf32>
    %719 = arith.andi %716, %718 : vector<8x1024xi1>
    %cst_95 = arith.constant 1.000000e+00 : f32
    %720 = vector.broadcast %cst_95 : f32 to vector<8x1024xf32>
    %721 = arith.select %719, %720, %713 : vector<8x1024xi1>, vector<8x1024xf32>
    %722 = vector.extract_strided_slice %8 {offsets = [0, 89], sizes = [8, 1], strides = [1, 1]} : vector<8x128xf32> to vector<8x1xf32>
    %723 = vector.broadcast %722 : vector<8x1xf32> to vector<8x1024xf32>
    %724 = arith.cmpf oge, %723, %4 : vector<8x1024xf32>
    %725 = vector.broadcast %722 : vector<8x1xf32> to vector<8x1024xf32>
    %726 = arith.cmpf olt, %725, %3 : vector<8x1024xf32>
    %727 = arith.andi %724, %726 : vector<8x1024xi1>
    %cst_96 = arith.constant 1.000000e+00 : f32
    %728 = vector.broadcast %cst_96 : f32 to vector<8x1024xf32>
    %729 = arith.select %727, %728, %721 : vector<8x1024xi1>, vector<8x1024xf32>
    %730 = vector.extract_strided_slice %8 {offsets = [0, 90], sizes = [8, 1], strides = [1, 1]} : vector<8x128xf32> to vector<8x1xf32>
    %731 = vector.broadcast %730 : vector<8x1xf32> to vector<8x1024xf32>
    %732 = arith.cmpf oge, %731, %4 : vector<8x1024xf32>
    %733 = vector.broadcast %730 : vector<8x1xf32> to vector<8x1024xf32>
    %734 = arith.cmpf olt, %733, %3 : vector<8x1024xf32>
    %735 = arith.andi %732, %734 : vector<8x1024xi1>
    %cst_97 = arith.constant 1.000000e+00 : f32
    %736 = vector.broadcast %cst_97 : f32 to vector<8x1024xf32>
    %737 = arith.select %735, %736, %729 : vector<8x1024xi1>, vector<8x1024xf32>
    %738 = vector.extract_strided_slice %8 {offsets = [0, 91], sizes = [8, 1], strides = [1, 1]} : vector<8x128xf32> to vector<8x1xf32>
    %739 = vector.broadcast %738 : vector<8x1xf32> to vector<8x1024xf32>
    %740 = arith.cmpf oge, %739, %4 : vector<8x1024xf32>
    %741 = vector.broadcast %738 : vector<8x1xf32> to vector<8x1024xf32>
    %742 = arith.cmpf olt, %741, %3 : vector<8x1024xf32>
    %743 = arith.andi %740, %742 : vector<8x1024xi1>
    %cst_98 = arith.constant 1.000000e+00 : f32
    %744 = vector.broadcast %cst_98 : f32 to vector<8x1024xf32>
    %745 = arith.select %743, %744, %737 : vector<8x1024xi1>, vector<8x1024xf32>
    %746 = vector.extract_strided_slice %8 {offsets = [0, 92], sizes = [8, 1], strides = [1, 1]} : vector<8x128xf32> to vector<8x1xf32>
    %747 = vector.broadcast %746 : vector<8x1xf32> to vector<8x1024xf32>
    %748 = arith.cmpf oge, %747, %4 : vector<8x1024xf32>
    %749 = vector.broadcast %746 : vector<8x1xf32> to vector<8x1024xf32>
    %750 = arith.cmpf olt, %749, %3 : vector<8x1024xf32>
    %751 = arith.andi %748, %750 : vector<8x1024xi1>
    %cst_99 = arith.constant 1.000000e+00 : f32
    %752 = vector.broadcast %cst_99 : f32 to vector<8x1024xf32>
    %753 = arith.select %751, %752, %745 : vector<8x1024xi1>, vector<8x1024xf32>
    %754 = vector.extract_strided_slice %8 {offsets = [0, 93], sizes = [8, 1], strides = [1, 1]} : vector<8x128xf32> to vector<8x1xf32>
    %755 = vector.broadcast %754 : vector<8x1xf32> to vector<8x1024xf32>
    %756 = arith.cmpf oge, %755, %4 : vector<8x1024xf32>
    %757 = vector.broadcast %754 : vector<8x1xf32> to vector<8x1024xf32>
    %758 = arith.cmpf olt, %757, %3 : vector<8x1024xf32>
    %759 = arith.andi %756, %758 : vector<8x1024xi1>
    %cst_100 = arith.constant 1.000000e+00 : f32
    %760 = vector.broadcast %cst_100 : f32 to vector<8x1024xf32>
    %761 = arith.select %759, %760, %753 : vector<8x1024xi1>, vector<8x1024xf32>
    %762 = vector.extract_strided_slice %8 {offsets = [0, 94], sizes = [8, 1], strides = [1, 1]} : vector<8x128xf32> to vector<8x1xf32>
    %763 = vector.broadcast %762 : vector<8x1xf32> to vector<8x1024xf32>
    %764 = arith.cmpf oge, %763, %4 : vector<8x1024xf32>
    %765 = vector.broadcast %762 : vector<8x1xf32> to vector<8x1024xf32>
    %766 = arith.cmpf olt, %765, %3 : vector<8x1024xf32>
    %767 = arith.andi %764, %766 : vector<8x1024xi1>
    %cst_101 = arith.constant 1.000000e+00 : f32
    %768 = vector.broadcast %cst_101 : f32 to vector<8x1024xf32>
    %769 = arith.select %767, %768, %761 : vector<8x1024xi1>, vector<8x1024xf32>
    %770 = vector.extract_strided_slice %8 {offsets = [0, 95], sizes = [8, 1], strides = [1, 1]} : vector<8x128xf32> to vector<8x1xf32>
    %771 = vector.broadcast %770 : vector<8x1xf32> to vector<8x1024xf32>
    %772 = arith.cmpf oge, %771, %4 : vector<8x1024xf32>
    %773 = vector.broadcast %770 : vector<8x1xf32> to vector<8x1024xf32>
    %774 = arith.cmpf olt, %773, %3 : vector<8x1024xf32>
    %775 = arith.andi %772, %774 : vector<8x1024xi1>
    %cst_102 = arith.constant 1.000000e+00 : f32
    %776 = vector.broadcast %cst_102 : f32 to vector<8x1024xf32>
    %777 = arith.select %775, %776, %769 : vector<8x1024xi1>, vector<8x1024xf32>
    %778 = vector.extract_strided_slice %8 {offsets = [0, 96], sizes = [8, 1], strides = [1, 1]} : vector<8x128xf32> to vector<8x1xf32>
    %779 = vector.broadcast %778 : vector<8x1xf32> to vector<8x1024xf32>
    %780 = arith.cmpf oge, %779, %4 : vector<8x1024xf32>
    %781 = vector.broadcast %778 : vector<8x1xf32> to vector<8x1024xf32>
    %782 = arith.cmpf olt, %781, %3 : vector<8x1024xf32>
    %783 = arith.andi %780, %782 : vector<8x1024xi1>
    %cst_103 = arith.constant 1.000000e+00 : f32
    %784 = vector.broadcast %cst_103 : f32 to vector<8x1024xf32>
    %785 = arith.select %783, %784, %777 : vector<8x1024xi1>, vector<8x1024xf32>
    %786 = vector.extract_strided_slice %8 {offsets = [0, 97], sizes = [8, 1], strides = [1, 1]} : vector<8x128xf32> to vector<8x1xf32>
    %787 = vector.broadcast %786 : vector<8x1xf32> to vector<8x1024xf32>
    %788 = arith.cmpf oge, %787, %4 : vector<8x1024xf32>
    %789 = vector.broadcast %786 : vector<8x1xf32> to vector<8x1024xf32>
    %790 = arith.cmpf olt, %789, %3 : vector<8x1024xf32>
    %791 = arith.andi %788, %790 : vector<8x1024xi1>
    %cst_104 = arith.constant 1.000000e+00 : f32
    %792 = vector.broadcast %cst_104 : f32 to vector<8x1024xf32>
    %793 = arith.select %791, %792, %785 : vector<8x1024xi1>, vector<8x1024xf32>
    %794 = vector.extract_strided_slice %8 {offsets = [0, 98], sizes = [8, 1], strides = [1, 1]} : vector<8x128xf32> to vector<8x1xf32>
    %795 = vector.broadcast %794 : vector<8x1xf32> to vector<8x1024xf32>
    %796 = arith.cmpf oge, %795, %4 : vector<8x1024xf32>
    %797 = vector.broadcast %794 : vector<8x1xf32> to vector<8x1024xf32>
    %798 = arith.cmpf olt, %797, %3 : vector<8x1024xf32>
    %799 = arith.andi %796, %798 : vector<8x1024xi1>
    %cst_105 = arith.constant 1.000000e+00 : f32
    %800 = vector.broadcast %cst_105 : f32 to vector<8x1024xf32>
    %801 = arith.select %799, %800, %793 : vector<8x1024xi1>, vector<8x1024xf32>
    %802 = vector.extract_strided_slice %8 {offsets = [0, 99], sizes = [8, 1], strides = [1, 1]} : vector<8x128xf32> to vector<8x1xf32>
    %803 = vector.broadcast %802 : vector<8x1xf32> to vector<8x1024xf32>
    %804 = arith.cmpf oge, %803, %4 : vector<8x1024xf32>
    %805 = vector.broadcast %802 : vector<8x1xf32> to vector<8x1024xf32>
    %806 = arith.cmpf olt, %805, %3 : vector<8x1024xf32>
    %807 = arith.andi %804, %806 : vector<8x1024xi1>
    %cst_106 = arith.constant 1.000000e+00 : f32
    %808 = vector.broadcast %cst_106 : f32 to vector<8x1024xf32>
    %809 = arith.select %807, %808, %801 : vector<8x1024xi1>, vector<8x1024xf32>
    %810 = vector.extract_strided_slice %8 {offsets = [0, 100], sizes = [8, 1], strides = [1, 1]} : vector<8x128xf32> to vector<8x1xf32>
    %811 = vector.broadcast %810 : vector<8x1xf32> to vector<8x1024xf32>
    %812 = arith.cmpf oge, %811, %4 : vector<8x1024xf32>
    %813 = vector.broadcast %810 : vector<8x1xf32> to vector<8x1024xf32>
    %814 = arith.cmpf olt, %813, %3 : vector<8x1024xf32>
    %815 = arith.andi %812, %814 : vector<8x1024xi1>
    %cst_107 = arith.constant 1.000000e+00 : f32
    %816 = vector.broadcast %cst_107 : f32 to vector<8x1024xf32>
    %817 = arith.select %815, %816, %809 : vector<8x1024xi1>, vector<8x1024xf32>
    %818 = vector.extract_strided_slice %8 {offsets = [0, 101], sizes = [8, 1], strides = [1, 1]} : vector<8x128xf32> to vector<8x1xf32>
    %819 = vector.broadcast %818 : vector<8x1xf32> to vector<8x1024xf32>
    %820 = arith.cmpf oge, %819, %4 : vector<8x1024xf32>
    %821 = vector.broadcast %818 : vector<8x1xf32> to vector<8x1024xf32>
    %822 = arith.cmpf olt, %821, %3 : vector<8x1024xf32>
    %823 = arith.andi %820, %822 : vector<8x1024xi1>
    %cst_108 = arith.constant 1.000000e+00 : f32
    %824 = vector.broadcast %cst_108 : f32 to vector<8x1024xf32>
    %825 = arith.select %823, %824, %817 : vector<8x1024xi1>, vector<8x1024xf32>
    %826 = vector.extract_strided_slice %8 {offsets = [0, 102], sizes = [8, 1], strides = [1, 1]} : vector<8x128xf32> to vector<8x1xf32>
    %827 = vector.broadcast %826 : vector<8x1xf32> to vector<8x1024xf32>
    %828 = arith.cmpf oge, %827, %4 : vector<8x1024xf32>
    %829 = vector.broadcast %826 : vector<8x1xf32> to vector<8x1024xf32>
    %830 = arith.cmpf olt, %829, %3 : vector<8x1024xf32>
    %831 = arith.andi %828, %830 : vector<8x1024xi1>
    %cst_109 = arith.constant 1.000000e+00 : f32
    %832 = vector.broadcast %cst_109 : f32 to vector<8x1024xf32>
    %833 = arith.select %831, %832, %825 : vector<8x1024xi1>, vector<8x1024xf32>
    %834 = vector.extract_strided_slice %8 {offsets = [0, 103], sizes = [8, 1], strides = [1, 1]} : vector<8x128xf32> to vector<8x1xf32>
    %835 = vector.broadcast %834 : vector<8x1xf32> to vector<8x1024xf32>
    %836 = arith.cmpf oge, %835, %4 : vector<8x1024xf32>
    %837 = vector.broadcast %834 : vector<8x1xf32> to vector<8x1024xf32>
    %838 = arith.cmpf olt, %837, %3 : vector<8x1024xf32>
    %839 = arith.andi %836, %838 : vector<8x1024xi1>
    %cst_110 = arith.constant 1.000000e+00 : f32
    %840 = vector.broadcast %cst_110 : f32 to vector<8x1024xf32>
    %841 = arith.select %839, %840, %833 : vector<8x1024xi1>, vector<8x1024xf32>
    %842 = vector.extract_strided_slice %8 {offsets = [0, 104], sizes = [8, 1], strides = [1, 1]} : vector<8x128xf32> to vector<8x1xf32>
    %843 = vector.broadcast %842 : vector<8x1xf32> to vector<8x1024xf32>
    %844 = arith.cmpf oge, %843, %4 : vector<8x1024xf32>
    %845 = vector.broadcast %842 : vector<8x1xf32> to vector<8x1024xf32>
    %846 = arith.cmpf olt, %845, %3 : vector<8x1024xf32>
    %847 = arith.andi %844, %846 : vector<8x1024xi1>
    %cst_111 = arith.constant 1.000000e+00 : f32
    %848 = vector.broadcast %cst_111 : f32 to vector<8x1024xf32>
    %849 = arith.select %847, %848, %841 : vector<8x1024xi1>, vector<8x1024xf32>
    %850 = vector.extract_strided_slice %8 {offsets = [0, 105], sizes = [8, 1], strides = [1, 1]} : vector<8x128xf32> to vector<8x1xf32>
    %851 = vector.broadcast %850 : vector<8x1xf32> to vector<8x1024xf32>
    %852 = arith.cmpf oge, %851, %4 : vector<8x1024xf32>
    %853 = vector.broadcast %850 : vector<8x1xf32> to vector<8x1024xf32>
    %854 = arith.cmpf olt, %853, %3 : vector<8x1024xf32>
    %855 = arith.andi %852, %854 : vector<8x1024xi1>
    %cst_112 = arith.constant 1.000000e+00 : f32
    %856 = vector.broadcast %cst_112 : f32 to vector<8x1024xf32>
    %857 = arith.select %855, %856, %849 : vector<8x1024xi1>, vector<8x1024xf32>
    %858 = vector.extract_strided_slice %8 {offsets = [0, 106], sizes = [8, 1], strides = [1, 1]} : vector<8x128xf32> to vector<8x1xf32>
    %859 = vector.broadcast %858 : vector<8x1xf32> to vector<8x1024xf32>
    %860 = arith.cmpf oge, %859, %4 : vector<8x1024xf32>
    %861 = vector.broadcast %858 : vector<8x1xf32> to vector<8x1024xf32>
    %862 = arith.cmpf olt, %861, %3 : vector<8x1024xf32>
    %863 = arith.andi %860, %862 : vector<8x1024xi1>
    %cst_113 = arith.constant 1.000000e+00 : f32
    %864 = vector.broadcast %cst_113 : f32 to vector<8x1024xf32>
    %865 = arith.select %863, %864, %857 : vector<8x1024xi1>, vector<8x1024xf32>
    %866 = vector.extract_strided_slice %8 {offsets = [0, 107], sizes = [8, 1], strides = [1, 1]} : vector<8x128xf32> to vector<8x1xf32>
    %867 = vector.broadcast %866 : vector<8x1xf32> to vector<8x1024xf32>
    %868 = arith.cmpf oge, %867, %4 : vector<8x1024xf32>
    %869 = vector.broadcast %866 : vector<8x1xf32> to vector<8x1024xf32>
    %870 = arith.cmpf olt, %869, %3 : vector<8x1024xf32>
    %871 = arith.andi %868, %870 : vector<8x1024xi1>
    %cst_114 = arith.constant 1.000000e+00 : f32
    %872 = vector.broadcast %cst_114 : f32 to vector<8x1024xf32>
    %873 = arith.select %871, %872, %865 : vector<8x1024xi1>, vector<8x1024xf32>
    %874 = vector.extract_strided_slice %8 {offsets = [0, 108], sizes = [8, 1], strides = [1, 1]} : vector<8x128xf32> to vector<8x1xf32>
    %875 = vector.broadcast %874 : vector<8x1xf32> to vector<8x1024xf32>
    %876 = arith.cmpf oge, %875, %4 : vector<8x1024xf32>
    %877 = vector.broadcast %874 : vector<8x1xf32> to vector<8x1024xf32>
    %878 = arith.cmpf olt, %877, %3 : vector<8x1024xf32>
    %879 = arith.andi %876, %878 : vector<8x1024xi1>
    %cst_115 = arith.constant 1.000000e+00 : f32
    %880 = vector.broadcast %cst_115 : f32 to vector<8x1024xf32>
    %881 = arith.select %879, %880, %873 : vector<8x1024xi1>, vector<8x1024xf32>
    %882 = vector.extract_strided_slice %8 {offsets = [0, 109], sizes = [8, 1], strides = [1, 1]} : vector<8x128xf32> to vector<8x1xf32>
    %883 = vector.broadcast %882 : vector<8x1xf32> to vector<8x1024xf32>
    %884 = arith.cmpf oge, %883, %4 : vector<8x1024xf32>
    %885 = vector.broadcast %882 : vector<8x1xf32> to vector<8x1024xf32>
    %886 = arith.cmpf olt, %885, %3 : vector<8x1024xf32>
    %887 = arith.andi %884, %886 : vector<8x1024xi1>
    %cst_116 = arith.constant 1.000000e+00 : f32
    %888 = vector.broadcast %cst_116 : f32 to vector<8x1024xf32>
    %889 = arith.select %887, %888, %881 : vector<8x1024xi1>, vector<8x1024xf32>
    %890 = vector.extract_strided_slice %8 {offsets = [0, 110], sizes = [8, 1], strides = [1, 1]} : vector<8x128xf32> to vector<8x1xf32>
    %891 = vector.broadcast %890 : vector<8x1xf32> to vector<8x1024xf32>
    %892 = arith.cmpf oge, %891, %4 : vector<8x1024xf32>
    %893 = vector.broadcast %890 : vector<8x1xf32> to vector<8x1024xf32>
    %894 = arith.cmpf olt, %893, %3 : vector<8x1024xf32>
    %895 = arith.andi %892, %894 : vector<8x1024xi1>
    %cst_117 = arith.constant 1.000000e+00 : f32
    %896 = vector.broadcast %cst_117 : f32 to vector<8x1024xf32>
    %897 = arith.select %895, %896, %889 : vector<8x1024xi1>, vector<8x1024xf32>
    %898 = vector.extract_strided_slice %8 {offsets = [0, 111], sizes = [8, 1], strides = [1, 1]} : vector<8x128xf32> to vector<8x1xf32>
    %899 = vector.broadcast %898 : vector<8x1xf32> to vector<8x1024xf32>
    %900 = arith.cmpf oge, %899, %4 : vector<8x1024xf32>
    %901 = vector.broadcast %898 : vector<8x1xf32> to vector<8x1024xf32>
    %902 = arith.cmpf olt, %901, %3 : vector<8x1024xf32>
    %903 = arith.andi %900, %902 : vector<8x1024xi1>
    %cst_118 = arith.constant 1.000000e+00 : f32
    %904 = vector.broadcast %cst_118 : f32 to vector<8x1024xf32>
    %905 = arith.select %903, %904, %897 : vector<8x1024xi1>, vector<8x1024xf32>
    %906 = vector.extract_strided_slice %8 {offsets = [0, 112], sizes = [8, 1], strides = [1, 1]} : vector<8x128xf32> to vector<8x1xf32>
    %907 = vector.broadcast %906 : vector<8x1xf32> to vector<8x1024xf32>
    %908 = arith.cmpf oge, %907, %4 : vector<8x1024xf32>
    %909 = vector.broadcast %906 : vector<8x1xf32> to vector<8x1024xf32>
    %910 = arith.cmpf olt, %909, %3 : vector<8x1024xf32>
    %911 = arith.andi %908, %910 : vector<8x1024xi1>
    %cst_119 = arith.constant 1.000000e+00 : f32
    %912 = vector.broadcast %cst_119 : f32 to vector<8x1024xf32>
    %913 = arith.select %911, %912, %905 : vector<8x1024xi1>, vector<8x1024xf32>
    %914 = vector.extract_strided_slice %8 {offsets = [0, 113], sizes = [8, 1], strides = [1, 1]} : vector<8x128xf32> to vector<8x1xf32>
    %915 = vector.broadcast %914 : vector<8x1xf32> to vector<8x1024xf32>
    %916 = arith.cmpf oge, %915, %4 : vector<8x1024xf32>
    %917 = vector.broadcast %914 : vector<8x1xf32> to vector<8x1024xf32>
    %918 = arith.cmpf olt, %917, %3 : vector<8x1024xf32>
    %919 = arith.andi %916, %918 : vector<8x1024xi1>
    %cst_120 = arith.constant 1.000000e+00 : f32
    %920 = vector.broadcast %cst_120 : f32 to vector<8x1024xf32>
    %921 = arith.select %919, %920, %913 : vector<8x1024xi1>, vector<8x1024xf32>
    %922 = vector.extract_strided_slice %8 {offsets = [0, 114], sizes = [8, 1], strides = [1, 1]} : vector<8x128xf32> to vector<8x1xf32>
    %923 = vector.broadcast %922 : vector<8x1xf32> to vector<8x1024xf32>
    %924 = arith.cmpf oge, %923, %4 : vector<8x1024xf32>
    %925 = vector.broadcast %922 : vector<8x1xf32> to vector<8x1024xf32>
    %926 = arith.cmpf olt, %925, %3 : vector<8x1024xf32>
    %927 = arith.andi %924, %926 : vector<8x1024xi1>
    %cst_121 = arith.constant 1.000000e+00 : f32
    %928 = vector.broadcast %cst_121 : f32 to vector<8x1024xf32>
    %929 = arith.select %927, %928, %921 : vector<8x1024xi1>, vector<8x1024xf32>
    %930 = vector.extract_strided_slice %8 {offsets = [0, 115], sizes = [8, 1], strides = [1, 1]} : vector<8x128xf32> to vector<8x1xf32>
    %931 = vector.broadcast %930 : vector<8x1xf32> to vector<8x1024xf32>
    %932 = arith.cmpf oge, %931, %4 : vector<8x1024xf32>
    %933 = vector.broadcast %930 : vector<8x1xf32> to vector<8x1024xf32>
    %934 = arith.cmpf olt, %933, %3 : vector<8x1024xf32>
    %935 = arith.andi %932, %934 : vector<8x1024xi1>
    %cst_122 = arith.constant 1.000000e+00 : f32
    %936 = vector.broadcast %cst_122 : f32 to vector<8x1024xf32>
    %937 = arith.select %935, %936, %929 : vector<8x1024xi1>, vector<8x1024xf32>
    %938 = vector.extract_strided_slice %8 {offsets = [0, 116], sizes = [8, 1], strides = [1, 1]} : vector<8x128xf32> to vector<8x1xf32>
    %939 = vector.broadcast %938 : vector<8x1xf32> to vector<8x1024xf32>
    %940 = arith.cmpf oge, %939, %4 : vector<8x1024xf32>
    %941 = vector.broadcast %938 : vector<8x1xf32> to vector<8x1024xf32>
    %942 = arith.cmpf olt, %941, %3 : vector<8x1024xf32>
    %943 = arith.andi %940, %942 : vector<8x1024xi1>
    %cst_123 = arith.constant 1.000000e+00 : f32
    %944 = vector.broadcast %cst_123 : f32 to vector<8x1024xf32>
    %945 = arith.select %943, %944, %937 : vector<8x1024xi1>, vector<8x1024xf32>
    %946 = vector.extract_strided_slice %8 {offsets = [0, 117], sizes = [8, 1], strides = [1, 1]} : vector<8x128xf32> to vector<8x1xf32>
    %947 = vector.broadcast %946 : vector<8x1xf32> to vector<8x1024xf32>
    %948 = arith.cmpf oge, %947, %4 : vector<8x1024xf32>
    %949 = vector.broadcast %946 : vector<8x1xf32> to vector<8x1024xf32>
    %950 = arith.cmpf olt, %949, %3 : vector<8x1024xf32>
    %951 = arith.andi %948, %950 : vector<8x1024xi1>
    %cst_124 = arith.constant 1.000000e+00 : f32
    %952 = vector.broadcast %cst_124 : f32 to vector<8x1024xf32>
    %953 = arith.select %951, %952, %945 : vector<8x1024xi1>, vector<8x1024xf32>
    %954 = vector.extract_strided_slice %8 {offsets = [0, 118], sizes = [8, 1], strides = [1, 1]} : vector<8x128xf32> to vector<8x1xf32>
    %955 = vector.broadcast %954 : vector<8x1xf32> to vector<8x1024xf32>
    %956 = arith.cmpf oge, %955, %4 : vector<8x1024xf32>
    %957 = vector.broadcast %954 : vector<8x1xf32> to vector<8x1024xf32>
    %958 = arith.cmpf olt, %957, %3 : vector<8x1024xf32>
    %959 = arith.andi %956, %958 : vector<8x1024xi1>
    %cst_125 = arith.constant 1.000000e+00 : f32
    %960 = vector.broadcast %cst_125 : f32 to vector<8x1024xf32>
    %961 = arith.select %959, %960, %953 : vector<8x1024xi1>, vector<8x1024xf32>
    %962 = vector.extract_strided_slice %8 {offsets = [0, 119], sizes = [8, 1], strides = [1, 1]} : vector<8x128xf32> to vector<8x1xf32>
    %963 = vector.broadcast %962 : vector<8x1xf32> to vector<8x1024xf32>
    %964 = arith.cmpf oge, %963, %4 : vector<8x1024xf32>
    %965 = vector.broadcast %962 : vector<8x1xf32> to vector<8x1024xf32>
    %966 = arith.cmpf olt, %965, %3 : vector<8x1024xf32>
    %967 = arith.andi %964, %966 : vector<8x1024xi1>
    %cst_126 = arith.constant 1.000000e+00 : f32
    %968 = vector.broadcast %cst_126 : f32 to vector<8x1024xf32>
    %969 = arith.select %967, %968, %961 : vector<8x1024xi1>, vector<8x1024xf32>
    %970 = vector.extract_strided_slice %8 {offsets = [0, 120], sizes = [8, 1], strides = [1, 1]} : vector<8x128xf32> to vector<8x1xf32>
    %971 = vector.broadcast %970 : vector<8x1xf32> to vector<8x1024xf32>
    %972 = arith.cmpf oge, %971, %4 : vector<8x1024xf32>
    %973 = vector.broadcast %970 : vector<8x1xf32> to vector<8x1024xf32>
    %974 = arith.cmpf olt, %973, %3 : vector<8x1024xf32>
    %975 = arith.andi %972, %974 : vector<8x1024xi1>
    %cst_127 = arith.constant 1.000000e+00 : f32
    %976 = vector.broadcast %cst_127 : f32 to vector<8x1024xf32>
    %977 = arith.select %975, %976, %969 : vector<8x1024xi1>, vector<8x1024xf32>
    %978 = vector.extract_strided_slice %8 {offsets = [0, 121], sizes = [8, 1], strides = [1, 1]} : vector<8x128xf32> to vector<8x1xf32>
    %979 = vector.broadcast %978 : vector<8x1xf32> to vector<8x1024xf32>
    %980 = arith.cmpf oge, %979, %4 : vector<8x1024xf32>
    %981 = vector.broadcast %978 : vector<8x1xf32> to vector<8x1024xf32>
    %982 = arith.cmpf olt, %981, %3 : vector<8x1024xf32>
    %983 = arith.andi %980, %982 : vector<8x1024xi1>
    %cst_128 = arith.constant 1.000000e+00 : f32
    %984 = vector.broadcast %cst_128 : f32 to vector<8x1024xf32>
    %985 = arith.select %983, %984, %977 : vector<8x1024xi1>, vector<8x1024xf32>
    %986 = vector.extract_strided_slice %8 {offsets = [0, 122], sizes = [8, 1], strides = [1, 1]} : vector<8x128xf32> to vector<8x1xf32>
    %987 = vector.broadcast %986 : vector<8x1xf32> to vector<8x1024xf32>
    %988 = arith.cmpf oge, %987, %4 : vector<8x1024xf32>
    %989 = vector.broadcast %986 : vector<8x1xf32> to vector<8x1024xf32>
    %990 = arith.cmpf olt, %989, %3 : vector<8x1024xf32>
    %991 = arith.andi %988, %990 : vector<8x1024xi1>
    %cst_129 = arith.constant 1.000000e+00 : f32
    %992 = vector.broadcast %cst_129 : f32 to vector<8x1024xf32>
    %993 = arith.select %991, %992, %985 : vector<8x1024xi1>, vector<8x1024xf32>
    %994 = vector.extract_strided_slice %8 {offsets = [0, 123], sizes = [8, 1], strides = [1, 1]} : vector<8x128xf32> to vector<8x1xf32>
    %995 = vector.broadcast %994 : vector<8x1xf32> to vector<8x1024xf32>
    %996 = arith.cmpf oge, %995, %4 : vector<8x1024xf32>
    %997 = vector.broadcast %994 : vector<8x1xf32> to vector<8x1024xf32>
    %998 = arith.cmpf olt, %997, %3 : vector<8x1024xf32>
    %999 = arith.andi %996, %998 : vector<8x1024xi1>
    %cst_130 = arith.constant 1.000000e+00 : f32
    %1000 = vector.broadcast %cst_130 : f32 to vector<8x1024xf32>
    %1001 = arith.select %999, %1000, %993 : vector<8x1024xi1>, vector<8x1024xf32>
    %1002 = vector.extract_strided_slice %8 {offsets = [0, 124], sizes = [8, 1], strides = [1, 1]} : vector<8x128xf32> to vector<8x1xf32>
    %1003 = vector.broadcast %1002 : vector<8x1xf32> to vector<8x1024xf32>
    %1004 = arith.cmpf oge, %1003, %4 : vector<8x1024xf32>
    %1005 = vector.broadcast %1002 : vector<8x1xf32> to vector<8x1024xf32>
    %1006 = arith.cmpf olt, %1005, %3 : vector<8x1024xf32>
    %1007 = arith.andi %1004, %1006 : vector<8x1024xi1>
    %cst_131 = arith.constant 1.000000e+00 : f32
    %1008 = vector.broadcast %cst_131 : f32 to vector<8x1024xf32>
    %1009 = arith.select %1007, %1008, %1001 : vector<8x1024xi1>, vector<8x1024xf32>
    %1010 = vector.extract_strided_slice %8 {offsets = [0, 125], sizes = [8, 1], strides = [1, 1]} : vector<8x128xf32> to vector<8x1xf32>
    %1011 = vector.broadcast %1010 : vector<8x1xf32> to vector<8x1024xf32>
    %1012 = arith.cmpf oge, %1011, %4 : vector<8x1024xf32>
    %1013 = vector.broadcast %1010 : vector<8x1xf32> to vector<8x1024xf32>
    %1014 = arith.cmpf olt, %1013, %3 : vector<8x1024xf32>
    %1015 = arith.andi %1012, %1014 : vector<8x1024xi1>
    %cst_132 = arith.constant 1.000000e+00 : f32
    %1016 = vector.broadcast %cst_132 : f32 to vector<8x1024xf32>
    %1017 = arith.select %1015, %1016, %1009 : vector<8x1024xi1>, vector<8x1024xf32>
    %1018 = vector.extract_strided_slice %8 {offsets = [0, 126], sizes = [8, 1], strides = [1, 1]} : vector<8x128xf32> to vector<8x1xf32>
    %1019 = vector.broadcast %1018 : vector<8x1xf32> to vector<8x1024xf32>
    %1020 = arith.cmpf oge, %1019, %4 : vector<8x1024xf32>
    %1021 = vector.broadcast %1018 : vector<8x1xf32> to vector<8x1024xf32>
    %1022 = arith.cmpf olt, %1021, %3 : vector<8x1024xf32>
    %1023 = arith.andi %1020, %1022 : vector<8x1024xi1>
    %cst_133 = arith.constant 1.000000e+00 : f32
    %1024 = vector.broadcast %cst_133 : f32 to vector<8x1024xf32>
    %1025 = arith.select %1023, %1024, %1017 : vector<8x1024xi1>, vector<8x1024xf32>
    %1026 = vector.extract_strided_slice %8 {offsets = [0, 127], sizes = [8, 1], strides = [1, 1]} : vector<8x128xf32> to vector<8x1xf32>
    %1027 = vector.broadcast %1026 : vector<8x1xf32> to vector<8x1024xf32>
    %1028 = arith.cmpf oge, %1027, %4 : vector<8x1024xf32>
    %1029 = vector.broadcast %1026 : vector<8x1xf32> to vector<8x1024xf32>
    %1030 = arith.cmpf olt, %1029, %3 : vector<8x1024xf32>
    %1031 = arith.andi %1028, %1030 : vector<8x1024xi1>
    %cst_134 = arith.constant 1.000000e+00 : f32
    %1032 = vector.broadcast %cst_134 : f32 to vector<8x1024xf32>
    %1033 = arith.select %1031, %1032, %1025 : vector<8x1024xi1>, vector<8x1024xf32>
    %c0_135 = arith.constant 0 : index
    %c0_136 = arith.constant 0 : index
    %1034 = vector.load %arg8[%c0_135, %c0_136] : memref<8x1024xf32, #tpu.memory_space<vmem>>, vector<8x1024xf32>
    tpu.vector_store %arg8[%c0_135, %c0_136], %1033 {strides = array<i32>} : memref<8x1024xf32, #tpu.memory_space<vmem>>, vector<8x1024xf32>,
    %c3_i32 = arith.constant 3 : i32
    %1035 = arith.cmpi eq, %arg1, %c3_i32 : i32
    %1036 = arith.extui %1035 : i1 to i32
    %c0_i32_137 = arith.constant 0 : i32
    %1037 = arith.cmpi ne, %1036, %c0_i32_137 : i32
    scf.if %1037 {
      %c0_138 = arith.constant 0 : index
      %c0_139 = arith.constant 0 : index
      %1038 = vector.load %arg8[%c0_138, %c0_139] : memref<8x1024xf32, #tpu.memory_space<vmem>>, vector<8x1024xf32>
      %cst_140 = arith.constant 5.000000e-01 : f32
      %1039 = vector.broadcast %cst_140 : f32 to vector<8x1024xf32>
      %1040 = arith.cmpf ogt, %1038, %1039 : vector<8x1024xf32>
      %c0_141 = arith.constant 0 : index
      %c0_142 = arith.constant 0 : index
      %1041 = vector.load %arg7[%c0_141, %c0_142] : memref<8x1024xf32, #tpu.memory_space<vmem>>, vector<8x1024xf32>
      %cst_143 = arith.constant 0.000000e+00 : f32
      %1042 = vector.broadcast %cst_143 : f32 to vector<8x1024xf32>
      %1043 = arith.select %1040, %1041, %1042 : vector<8x1024xi1>, vector<8x1024xf32>
      %c0_144 = arith.constant 0 : index
      %c0_145 = arith.constant 0 : index
      %1044 = vector.load %arg4[%c0_144, %c0_145] : memref<8x1024xf32, #tpu.memory_space<vmem>>, vector<8x1024xf32>
      tpu.vector_store %arg4[%c0_144, %c0_145], %1043 {strides = array<i32>} : memref<8x1024xf32, #tpu.memory_space<vmem>>, vector<8x1024xf32>,
    } else {
    }
    return
  }
  func.func @transform_0(%arg0: i32, %arg1: i32) -> (i32, i32) {
    %c0_i32 = arith.constant 0 : i32
    %c0_i32_0 = arith.constant 0 : i32
    return %arg0, %c0_i32 : i32, i32
  }
  func.func @transform_1(%arg0: i32, %arg1: i32) -> (i32, i32) {
    %c0_i32 = arith.constant 0 : i32
    return %arg0, %arg1 : i32, i32
  }
  func.func @transform_2(%arg0: i32, %arg1: i32) -> (i32, i32) {
    %c0_i32 = arith.constant 0 : i32
    %c0_i32_0 = arith.constant 0 : i32
    return %arg0, %c0_i32 : i32, i32
  }
}

</mosaic_0001>

<llo_original>
// kernel: tpu_custom_call.1
$region0: #{tpu_custom_call.1}
  #allocation0 [shape = 'u32[]', space=smem, size = 0x4, offset = 0x4, fixed_abs, tag = 'smem constant byte address 0x4 - core index']
  #allocation1 [shape = 'u32[144,128]{1,0:T(1,128)}', space=vmem, size = 0x12000, scoped, tag = 'internal scratch']
  #allocation2 [shape = 'f32[8,1024]{1,0:T(8,128)}', space=vmem, size = 0x8000, scoped, tag = 'scratch operand']
  #allocation3 [shape = 'f32[8,1024]{1,0:T(8,128)}', space=vmem, size = 0x8000, scoped, tag = 'scratch operand']
  #allocation4 [shape = 'f32[8,1024]{1,0:T(8,128)}', space=vmem, size = 0x8000, scoped, tag = 'scratch operand']
  #allocation5 [shape = 'f32[8,1024]{1,0:T(8,128)}', space=vmem, size = 0x8000, scoped, tag = 'scratch operand']
  %s0 = inlined_call_operand.hbm [shape: f32[8,1024], index: 0, kind: input, shape index: {}]
  %s1 = inlined_call_operand.hbm [shape: f32[8,512], index: 1, kind: input, shape index: {}]
  %s2 = inlined_call_operand.hbm [shape: f32[8,1024], index: 2, kind: output, shape index: {}]
  %s3 = sld [smem:[#allocation0]]
  $region57: #{tpu_custom_call.1} parent=0
    _
  %s5 = ssub.s32 1, %s3
  %s6 = scalar_select 0, %s5, %s3
  $region1: #{tpu_custom_call.1} parent=0
    #allocation6 [shape = 'u8[32768]{0}', space=vmem, size = 0x8000, scoped, tag = 'input window, operand 0, single buffered']
    #allocation7 [shape = 's32[2]{0}', space=sflag, size = 0x8, scoped, tag = 'scoped memory for tpu_custom_call.1']
    #allocation8 [shape = 's32[2]{0}', space=sflag, size = 0x8, scoped, tag = 'scoped memory for tpu_custom_call.1']
    #allocation9 [shape = 'u8[8192]{0}', space=vmem, size = 0x2000, scoped, tag = 'input window, operand 1']
    #allocation10 [shape = 's32[2]{0}', space=sflag, size = 0x8, scoped, tag = 'scoped memory for tpu_custom_call.1']
    #allocation11 [shape = 'u8[32768]{0}', space=vmem, size = 0x8000, scoped, tag = 'output window, operand 0, single buffered']
    %7 = vsyncpa [#allocation7], 0
    %8 = vsyncpa [#allocation10], 0
    %s9 = scalar_lea.sflag [#allocation10], 1
    %10 = vsyncpa %s9, 0
    %11 = vsyncpa [#allocation8], 0
    loop: start=0, step=1, limit=6
    $region2: #{tpu_custom_call.1} parent=1 // loop_pre_header
      _
    $region3: #{tpu_custom_call.1} parent=1 // loop_header
      %s13 = sphi 0, %s17
      %p14 = scmp.ge.s32.totalorder %s13, 6
      %s20 = sphi 0, %s32
      %s21 = sphi 0, %s28
      %s22 = sphi 0, %s20
      %s23 = sphi 0, %s21
      %s24 = sphi 0, %s22
      %s25 = sphi 0, %s23
      %s35 = sphi 0, %s37
      %s38 = sphi 0, %s35
      %s39 = sphi 0, %s38
      %s55 = sphi 0, %s39
      %s63 = sphi 0, %s65
      %s66 = sphi 0, %s63
      %s67 = sphi 0, %s66
      %s83 = sphi 0, %s67
      %s89 = sphi 0, %s91
      %s92 = sphi 0, %s89
      %s93 = sphi 0, %s92
      %s109 = sphi 0, %s93
    $region4: #{tpu_custom_call.1} parent=1 // loop_header_branch
      %16 = sbr.rel (%p14) target = $region8
    $region5: #{tpu_custom_call.1} parent=1 // loop_body
      %s18 = ssub.s32 %s13, 1
      %s19 = ssub.s32 %s13, 2
      %s26 = sadd.s32 1, %s21
      %p27 = scmp.ge.s32.totalorder %s26, 4
      %s28 = scalar_select %p27, 0, %s26
      %s29 = sadd.s32 1, %s20
      %s30 = scalar_select %p27, %s29, %s20
      %p31 = scmp.ge.s32.totalorder %s30, 1
      %s32 = scalar_select %p31, 0, %s30
      %s33 = ssub.s32 %s20, %s32
      %p34 = scmp.eq.s32.totalorder %s33, 0
      %s36 = sadd.s32 %s35, 1
      %s37 = scalar_select %p34, %s35, %s36
      %p40 = pneg %p34
      %p41 = scmp.eq.s32.totalorder %s13, 3
      %p42 = por %p40, %p41
      %p43 = scmp.ne.s32.totalorder %s35, %s38
      %p44 = scmp.eq.s32.totalorder %s13, 0
      %p45 = por %p43, %p44
      %p46 = scmp.ne.s32.totalorder %s35, %s38
      %p47 = scmp.eq.s32.totalorder %s18, 3
      %p48 = por %p46, %p47
      %p49 = scmp.ne.s32.totalorder %s38, %s39
      %p50 = scmp.eq.s32.totalorder %s18, 0
      %p51 = por %p49, %p50
      %p52 = scmp.ne.s32.totalorder %s38, %s39
      %p53 = scmp.eq.s32.totalorder %s19, 3
      %p54 = por %p52, %p53
      %p56 = scmp.ne.s32.totalorder %s39, %s55
      %p57 = scmp.eq.s32.totalorder %s19, 0
      %p58 = por %p56, %p57
      %s59 = ssub.s32 %s20, %s32
      %s60 = ssub.s32 %s21, %s28
      %s61 = sor.u32 %s59, %s60
      %p62 = scmp.eq.s32.totalorder %s61, 0
      %s64 = sadd.s32 %s63, 1
      %s65 = scalar_select %p62, %s63, %s64
      %p68 = pneg %p62
      %p69 = scmp.eq.s32.totalorder %s13, 3
      %p70 = por %p68, %p69
      %p71 = scmp.ne.s32.totalorder %s63, %s66
      %p72 = scmp.eq.s32.totalorder %s13, 0
      %p73 = por %p71, %p72
      %p74 = scmp.ne.s32.totalorder %s63, %s66
      %p75 = scmp.eq.s32.totalorder %s18, 3
      %p76 = por %p74, %p75
      %p77 = scmp.ne.s32.totalorder %s66, %s67
      %p78 = scmp.eq.s32.totalorder %s18, 0
      %p79 = por %p77, %p78
      %p80 = scmp.ne.s32.totalorder %s66, %s67
      %p81 = scmp.eq.s32.totalorder %s19, 3
      %p82 = por %p80, %p81
      %p84 = scmp.ne.s32.totalorder %s67, %s83
      %p85 = scmp.eq.s32.totalorder %s19, 0
      %p86 = por %p84, %p85
      %s87 = ssub.s32 %s20, %s32
      %p88 = scmp.eq.s32.totalorder %s87, 0
      %s90 = sadd.s32 %s89, 1
      %s91 = scalar_select %p88, %s89, %s90
      %p94 = pneg %p88
      %p95 = scmp.eq.s32.totalorder %s13, 3
      %p96 = por %p94, %p95
      %p97 = scmp.ne.s32.totalorder %s89, %s92
      %p98 = scmp.eq.s32.totalorder %s13, 0
      %p99 = por %p97, %p98
      %p100 = scmp.ne.s32.totalorder %s89, %s92
      %p101 = scmp.eq.s32.totalorder %s18, 3
      %p102 = por %p100, %p101
      %p103 = scmp.ne.s32.totalorder %s92, %s93
      %p104 = scmp.eq.s32.totalorder %s18, 0
      %p105 = por %p103, %p104
      %p106 = scmp.ne.s32.totalorder %s92, %s93
      %p107 = scmp.eq.s32.totalorder %s19, 3
      %p108 = por %p106, %p107
      %p110 = scmp.ne.s32.totalorder %s93, %s109
      %p111 = scmp.eq.s32.totalorder %s19, 0
      %p112 = por %p110, %p111
      %p113 = scmp.le.s32.totalorder 1, %s13
      %p114 = scmp.lt.s32.totalorder %s13, 5
      %p115 = pnand %p113, %p114
      %p116 = pneg %p115
      // Predicated region
      $region9: #{tpu_custom_call.1} parent=5 // pred_check
        _
      $region10: #{tpu_custom_call.1} parent=5 // pred_check_branch
        %118 = sbr.rel (%p115) target = $region12
      $region11: #{tpu_custom_call.1} parent=5 // pred_region
        %s119 = ssub.s32 %s13, 1
        // Predicated region
        $region13: #{tpu_custom_call.1} parent=11 // pred_check
          %p120 = pneg %p51
        $region14: #{tpu_custom_call.1} parent=11 // pred_check_branch
          %122 = sbr.rel (%p120) target = $region16
        $region15: #{tpu_custom_call.1} parent=11 // pred_region
          %s124 = ssub.s32 1024, 1024
          %125 = vsyncadd [#allocation7], %s124
          %s126 = smul.addr %s22, 8
          %s127 = smul.addr %s126, 128
          %s128 = scalar_lea.hbm %s0, %s127
          %s130 = sshll.u32 [#allocation6], 4
          %s131 = int_to_ptr.vmem [resolvable:$true] %s130
          %133 = dma.hbm_to_vmem [thread:$0]  %s128, 1024, %s131, [#allocation7]
        $region16: #{tpu_custom_call.1} parent=11 // pred_fallthru
          _
      $region12: #{tpu_custom_call.1} parent=5 // pred_fallthru
        _
      %p134 = scmp.lt.s32.totalorder %s13, 4
      // Predicated region
      $region17: #{tpu_custom_call.1} parent=5 // pred_check
        %p135 = pneg %p134
      $region18: #{tpu_custom_call.1} parent=5 // pred_check_branch
        %137 = sbr.rel (%p135) target = $region20
      $region19: #{tpu_custom_call.1} parent=5 // pred_region
        // Predicated region
        $region21: #{tpu_custom_call.1} parent=19 // pred_check
          %p138 = pneg %p73
        $region22: #{tpu_custom_call.1} parent=19 // pred_check_branch
          %140 = sbr.rel (%p138) target = $region24
        $region23: #{tpu_custom_call.1} parent=19 // pred_region
          %s141 = sand.u32 %s63, 1
          %s142 = scalar_lea.sflag [#allocation10], %s141
          %s143 = sand.u32 %s63, 1
          %s144 = smul.addr %s143, 8
          %s145 = scalar_lea.vmem [#allocation9], %s144
          %s147 = ssub.s32 128, 128
          %148 = vsyncadd %s142, %s147
          %s149 = smul.addr %s20, 4
          %s150 = sadd.s32 %s21, %s149
          %s151 = smul.addr %s150, 128
          %s152 = scalar_lea.hbm %s1, %s151
          %s154 = sshll.u32 %s145, 4
          %s155 = int_to_ptr.vmem [resolvable:$true] %s154
          %157 = dma.hbm_to_vmem [thread:$0]  %s152, 128, %s155, %s142
        $region24: #{tpu_custom_call.1} parent=19 // pred_fallthru
          _
      $region20: #{tpu_custom_call.1} parent=5 // pred_fallthru
        _
      %p158 = scmp.le.s32.totalorder 1, %s13
      %p159 = scmp.lt.s32.totalorder %s13, 5
      %p160 = pnand %p158, %p159
      %p161 = pneg %p160
      // Predicated region
      $region25: #{tpu_custom_call.1} parent=5 // pred_check
        _
      $region26: #{tpu_custom_call.1} parent=5 // pred_check_branch
        %163 = sbr.rel (%p160) target = $region28
      $region27: #{tpu_custom_call.1} parent=5 // pred_region
        %s164 = ssub.s32 %s13, 1
        // Predicated region
        $region29: #{tpu_custom_call.1} parent=27 // pred_check
          %p165 = pneg %p51
        $region30: #{tpu_custom_call.1} parent=27 // pred_check_branch
          %167 = sbr.rel (%p165) target = $region32
        $region31: #{tpu_custom_call.1} parent=27 // pred_region
          %168 = dma.done [#allocation7], 1024
        $region32: #{tpu_custom_call.1} parent=27 // pred_fallthru
          _
        %s169 = sand.u32 %s66, 1
        %s170 = scalar_lea.sflag [#allocation10], %s169
        %s171 = sand.u32 %s66, 1
        %s172 = smul.addr %s171, 8
        %s173 = scalar_lea.vmem [#allocation9], %s172
        // Predicated region
        $region33: #{tpu_custom_call.1} parent=27 // pred_check
          %p174 = pneg %p79
        $region34: #{tpu_custom_call.1} parent=27 // pred_check_branch
          %176 = sbr.rel (%p174) target = $region36
        $region35: #{tpu_custom_call.1} parent=27 // pred_region
          %177 = dma.done %s170, 128
        $region36: #{tpu_custom_call.1} parent=27 // pred_fallthru
          _
        %p178 = pneg %p51
        %p179 = pneg %p48
        %s180 = sand.u32 %s66, 1
        %s181 = scalar_lea.sflag [#allocation10], %s180
        %s182 = sand.u32 %s66, 1
        %s183 = smul.addr %s182, 8
        %s184 = scalar_lea.vmem [#allocation9], %s183
        %p185 = pneg %p79
        %p186 = pneg %p76
        %p187 = pneg %p105
        %p188 = pneg %p102
        %p189 = scmp.eq.s32.totalorder %s23, 0
        // Predicated region
        $region37: #{tpu_custom_call.1} parent=27 // pred_check
          %p190 = pneg %p189
        $region38: #{tpu_custom_call.1} parent=27 // pred_check_branch
          %192 = sbr.rel (%p190) target = $region40
        $region39: #{tpu_custom_call.1} parent=27 // pred_region
          %v193 = vld [vmem:[#allocation6] sm:$0xff]
          %v194 = vld [vmem:[#allocation6 + $0x8] sm:$0xff]
          %v195 = vld [vmem:[#allocation6 + $0x10] sm:$0xff]
          %v196 = vld [vmem:[#allocation6 + $0x18] sm:$0xff]
          %v197 = vld [vmem:[#allocation6 + $0x20] sm:$0xff]
          %v198 = vld [vmem:[#allocation6 + $0x28] sm:$0xff]
          %v199 = vld [vmem:[#allocation6 + $0x30] sm:$0xff]
          %v200 = vld [vmem:[#allocation6 + $0x38] sm:$0xff]
          %v201 = vand.u32 2147483647, %v193
          %v202 = vand.u32 2147483647, %v194
          %v203 = vand.u32 2147483647, %v195
          %v204 = vand.u32 2147483647, %v196
          %v205 = vand.u32 2147483647, %v197
          %v206 = vand.u32 2147483647, %v198
          %v207 = vand.u32 2147483647, %v199
          %v208 = vand.u32 2147483647, %v200
          %v209 = vadd.f32 %v201, %v202
          %v210 = vadd.f32 %v209, %v203
          %v211 = vadd.f32 %v210, %v204
          %v212 = vadd.f32 %v211, %v205
          %v213 = vadd.f32 %v212, %v206
          %v214 = vadd.f32 %v213, %v207
          %v215 = vadd.f32 %v214, %v208
          %216 = vadd.xlane.f32.xlu0 %v215
          %v217 = vpop.xlane.xlu0 %216
          %v218 = vadd.f32 %v217, 1e-10
          %v219 = vrcp.pop %v218
          %v220 = vmul.f32 %v201, %v219
          %v221 = vmul.f32 %v202, %v219
          %v222 = vmul.f32 %v203, %v219
          %v223 = vmul.f32 %v204, %v219
          %v224 = vmul.f32 %v205, %v219
          %v225 = vmul.f32 %v206, %v219
          %v226 = vmul.f32 %v207, %v219
          %v227 = vmul.f32 %v208, %v219
          %v228 = vlaneseq
          %v229 = vshrl.u32 %v228, 7
          %v230 = vadd.s32 %v229, 8
          %v231 = vadd.s32 %v229, 16
          %v232 = vadd.s32 %v229, 24
          %v233 = vadd.s32 %v229, 32
          %v234 = vadd.s32 %v229, 40
          %v235 = vadd.s32 %v229, 48
          %v236 = vadd.s32 %v229, 56
          %v237 = vadd.s32 %v229, 64
          %v238 = vadd.s32 %v229, 72
          %v239 = vadd.s32 %v229, 80
          %v240 = vadd.s32 %v229, 88
          %v241 = vadd.s32 %v229, 96
          %v242 = vadd.s32 %v229, 104
          %v243 = vadd.s32 %v229, 112
          %v244 = vadd.s32 %v229, 120
          %v245 = vlaneseq
          %v246 = vand.u32 %v245, 127
          %vm247 = vcmp.le.s32.totalorder %v229, %v246
          %vm248 = vcmp.le.s32.totalorder %v230, %v246
          %vm249 = vcmp.le.s32.totalorder %v231, %v246
          %vm250 = vcmp.le.s32.totalorder %v232, %v246
          %vm251 = vcmp.le.s32.totalorder %v233, %v246
          %vm252 = vcmp.le.s32.totalorder %v234, %v246
          %vm253 = vcmp.le.s32.totalorder %v235, %v246
          %vm254 = vcmp.le.s32.totalorder %v236, %v246
          %vm255 = vcmp.le.s32.totalorder %v237, %v246
          %vm256 = vcmp.le.s32.totalorder %v238, %v246
          %vm257 = vcmp.le.s32.totalorder %v239, %v246
          %vm258 = vcmp.le.s32.totalorder %v240, %v246
          %vm259 = vcmp.le.s32.totalorder %v241, %v246
          %vm260 = vcmp.le.s32.totalorder %v242, %v246
          %vm261 = vcmp.le.s32.totalorder %v243, %v246
          %vm262 = vcmp.le.s32.totalorder %v244, %v246
          %v263 = vsel %vm247, 1, 0
          %v264 = vsel %vm248, 1, 0
          %v265 = vsel %vm249, 1, 0
          %v266 = vsel %vm250, 1, 0
          %v267 = vsel %vm251, 1, 0
          %v268 = vsel %vm252, 1, 0
          %v269 = vsel %vm253, 1, 0
          %v270 = vsel %vm254, 1, 0
          %v271 = vsel %vm255, 1, 0
          %v272 = vsel %vm256, 1, 0
          %v273 = vsel %vm257, 1, 0
          %v274 = vsel %vm258, 1, 0
          %v275 = vsel %vm259, 1, 0
          %v276 = vsel %vm260, 1, 0
          %v277 = vsel %vm261, 1, 0
          %v278 = vsel %vm262, 1, 0
          %v279 = vcvt.s32.f32 %v263
          %v280 = vcvt.s32.f32 %v264
          %v281 = vcvt.s32.f32 %v265
          %v282 = vcvt.s32.f32 %v266
          %v283 = vcvt.s32.f32 %v267
          %v284 = vcvt.s32.f32 %v268
          %v285 = vcvt.s32.f32 %v269
          %v286 = vcvt.s32.f32 %v270
          %v287 = vcvt.s32.f32 %v271
          %v288 = vcvt.s32.f32 %v272
          %v289 = vcvt.s32.f32 %v273
          %v290 = vcvt.s32.f32 %v274
          %v291 = vcvt.s32.f32 %v275
          %v292 = vcvt.s32.f32 %v276
          %v293 = vcvt.s32.f32 %v277
          %v294 = vcvt.s32.f32 %v278
          %295 = vmatprep.subr.mxu0 0.0
          %296 = vmatpush1.msra.mxu0 %v279
          %297 = vmatprep.subr.mxu0 0.0
          %298 = vmatpush1.msra.mxu0 %v280
          %299 = vmatprep.subr.mxu0 0.0
          %300 = vmatpush1.msra.mxu0 %v281
          %301 = vmatprep.subr.mxu0 0.0
          %302 = vmatpush1.msra.mxu0 %v282
          %303 = vmatprep.subr.mxu0 0.0
          %304 = vmatpush1.msra.mxu0 %v283
          %305 = vmatprep.subr.mxu0 0.0
          %306 = vmatpush1.msra.mxu0 %v284
          %307 = vmatprep.subr.mxu0 0.0
          %308 = vmatpush1.msra.mxu0 %v285
          %309 = vmatprep.subr.mxu0 0.0
          %310 = vmatpush1.msra.mxu0 %v286
          %311 = vmatprep.subr.mxu0 0.0
          %312 = vmatpush1.msra.mxu0 %v287
          %313 = vmatprep.subr.mxu0 0.0
          %314 = vmatpush1.msra.mxu0 %v288
          %315 = vmatprep.subr.mxu0 0.0
          %316 = vmatpush1.msra.mxu0 %v289
          %317 = vmatprep.subr.mxu0 0.0
          %318 = vmatpush1.msra.mxu0 %v290
          %319 = vmatprep.subr.mxu0 0.0
          %320 = vmatpush1.msra.mxu0 %v291
          %321 = vmatprep.subr.mxu0 0.0
          %322 = vmatpush1.msra.mxu0 %v292
          %323 = vmatprep.subr.mxu0 0.0
          %324 = vmatpush1.msra.mxu0 %v293
          %325 = vmatprep.subr.mxu0 0.0
          %326 = vmatpush1.msra.mxu0 %v294
          %327 = vmatprep.subr.mxu0 0.0
          %328 = vmatpush1.msra.mxu0 0.0
          %329 = vmatprep.subr.mxu0 0.0
          %330 = vmatpush1.msra.mxu0 0.0
          %331 = vmatprep.subr.mxu0 0.0
          %332 = vmatpush1.msra.mxu0 0.0
          %333 = vmatprep.subr.mxu0 0.0
          %334 = vmatpush1.msra.mxu0 0.0
          %335 = vmatprep.subr.mxu0 0.0
          %336 = vmatpush1.msra.mxu0 0.0
          %337 = vmatprep.subr.mxu0 0.0
          %338 = vmatpush1.msra.mxu0 0.0
          %339 = vmatprep.subr.mxu0 0.0
          %340 = vmatpush1.msra.mxu0 0.0
          %341 = vmatprep.subr.mxu0 0.0
          %342 = vmatpush1.msra.mxu0 0.0
          %343 = vmatprep.subr.mxu0 0.0
          %344 = vmatpush1.msra.mxu0 0.0
          %345 = vmatprep.subr.mxu0 0.0
          %346 = vmatpush1.msra.mxu0 0.0
          %347 = vmatprep.subr.mxu0 0.0
          %348 = vmatpush1.msra.mxu0 0.0
          %349 = vmatprep.subr.mxu0 0.0
          %350 = vmatpush1.msra.mxu0 0.0
          %351 = vmatprep.subr.mxu0 0.0
          %352 = vmatpush1.msra.mxu0 0.0
          %353 = vmatprep.subr.mxu0 0.0
          %354 = vmatpush1.msra.mxu0 0.0
          %355 = vmatprep.subr.mxu0 0.0
          %356 = vmatpush1.msra.mxu0 0.0
          %357 = vmatprep.subr.mxu0 0.0
          %358 = vmatpush1.msra.mxu0 0.0
          %359 = vmatprep.mubr.f32.mxu0 0.0
          %360 = vmatmul.mubr.f32.gmra.mrb[0].mxu0 %v220
          %v361 = vpop.f32.mrb[0].mxu0
          %v362 = vadd.f32 0.0, %v361
          %v363 = vpop.f32.mrb[0].mxu0
          %364 = vdwg.mxu0
          %365 = vst [vmem:[#allocation2] sm:$0xff] %v362
          %367 = vset.pattern.permute.xlu0 127
          %368 = vperm.xlu0 %367, %v362
          %v369 = vpop.permute.xlu0 %368
          %371 = vmatprep.subr.mxu0 0.0
          %372 = vmatpush1.msra.mxu0 %v279
          %373 = vmatprep.subr.mxu0 0.0
          %374 = vmatpush1.msra.mxu0 %v280
          %375 = vmatprep.subr.mxu0 0.0
          %376 = vmatpush1.msra.mxu0 %v281
          %377 = vmatprep.subr.mxu0 0.0
          %378 = vmatpush1.msra.mxu0 %v282
          %379 = vmatprep.subr.mxu0 0.0
          %380 = vmatpush1.msra.mxu0 %v283
          %381 = vmatprep.subr.mxu0 0.0
          %382 = vmatpush1.msra.mxu0 %v284
          %383 = vmatprep.subr.mxu0 0.0
          %384 = vmatpush1.msra.mxu0 %v285
          %385 = vmatprep.subr.mxu0 0.0
          %386 = vmatpush1.msra.mxu0 %v286
          %387 = vmatprep.subr.mxu0 0.0
          %388 = vmatpush1.msra.mxu0 %v287
          %389 = vmatprep.subr.mxu0 0.0
          %390 = vmatpush1.msra.mxu0 %v288
          %391 = vmatprep.subr.mxu0 0.0
          %392 = vmatpush1.msra.mxu0 %v289
          %393 = vmatprep.subr.mxu0 0.0
          %394 = vmatpush1.msra.mxu0 %v290
          %395 = vmatprep.subr.mxu0 0.0
          %396 = vmatpush1.msra.mxu0 %v291
          %397 = vmatprep.subr.mxu0 0.0
          %398 = vmatpush1.msra.mxu0 %v292
          %399 = vmatprep.subr.mxu0 0.0
          %400 = vmatpush1.msra.mxu0 %v293
          %401 = vmatprep.subr.mxu0 0.0
          %402 = vmatpush1.msra.mxu0 %v294
          %403 = vmatprep.subr.mxu0 0.0
          %404 = vmatpush1.msra.mxu0 0.0
          %405 = vmatprep.subr.mxu0 0.0
          %406 = vmatpush1.msra.mxu0 0.0
          %407 = vmatprep.subr.mxu0 0.0
          %408 = vmatpush1.msra.mxu0 0.0
          %409 = vmatprep.subr.mxu0 0.0
          %410 = vmatpush1.msra.mxu0 0.0
          %411 = vmatprep.subr.mxu0 0.0
          %412 = vmatpush1.msra.mxu0 0.0
          %413 = vmatprep.subr.mxu0 0.0
          %414 = vmatpush1.msra.mxu0 0.0
          %415 = vmatprep.subr.mxu0 0.0
          %416 = vmatpush1.msra.mxu0 0.0
          %417 = vmatprep.subr.mxu0 0.0
          %418 = vmatpush1.msra.mxu0 0.0
          %419 = vmatprep.subr.mxu0 0.0
          %420 = vmatpush1.msra.mxu0 0.0
          %421 = vmatprep.subr.mxu0 0.0
          %422 = vmatpush1.msra.mxu0 0.0
          %423 = vmatprep.subr.mxu0 0.0
          %424 = vmatpush1.msra.mxu0 0.0
          %425 = vmatprep.subr.mxu0 0.0
          %426 = vmatpush1.msra.mxu0 0.0
          %427 = vmatprep.subr.mxu0 0.0
          %428 = vmatpush1.msra.mxu0 0.0
          %429 = vmatprep.subr.mxu0 0.0
          %430 = vmatpush1.msra.mxu0 0.0
          %431 = vmatprep.subr.mxu0 0.0
          %432 = vmatpush1.msra.mxu0 0.0
          %433 = vmatprep.subr.mxu0 0.0
          %434 = vmatpush1.msra.mxu0 0.0
          %435 = vmatprep.mubr.f32.mxu0 0.0
          %436 = vmatmul.mubr.f32.gmra.mrb[0].mxu0 %v221
          %v437 = vpop.f32.mrb[0].mxu0
          %v438 = vadd.f32 %v369, %v437
          %v439 = vpop.f32.mrb[0].mxu0
          %440 = vdwg.mxu0
          %441 = vst [vmem:[#allocation2 + $0x8] sm:$0xff] %v438
          %443 = vset.pattern.permute.xlu0 127
          %444 = vperm.xlu0 %443, %v438
          %v445 = vpop.permute.xlu0 %444
          %447 = vmatprep.subr.mxu0 0.0
          %448 = vmatpush1.msra.mxu0 %v279
          %449 = vmatprep.subr.mxu0 0.0
          %450 = vmatpush1.msra.mxu0 %v280
          %451 = vmatprep.subr.mxu0 0.0
          %452 = vmatpush1.msra.mxu0 %v281
          %453 = vmatprep.subr.mxu0 0.0
          %454 = vmatpush1.msra.mxu0 %v282
          %455 = vmatprep.subr.mxu0 0.0
          %456 = vmatpush1.msra.mxu0 %v283
          %457 = vmatprep.subr.mxu0 0.0
          %458 = vmatpush1.msra.mxu0 %v284
          %459 = vmatprep.subr.mxu0 0.0
          %460 = vmatpush1.msra.mxu0 %v285
          %461 = vmatprep.subr.mxu0 0.0
          %462 = vmatpush1.msra.mxu0 %v286
          %463 = vmatprep.subr.mxu0 0.0
          %464 = vmatpush1.msra.mxu0 %v287
          %465 = vmatprep.subr.mxu0 0.0
          %466 = vmatpush1.msra.mxu0 %v288
          %467 = vmatprep.subr.mxu0 0.0
          %468 = vmatpush1.msra.mxu0 %v289
          %469 = vmatprep.subr.mxu0 0.0
          %470 = vmatpush1.msra.mxu0 %v290
          %471 = vmatprep.subr.mxu0 0.0
          %472 = vmatpush1.msra.mxu0 %v291
          %473 = vmatprep.subr.mxu0 0.0
          %474 = vmatpush1.msra.mxu0 %v292
          %475 = vmatprep.subr.mxu0 0.0
          %476 = vmatpush1.msra.mxu0 %v293
          %477 = vmatprep.subr.mxu0 0.0
          %478 = vmatpush1.msra.mxu0 %v294
          %479 = vmatprep.subr.mxu0 0.0
          %480 = vmatpush1.msra.mxu0 0.0
          %481 = vmatprep.subr.mxu0 0.0
          %482 = vmatpush1.msra.mxu0 0.0
          %483 = vmatprep.subr.mxu0 0.0
          %484 = vmatpush1.msra.mxu0 0.0
          %485 = vmatprep.subr.mxu0 0.0
          %486 = vmatpush1.msra.mxu0 0.0
          %487 = vmatprep.subr.mxu0 0.0
          %488 = vmatpush1.msra.mxu0 0.0
          %489 = vmatprep.subr.mxu0 0.0
          %490 = vmatpush1.msra.mxu0 0.0
          %491 = vmatprep.subr.mxu0 0.0
          %492 = vmatpush1.msra.mxu0 0.0
          %493 = vmatprep.subr.mxu0 0.0
          %494 = vmatpush1.msra.mxu0 0.0
          %495 = vmatprep.subr.mxu0 0.0
          %496 = vmatpush1.msra.mxu0 0.0
          %497 = vmatprep.subr.mxu0 0.0
          %498 = vmatpush1.msra.mxu0 0.0
          %499 = vmatprep.subr.mxu0 0.0
          %500 = vmatpush1.msra.mxu0 0.0
          %501 = vmatprep.subr.mxu0 0.0
          %502 = vmatpush1.msra.mxu0 0.0
          %503 = vmatprep.subr.mxu0 0.0
          %504 = vmatpush1.msra.mxu0 0.0
          %505 = vmatprep.subr.mxu0 0.0
          %506 = vmatpush1.msra.mxu0 0.0
          %507 = vmatprep.subr.mxu0 0.0
          %508 = vmatpush1.msra.mxu0 0.0
          %509 = vmatprep.subr.mxu0 0.0
          %510 = vmatpush1.msra.mxu0 0.0
          %511 = vmatprep.mubr.f32.mxu0 0.0
          %512 = vmatmul.mubr.f32.gmra.mrb[0].mxu0 %v222
          %v513 = vpop.f32.mrb[0].mxu0
          %v514 = vadd.f32 %v445, %v513
          %v515 = vpop.f32.mrb[0].mxu0
          %516 = vdwg.mxu0
          %517 = vst [vmem:[#allocation2 + $0x10] sm:$0xff] %v514
          %519 = vset.pattern.permute.xlu0 127
          %520 = vperm.xlu0 %519, %v514
          %v521 = vpop.permute.xlu0 %520
          %523 = vmatprep.subr.mxu0 0.0
          %524 = vmatpush1.msra.mxu0 %v279
          %525 = vmatprep.subr.mxu0 0.0
          %526 = vmatpush1.msra.mxu0 %v280
          %527 = vmatprep.subr.mxu0 0.0
          %528 = vmatpush1.msra.mxu0 %v281
          %529 = vmatprep.subr.mxu0 0.0
          %530 = vmatpush1.msra.mxu0 %v282
          %531 = vmatprep.subr.mxu0 0.0
          %532 = vmatpush1.msra.mxu0 %v283
          %533 = vmatprep.subr.mxu0 0.0
          %534 = vmatpush1.msra.mxu0 %v284
          %535 = vmatprep.subr.mxu0 0.0
          %536 = vmatpush1.msra.mxu0 %v285
          %537 = vmatprep.subr.mxu0 0.0
          %538 = vmatpush1.msra.mxu0 %v286
          %539 = vmatprep.subr.mxu0 0.0
          %540 = vmatpush1.msra.mxu0 %v287
          %541 = vmatprep.subr.mxu0 0.0
          %542 = vmatpush1.msra.mxu0 %v288
          %543 = vmatprep.subr.mxu0 0.0
          %544 = vmatpush1.msra.mxu0 %v289
          %545 = vmatprep.subr.mxu0 0.0
          %546 = vmatpush1.msra.mxu0 %v290
          %547 = vmatprep.subr.mxu0 0.0
          %548 = vmatpush1.msra.mxu0 %v291
          %549 = vmatprep.subr.mxu0 0.0
          %550 = vmatpush1.msra.mxu0 %v292
          %551 = vmatprep.subr.mxu0 0.0
          %552 = vmatpush1.msra.mxu0 %v293
          %553 = vmatprep.subr.mxu0 0.0
          %554 = vmatpush1.msra.mxu0 %v294
          %555 = vmatprep.subr.mxu0 0.0
          %556 = vmatpush1.msra.mxu0 0.0
          %557 = vmatprep.subr.mxu0 0.0
          %558 = vmatpush1.msra.mxu0 0.0
          %559 = vmatprep.subr.mxu0 0.0
          %560 = vmatpush1.msra.mxu0 0.0
          %561 = vmatprep.subr.mxu0 0.0
          %562 = vmatpush1.msra.mxu0 0.0
          %563 = vmatprep.subr.mxu0 0.0
          %564 = vmatpush1.msra.mxu0 0.0
          %565 = vmatprep.subr.mxu0 0.0
          %566 = vmatpush1.msra.mxu0 0.0
          %567 = vmatprep.subr.mxu0 0.0
          %568 = vmatpush1.msra.mxu0 0.0
          %569 = vmatprep.subr.mxu0 0.0
          %570 = vmatpush1.msra.mxu0 0.0
          %571 = vmatprep.subr.mxu0 0.0
          %572 = vmatpush1.msra.mxu0 0.0
          %573 = vmatprep.subr.mxu0 0.0
          %574 = vmatpush1.msra.mxu0 0.0
          %575 = vmatprep.subr.mxu0 0.0
          %576 = vmatpush1.msra.mxu0 0.0
          %577 = vmatprep.subr.mxu0 0.0
          %578 = vmatpush1.msra.mxu0 0.0
          %579 = vmatprep.subr.mxu0 0.0
          %580 = vmatpush1.msra.mxu0 0.0
          %581 = vmatprep.subr.mxu0 0.0
          %582 = vmatpush1.msra.mxu0 0.0
          %583 = vmatprep.subr.mxu0 0.0
          %584 = vmatpush1.msra.mxu0 0.0
          %585 = vmatprep.subr.mxu0 0.0
          %586 = vmatpush1.msra.mxu0 0.0
          %587 = vmatprep.mubr.f32.mxu0 0.0
          %588 = vmatmul.mubr.f32.gmra.mrb[0].mxu0 %v223
          %v589 = vpop.f32.mrb[0].mxu0
          %v590 = vadd.f32 %v521, %v589
          %v591 = vpop.f32.mrb[0].mxu0
          %592 = vdwg.mxu0
          %593 = vst [vmem:[#allocation2 + $0x18] sm:$0xff] %v590
          %595 = vset.pattern.permute.xlu0 127
          %596 = vperm.xlu0 %595, %v590
          %v597 = vpop.permute.xlu0 %596
          %599 = vmatprep.subr.mxu0 0.0
          %600 = vmatpush1.msra.mxu0 %v279
          %601 = vmatprep.subr.mxu0 0.0
          %602 = vmatpush1.msra.mxu0 %v280
          %603 = vmatprep.subr.mxu0 0.0
          %604 = vmatpush1.msra.mxu0 %v281
          %605 = vmatprep.subr.mxu0 0.0
          %606 = vmatpush1.msra.mxu0 %v282
          %607 = vmatprep.subr.mxu0 0.0
          %608 = vmatpush1.msra.mxu0 %v283
          %609 = vmatprep.subr.mxu0 0.0
          %610 = vmatpush1.msra.mxu0 %v284
          %611 = vmatprep.subr.mxu0 0.0
          %612 = vmatpush1.msra.mxu0 %v285
          %613 = vmatprep.subr.mxu0 0.0
          %614 = vmatpush1.msra.mxu0 %v286
          %615 = vmatprep.subr.mxu0 0.0
          %616 = vmatpush1.msra.mxu0 %v287
          %617 = vmatprep.subr.mxu0 0.0
          %618 = vmatpush1.msra.mxu0 %v288
          %619 = vmatprep.subr.mxu0 0.0
          %620 = vmatpush1.msra.mxu0 %v289
          %621 = vmatprep.subr.mxu0 0.0
          %622 = vmatpush1.msra.mxu0 %v290
          %623 = vmatprep.subr.mxu0 0.0
          %624 = vmatpush1.msra.mxu0 %v291
          %625 = vmatprep.subr.mxu0 0.0
          %626 = vmatpush1.msra.mxu0 %v292
          %627 = vmatprep.subr.mxu0 0.0
          %628 = vmatpush1.msra.mxu0 %v293
          %629 = vmatprep.subr.mxu0 0.0
          %630 = vmatpush1.msra.mxu0 %v294
          %631 = vmatprep.subr.mxu0 0.0
          %632 = vmatpush1.msra.mxu0 0.0
          %633 = vmatprep.subr.mxu0 0.0
          %634 = vmatpush1.msra.mxu0 0.0
          %635 = vmatprep.subr.mxu0 0.0
          %636 = vmatpush1.msra.mxu0 0.0
          %637 = vmatprep.subr.mxu0 0.0
          %638 = vmatpush1.msra.mxu0 0.0
          %639 = vmatprep.subr.mxu0 0.0
          %640 = vmatpush1.msra.mxu0 0.0
          %641 = vmatprep.subr.mxu0 0.0
          %642 = vmatpush1.msra.mxu0 0.0
          %643 = vmatprep.subr.mxu0 0.0
          %644 = vmatpush1.msra.mxu0 0.0
          %645 = vmatprep.subr.mxu0 0.0
          %646 = vmatpush1.msra.mxu0 0.0
          %647 = vmatprep.subr.mxu0 0.0
          %648 = vmatpush1.msra.mxu0 0.0
          %649 = vmatprep.subr.mxu0 0.0
          %650 = vmatpush1.msra.mxu0 0.0
          %651 = vmatprep.subr.mxu0 0.0
          %652 = vmatpush1.msra.mxu0 0.0
          %653 = vmatprep.subr.mxu0 0.0
          %654 = vmatpush1.msra.mxu0 0.0
          %655 = vmatprep.subr.mxu0 0.0
          %656 = vmatpush1.msra.mxu0 0.0
          %657 = vmatprep.subr.mxu0 0.0
          %658 = vmatpush1.msra.mxu0 0.0
          %659 = vmatprep.subr.mxu0 0.0
          %660 = vmatpush1.msra.mxu0 0.0
          %661 = vmatprep.subr.mxu0 0.0
          %662 = vmatpush1.msra.mxu0 0.0
          %663 = vmatprep.mubr.f32.mxu0 0.0
          %664 = vmatmul.mubr.f32.gmra.mrb[0].mxu0 %v224
          %v665 = vpop.f32.mrb[0].mxu0
          %v666 = vadd.f32 %v597, %v665
          %v667 = vpop.f32.mrb[0].mxu0
          %668 = vdwg.mxu0
          %669 = vst [vmem:[#allocation2 + $0x20] sm:$0xff] %v666
          %671 = vset.pattern.permute.xlu0 127
          %672 = vperm.xlu0 %671, %v666
          %v673 = vpop.permute.xlu0 %672
          %675 = vmatprep.subr.mxu0 0.0
          %676 = vmatpush1.msra.mxu0 %v279
          %677 = vmatprep.subr.mxu0 0.0
          %678 = vmatpush1.msra.mxu0 %v280
          %679 = vmatprep.subr.mxu0 0.0
          %680 = vmatpush1.msra.mxu0 %v281
          %681 = vmatprep.subr.mxu0 0.0
          %682 = vmatpush1.msra.mxu0 %v282
          %683 = vmatprep.subr.mxu0 0.0
          %684 = vmatpush1.msra.mxu0 %v283
          %685 = vmatprep.subr.mxu0 0.0
          %686 = vmatpush1.msra.mxu0 %v284
          %687 = vmatprep.subr.mxu0 0.0
          %688 = vmatpush1.msra.mxu0 %v285
          %689 = vmatprep.subr.mxu0 0.0
          %690 = vmatpush1.msra.mxu0 %v286
          %691 = vmatprep.subr.mxu0 0.0
          %692 = vmatpush1.msra.mxu0 %v287
          %693 = vmatprep.subr.mxu0 0.0
          %694 = vmatpush1.msra.mxu0 %v288
          %695 = vmatprep.subr.mxu0 0.0
          %696 = vmatpush1.msra.mxu0 %v289
          %697 = vmatprep.subr.mxu0 0.0
          %698 = vmatpush1.msra.mxu0 %v290
          %699 = vmatprep.subr.mxu0 0.0
          %700 = vmatpush1.msra.mxu0 %v291
          %701 = vmatprep.subr.mxu0 0.0
          %702 = vmatpush1.msra.mxu0 %v292
          %703 = vmatprep.subr.mxu0 0.0
          %704 = vmatpush1.msra.mxu0 %v293
          %705 = vmatprep.subr.mxu0 0.0
          %706 = vmatpush1.msra.mxu0 %v294
          %707 = vmatprep.subr.mxu0 0.0
          %708 = vmatpush1.msra.mxu0 0.0
          %709 = vmatprep.subr.mxu0 0.0
          %710 = vmatpush1.msra.mxu0 0.0
          %711 = vmatprep.subr.mxu0 0.0
          %712 = vmatpush1.msra.mxu0 0.0
          %713 = vmatprep.subr.mxu0 0.0
          %714 = vmatpush1.msra.mxu0 0.0
          %715 = vmatprep.subr.mxu0 0.0
          %716 = vmatpush1.msra.mxu0 0.0
          %717 = vmatprep.subr.mxu0 0.0
          %718 = vmatpush1.msra.mxu0 0.0
          %719 = vmatprep.subr.mxu0 0.0
          %720 = vmatpush1.msra.mxu0 0.0
          %721 = vmatprep.subr.mxu0 0.0
          %722 = vmatpush1.msra.mxu0 0.0
          %723 = vmatprep.subr.mxu0 0.0
          %724 = vmatpush1.msra.mxu0 0.0
          %725 = vmatprep.subr.mxu0 0.0
          %726 = vmatpush1.msra.mxu0 0.0
          %727 = vmatprep.subr.mxu0 0.0
          %728 = vmatpush1.msra.mxu0 0.0
          %729 = vmatprep.subr.mxu0 0.0
          %730 = vmatpush1.msra.mxu0 0.0
          %731 = vmatprep.subr.mxu0 0.0
          %732 = vmatpush1.msra.mxu0 0.0
          %733 = vmatprep.subr.mxu0 0.0
          %734 = vmatpush1.msra.mxu0 0.0
          %735 = vmatprep.subr.mxu0 0.0
          %736 = vmatpush1.msra.mxu0 0.0
          %737 = vmatprep.subr.mxu0 0.0
          %738 = vmatpush1.msra.mxu0 0.0
          %739 = vmatprep.mubr.f32.mxu0 0.0
          %740 = vmatmul.mubr.f32.gmra.mrb[0].mxu0 %v225
          %v741 = vpop.f32.mrb[0].mxu0
          %v742 = vadd.f32 %v673, %v741
          %v743 = vpop.f32.mrb[0].mxu0
          %744 = vdwg.mxu0
          %745 = vst [vmem:[#allocation2 + $0x28] sm:$0xff] %v742
          %747 = vset.pattern.permute.xlu0 127
          %748 = vperm.xlu0 %747, %v742
          %v749 = vpop.permute.xlu0 %748
          %751 = vmatprep.subr.mxu0 0.0
          %752 = vmatpush1.msra.mxu0 %v279
          %753 = vmatprep.subr.mxu0 0.0
          %754 = vmatpush1.msra.mxu0 %v280
          %755 = vmatprep.subr.mxu0 0.0
          %756 = vmatpush1.msra.mxu0 %v281
          %757 = vmatprep.subr.mxu0 0.0
          %758 = vmatpush1.msra.mxu0 %v282
          %759 = vmatprep.subr.mxu0 0.0
          %760 = vmatpush1.msra.mxu0 %v283
          %761 = vmatprep.subr.mxu0 0.0
          %762 = vmatpush1.msra.mxu0 %v284
          %763 = vmatprep.subr.mxu0 0.0
          %764 = vmatpush1.msra.mxu0 %v285
          %765 = vmatprep.subr.mxu0 0.0
          %766 = vmatpush1.msra.mxu0 %v286
          %767 = vmatprep.subr.mxu0 0.0
          %768 = vmatpush1.msra.mxu0 %v287
          %769 = vmatprep.subr.mxu0 0.0
          %770 = vmatpush1.msra.mxu0 %v288
          %771 = vmatprep.subr.mxu0 0.0
          %772 = vmatpush1.msra.mxu0 %v289
          %773 = vmatprep.subr.mxu0 0.0
          %774 = vmatpush1.msra.mxu0 %v290
          %775 = vmatprep.subr.mxu0 0.0
          %776 = vmatpush1.msra.mxu0 %v291
          %777 = vmatprep.subr.mxu0 0.0
          %778 = vmatpush1.msra.mxu0 %v292
          %779 = vmatprep.subr.mxu0 0.0
          %780 = vmatpush1.msra.mxu0 %v293
          %781 = vmatprep.subr.mxu0 0.0
          %782 = vmatpush1.msra.mxu0 %v294
          %783 = vmatprep.subr.mxu0 0.0
          %784 = vmatpush1.msra.mxu0 0.0
          %785 = vmatprep.subr.mxu0 0.0
          %786 = vmatpush1.msra.mxu0 0.0
          %787 = vmatprep.subr.mxu0 0.0
          %788 = vmatpush1.msra.mxu0 0.0
          %789 = vmatprep.subr.mxu0 0.0
          %790 = vmatpush1.msra.mxu0 0.0
          %791 = vmatprep.subr.mxu0 0.0
          %792 = vmatpush1.msra.mxu0 0.0
          %793 = vmatprep.subr.mxu0 0.0
          %794 = vmatpush1.msra.mxu0 0.0
          %795 = vmatprep.subr.mxu0 0.0
          %796 = vmatpush1.msra.mxu0 0.0
          %797 = vmatprep.subr.mxu0 0.0
          %798 = vmatpush1.msra.mxu0 0.0
          %799 = vmatprep.subr.mxu0 0.0
          %800 = vmatpush1.msra.mxu0 0.0
          %801 = vmatprep.subr.mxu0 0.0
          %802 = vmatpush1.msra.mxu0 0.0
          %803 = vmatprep.subr.mxu0 0.0
          %804 = vmatpush1.msra.mxu0 0.0
          %805 = vmatprep.subr.mxu0 0.0
          %806 = vmatpush1.msra.mxu0 0.0
          %807 = vmatprep.subr.mxu0 0.0
          %808 = vmatpush1.msra.mxu0 0.0
          %809 = vmatprep.subr.mxu0 0.0
          %810 = vmatpush1.msra.mxu0 0.0
          %811 = vmatprep.subr.mxu0 0.0
          %812 = vmatpush1.msra.mxu0 0.0
          %813 = vmatprep.subr.mxu0 0.0
          %814 = vmatpush1.msra.mxu0 0.0
          %815 = vmatprep.mubr.f32.mxu0 0.0
          %816 = vmatmul.mubr.f32.gmra.mrb[0].mxu0 %v226
          %v817 = vpop.f32.mrb[0].mxu0
          %v818 = vadd.f32 %v749, %v817
          %v819 = vpop.f32.mrb[0].mxu0
          %820 = vdwg.mxu0
          %821 = vst [vmem:[#allocation2 + $0x30] sm:$0xff] %v818
          %823 = vset.pattern.permute.xlu0 127
          %824 = vperm.xlu0 %823, %v818
          %v825 = vpop.permute.xlu0 %824
          %827 = vmatprep.subr.mxu0 0.0
          %828 = vmatpush1.msra.mxu0 %v279
          %829 = vmatprep.subr.mxu0 0.0
          %830 = vmatpush1.msra.mxu0 %v280
          %831 = vmatprep.subr.mxu0 0.0
          %832 = vmatpush1.msra.mxu0 %v281
          %833 = vmatprep.subr.mxu0 0.0
          %834 = vmatpush1.msra.mxu0 %v282
          %835 = vmatprep.subr.mxu0 0.0
          %836 = vmatpush1.msra.mxu0 %v283
          %837 = vmatprep.subr.mxu0 0.0
          %838 = vmatpush1.msra.mxu0 %v284
          %839 = vmatprep.subr.mxu0 0.0
          %840 = vmatpush1.msra.mxu0 %v285
          %841 = vmatprep.subr.mxu0 0.0
          %842 = vmatpush1.msra.mxu0 %v286
          %843 = vmatprep.subr.mxu0 0.0
          %844 = vmatpush1.msra.mxu0 %v287
          %845 = vmatprep.subr.mxu0 0.0
          %846 = vmatpush1.msra.mxu0 %v288
          %847 = vmatprep.subr.mxu0 0.0
          %848 = vmatpush1.msra.mxu0 %v289
          %849 = vmatprep.subr.mxu0 0.0
          %850 = vmatpush1.msra.mxu0 %v290
          %851 = vmatprep.subr.mxu0 0.0
          %852 = vmatpush1.msra.mxu0 %v291
          %853 = vmatprep.subr.mxu0 0.0
          %854 = vmatpush1.msra.mxu0 %v292
          %855 = vmatprep.subr.mxu0 0.0
          %856 = vmatpush1.msra.mxu0 %v293
          %857 = vmatprep.subr.mxu0 0.0
          %858 = vmatpush1.msra.mxu0 %v294
          %859 = vmatprep.subr.mxu0 0.0
          %860 = vmatpush1.msra.mxu0 0.0
          %861 = vmatprep.subr.mxu0 0.0
          %862 = vmatpush1.msra.mxu0 0.0
          %863 = vmatprep.subr.mxu0 0.0
          %864 = vmatpush1.msra.mxu0 0.0
          %865 = vmatprep.subr.mxu0 0.0
          %866 = vmatpush1.msra.mxu0 0.0
          %867 = vmatprep.subr.mxu0 0.0
          %868 = vmatpush1.msra.mxu0 0.0
          %869 = vmatprep.subr.mxu0 0.0
          %870 = vmatpush1.msra.mxu0 0.0
          %871 = vmatprep.subr.mxu0 0.0
          %872 = vmatpush1.msra.mxu0 0.0
          %873 = vmatprep.subr.mxu0 0.0
          %874 = vmatpush1.msra.mxu0 0.0
          %875 = vmatprep.subr.mxu0 0.0
          %876 = vmatpush1.msra.mxu0 0.0
          %877 = vmatprep.subr.mxu0 0.0
          %878 = vmatpush1.msra.mxu0 0.0
          %879 = vmatprep.subr.mxu0 0.0
          %880 = vmatpush1.msra.mxu0 0.0
          %881 = vmatprep.subr.mxu0 0.0
          %882 = vmatpush1.msra.mxu0 0.0
          %883 = vmatprep.subr.mxu0 0.0
          %884 = vmatpush1.msra.mxu0 0.0
          %885 = vmatprep.subr.mxu0 0.0
          %886 = vmatpush1.msra.mxu0 0.0
          %887 = vmatprep.subr.mxu0 0.0
          %888 = vmatpush1.msra.mxu0 0.0
          %889 = vmatprep.subr.mxu0 0.0
          %890 = vmatpush1.msra.mxu0 0.0
          %891 = vmatprep.mubr.f32.mxu0 0.0
          %892 = vmatmul.mubr.f32.gmra.mrb[0].mxu0 %v227
          %v893 = vpop.f32.mrb[0].mxu0
          %v894 = vadd.f32 %v825, %v893
          %v895 = vpop.f32.mrb[0].mxu0
          %896 = vdwg.mxu0
          %897 = vst [vmem:[#allocation2 + $0x38] sm:$0xff] %v894
          %v898 = vld [vmem:[#allocation2] sm:$0xff]
          %v899 = vld [vmem:[#allocation2 + $0x8] sm:$0xff]
          %v900 = vld [vmem:[#allocation2 + $0x10] sm:$0xff]
          %v901 = vld [vmem:[#allocation2 + $0x18] sm:$0xff]
          %v902 = vld [vmem:[#allocation2 + $0x20] sm:$0xff]
          %v903 = vld [vmem:[#allocation2 + $0x28] sm:$0xff]
          %v904 = vld [vmem:[#allocation2 + $0x30] sm:$0xff]
          %v905 = vld [vmem:[#allocation2 + $0x38] sm:$0xff]
          %v906 = vsub.f32 %v898, %v220
          %v907 = vsub.f32 %v899, %v221
          %v908 = vsub.f32 %v900, %v222
          %v909 = vsub.f32 %v901, %v223
          %v910 = vsub.f32 %v902, %v224
          %v911 = vsub.f32 %v903, %v225
          %v912 = vsub.f32 %v904, %v226
          %v913 = vsub.f32 %v905, %v227
          %914 = vst [vmem:[#allocation3] sm:$0xff] %v906
          %915 = vst [vmem:[#allocation3 + $0x8] sm:$0xff] %v907
          %916 = vst [vmem:[#allocation3 + $0x10] sm:$0xff] %v908
          %917 = vst [vmem:[#allocation3 + $0x18] sm:$0xff] %v909
          %918 = vst [vmem:[#allocation3 + $0x20] sm:$0xff] %v910
          %919 = vst [vmem:[#allocation3 + $0x28] sm:$0xff] %v911
          %920 = vst [vmem:[#allocation3 + $0x30] sm:$0xff] %v912
          %921 = vst [vmem:[#allocation3 + $0x38] sm:$0xff] %v913
          %v922 = vsub.f32 1.0, %v220
          %v923 = vsub.f32 1.0, %v221
          %v924 = vsub.f32 1.0, %v222
          %v925 = vsub.f32 1.0, %v223
          %v926 = vsub.f32 1.0, %v224
          %v927 = vsub.f32 1.0, %v225
          %v928 = vsub.f32 1.0, %v226
          %v929 = vsub.f32 1.0, %v227
          %v930 = vlog2.pop %v922
          %v931 = vmul.f32 %v930, 0.6931472
          %v932 = vlog2.pop %v923
          %v933 = vmul.f32 %v932, 0.6931472
          %v934 = vlog2.pop %v924
          %v935 = vmul.f32 %v934, 0.6931472
          %v936 = vlog2.pop %v925
          %v937 = vmul.f32 %v936, 0.6931472
          %v938 = vlog2.pop %v926
          %v939 = vmul.f32 %v938, 0.6931472
          %v940 = vlog2.pop %v927
          %v941 = vmul.f32 %v940, 0.6931472
          %v942 = vlog2.pop %v928
          %v943 = vmul.f32 %v942, 0.6931472
          %v944 = vlog2.pop %v929
          %v945 = vmul.f32 %v944, 0.6931472
          %v946 = vmul.f32 %v931, 512.0
          %v947 = vmul.f32 %v933, 512.0
          %v948 = vmul.f32 %v935, 512.0
          %v949 = vmul.f32 %v937, 512.0
          %v950 = vmul.f32 %v939, 512.0
          %v951 = vmul.f32 %v941, 512.0
          %v952 = vmul.f32 %v943, 512.0
          %v953 = vmul.f32 %v945, 512.0
          %v954 = vmul.f32 %v946, 1.442695
          %v955 = vpow.pop %v954
          %v956 = vmul.f32 %v947, 1.442695
          %v957 = vpow.pop %v956
          %v958 = vmul.f32 %v948, 1.442695
          %v959 = vpow.pop %v958
          %v960 = vmul.f32 %v949, 1.442695
          %v961 = vpow.pop %v960
          %v962 = vmul.f32 %v950, 1.442695
          %v963 = vpow.pop %v962
          %v964 = vmul.f32 %v951, 1.442695
          %v965 = vpow.pop %v964
          %v966 = vmul.f32 %v952, 1.442695
          %v967 = vpow.pop %v966
          %v968 = vmul.f32 %v953, 1.442695
          %v969 = vpow.pop %v968
          %v970 = vsub.f32 1.0, %v955
          %v971 = vsub.f32 1.0, %v957
          %v972 = vsub.f32 1.0, %v959
          %v973 = vsub.f32 1.0, %v961
          %v974 = vsub.f32 1.0, %v963
          %v975 = vsub.f32 1.0, %v965
          %v976 = vsub.f32 1.0, %v967
          %v977 = vsub.f32 1.0, %v969
          %vm978 = vcmp.gt.f32.partialorder %v970, 0.0
          %vm979 = vcmp.gt.f32.partialorder %v971, 0.0
          %vm980 = vcmp.gt.f32.partialorder %v972, 0.0
          %vm981 = vcmp.gt.f32.partialorder %v973, 0.0
          %vm982 = vcmp.gt.f32.partialorder %v974, 0.0
          %vm983 = vcmp.gt.f32.partialorder %v975, 0.0
          %vm984 = vcmp.gt.f32.partialorder %v976, 0.0
          %vm985 = vcmp.gt.f32.partialorder %v977, 0.0
          %v986 = vsel %vm978, %v970, 1.0
          %v987 = vsel %vm979, %v971, 1.0
          %v988 = vsel %vm980, %v972, 1.0
          %v989 = vsel %vm981, %v973, 1.0
          %v990 = vsel %vm982, %v974, 1.0
          %v991 = vsel %vm983, %v975, 1.0
          %v992 = vsel %vm984, %v976, 1.0
          %v993 = vsel %vm985, %v977, 1.0
          %v994 = vrcp.pop %v986
          %v995 = vmul.f32 1.0, %v994
          %v996 = vrcp.pop %v987
          %v997 = vmul.f32 1.0, %v996
          %v998 = vrcp.pop %v988
          %v999 = vmul.f32 1.0, %v998
          %v1000 = vrcp.pop %v989
          %v1001 = vmul.f32 1.0, %v1000
          %v1002 = vrcp.pop %v990
          %v1003 = vmul.f32 1.0, %v1002
          %v1004 = vrcp.pop %v991
          %v1005 = vmul.f32 1.0, %v1004
          %v1006 = vrcp.pop %v992
          %v1007 = vmul.f32 1.0, %v1006
          %v1008 = vrcp.pop %v993
          %v1009 = vmul.f32 1.0, %v1008
          %vm1010 = vcmp.gt.f32.partialorder %v220, 0.0
          %vm1011 = vcmp.gt.f32.partialorder %v221, 0.0
          %vm1012 = vcmp.gt.f32.partialorder %v222, 0.0
          %vm1013 = vcmp.gt.f32.partialorder %v223, 0.0
          %vm1014 = vcmp.gt.f32.partialorder %v224, 0.0
          %vm1015 = vcmp.gt.f32.partialorder %v225, 0.0
          %vm1016 = vcmp.gt.f32.partialorder %v226, 0.0
          %vm1017 = vcmp.gt.f32.partialorder %v227, 0.0
          %v1018 = vmul.f32 %v220, 512.0
          %v1019 = vmul.f32 %v221, 512.0
          %v1020 = vmul.f32 %v222, 512.0
          %v1021 = vmul.f32 %v223, 512.0
          %v1022 = vmul.f32 %v224, 512.0
          %v1023 = vmul.f32 %v225, 512.0
          %v1024 = vmul.f32 %v226, 512.0
          %v1025 = vmul.f32 %v227, 512.0
          %v1026 = vsel %vm1010, %v1018, 1.0
          %v1027 = vsel %vm1011, %v1019, 1.0
          %v1028 = vsel %vm1012, %v1020, 1.0
          %v1029 = vsel %vm1013, %v1021, 1.0
          %v1030 = vsel %vm1014, %v1022, 1.0
          %v1031 = vsel %vm1015, %v1023, 1.0
          %v1032 = vsel %vm1016, %v1024, 1.0
          %v1033 = vsel %vm1017, %v1025, 1.0
          %v1034 = vrcp.pop %v1026
          %v1035 = vmul.f32 1.0, %v1034
          %v1036 = vrcp.pop %v1027
          %v1037 = vmul.f32 1.0, %v1036
          %v1038 = vrcp.pop %v1028
          %v1039 = vmul.f32 1.0, %v1038
          %v1040 = vrcp.pop %v1029
          %v1041 = vmul.f32 1.0, %v1040
          %v1042 = vrcp.pop %v1030
          %v1043 = vmul.f32 1.0, %v1042
          %v1044 = vrcp.pop %v1031
          %v1045 = vmul.f32 1.0, %v1044
          %v1046 = vrcp.pop %v1032
          %v1047 = vmul.f32 1.0, %v1046
          %v1048 = vrcp.pop %v1033
          %v1049 = vmul.f32 1.0, %v1048
          %v1050 = vsel %vm1010, %v1035, 0.0
          %v1051 = vsel %vm1011, %v1037, 0.0
          %v1052 = vsel %vm1012, %v1039, 0.0
          %v1053 = vsel %vm1013, %v1041, 0.0
          %v1054 = vsel %vm1014, %v1043, 0.0
          %v1055 = vsel %vm1015, %v1045, 0.0
          %v1056 = vsel %vm1016, %v1047, 0.0
          %v1057 = vsel %vm1017, %v1049, 0.0
          %v1058 = vsel %vm978, %v995, %v1050
          %v1059 = vsel %vm979, %v997, %v1051
          %v1060 = vsel %vm980, %v999, %v1052
          %v1061 = vsel %vm981, %v1001, %v1053
          %v1062 = vsel %vm982, %v1003, %v1054
          %v1063 = vsel %vm983, %v1005, %v1055
          %v1064 = vsel %vm984, %v1007, %v1056
          %v1065 = vsel %vm985, %v1009, %v1057
          %v1066 = vmul.f32 %v193, %v1058
          %v1067 = vmul.f32 %v194, %v1059
          %v1068 = vmul.f32 %v195, %v1060
          %v1069 = vmul.f32 %v196, %v1061
          %v1070 = vmul.f32 %v197, %v1062
          %v1071 = vmul.f32 %v198, %v1063
          %v1072 = vmul.f32 %v199, %v1064
          %v1073 = vmul.f32 %v200, %v1065
          %1074 = vst [vmem:[#allocation4] sm:$0xff] %v1066
          %1075 = vst [vmem:[#allocation4 + $0x8] sm:$0xff] %v1067
          %1076 = vst [vmem:[#allocation4 + $0x10] sm:$0xff] %v1068
          %1077 = vst [vmem:[#allocation4 + $0x18] sm:$0xff] %v1069
          %1078 = vst [vmem:[#allocation4 + $0x20] sm:$0xff] %v1070
          %1079 = vst [vmem:[#allocation4 + $0x28] sm:$0xff] %v1071
          %1080 = vst [vmem:[#allocation4 + $0x30] sm:$0xff] %v1072
          %1081 = vst [vmem:[#allocation4 + $0x38] sm:$0xff] %v1073
          %1082 = vst [vmem:[#allocation5] sm:$0xff] 0.0
          %1083 = vst [vmem:[#allocation5 + $0x8] sm:$0xff] 0.0
          %1084 = vst [vmem:[#allocation5 + $0x10] sm:$0xff] 0.0
          %1085 = vst [vmem:[#allocation5 + $0x18] sm:$0xff] 0.0
          %1086 = vst [vmem:[#allocation5 + $0x20] sm:$0xff] 0.0
          %1087 = vst [vmem:[#allocation5 + $0x28] sm:$0xff] 0.0
          %1088 = vst [vmem:[#allocation5 + $0x30] sm:$0xff] 0.0
          %1089 = vst [vmem:[#allocation5 + $0x38] sm:$0xff] 0.0
        $region40: #{tpu_custom_call.1} parent=27 // pred_fallthru
          _
        %v1090 = vld [vmem:[#allocation2] sm:$0xff]
        %v1091 = vld [vmem:[#allocation2 + $0x8] sm:$0xff]
        %v1092 = vld [vmem:[#allocation2 + $0x10] sm:$0xff]
        %v1093 = vld [vmem:[#allocation2 + $0x18] sm:$0xff]
        %v1094 = vld [vmem:[#allocation2 + $0x20] sm:$0xff]
        %v1095 = vld [vmem:[#allocation2 + $0x28] sm:$0xff]
        %v1096 = vld [vmem:[#allocation2 + $0x30] sm:$0xff]
        %v1097 = vld [vmem:[#allocation2 + $0x38] sm:$0xff]
        %v1098 = vld [vmem:[#allocation3] sm:$0xff]
        %v1099 = vld [vmem:[#allocation3 + $0x8] sm:$0xff]
        %v1100 = vld [vmem:[#allocation3 + $0x10] sm:$0xff]
        %v1101 = vld [vmem:[#allocation3 + $0x18] sm:$0xff]
        %v1102 = vld [vmem:[#allocation3 + $0x20] sm:$0xff]
        %v1103 = vld [vmem:[#allocation3 + $0x28] sm:$0xff]
        %v1104 = vld [vmem:[#allocation3 + $0x30] sm:$0xff]
        %v1105 = vld [vmem:[#allocation3 + $0x38] sm:$0xff]
        %v1106 = vld [vmem:[%s173] sm:$0xff]
        %1108 = vset.pattern.permute.xlu0 127
        %1109 = vperm.xlu0 %1108, %v1097
        %v1110 = vpop.permute.xlu0 %1109
        %v1112 = vmul.f32 %v1106, %v1110
        %v1113 = vld [vmem:[#allocation5] sm:$0xff]
        %v1114 = vld [vmem:[#allocation5 + $0x8] sm:$0xff]
        %v1115 = vld [vmem:[#allocation5 + $0x10] sm:$0xff]
        %v1116 = vld [vmem:[#allocation5 + $0x18] sm:$0xff]
        %v1117 = vld [vmem:[#allocation5 + $0x20] sm:$0xff]
        %v1118 = vld [vmem:[#allocation5 + $0x28] sm:$0xff]
        %v1119 = vld [vmem:[#allocation5 + $0x30] sm:$0xff]
        %v1120 = vld [vmem:[#allocation5 + $0x38] sm:$0xff]
        %1122 = vset.pattern.permute.xlu0 0
        %1123 = vperm.xlu0 %1122, %v1112
        %v1124 = vpop.permute.xlu0 %1123
        %vm1126 = vcmp.ge.f32.partialorder %v1124, %v1098
        %vm1127 = vcmp.ge.f32.partialorder %v1124, %v1099
        %vm1128 = vcmp.ge.f32.partialorder %v1124, %v1100
        %vm1129 = vcmp.ge.f32.partialorder %v1124, %v1101
        %vm1130 = vcmp.ge.f32.partialorder %v1124, %v1102
        %vm1131 = vcmp.ge.f32.partialorder %v1124, %v1103
        %vm1132 = vcmp.ge.f32.partialorder %v1124, %v1104
        %vm1133 = vcmp.ge.f32.partialorder %v1124, %v1105
        %vm1134 = vcmp.lt.f32.partialorder %v1124, %v1090
        %vm1135 = vcmp.lt.f32.partialorder %v1124, %v1091
        %vm1136 = vcmp.lt.f32.partialorder %v1124, %v1092
        %vm1137 = vcmp.lt.f32.partialorder %v1124, %v1093
        %vm1138 = vcmp.lt.f32.partialorder %v1124, %v1094
        %vm1139 = vcmp.lt.f32.partialorder %v1124, %v1095
        %vm1140 = vcmp.lt.f32.partialorder %v1124, %v1096
        %vm1141 = vcmp.lt.f32.partialorder %v1124, %v1097
        %vm1142 = vmand %vm1126, %vm1134
        %vm1143 = vmand %vm1127, %vm1135
        %vm1144 = vmand %vm1128, %vm1136
        %vm1145 = vmand %vm1129, %vm1137
        %vm1146 = vmand %vm1130, %vm1138
        %vm1147 = vmand %vm1131, %vm1139
        %vm1148 = vmand %vm1132, %vm1140
        %vm1149 = vmand %vm1133, %vm1141
        %v1150 = vsel %vm1142, 1.0, %v1113
        %v1151 = vsel %vm1143, 1.0, %v1114
        %v1152 = vsel %vm1144, 1.0, %v1115
        %v1153 = vsel %vm1145, 1.0, %v1116
        %v1154 = vsel %vm1146, 1.0, %v1117
        %v1155 = vsel %vm1147, 1.0, %v1118
        %v1156 = vsel %vm1148, 1.0, %v1119
        %v1157 = vsel %vm1149, 1.0, %v1120
        %1158 = vset.pattern.permute.xlu0 1
        %1159 = vperm.xlu0 %1158, %v1112
        %v1160 = vpop.permute.xlu0 %1159
        %vm1162 = vcmp.ge.f32.partialorder %v1160, %v1098
        %vm1163 = vcmp.ge.f32.partialorder %v1160, %v1099
        %vm1164 = vcmp.ge.f32.partialorder %v1160, %v1100
        %vm1165 = vcmp.ge.f32.partialorder %v1160, %v1101
        %vm1166 = vcmp.ge.f32.partialorder %v1160, %v1102
        %vm1167 = vcmp.ge.f32.partialorder %v1160, %v1103
        %vm1168 = vcmp.ge.f32.partialorder %v1160, %v1104
        %vm1169 = vcmp.ge.f32.partialorder %v1160, %v1105
        %vm1170 = vcmp.lt.f32.partialorder %v1160, %v1090
        %vm1171 = vcmp.lt.f32.partialorder %v1160, %v1091
        %vm1172 = vcmp.lt.f32.partialorder %v1160, %v1092
        %vm1173 = vcmp.lt.f32.partialorder %v1160, %v1093
        %vm1174 = vcmp.lt.f32.partialorder %v1160, %v1094
        %vm1175 = vcmp.lt.f32.partialorder %v1160, %v1095
        %vm1176 = vcmp.lt.f32.partialorder %v1160, %v1096
        %vm1177 = vcmp.lt.f32.partialorder %v1160, %v1097
        %vm1178 = vmand %vm1162, %vm1170
        %vm1179 = vmand %vm1163, %vm1171
        %vm1180 = vmand %vm1164, %vm1172
        %vm1181 = vmand %vm1165, %vm1173
        %vm1182 = vmand %vm1166, %vm1174
        %vm1183 = vmand %vm1167, %vm1175
        %vm1184 = vmand %vm1168, %vm1176
        %vm1185 = vmand %vm1169, %vm1177
        %v1186 = vsel %vm1178, 1.0, %v1150
        %v1187 = vsel %vm1179, 1.0, %v1151
        %v1188 = vsel %vm1180, 1.0, %v1152
        %v1189 = vsel %vm1181, 1.0, %v1153
        %v1190 = vsel %vm1182, 1.0, %v1154
        %v1191 = vsel %vm1183, 1.0, %v1155
        %v1192 = vsel %vm1184, 1.0, %v1156
        %v1193 = vsel %vm1185, 1.0, %v1157
        %1194 = vset.pattern.permute.xlu0 2
        %1195 = vperm.xlu0 %1194, %v1112
        %v1196 = vpop.permute.xlu0 %1195
        %vm1198 = vcmp.ge.f32.partialorder %v1196, %v1098
        %vm1199 = vcmp.ge.f32.partialorder %v1196, %v1099
        %vm1200 = vcmp.ge.f32.partialorder %v1196, %v1100
        %vm1201 = vcmp.ge.f32.partialorder %v1196, %v1101
        %vm1202 = vcmp.ge.f32.partialorder %v1196, %v1102
        %vm1203 = vcmp.ge.f32.partialorder %v1196, %v1103
        %vm1204 = vcmp.ge.f32.partialorder %v1196, %v1104
        %vm1205 = vcmp.ge.f32.partialorder %v1196, %v1105
        %vm1206 = vcmp.lt.f32.partialorder %v1196, %v1090
        %vm1207 = vcmp.lt.f32.partialorder %v1196, %v1091
        %vm1208 = vcmp.lt.f32.partialorder %v1196, %v1092
        %vm1209 = vcmp.lt.f32.partialorder %v1196, %v1093
        %vm1210 = vcmp.lt.f32.partialorder %v1196, %v1094
        %vm1211 = vcmp.lt.f32.partialorder %v1196, %v1095
        %vm1212 = vcmp.lt.f32.partialorder %v1196, %v1096
        %vm1213 = vcmp.lt.f32.partialorder %v1196, %v1097
        %vm1214 = vmand %vm1198, %vm1206
        %vm1215 = vmand %vm1199, %vm1207
        %vm1216 = vmand %vm1200, %vm1208
        %vm1217 = vmand %vm1201, %vm1209
        %vm1218 = vmand %vm1202, %vm1210
        %vm1219 = vmand %vm1203, %vm1211
        %vm1220 = vmand %vm1204, %vm1212
        %vm1221 = vmand %vm1205, %vm1213
        %v1222 = vsel %vm1214, 1.0, %v1186
        %v1223 = vsel %vm1215, 1.0, %v1187
        %v1224 = vsel %vm1216, 1.0, %v1188
        %v1225 = vsel %vm1217, 1.0, %v1189
        %v1226 = vsel %vm1218, 1.0, %v1190
        %v1227 = vsel %vm1219, 1.0, %v1191
        %v1228 = vsel %vm1220, 1.0, %v1192
        %v1229 = vsel %vm1221, 1.0, %v1193
        %1230 = vset.pattern.permute.xlu0 3
        %1231 = vperm.xlu0 %1230, %v1112
        %v1232 = vpop.permute.xlu0 %1231
        %vm1234 = vcmp.ge.f32.partialorder %v1232, %v1098
        %vm1235 = vcmp.ge.f32.partialorder %v1232, %v1099
        %vm1236 = vcmp.ge.f32.partialorder %v1232, %v1100
        %vm1237 = vcmp.ge.f32.partialorder %v1232, %v1101
        %vm1238 = vcmp.ge.f32.partialorder %v1232, %v1102
        %vm1239 = vcmp.ge.f32.partialorder %v1232, %v1103
        %vm1240 = vcmp.ge.f32.partialorder %v1232, %v1104
        %vm1241 = vcmp.ge.f32.partialorder %v1232, %v1105
        %vm1242 = vcmp.lt.f32.partialorder %v1232, %v1090
        %vm1243 = vcmp.lt.f32.partialorder %v1232, %v1091
        %vm1244 = vcmp.lt.f32.partialorder %v1232, %v1092
        %vm1245 = vcmp.lt.f32.partialorder %v1232, %v1093
        %vm1246 = vcmp.lt.f32.partialorder %v1232, %v1094
        %vm1247 = vcmp.lt.f32.partialorder %v1232, %v1095
        %vm1248 = vcmp.lt.f32.partialorder %v1232, %v1096
        %vm1249 = vcmp.lt.f32.partialorder %v1232, %v1097
        %vm1250 = vmand %vm1234, %vm1242
        %vm1251 = vmand %vm1235, %vm1243
        %vm1252 = vmand %vm1236, %vm1244
        %vm1253 = vmand %vm1237, %vm1245
        %vm1254 = vmand %vm1238, %vm1246
        %vm1255 = vmand %vm1239, %vm1247
        %vm1256 = vmand %vm1240, %vm1248
        %vm1257 = vmand %vm1241, %vm1249
        %v1258 = vsel %vm1250, 1.0, %v1222
        %v1259 = vsel %vm1251, 1.0, %v1223
        %v1260 = vsel %vm1252, 1.0, %v1224
        %v1261 = vsel %vm1253, 1.0, %v1225
        %v1262 = vsel %vm1254, 1.0, %v1226
        %v1263 = vsel %vm1255, 1.0, %v1227
        %v1264 = vsel %vm1256, 1.0, %v1228
        %v1265 = vsel %vm1257, 1.0, %v1229
        %1266 = vset.pattern.permute.xlu0 4
        %1267 = vperm.xlu0 %1266, %v1112
        %v1268 = vpop.permute.xlu0 %1267
        %vm1270 = vcmp.ge.f32.partialorder %v1268, %v1098
        %vm1271 = vcmp.ge.f32.partialorder %v1268, %v1099
        %vm1272 = vcmp.ge.f32.partialorder %v1268, %v1100
        %vm1273 = vcmp.ge.f32.partialorder %v1268, %v1101
        %vm1274 = vcmp.ge.f32.partialorder %v1268, %v1102
        %vm1275 = vcmp.ge.f32.partialorder %v1268, %v1103
        %vm1276 = vcmp.ge.f32.partialorder %v1268, %v1104
        %vm1277 = vcmp.ge.f32.partialorder %v1268, %v1105
        %vm1278 = vcmp.lt.f32.partialorder %v1268, %v1090
        %vm1279 = vcmp.lt.f32.partialorder %v1268, %v1091
        %vm1280 = vcmp.lt.f32.partialorder %v1268, %v1092
        %vm1281 = vcmp.lt.f32.partialorder %v1268, %v1093
        %vm1282 = vcmp.lt.f32.partialorder %v1268, %v1094
        %vm1283 = vcmp.lt.f32.partialorder %v1268, %v1095
        %vm1284 = vcmp.lt.f32.partialorder %v1268, %v1096
        %vm1285 = vcmp.lt.f32.partialorder %v1268, %v1097
        %vm1286 = vmand %vm1270, %vm1278
        %vm1287 = vmand %vm1271, %vm1279
        %vm1288 = vmand %vm1272, %vm1280
        %vm1289 = vmand %vm1273, %vm1281
        %vm1290 = vmand %vm1274, %vm1282
        %vm1291 = vmand %vm1275, %vm1283
        %vm1292 = vmand %vm1276, %vm1284
        %vm1293 = vmand %vm1277, %vm1285
        %v1294 = vsel %vm1286, 1.0, %v1258
        %v1295 = vsel %vm1287, 1.0, %v1259
        %v1296 = vsel %vm1288, 1.0, %v1260
        %v1297 = vsel %vm1289, 1.0, %v1261
        %v1298 = vsel %vm1290, 1.0, %v1262
        %v1299 = vsel %vm1291, 1.0, %v1263
        %v1300 = vsel %vm1292, 1.0, %v1264
        %v1301 = vsel %vm1293, 1.0, %v1265
        %1302 = vset.pattern.permute.xlu0 5
        %1303 = vperm.xlu0 %1302, %v1112
        %v1304 = vpop.permute.xlu0 %1303
        %vm1306 = vcmp.ge.f32.partialorder %v1304, %v1098
        %vm1307 = vcmp.ge.f32.partialorder %v1304, %v1099
        %vm1308 = vcmp.ge.f32.partialorder %v1304, %v1100
        %vm1309 = vcmp.ge.f32.partialorder %v1304, %v1101
        %vm1310 = vcmp.ge.f32.partialorder %v1304, %v1102
        %vm1311 = vcmp.ge.f32.partialorder %v1304, %v1103
        %vm1312 = vcmp.ge.f32.partialorder %v1304, %v1104
        %vm1313 = vcmp.ge.f32.partialorder %v1304, %v1105
        %vm1314 = vcmp.lt.f32.partialorder %v1304, %v1090
        %vm1315 = vcmp.lt.f32.partialorder %v1304, %v1091
        %vm1316 = vcmp.lt.f32.partialorder %v1304, %v1092
        %vm1317 = vcmp.lt.f32.partialorder %v1304, %v1093
        %vm1318 = vcmp.lt.f32.partialorder %v1304, %v1094
        %vm1319 = vcmp.lt.f32.partialorder %v1304, %v1095
        %vm1320 = vcmp.lt.f32.partialorder %v1304, %v1096
        %vm1321 = vcmp.lt.f32.partialorder %v1304, %v1097
        %vm1322 = vmand %vm1306, %vm1314
        %vm1323 = vmand %vm1307, %vm1315
        %vm1324 = vmand %vm1308, %vm1316
        %vm1325 = vmand %vm1309, %vm1317
        %vm1326 = vmand %vm1310, %vm1318
        %vm1327 = vmand %vm1311, %vm1319
        %vm1328 = vmand %vm1312, %vm1320
        %vm1329 = vmand %vm1313, %vm1321
        %v1330 = vsel %vm1322, 1.0, %v1294
        %v1331 = vsel %vm1323, 1.0, %v1295
        %v1332 = vsel %vm1324, 1.0, %v1296
        %v1333 = vsel %vm1325, 1.0, %v1297
        %v1334 = vsel %vm1326, 1.0, %v1298
        %v1335 = vsel %vm1327, 1.0, %v1299
        %v1336 = vsel %vm1328, 1.0, %v1300
        %v1337 = vsel %vm1329, 1.0, %v1301
        %1338 = vset.pattern.permute.xlu0 6
        %1339 = vperm.xlu0 %1338, %v1112
        %v1340 = vpop.permute.xlu0 %1339
        %vm1342 = vcmp.ge.f32.partialorder %v1340, %v1098
        %vm1343 = vcmp.ge.f32.partialorder %v1340, %v1099
        %vm1344 = vcmp.ge.f32.partialorder %v1340, %v1100
        %vm1345 = vcmp.ge.f32.partialorder %v1340, %v1101
        %vm1346 = vcmp.ge.f32.partialorder %v1340, %v1102
        %vm1347 = vcmp.ge.f32.partialorder %v1340, %v1103
        %vm1348 = vcmp.ge.f32.partialorder %v1340, %v1104
        %vm1349 = vcmp.ge.f32.partialorder %v1340, %v1105
        %vm1350 = vcmp.lt.f32.partialorder %v1340, %v1090
        %vm1351 = vcmp.lt.f32.partialorder %v1340, %v1091
        %vm1352 = vcmp.lt.f32.partialorder %v1340, %v1092
        %vm1353 = vcmp.lt.f32.partialorder %v1340, %v1093
        %vm1354 = vcmp.lt.f32.partialorder %v1340, %v1094
        %vm1355 = vcmp.lt.f32.partialorder %v1340, %v1095
        %vm1356 = vcmp.lt.f32.partialorder %v1340, %v1096
        %vm1357 = vcmp.lt.f32.partialorder %v1340, %v1097
        %vm1358 = vmand %vm1342, %vm1350
        %vm1359 = vmand %vm1343, %vm1351
        %vm1360 = vmand %vm1344, %vm1352
        %vm1361 = vmand %vm1345, %vm1353
        %vm1362 = vmand %vm1346, %vm1354
        %vm1363 = vmand %vm1347, %vm1355
        %vm1364 = vmand %vm1348, %vm1356
        %vm1365 = vmand %vm1349, %vm1357
        %v1366 = vsel %vm1358, 1.0, %v1330
        %v1367 = vsel %vm1359, 1.0, %v1331
        %v1368 = vsel %vm1360, 1.0, %v1332
        %v1369 = vsel %vm1361, 1.0, %v1333
        %v1370 = vsel %vm1362, 1.0, %v1334
        %v1371 = vsel %vm1363, 1.0, %v1335
        %v1372 = vsel %vm1364, 1.0, %v1336
        %v1373 = vsel %vm1365, 1.0, %v1337
        %1374 = vset.pattern.permute.xlu0 7
        %1375 = vperm.xlu0 %1374, %v1112
        %v1376 = vpop.permute.xlu0 %1375
        %vm1378 = vcmp.ge.f32.partialorder %v1376, %v1098
        %vm1379 = vcmp.ge.f32.partialorder %v1376, %v1099
        %vm1380 = vcmp.ge.f32.partialorder %v1376, %v1100
        %vm1381 = vcmp.ge.f32.partialorder %v1376, %v1101
        %vm1382 = vcmp.ge.f32.partialorder %v1376, %v1102
        %vm1383 = vcmp.ge.f32.partialorder %v1376, %v1103
        %vm1384 = vcmp.ge.f32.partialorder %v1376, %v1104
        %vm1385 = vcmp.ge.f32.partialorder %v1376, %v1105
        %vm1386 = vcmp.lt.f32.partialorder %v1376, %v1090
        %vm1387 = vcmp.lt.f32.partialorder %v1376, %v1091
        %vm1388 = vcmp.lt.f32.partialorder %v1376, %v1092
        %vm1389 = vcmp.lt.f32.partialorder %v1376, %v1093
        %vm1390 = vcmp.lt.f32.partialorder %v1376, %v1094
        %vm1391 = vcmp.lt.f32.partialorder %v1376, %v1095
        %vm1392 = vcmp.lt.f32.partialorder %v1376, %v1096
        %vm1393 = vcmp.lt.f32.partialorder %v1376, %v1097
        %vm1394 = vmand %vm1378, %vm1386
        %vm1395 = vmand %vm1379, %vm1387
        %vm1396 = vmand %vm1380, %vm1388
        %vm1397 = vmand %vm1381, %vm1389
        %vm1398 = vmand %vm1382, %vm1390
        %vm1399 = vmand %vm1383, %vm1391
        %vm1400 = vmand %vm1384, %vm1392
        %vm1401 = vmand %vm1385, %vm1393
        %v1402 = vsel %vm1394, 1.0, %v1366
        %v1403 = vsel %vm1395, 1.0, %v1367
        %v1404 = vsel %vm1396, 1.0, %v1368
        %v1405 = vsel %vm1397, 1.0, %v1369
        %v1406 = vsel %vm1398, 1.0, %v1370
        %v1407 = vsel %vm1399, 1.0, %v1371
        %v1408 = vsel %vm1400, 1.0, %v1372
        %v1409 = vsel %vm1401, 1.0, %v1373
        %1410 = vset.pattern.permute.xlu0 8
        %1411 = vperm.xlu0 %1410, %v1112
        %v1412 = vpop.permute.xlu0 %1411
        %vm1414 = vcmp.ge.f32.partialorder %v1412, %v1098
        %vm1415 = vcmp.ge.f32.partialorder %v1412, %v1099
        %vm1416 = vcmp.ge.f32.partialorder %v1412, %v1100
        %vm1417 = vcmp.ge.f32.partialorder %v1412, %v1101
        %vm1418 = vcmp.ge.f32.partialorder %v1412, %v1102
        %vm1419 = vcmp.ge.f32.partialorder %v1412, %v1103
        %vm1420 = vcmp.ge.f32.partialorder %v1412, %v1104
        %vm1421 = vcmp.ge.f32.partialorder %v1412, %v1105
        %vm1422 = vcmp.lt.f32.partialorder %v1412, %v1090
        %vm1423 = vcmp.lt.f32.partialorder %v1412, %v1091
        %vm1424 = vcmp.lt.f32.partialorder %v1412, %v1092
        %vm1425 = vcmp.lt.f32.partialorder %v1412, %v1093
        %vm1426 = vcmp.lt.f32.partialorder %v1412, %v1094
        %vm1427 = vcmp.lt.f32.partialorder %v1412, %v1095
        %vm1428 = vcmp.lt.f32.partialorder %v1412, %v1096
        %vm1429 = vcmp.lt.f32.partialorder %v1412, %v1097
        %vm1430 = vmand %vm1414, %vm1422
        %vm1431 = vmand %vm1415, %vm1423
        %vm1432 = vmand %vm1416, %vm1424
        %vm1433 = vmand %vm1417, %vm1425
        %vm1434 = vmand %vm1418, %vm1426
        %vm1435 = vmand %vm1419, %vm1427
        %vm1436 = vmand %vm1420, %vm1428
        %vm1437 = vmand %vm1421, %vm1429
        %v1438 = vsel %vm1430, 1.0, %v1402
        %v1439 = vsel %vm1431, 1.0, %v1403
        %v1440 = vsel %vm1432, 1.0, %v1404
        %v1441 = vsel %vm1433, 1.0, %v1405
        %v1442 = vsel %vm1434, 1.0, %v1406
        %v1443 = vsel %vm1435, 1.0, %v1407
        %v1444 = vsel %vm1436, 1.0, %v1408
        %v1445 = vsel %vm1437, 1.0, %v1409
        %1446 = vset.pattern.permute.xlu0 9
        %1447 = vperm.xlu0 %1446, %v1112
        %v1448 = vpop.permute.xlu0 %1447
        %vm1450 = vcmp.ge.f32.partialorder %v1448, %v1098
        %vm1451 = vcmp.ge.f32.partialorder %v1448, %v1099
        %vm1452 = vcmp.ge.f32.partialorder %v1448, %v1100
        %vm1453 = vcmp.ge.f32.partialorder %v1448, %v1101
        %vm1454 = vcmp.ge.f32.partialorder %v1448, %v1102
        %vm1455 = vcmp.ge.f32.partialorder %v1448, %v1103
        %vm1456 = vcmp.ge.f32.partialorder %v1448, %v1104
        %vm1457 = vcmp.ge.f32.partialorder %v1448, %v1105
        %vm1458 = vcmp.lt.f32.partialorder %v1448, %v1090
        %vm1459 = vcmp.lt.f32.partialorder %v1448, %v1091
        %vm1460 = vcmp.lt.f32.partialorder %v1448, %v1092
        %vm1461 = vcmp.lt.f32.partialorder %v1448, %v1093
        %vm1462 = vcmp.lt.f32.partialorder %v1448, %v1094
        %vm1463 = vcmp.lt.f32.partialorder %v1448, %v1095
        %vm1464 = vcmp.lt.f32.partialorder %v1448, %v1096
        %vm1465 = vcmp.lt.f32.partialorder %v1448, %v1097
        %vm1466 = vmand %vm1450, %vm1458
        %vm1467 = vmand %vm1451, %vm1459
        %vm1468 = vmand %vm1452, %vm1460
        %vm1469 = vmand %vm1453, %vm1461
        %vm1470 = vmand %vm1454, %vm1462
        %vm1471 = vmand %vm1455, %vm1463
        %vm1472 = vmand %vm1456, %vm1464
        %vm1473 = vmand %vm1457, %vm1465
        %v1474 = vsel %vm1466, 1.0, %v1438
        %v1475 = vsel %vm1467, 1.0, %v1439
        %v1476 = vsel %vm1468, 1.0, %v1440
        %v1477 = vsel %vm1469, 1.0, %v1441
        %v1478 = vsel %vm1470, 1.0, %v1442
        %v1479 = vsel %vm1471, 1.0, %v1443
        %v1480 = vsel %vm1472, 1.0, %v1444
        %v1481 = vsel %vm1473, 1.0, %v1445
        %1482 = vset.pattern.permute.xlu0 10
        %1483 = vperm.xlu0 %1482, %v1112
        %v1484 = vpop.permute.xlu0 %1483
        %vm1486 = vcmp.ge.f32.partialorder %v1484, %v1098
        %vm1487 = vcmp.ge.f32.partialorder %v1484, %v1099
        %vm1488 = vcmp.ge.f32.partialorder %v1484, %v1100
        %vm1489 = vcmp.ge.f32.partialorder %v1484, %v1101
        %vm1490 = vcmp.ge.f32.partialorder %v1484, %v1102
        %vm1491 = vcmp.ge.f32.partialorder %v1484, %v1103
        %vm1492 = vcmp.ge.f32.partialorder %v1484, %v1104
        %vm1493 = vcmp.ge.f32.partialorder %v1484, %v1105
        %vm1494 = vcmp.lt.f32.partialorder %v1484, %v1090
        %vm1495 = vcmp.lt.f32.partialorder %v1484, %v1091
        %vm1496 = vcmp.lt.f32.partialorder %v1484, %v1092
        %vm1497 = vcmp.lt.f32.partialorder %v1484, %v1093
        %vm1498 = vcmp.lt.f32.partialorder %v1484, %v1094
        %vm1499 = vcmp.lt.f32.partialorder %v1484, %v1095
        %vm1500 = vcmp.lt.f32.partialorder %v1484, %v1096
        %vm1501 = vcmp.lt.f32.partialorder %v1484, %v1097
        %vm1502 = vmand %vm1486, %vm1494
        %vm1503 = vmand %vm1487, %vm1495
        %vm1504 = vmand %vm1488, %vm1496
        %vm1505 = vmand %vm1489, %vm1497
        %vm1506 = vmand %vm1490, %vm1498
        %vm1507 = vmand %vm1491, %vm1499
        %vm1508 = vmand %vm1492, %vm1500
        %vm1509 = vmand %vm1493, %vm1501
        %v1510 = vsel %vm1502, 1.0, %v1474
        %v1511 = vsel %vm1503, 1.0, %v1475
        %v1512 = vsel %vm1504, 1.0, %v1476
        %v1513 = vsel %vm1505, 1.0, %v1477
        %v1514 = vsel %vm1506, 1.0, %v1478
        %v1515 = vsel %vm1507, 1.0, %v1479
        %v1516 = vsel %vm1508, 1.0, %v1480
        %v1517 = vsel %vm1509, 1.0, %v1481
        %1518 = vset.pattern.permute.xlu0 11
        %1519 = vperm.xlu0 %1518, %v1112
        %v1520 = vpop.permute.xlu0 %1519
        %vm1522 = vcmp.ge.f32.partialorder %v1520, %v1098
        %vm1523 = vcmp.ge.f32.partialorder %v1520, %v1099
        %vm1524 = vcmp.ge.f32.partialorder %v1520, %v1100
        %vm1525 = vcmp.ge.f32.partialorder %v1520, %v1101
        %vm1526 = vcmp.ge.f32.partialorder %v1520, %v1102
        %vm1527 = vcmp.ge.f32.partialorder %v1520, %v1103
        %vm1528 = vcmp.ge.f32.partialorder %v1520, %v1104
        %vm1529 = vcmp.ge.f32.partialorder %v1520, %v1105
        %vm1530 = vcmp.lt.f32.partialorder %v1520, %v1090
        %vm1531 = vcmp.lt.f32.partialorder %v1520, %v1091
        %vm1532 = vcmp.lt.f32.partialorder %v1520, %v1092
        %vm1533 = vcmp.lt.f32.partialorder %v1520, %v1093
        %vm1534 = vcmp.lt.f32.partialorder %v1520, %v1094
        %vm1535 = vcmp.lt.f32.partialorder %v1520, %v1095
        %vm1536 = vcmp.lt.f32.partialorder %v1520, %v1096
        %vm1537 = vcmp.lt.f32.partialorder %v1520, %v1097
        %vm1538 = vmand %vm1522, %vm1530
        %vm1539 = vmand %vm1523, %vm1531
        %vm1540 = vmand %vm1524, %vm1532
        %vm1541 = vmand %vm1525, %vm1533
        %vm1542 = vmand %vm1526, %vm1534
        %vm1543 = vmand %vm1527, %vm1535
        %vm1544 = vmand %vm1528, %vm1536
        %vm1545 = vmand %vm1529, %vm1537
        %v1546 = vsel %vm1538, 1.0, %v1510
        %v1547 = vsel %vm1539, 1.0, %v1511
        %v1548 = vsel %vm1540, 1.0, %v1512
        %v1549 = vsel %vm1541, 1.0, %v1513
        %v1550 = vsel %vm1542, 1.0, %v1514
        %v1551 = vsel %vm1543, 1.0, %v1515
        %v1552 = vsel %vm1544, 1.0, %v1516
        %v1553 = vsel %vm1545, 1.0, %v1517
        %1554 = vset.pattern.permute.xlu0 12
        %1555 = vperm.xlu0 %1554, %v1112
        %v1556 = vpop.permute.xlu0 %1555
        %vm1558 = vcmp.ge.f32.partialorder %v1556, %v1098
        %vm1559 = vcmp.ge.f32.partialorder %v1556, %v1099
        %vm1560 = vcmp.ge.f32.partialorder %v1556, %v1100
        %vm1561 = vcmp.ge.f32.partialorder %v1556, %v1101
        %vm1562 = vcmp.ge.f32.partialorder %v1556, %v1102
        %vm1563 = vcmp.ge.f32.partialorder %v1556, %v1103
        %vm1564 = vcmp.ge.f32.partialorder %v1556, %v1104
        %vm1565 = vcmp.ge.f32.partialorder %v1556, %v1105
        %vm1566 = vcmp.lt.f32.partialorder %v1556, %v1090
        %vm1567 = vcmp.lt.f32.partialorder %v1556, %v1091
        %vm1568 = vcmp.lt.f32.partialorder %v1556, %v1092
        %vm1569 = vcmp.lt.f32.partialorder %v1556, %v1093
        %vm1570 = vcmp.lt.f32.partialorder %v1556, %v1094
        %vm1571 = vcmp.lt.f32.partialorder %v1556, %v1095
        %vm1572 = vcmp.lt.f32.partialorder %v1556, %v1096
        %vm1573 = vcmp.lt.f32.partialorder %v1556, %v1097
        %vm1574 = vmand %vm1558, %vm1566
        %vm1575 = vmand %vm1559, %vm1567
        %vm1576 = vmand %vm1560, %vm1568
        %vm1577 = vmand %vm1561, %vm1569
        %vm1578 = vmand %vm1562, %vm1570
        %vm1579 = vmand %vm1563, %vm1571
        %vm1580 = vmand %vm1564, %vm1572
        %vm1581 = vmand %vm1565, %vm1573
        %v1582 = vsel %vm1574, 1.0, %v1546
        %v1583 = vsel %vm1575, 1.0, %v1547
        %v1584 = vsel %vm1576, 1.0, %v1548
        %v1585 = vsel %vm1577, 1.0, %v1549
        %v1586 = vsel %vm1578, 1.0, %v1550
        %v1587 = vsel %vm1579, 1.0, %v1551
        %v1588 = vsel %vm1580, 1.0, %v1552
        %v1589 = vsel %vm1581, 1.0, %v1553
        %1590 = vset.pattern.permute.xlu0 13
        %1591 = vperm.xlu0 %1590, %v1112
        %v1592 = vpop.permute.xlu0 %1591
        %vm1594 = vcmp.ge.f32.partialorder %v1592, %v1098
        %vm1595 = vcmp.ge.f32.partialorder %v1592, %v1099
        %vm1596 = vcmp.ge.f32.partialorder %v1592, %v1100
        %vm1597 = vcmp.ge.f32.partialorder %v1592, %v1101
        %vm1598 = vcmp.ge.f32.partialorder %v1592, %v1102
        %vm1599 = vcmp.ge.f32.partialorder %v1592, %v1103
        %vm1600 = vcmp.ge.f32.partialorder %v1592, %v1104
        %vm1601 = vcmp.ge.f32.partialorder %v1592, %v1105
        %vm1602 = vcmp.lt.f32.partialorder %v1592, %v1090
        %vm1603 = vcmp.lt.f32.partialorder %v1592, %v1091
        %vm1604 = vcmp.lt.f32.partialorder %v1592, %v1092
        %vm1605 = vcmp.lt.f32.partialorder %v1592, %v1093
        %vm1606 = vcmp.lt.f32.partialorder %v1592, %v1094
        %vm1607 = vcmp.lt.f32.partialorder %v1592, %v1095
        %vm1608 = vcmp.lt.f32.partialorder %v1592, %v1096
        %vm1609 = vcmp.lt.f32.partialorder %v1592, %v1097
        %vm1610 = vmand %vm1594, %vm1602
        %vm1611 = vmand %vm1595, %vm1603
        %vm1612 = vmand %vm1596, %vm1604
        %vm1613 = vmand %vm1597, %vm1605
        %vm1614 = vmand %vm1598, %vm1606
        %vm1615 = vmand %vm1599, %vm1607
        %vm1616 = vmand %vm1600, %vm1608
        %vm1617 = vmand %vm1601, %vm1609
        %v1618 = vsel %vm1610, 1.0, %v1582
        %v1619 = vsel %vm1611, 1.0, %v1583
        %v1620 = vsel %vm1612, 1.0, %v1584
        %v1621 = vsel %vm1613, 1.0, %v1585
        %v1622 = vsel %vm1614, 1.0, %v1586
        %v1623 = vsel %vm1615, 1.0, %v1587
        %v1624 = vsel %vm1616, 1.0, %v1588
        %v1625 = vsel %vm1617, 1.0, %v1589
        %1626 = vset.pattern.permute.xlu0 14
        %1627 = vperm.xlu0 %1626, %v1112
        %v1628 = vpop.permute.xlu0 %1627
        %vm1630 = vcmp.ge.f32.partialorder %v1628, %v1098
        %vm1631 = vcmp.ge.f32.partialorder %v1628, %v1099
        %vm1632 = vcmp.ge.f32.partialorder %v1628, %v1100
        %vm1633 = vcmp.ge.f32.partialorder %v1628, %v1101
        %vm1634 = vcmp.ge.f32.partialorder %v1628, %v1102
        %vm1635 = vcmp.ge.f32.partialorder %v1628, %v1103
        %vm1636 = vcmp.ge.f32.partialorder %v1628, %v1104
        %vm1637 = vcmp.ge.f32.partialorder %v1628, %v1105
        %vm1638 = vcmp.lt.f32.partialorder %v1628, %v1090
        %vm1639 = vcmp.lt.f32.partialorder %v1628, %v1091
        %vm1640 = vcmp.lt.f32.partialorder %v1628, %v1092
        %vm1641 = vcmp.lt.f32.partialorder %v1628, %v1093
        %vm1642 = vcmp.lt.f32.partialorder %v1628, %v1094
        %vm1643 = vcmp.lt.f32.partialorder %v1628, %v1095
        %vm1644 = vcmp.lt.f32.partialorder %v1628, %v1096
        %vm1645 = vcmp.lt.f32.partialorder %v1628, %v1097
        %vm1646 = vmand %vm1630, %vm1638
        %vm1647 = vmand %vm1631, %vm1639
        %vm1648 = vmand %vm1632, %vm1640
        %vm1649 = vmand %vm1633, %vm1641
        %vm1650 = vmand %vm1634, %vm1642
        %vm1651 = vmand %vm1635, %vm1643
        %vm1652 = vmand %vm1636, %vm1644
        %vm1653 = vmand %vm1637, %vm1645
        %v1654 = vsel %vm1646, 1.0, %v1618
        %v1655 = vsel %vm1647, 1.0, %v1619
        %v1656 = vsel %vm1648, 1.0, %v1620
        %v1657 = vsel %vm1649, 1.0, %v1621
        %v1658 = vsel %vm1650, 1.0, %v1622
        %v1659 = vsel %vm1651, 1.0, %v1623
        %v1660 = vsel %vm1652, 1.0, %v1624
        %v1661 = vsel %vm1653, 1.0, %v1625
        %1662 = vset.pattern.permute.xlu0 15
        %1663 = vperm.xlu0 %1662, %v1112
        %v1664 = vpop.permute.xlu0 %1663
        %vm1666 = vcmp.ge.f32.partialorder %v1664, %v1098
        %vm1667 = vcmp.ge.f32.partialorder %v1664, %v1099
        %vm1668 = vcmp.ge.f32.partialorder %v1664, %v1100
        %vm1669 = vcmp.ge.f32.partialorder %v1664, %v1101
        %vm1670 = vcmp.ge.f32.partialorder %v1664, %v1102
        %vm1671 = vcmp.ge.f32.partialorder %v1664, %v1103
        %vm1672 = vcmp.ge.f32.partialorder %v1664, %v1104
        %vm1673 = vcmp.ge.f32.partialorder %v1664, %v1105
        %vm1674 = vcmp.lt.f32.partialorder %v1664, %v1090
        %vm1675 = vcmp.lt.f32.partialorder %v1664, %v1091
        %vm1676 = vcmp.lt.f32.partialorder %v1664, %v1092
        %vm1677 = vcmp.lt.f32.partialorder %v1664, %v1093
        %vm1678 = vcmp.lt.f32.partialorder %v1664, %v1094
        %vm1679 = vcmp.lt.f32.partialorder %v1664, %v1095
        %vm1680 = vcmp.lt.f32.partialorder %v1664, %v1096
        %vm1681 = vcmp.lt.f32.partialorder %v1664, %v1097
        %vm1682 = vmand %vm1666, %vm1674
        %vm1683 = vmand %vm1667, %vm1675
        %vm1684 = vmand %vm1668, %vm1676
        %vm1685 = vmand %vm1669, %vm1677
        %vm1686 = vmand %vm1670, %vm1678
        %vm1687 = vmand %vm1671, %vm1679
        %vm1688 = vmand %vm1672, %vm1680
        %vm1689 = vmand %vm1673, %vm1681
        %v1690 = vsel %vm1682, 1.0, %v1654
        %v1691 = vsel %vm1683, 1.0, %v1655
        %v1692 = vsel %vm1684, 1.0, %v1656
        %v1693 = vsel %vm1685, 1.0, %v1657
        %v1694 = vsel %vm1686, 1.0, %v1658
        %v1695 = vsel %vm1687, 1.0, %v1659
        %v1696 = vsel %vm1688, 1.0, %v1660
        %v1697 = vsel %vm1689, 1.0, %v1661
        %1698 = vset.pattern.permute.xlu0 16
        %1699 = vperm.xlu0 %1698, %v1112
        %v1700 = vpop.permute.xlu0 %1699
        %vm1702 = vcmp.ge.f32.partialorder %v1700, %v1098
        %vm1703 = vcmp.ge.f32.partialorder %v1700, %v1099
        %vm1704 = vcmp.ge.f32.partialorder %v1700, %v1100
        %vm1705 = vcmp.ge.f32.partialorder %v1700, %v1101
        %vm1706 = vcmp.ge.f32.partialorder %v1700, %v1102
        %vm1707 = vcmp.ge.f32.partialorder %v1700, %v1103
        %vm1708 = vcmp.ge.f32.partialorder %v1700, %v1104
        %vm1709 = vcmp.ge.f32.partialorder %v1700, %v1105
        %vm1710 = vcmp.lt.f32.partialorder %v1700, %v1090
        %vm1711 = vcmp.lt.f32.partialorder %v1700, %v1091
        %vm1712 = vcmp.lt.f32.partialorder %v1700, %v1092
        %vm1713 = vcmp.lt.f32.partialorder %v1700, %v1093
        %vm1714 = vcmp.lt.f32.partialorder %v1700, %v1094
        %vm1715 = vcmp.lt.f32.partialorder %v1700, %v1095
        %vm1716 = vcmp.lt.f32.partialorder %v1700, %v1096
        %vm1717 = vcmp.lt.f32.partialorder %v1700, %v1097
        %vm1718 = vmand %vm1702, %vm1710
        %vm1719 = vmand %vm1703, %vm1711
        %vm1720 = vmand %vm1704, %vm1712
        %vm1721 = vmand %vm1705, %vm1713
        %vm1722 = vmand %vm1706, %vm1714
        %vm1723 = vmand %vm1707, %vm1715
        %vm1724 = vmand %vm1708, %vm1716
        %vm1725 = vmand %vm1709, %vm1717
        %v1726 = vsel %vm1718, 1.0, %v1690
        %v1727 = vsel %vm1719, 1.0, %v1691
        %v1728 = vsel %vm1720, 1.0, %v1692
        %v1729 = vsel %vm1721, 1.0, %v1693
        %v1730 = vsel %vm1722, 1.0, %v1694
        %v1731 = vsel %vm1723, 1.0, %v1695
        %v1732 = vsel %vm1724, 1.0, %v1696
        %v1733 = vsel %vm1725, 1.0, %v1697
        %1734 = vset.pattern.permute.xlu0 17
        %1735 = vperm.xlu0 %1734, %v1112
        %v1736 = vpop.permute.xlu0 %1735
        %vm1738 = vcmp.ge.f32.partialorder %v1736, %v1098
        %vm1739 = vcmp.ge.f32.partialorder %v1736, %v1099
        %vm1740 = vcmp.ge.f32.partialorder %v1736, %v1100
        %vm1741 = vcmp.ge.f32.partialorder %v1736, %v1101
        %vm1742 = vcmp.ge.f32.partialorder %v1736, %v1102
        %vm1743 = vcmp.ge.f32.partialorder %v1736, %v1103
        %vm1744 = vcmp.ge.f32.partialorder %v1736, %v1104
        %vm1745 = vcmp.ge.f32.partialorder %v1736, %v1105
        %vm1746 = vcmp.lt.f32.partialorder %v1736, %v1090
        %vm1747 = vcmp.lt.f32.partialorder %v1736, %v1091
        %vm1748 = vcmp.lt.f32.partialorder %v1736, %v1092
        %vm1749 = vcmp.lt.f32.partialorder %v1736, %v1093
        %vm1750 = vcmp.lt.f32.partialorder %v1736, %v1094
        %vm1751 = vcmp.lt.f32.partialorder %v1736, %v1095
        %vm1752 = vcmp.lt.f32.partialorder %v1736, %v1096
        %vm1753 = vcmp.lt.f32.partialorder %v1736, %v1097
        %vm1754 = vmand %vm1738, %vm1746
        %vm1755 = vmand %vm1739, %vm1747
        %vm1756 = vmand %vm1740, %vm1748
        %vm1757 = vmand %vm1741, %vm1749
        %vm1758 = vmand %vm1742, %vm1750
        %vm1759 = vmand %vm1743, %vm1751
        %vm1760 = vmand %vm1744, %vm1752
        %vm1761 = vmand %vm1745, %vm1753
        %v1762 = vsel %vm1754, 1.0, %v1726
        %v1763 = vsel %vm1755, 1.0, %v1727
        %v1764 = vsel %vm1756, 1.0, %v1728
        %v1765 = vsel %vm1757, 1.0, %v1729
        %v1766 = vsel %vm1758, 1.0, %v1730
        %v1767 = vsel %vm1759, 1.0, %v1731
        %v1768 = vsel %vm1760, 1.0, %v1732
        %v1769 = vsel %vm1761, 1.0, %v1733
        %1770 = vset.pattern.permute.xlu0 18
        %1771 = vperm.xlu0 %1770, %v1112
        %v1772 = vpop.permute.xlu0 %1771
        %vm1774 = vcmp.ge.f32.partialorder %v1772, %v1098
        %vm1775 = vcmp.ge.f32.partialorder %v1772, %v1099
        %vm1776 = vcmp.ge.f32.partialorder %v1772, %v1100
        %vm1777 = vcmp.ge.f32.partialorder %v1772, %v1101
        %vm1778 = vcmp.ge.f32.partialorder %v1772, %v1102
        %vm1779 = vcmp.ge.f32.partialorder %v1772, %v1103
        %vm1780 = vcmp.ge.f32.partialorder %v1772, %v1104
        %vm1781 = vcmp.ge.f32.partialorder %v1772, %v1105
        %vm1782 = vcmp.lt.f32.partialorder %v1772, %v1090
        %vm1783 = vcmp.lt.f32.partialorder %v1772, %v1091
        %vm1784 = vcmp.lt.f32.partialorder %v1772, %v1092
        %vm1785 = vcmp.lt.f32.partialorder %v1772, %v1093
        %vm1786 = vcmp.lt.f32.partialorder %v1772, %v1094
        %vm1787 = vcmp.lt.f32.partialorder %v1772, %v1095
        %vm1788 = vcmp.lt.f32.partialorder %v1772, %v1096
        %vm1789 = vcmp.lt.f32.partialorder %v1772, %v1097
        %vm1790 = vmand %vm1774, %vm1782
        %vm1791 = vmand %vm1775, %vm1783
        %vm1792 = vmand %vm1776, %vm1784
        %vm1793 = vmand %vm1777, %vm1785
        %vm1794 = vmand %vm1778, %vm1786
        %vm1795 = vmand %vm1779, %vm1787
        %vm1796 = vmand %vm1780, %vm1788
        %vm1797 = vmand %vm1781, %vm1789
        %v1798 = vsel %vm1790, 1.0, %v1762
        %v1799 = vsel %vm1791, 1.0, %v1763
        %v1800 = vsel %vm1792, 1.0, %v1764
        %v1801 = vsel %vm1793, 1.0, %v1765
        %v1802 = vsel %vm1794, 1.0, %v1766
        %v1803 = vsel %vm1795, 1.0, %v1767
        %v1804 = vsel %vm1796, 1.0, %v1768
        %v1805 = vsel %vm1797, 1.0, %v1769
        %1806 = vset.pattern.permute.xlu0 19
        %1807 = vperm.xlu0 %1806, %v1112
        %v1808 = vpop.permute.xlu0 %1807
        %vm1810 = vcmp.ge.f32.partialorder %v1808, %v1098
        %vm1811 = vcmp.ge.f32.partialorder %v1808, %v1099
        %vm1812 = vcmp.ge.f32.partialorder %v1808, %v1100
        %vm1813 = vcmp.ge.f32.partialorder %v1808, %v1101
        %vm1814 = vcmp.ge.f32.partialorder %v1808, %v1102
        %vm1815 = vcmp.ge.f32.partialorder %v1808, %v1103
        %vm1816 = vcmp.ge.f32.partialorder %v1808, %v1104
        %vm1817 = vcmp.ge.f32.partialorder %v1808, %v1105
        %vm1818 = vcmp.lt.f32.partialorder %v1808, %v1090
        %vm1819 = vcmp.lt.f32.partialorder %v1808, %v1091
        %vm1820 = vcmp.lt.f32.partialorder %v1808, %v1092
        %vm1821 = vcmp.lt.f32.partialorder %v1808, %v1093
        %vm1822 = vcmp.lt.f32.partialorder %v1808, %v1094
        %vm1823 = vcmp.lt.f32.partialorder %v1808, %v1095
        %vm1824 = vcmp.lt.f32.partialorder %v1808, %v1096
        %vm1825 = vcmp.lt.f32.partialorder %v1808, %v1097
        %vm1826 = vmand %vm1810, %vm1818
        %vm1827 = vmand %vm1811, %vm1819
        %vm1828 = vmand %vm1812, %vm1820
        %vm1829 = vmand %vm1813, %vm1821
        %vm1830 = vmand %vm1814, %vm1822
        %vm1831 = vmand %vm1815, %vm1823
        %vm1832 = vmand %vm1816, %vm1824
        %vm1833 = vmand %vm1817, %vm1825
        %v1834 = vsel %vm1826, 1.0, %v1798
        %v1835 = vsel %vm1827, 1.0, %v1799
        %v1836 = vsel %vm1828, 1.0, %v1800
        %v1837 = vsel %vm1829, 1.0, %v1801
        %v1838 = vsel %vm1830, 1.0, %v1802
        %v1839 = vsel %vm1831, 1.0, %v1803
        %v1840 = vsel %vm1832, 1.0, %v1804
        %v1841 = vsel %vm1833, 1.0, %v1805
        %1842 = vset.pattern.permute.xlu0 20
        %1843 = vperm.xlu0 %1842, %v1112
        %v1844 = vpop.permute.xlu0 %1843
        %vm1846 = vcmp.ge.f32.partialorder %v1844, %v1098
        %vm1847 = vcmp.ge.f32.partialorder %v1844, %v1099
        %vm1848 = vcmp.ge.f32.partialorder %v1844, %v1100
        %vm1849 = vcmp.ge.f32.partialorder %v1844, %v1101
        %vm1850 = vcmp.ge.f32.partialorder %v1844, %v1102
        %vm1851 = vcmp.ge.f32.partialorder %v1844, %v1103
        %vm1852 = vcmp.ge.f32.partialorder %v1844, %v1104
        %vm1853 = vcmp.ge.f32.partialorder %v1844, %v1105
        %vm1854 = vcmp.lt.f32.partialorder %v1844, %v1090
        %vm1855 = vcmp.lt.f32.partialorder %v1844, %v1091
        %vm1856 = vcmp.lt.f32.partialorder %v1844, %v1092
        %vm1857 = vcmp.lt.f32.partialorder %v1844, %v1093
        %vm1858 = vcmp.lt.f32.partialorder %v1844, %v1094
        %vm1859 = vcmp.lt.f32.partialorder %v1844, %v1095
        %vm1860 = vcmp.lt.f32.partialorder %v1844, %v1096
        %vm1861 = vcmp.lt.f32.partialorder %v1844, %v1097
        %vm1862 = vmand %vm1846, %vm1854
        %vm1863 = vmand %vm1847, %vm1855
        %vm1864 = vmand %vm1848, %vm1856
        %vm1865 = vmand %vm1849, %vm1857
        %vm1866 = vmand %vm1850, %vm1858
        %vm1867 = vmand %vm1851, %vm1859
        %vm1868 = vmand %vm1852, %vm1860
        %vm1869 = vmand %vm1853, %vm1861
        %v1870 = vsel %vm1862, 1.0, %v1834
        %v1871 = vsel %vm1863, 1.0, %v1835
        %v1872 = vsel %vm1864, 1.0, %v1836
        %v1873 = vsel %vm1865, 1.0, %v1837
        %v1874 = vsel %vm1866, 1.0, %v1838
        %v1875 = vsel %vm1867, 1.0, %v1839
        %v1876 = vsel %vm1868, 1.0, %v1840
        %v1877 = vsel %vm1869, 1.0, %v1841
        %1878 = vset.pattern.permute.xlu0 21
        %1879 = vperm.xlu0 %1878, %v1112
        %v1880 = vpop.permute.xlu0 %1879
        %vm1882 = vcmp.ge.f32.partialorder %v1880, %v1098
        %vm1883 = vcmp.ge.f32.partialorder %v1880, %v1099
        %vm1884 = vcmp.ge.f32.partialorder %v1880, %v1100
        %vm1885 = vcmp.ge.f32.partialorder %v1880, %v1101
        %vm1886 = vcmp.ge.f32.partialorder %v1880, %v1102
        %vm1887 = vcmp.ge.f32.partialorder %v1880, %v1103
        %vm1888 = vcmp.ge.f32.partialorder %v1880, %v1104
        %vm1889 = vcmp.ge.f32.partialorder %v1880, %v1105
        %vm1890 = vcmp.lt.f32.partialorder %v1880, %v1090
        %vm1891 = vcmp.lt.f32.partialorder %v1880, %v1091
        %vm1892 = vcmp.lt.f32.partialorder %v1880, %v1092
        %vm1893 = vcmp.lt.f32.partialorder %v1880, %v1093
        %vm1894 = vcmp.lt.f32.partialorder %v1880, %v1094
        %vm1895 = vcmp.lt.f32.partialorder %v1880, %v1095
        %vm1896 = vcmp.lt.f32.partialorder %v1880, %v1096
        %vm1897 = vcmp.lt.f32.partialorder %v1880, %v1097
        %vm1898 = vmand %vm1882, %vm1890
        %vm1899 = vmand %vm1883, %vm1891
        %vm1900 = vmand %vm1884, %vm1892
        %vm1901 = vmand %vm1885, %vm1893
        %vm1902 = vmand %vm1886, %vm1894
        %vm1903 = vmand %vm1887, %vm1895
        %vm1904 = vmand %vm1888, %vm1896
        %vm1905 = vmand %vm1889, %vm1897
        %v1906 = vsel %vm1898, 1.0, %v1870
        %v1907 = vsel %vm1899, 1.0, %v1871
        %v1908 = vsel %vm1900, 1.0, %v1872
        %v1909 = vsel %vm1901, 1.0, %v1873
        %v1910 = vsel %vm1902, 1.0, %v1874
        %v1911 = vsel %vm1903, 1.0, %v1875
        %v1912 = vsel %vm1904, 1.0, %v1876
        %v1913 = vsel %vm1905, 1.0, %v1877
        %1914 = vset.pattern.permute.xlu0 22
        %1915 = vperm.xlu0 %1914, %v1112
        %v1916 = vpop.permute.xlu0 %1915
        %vm1918 = vcmp.ge.f32.partialorder %v1916, %v1098
        %vm1919 = vcmp.ge.f32.partialorder %v1916, %v1099
        %vm1920 = vcmp.ge.f32.partialorder %v1916, %v1100
        %vm1921 = vcmp.ge.f32.partialorder %v1916, %v1101
        %vm1922 = vcmp.ge.f32.partialorder %v1916, %v1102
        %vm1923 = vcmp.ge.f32.partialorder %v1916, %v1103
        %vm1924 = vcmp.ge.f32.partialorder %v1916, %v1104
        %vm1925 = vcmp.ge.f32.partialorder %v1916, %v1105
        %vm1926 = vcmp.lt.f32.partialorder %v1916, %v1090
        %vm1927 = vcmp.lt.f32.partialorder %v1916, %v1091
        %vm1928 = vcmp.lt.f32.partialorder %v1916, %v1092
        %vm1929 = vcmp.lt.f32.partialorder %v1916, %v1093
        %vm1930 = vcmp.lt.f32.partialorder %v1916, %v1094
        %vm1931 = vcmp.lt.f32.partialorder %v1916, %v1095
        %vm1932 = vcmp.lt.f32.partialorder %v1916, %v1096
        %vm1933 = vcmp.lt.f32.partialorder %v1916, %v1097
        %vm1934 = vmand %vm1918, %vm1926
        %vm1935 = vmand %vm1919, %vm1927
        %vm1936 = vmand %vm1920, %vm1928
        %vm1937 = vmand %vm1921, %vm1929
        %vm1938 = vmand %vm1922, %vm1930
        %vm1939 = vmand %vm1923, %vm1931
        %vm1940 = vmand %vm1924, %vm1932
        %vm1941 = vmand %vm1925, %vm1933
        %v1942 = vsel %vm1934, 1.0, %v1906
        %v1943 = vsel %vm1935, 1.0, %v1907
        %v1944 = vsel %vm1936, 1.0, %v1908
        %v1945 = vsel %vm1937, 1.0, %v1909
        %v1946 = vsel %vm1938, 1.0, %v1910
        %v1947 = vsel %vm1939, 1.0, %v1911
        %v1948 = vsel %vm1940, 1.0, %v1912
        %v1949 = vsel %vm1941, 1.0, %v1913
        %1950 = vset.pattern.permute.xlu0 23
        %1951 = vperm.xlu0 %1950, %v1112
        %v1952 = vpop.permute.xlu0 %1951
        %vm1954 = vcmp.ge.f32.partialorder %v1952, %v1098
        %vm1955 = vcmp.ge.f32.partialorder %v1952, %v1099
        %vm1956 = vcmp.ge.f32.partialorder %v1952, %v1100
        %vm1957 = vcmp.ge.f32.partialorder %v1952, %v1101
        %vm1958 = vcmp.ge.f32.partialorder %v1952, %v1102
        %vm1959 = vcmp.ge.f32.partialorder %v1952, %v1103
        %vm1960 = vcmp.ge.f32.partialorder %v1952, %v1104
        %vm1961 = vcmp.ge.f32.partialorder %v1952, %v1105
        %vm1962 = vcmp.lt.f32.partialorder %v1952, %v1090
        %vm1963 = vcmp.lt.f32.partialorder %v1952, %v1091
        %vm1964 = vcmp.lt.f32.partialorder %v1952, %v1092
        %vm1965 = vcmp.lt.f32.partialorder %v1952, %v1093
        %vm1966 = vcmp.lt.f32.partialorder %v1952, %v1094
        %vm1967 = vcmp.lt.f32.partialorder %v1952, %v1095
        %vm1968 = vcmp.lt.f32.partialorder %v1952, %v1096
        %vm1969 = vcmp.lt.f32.partialorder %v1952, %v1097
        %vm1970 = vmand %vm1954, %vm1962
        %vm1971 = vmand %vm1955, %vm1963
        %vm1972 = vmand %vm1956, %vm1964
        %vm1973 = vmand %vm1957, %vm1965
        %vm1974 = vmand %vm1958, %vm1966
        %vm1975 = vmand %vm1959, %vm1967
        %vm1976 = vmand %vm1960, %vm1968
        %vm1977 = vmand %vm1961, %vm1969
        %v1978 = vsel %vm1970, 1.0, %v1942
        %v1979 = vsel %vm1971, 1.0, %v1943
        %v1980 = vsel %vm1972, 1.0, %v1944
        %v1981 = vsel %vm1973, 1.0, %v1945
        %v1982 = vsel %vm1974, 1.0, %v1946
        %v1983 = vsel %vm1975, 1.0, %v1947
        %v1984 = vsel %vm1976, 1.0, %v1948
        %v1985 = vsel %vm1977, 1.0, %v1949
        %1986 = vset.pattern.permute.xlu0 24
        %1987 = vperm.xlu0 %1986, %v1112
        %v1988 = vpop.permute.xlu0 %1987
        %vm1990 = vcmp.ge.f32.partialorder %v1988, %v1098
        %vm1991 = vcmp.ge.f32.partialorder %v1988, %v1099
        %vm1992 = vcmp.ge.f32.partialorder %v1988, %v1100
        %vm1993 = vcmp.ge.f32.partialorder %v1988, %v1101
        %vm1994 = vcmp.ge.f32.partialorder %v1988, %v1102
        %vm1995 = vcmp.ge.f32.partialorder %v1988, %v1103
        %vm1996 = vcmp.ge.f32.partialorder %v1988, %v1104
        %vm1997 = vcmp.ge.f32.partialorder %v1988, %v1105
        %vm1998 = vcmp.lt.f32.partialorder %v1988, %v1090
        %vm1999 = vcmp.lt.f32.partialorder %v1988, %v1091
        %vm2000 = vcmp.lt.f32.partialorder %v1988, %v1092
        %vm2001 = vcmp.lt.f32.partialorder %v1988, %v1093
        %vm2002 = vcmp.lt.f32.partialorder %v1988, %v1094
        %vm2003 = vcmp.lt.f32.partialorder %v1988, %v1095
        %vm2004 = vcmp.lt.f32.partialorder %v1988, %v1096
        %vm2005 = vcmp.lt.f32.partialorder %v1988, %v1097
        %vm2006 = vmand %vm1990, %vm1998
        %vm2007 = vmand %vm1991, %vm1999
        %vm2008 = vmand %vm1992, %vm2000
        %vm2009 = vmand %vm1993, %vm2001
        %vm2010 = vmand %vm1994, %vm2002
        %vm2011 = vmand %vm1995, %vm2003
        %vm2012 = vmand %vm1996, %vm2004
        %vm2013 = vmand %vm1997, %vm2005
        %v2014 = vsel %vm2006, 1.0, %v1978
        %v2015 = vsel %vm2007, 1.0, %v1979
        %v2016 = vsel %vm2008, 1.0, %v1980
        %v2017 = vsel %vm2009, 1.0, %v1981
        %v2018 = vsel %vm2010, 1.0, %v1982
        %v2019 = vsel %vm2011, 1.0, %v1983
        %v2020 = vsel %vm2012, 1.0, %v1984
        %v2021 = vsel %vm2013, 1.0, %v1985
        %2022 = vset.pattern.permute.xlu0 25
        %2023 = vperm.xlu0 %2022, %v1112
        %v2024 = vpop.permute.xlu0 %2023
        %vm2026 = vcmp.ge.f32.partialorder %v2024, %v1098
        %vm2027 = vcmp.ge.f32.partialorder %v2024, %v1099
        %vm2028 = vcmp.ge.f32.partialorder %v2024, %v1100
        %vm2029 = vcmp.ge.f32.partialorder %v2024, %v1101
        %vm2030 = vcmp.ge.f32.partialorder %v2024, %v1102
        %vm2031 = vcmp.ge.f32.partialorder %v2024, %v1103
        %vm2032 = vcmp.ge.f32.partialorder %v2024, %v1104
        %vm2033 = vcmp.ge.f32.partialorder %v2024, %v1105
        %vm2034 = vcmp.lt.f32.partialorder %v2024, %v1090
        %vm2035 = vcmp.lt.f32.partialorder %v2024, %v1091
        %vm2036 = vcmp.lt.f32.partialorder %v2024, %v1092
        %vm2037 = vcmp.lt.f32.partialorder %v2024, %v1093
        %vm2038 = vcmp.lt.f32.partialorder %v2024, %v1094
        %vm2039 = vcmp.lt.f32.partialorder %v2024, %v1095
        %vm2040 = vcmp.lt.f32.partialorder %v2024, %v1096
        %vm2041 = vcmp.lt.f32.partialorder %v2024, %v1097
        %vm2042 = vmand %vm2026, %vm2034
        %vm2043 = vmand %vm2027, %vm2035
        %vm2044 = vmand %vm2028, %vm2036
        %vm2045 = vmand %vm2029, %vm2037
        %vm2046 = vmand %vm2030, %vm2038
        %vm2047 = vmand %vm2031, %vm2039
        %vm2048 = vmand %vm2032, %vm2040
        %vm2049 = vmand %vm2033, %vm2041
        %v2050 = vsel %vm2042, 1.0, %v2014
        %v2051 = vsel %vm2043, 1.0, %v2015
        %v2052 = vsel %vm2044, 1.0, %v2016
        %v2053 = vsel %vm2045, 1.0, %v2017
        %v2054 = vsel %vm2046, 1.0, %v2018
        %v2055 = vsel %vm2047, 1.0, %v2019
        %v2056 = vsel %vm2048, 1.0, %v2020
        %v2057 = vsel %vm2049, 1.0, %v2021
        %2058 = vset.pattern.permute.xlu0 26
        %2059 = vperm.xlu0 %2058, %v1112
        %v2060 = vpop.permute.xlu0 %2059
        %vm2062 = vcmp.ge.f32.partialorder %v2060, %v1098
        %vm2063 = vcmp.ge.f32.partialorder %v2060, %v1099
        %vm2064 = vcmp.ge.f32.partialorder %v2060, %v1100
        %vm2065 = vcmp.ge.f32.partialorder %v2060, %v1101
        %vm2066 = vcmp.ge.f32.partialorder %v2060, %v1102
        %vm2067 = vcmp.ge.f32.partialorder %v2060, %v1103
        %vm2068 = vcmp.ge.f32.partialorder %v2060, %v1104
        %vm2069 = vcmp.ge.f32.partialorder %v2060, %v1105
        %vm2070 = vcmp.lt.f32.partialorder %v2060, %v1090
        %vm2071 = vcmp.lt.f32.partialorder %v2060, %v1091
        %vm2072 = vcmp.lt.f32.partialorder %v2060, %v1092
        %vm2073 = vcmp.lt.f32.partialorder %v2060, %v1093
        %vm2074 = vcmp.lt.f32.partialorder %v2060, %v1094
        %vm2075 = vcmp.lt.f32.partialorder %v2060, %v1095
        %vm2076 = vcmp.lt.f32.partialorder %v2060, %v1096
        %vm2077 = vcmp.lt.f32.partialorder %v2060, %v1097
        %vm2078 = vmand %vm2062, %vm2070
        %vm2079 = vmand %vm2063, %vm2071
        %vm2080 = vmand %vm2064, %vm2072
        %vm2081 = vmand %vm2065, %vm2073
        %vm2082 = vmand %vm2066, %vm2074
        %vm2083 = vmand %vm2067, %vm2075
        %vm2084 = vmand %vm2068, %vm2076
        %vm2085 = vmand %vm2069, %vm2077
        %v2086 = vsel %vm2078, 1.0, %v2050
        %v2087 = vsel %vm2079, 1.0, %v2051
        %v2088 = vsel %vm2080, 1.0, %v2052
        %v2089 = vsel %vm2081, 1.0, %v2053
        %v2090 = vsel %vm2082, 1.0, %v2054
        %v2091 = vsel %vm2083, 1.0, %v2055
        %v2092 = vsel %vm2084, 1.0, %v2056
        %v2093 = vsel %vm2085, 1.0, %v2057
        %2094 = vset.pattern.permute.xlu0 27
        %2095 = vperm.xlu0 %2094, %v1112
        %v2096 = vpop.permute.xlu0 %2095
        %vm2098 = vcmp.ge.f32.partialorder %v2096, %v1098
        %vm2099 = vcmp.ge.f32.partialorder %v2096, %v1099
        %vm2100 = vcmp.ge.f32.partialorder %v2096, %v1100
        %vm2101 = vcmp.ge.f32.partialorder %v2096, %v1101
        %vm2102 = vcmp.ge.f32.partialorder %v2096, %v1102
        %vm2103 = vcmp.ge.f32.partialorder %v2096, %v1103
        %vm2104 = vcmp.ge.f32.partialorder %v2096, %v1104
        %vm2105 = vcmp.ge.f32.partialorder %v2096, %v1105
        %vm2106 = vcmp.lt.f32.partialorder %v2096, %v1090
        %vm2107 = vcmp.lt.f32.partialorder %v2096, %v1091
        %vm2108 = vcmp.lt.f32.partialorder %v2096, %v1092
        %vm2109 = vcmp.lt.f32.partialorder %v2096, %v1093
        %vm2110 = vcmp.lt.f32.partialorder %v2096, %v1094
        %vm2111 = vcmp.lt.f32.partialorder %v2096, %v1095
        %vm2112 = vcmp.lt.f32.partialorder %v2096, %v1096
        %vm2113 = vcmp.lt.f32.partialorder %v2096, %v1097
        %vm2114 = vmand %vm2098, %vm2106
        %vm2115 = vmand %vm2099, %vm2107
        %vm2116 = vmand %vm2100, %vm2108
        %vm2117 = vmand %vm2101, %vm2109
        %vm2118 = vmand %vm2102, %vm2110
        %vm2119 = vmand %vm2103, %vm2111
        %vm2120 = vmand %vm2104, %vm2112
        %vm2121 = vmand %vm2105, %vm2113
        %v2122 = vsel %vm2114, 1.0, %v2086
        %v2123 = vsel %vm2115, 1.0, %v2087
        %v2124 = vsel %vm2116, 1.0, %v2088
        %v2125 = vsel %vm2117, 1.0, %v2089
        %v2126 = vsel %vm2118, 1.0, %v2090
        %v2127 = vsel %vm2119, 1.0, %v2091
        %v2128 = vsel %vm2120, 1.0, %v2092
        %v2129 = vsel %vm2121, 1.0, %v2093
        %2130 = vset.pattern.permute.xlu0 28
        %2131 = vperm.xlu0 %2130, %v1112
        %v2132 = vpop.permute.xlu0 %2131
        %vm2134 = vcmp.ge.f32.partialorder %v2132, %v1098
        %vm2135 = vcmp.ge.f32.partialorder %v2132, %v1099
        %vm2136 = vcmp.ge.f32.partialorder %v2132, %v1100
        %vm2137 = vcmp.ge.f32.partialorder %v2132, %v1101
        %vm2138 = vcmp.ge.f32.partialorder %v2132, %v1102
        %vm2139 = vcmp.ge.f32.partialorder %v2132, %v1103
        %vm2140 = vcmp.ge.f32.partialorder %v2132, %v1104
        %vm2141 = vcmp.ge.f32.partialorder %v2132, %v1105
        %vm2142 = vcmp.lt.f32.partialorder %v2132, %v1090
        %vm2143 = vcmp.lt.f32.partialorder %v2132, %v1091
        %vm2144 = vcmp.lt.f32.partialorder %v2132, %v1092
        %vm2145 = vcmp.lt.f32.partialorder %v2132, %v1093
        %vm2146 = vcmp.lt.f32.partialorder %v2132, %v1094
        %vm2147 = vcmp.lt.f32.partialorder %v2132, %v1095
        %vm2148 = vcmp.lt.f32.partialorder %v2132, %v1096
        %vm2149 = vcmp.lt.f32.partialorder %v2132, %v1097
        %vm2150 = vmand %vm2134, %vm2142
        %vm2151 = vmand %vm2135, %vm2143
        %vm2152 = vmand %vm2136, %vm2144
        %vm2153 = vmand %vm2137, %vm2145
        %vm2154 = vmand %vm2138, %vm2146
        %vm2155 = vmand %vm2139, %vm2147
        %vm2156 = vmand %vm2140, %vm2148
        %vm2157 = vmand %vm2141, %vm2149
        %v2158 = vsel %vm2150, 1.0, %v2122
        %v2159 = vsel %vm2151, 1.0, %v2123
        %v2160 = vsel %vm2152, 1.0, %v2124
        %v2161 = vsel %vm2153, 1.0, %v2125
        %v2162 = vsel %vm2154, 1.0, %v2126
        %v2163 = vsel %vm2155, 1.0, %v2127
        %v2164 = vsel %vm2156, 1.0, %v2128
        %v2165 = vsel %vm2157, 1.0, %v2129
        %2166 = vset.pattern.permute.xlu0 29
        %2167 = vperm.xlu0 %2166, %v1112
        %v2168 = vpop.permute.xlu0 %2167
        %vm2170 = vcmp.ge.f32.partialorder %v2168, %v1098
        %vm2171 = vcmp.ge.f32.partialorder %v2168, %v1099
        %vm2172 = vcmp.ge.f32.partialorder %v2168, %v1100
        %vm2173 = vcmp.ge.f32.partialorder %v2168, %v1101
        %vm2174 = vcmp.ge.f32.partialorder %v2168, %v1102
        %vm2175 = vcmp.ge.f32.partialorder %v2168, %v1103
        %vm2176 = vcmp.ge.f32.partialorder %v2168, %v1104
        %vm2177 = vcmp.ge.f32.partialorder %v2168, %v1105
        %vm2178 = vcmp.lt.f32.partialorder %v2168, %v1090
        %vm2179 = vcmp.lt.f32.partialorder %v2168, %v1091
        %vm2180 = vcmp.lt.f32.partialorder %v2168, %v1092
        %vm2181 = vcmp.lt.f32.partialorder %v2168, %v1093
        %vm2182 = vcmp.lt.f32.partialorder %v2168, %v1094
        %vm2183 = vcmp.lt.f32.partialorder %v2168, %v1095
        %vm2184 = vcmp.lt.f32.partialorder %v2168, %v1096
        %vm2185 = vcmp.lt.f32.partialorder %v2168, %v1097
        %vm2186 = vmand %vm2170, %vm2178
        %vm2187 = vmand %vm2171, %vm2179
        %vm2188 = vmand %vm2172, %vm2180
        %vm2189 = vmand %vm2173, %vm2181
        %vm2190 = vmand %vm2174, %vm2182
        %vm2191 = vmand %vm2175, %vm2183
        %vm2192 = vmand %vm2176, %vm2184
        %vm2193 = vmand %vm2177, %vm2185
        %v2194 = vsel %vm2186, 1.0, %v2158
        %v2195 = vsel %vm2187, 1.0, %v2159
        %v2196 = vsel %vm2188, 1.0, %v2160
        %v2197 = vsel %vm2189, 1.0, %v2161
        %v2198 = vsel %vm2190, 1.0, %v2162
        %v2199 = vsel %vm2191, 1.0, %v2163
        %v2200 = vsel %vm2192, 1.0, %v2164
        %v2201 = vsel %vm2193, 1.0, %v2165
        %2202 = vset.pattern.permute.xlu0 30
        %2203 = vperm.xlu0 %2202, %v1112
        %v2204 = vpop.permute.xlu0 %2203
        %vm2206 = vcmp.ge.f32.partialorder %v2204, %v1098
        %vm2207 = vcmp.ge.f32.partialorder %v2204, %v1099
        %vm2208 = vcmp.ge.f32.partialorder %v2204, %v1100
        %vm2209 = vcmp.ge.f32.partialorder %v2204, %v1101
        %vm2210 = vcmp.ge.f32.partialorder %v2204, %v1102
        %vm2211 = vcmp.ge.f32.partialorder %v2204, %v1103
        %vm2212 = vcmp.ge.f32.partialorder %v2204, %v1104
        %vm2213 = vcmp.ge.f32.partialorder %v2204, %v1105
        %vm2214 = vcmp.lt.f32.partialorder %v2204, %v1090
        %vm2215 = vcmp.lt.f32.partialorder %v2204, %v1091
        %vm2216 = vcmp.lt.f32.partialorder %v2204, %v1092
        %vm2217 = vcmp.lt.f32.partialorder %v2204, %v1093
        %vm2218 = vcmp.lt.f32.partialorder %v2204, %v1094
        %vm2219 = vcmp.lt.f32.partialorder %v2204, %v1095
        %vm2220 = vcmp.lt.f32.partialorder %v2204, %v1096
        %vm2221 = vcmp.lt.f32.partialorder %v2204, %v1097
        %vm2222 = vmand %vm2206, %vm2214
        %vm2223 = vmand %vm2207, %vm2215
        %vm2224 = vmand %vm2208, %vm2216
        %vm2225 = vmand %vm2209, %vm2217
        %vm2226 = vmand %vm2210, %vm2218
        %vm2227 = vmand %vm2211, %vm2219
        %vm2228 = vmand %vm2212, %vm2220
        %vm2229 = vmand %vm2213, %vm2221
        %v2230 = vsel %vm2222, 1.0, %v2194
        %v2231 = vsel %vm2223, 1.0, %v2195
        %v2232 = vsel %vm2224, 1.0, %v2196
        %v2233 = vsel %vm2225, 1.0, %v2197
        %v2234 = vsel %vm2226, 1.0, %v2198
        %v2235 = vsel %vm2227, 1.0, %v2199
        %v2236 = vsel %vm2228, 1.0, %v2200
        %v2237 = vsel %vm2229, 1.0, %v2201
        %2238 = vset.pattern.permute.xlu0 31
        %2239 = vperm.xlu0 %2238, %v1112
        %v2240 = vpop.permute.xlu0 %2239
        %vm2242 = vcmp.ge.f32.partialorder %v2240, %v1098
        %vm2243 = vcmp.ge.f32.partialorder %v2240, %v1099
        %vm2244 = vcmp.ge.f32.partialorder %v2240, %v1100
        %vm2245 = vcmp.ge.f32.partialorder %v2240, %v1101
        %vm2246 = vcmp.ge.f32.partialorder %v2240, %v1102
        %vm2247 = vcmp.ge.f32.partialorder %v2240, %v1103
        %vm2248 = vcmp.ge.f32.partialorder %v2240, %v1104
        %vm2249 = vcmp.ge.f32.partialorder %v2240, %v1105
        %vm2250 = vcmp.lt.f32.partialorder %v2240, %v1090
        %vm2251 = vcmp.lt.f32.partialorder %v2240, %v1091
        %vm2252 = vcmp.lt.f32.partialorder %v2240, %v1092
        %vm2253 = vcmp.lt.f32.partialorder %v2240, %v1093
        %vm2254 = vcmp.lt.f32.partialorder %v2240, %v1094
        %vm2255 = vcmp.lt.f32.partialorder %v2240, %v1095
        %vm2256 = vcmp.lt.f32.partialorder %v2240, %v1096
        %vm2257 = vcmp.lt.f32.partialorder %v2240, %v1097
        %vm2258 = vmand %vm2242, %vm2250
        %vm2259 = vmand %vm2243, %vm2251
        %vm2260 = vmand %vm2244, %vm2252
        %vm2261 = vmand %vm2245, %vm2253
        %vm2262 = vmand %vm2246, %vm2254
        %vm2263 = vmand %vm2247, %vm2255
        %vm2264 = vmand %vm2248, %vm2256
        %vm2265 = vmand %vm2249, %vm2257
        %v2266 = vsel %vm2258, 1.0, %v2230
        %v2267 = vsel %vm2259, 1.0, %v2231
        %v2268 = vsel %vm2260, 1.0, %v2232
        %v2269 = vsel %vm2261, 1.0, %v2233
        %v2270 = vsel %vm2262, 1.0, %v2234
        %v2271 = vsel %vm2263, 1.0, %v2235
        %v2272 = vsel %vm2264, 1.0, %v2236
        %v2273 = vsel %vm2265, 1.0, %v2237
        %2274 = vset.pattern.permute.xlu0 32
        %2275 = vperm.xlu0 %2274, %v1112
        %v2276 = vpop.permute.xlu0 %2275
        %vm2278 = vcmp.ge.f32.partialorder %v2276, %v1098
        %vm2279 = vcmp.ge.f32.partialorder %v2276, %v1099
        %vm2280 = vcmp.ge.f32.partialorder %v2276, %v1100
        %vm2281 = vcmp.ge.f32.partialorder %v2276, %v1101
        %vm2282 = vcmp.ge.f32.partialorder %v2276, %v1102
        %vm2283 = vcmp.ge.f32.partialorder %v2276, %v1103
        %vm2284 = vcmp.ge.f32.partialorder %v2276, %v1104
        %vm2285 = vcmp.ge.f32.partialorder %v2276, %v1105
        %vm2286 = vcmp.lt.f32.partialorder %v2276, %v1090
        %vm2287 = vcmp.lt.f32.partialorder %v2276, %v1091
        %vm2288 = vcmp.lt.f32.partialorder %v2276, %v1092
        %vm2289 = vcmp.lt.f32.partialorder %v2276, %v1093
        %vm2290 = vcmp.lt.f32.partialorder %v2276, %v1094
        %vm2291 = vcmp.lt.f32.partialorder %v2276, %v1095
        %vm2292 = vcmp.lt.f32.partialorder %v2276, %v1096
        %vm2293 = vcmp.lt.f32.partialorder %v2276, %v1097
        %vm2294 = vmand %vm2278, %vm2286
        %vm2295 = vmand %vm2279, %vm2287
        %vm2296 = vmand %vm2280, %vm2288
        %vm2297 = vmand %vm2281, %vm2289
        %vm2298 = vmand %vm2282, %vm2290
        %vm2299 = vmand %vm2283, %vm2291
        %vm2300 = vmand %vm2284, %vm2292
        %vm2301 = vmand %vm2285, %vm2293
        %v2302 = vsel %vm2294, 1.0, %v2266
        %v2303 = vsel %vm2295, 1.0, %v2267
        %v2304 = vsel %vm2296, 1.0, %v2268
        %v2305 = vsel %vm2297, 1.0, %v2269
        %v2306 = vsel %vm2298, 1.0, %v2270
        %v2307 = vsel %vm2299, 1.0, %v2271
        %v2308 = vsel %vm2300, 1.0, %v2272
        %v2309 = vsel %vm2301, 1.0, %v2273
        %2310 = vset.pattern.permute.xlu0 33
        %2311 = vperm.xlu0 %2310, %v1112
        %v2312 = vpop.permute.xlu0 %2311
        %vm2314 = vcmp.ge.f32.partialorder %v2312, %v1098
        %vm2315 = vcmp.ge.f32.partialorder %v2312, %v1099
        %vm2316 = vcmp.ge.f32.partialorder %v2312, %v1100
        %vm2317 = vcmp.ge.f32.partialorder %v2312, %v1101
        %vm2318 = vcmp.ge.f32.partialorder %v2312, %v1102
        %vm2319 = vcmp.ge.f32.partialorder %v2312, %v1103
        %vm2320 = vcmp.ge.f32.partialorder %v2312, %v1104
        %vm2321 = vcmp.ge.f32.partialorder %v2312, %v1105
        %vm2322 = vcmp.lt.f32.partialorder %v2312, %v1090
        %vm2323 = vcmp.lt.f32.partialorder %v2312, %v1091
        %vm2324 = vcmp.lt.f32.partialorder %v2312, %v1092
        %vm2325 = vcmp.lt.f32.partialorder %v2312, %v1093
        %vm2326 = vcmp.lt.f32.partialorder %v2312, %v1094
        %vm2327 = vcmp.lt.f32.partialorder %v2312, %v1095
        %vm2328 = vcmp.lt.f32.partialorder %v2312, %v1096
        %vm2329 = vcmp.lt.f32.partialorder %v2312, %v1097
        %vm2330 = vmand %vm2314, %vm2322
        %vm2331 = vmand %vm2315, %vm2323
        %vm2332 = vmand %vm2316, %vm2324
        %vm2333 = vmand %vm2317, %vm2325
        %vm2334 = vmand %vm2318, %vm2326
        %vm2335 = vmand %vm2319, %vm2327
        %vm2336 = vmand %vm2320, %vm2328
        %vm2337 = vmand %vm2321, %vm2329
        %v2338 = vsel %vm2330, 1.0, %v2302
        %v2339 = vsel %vm2331, 1.0, %v2303
        %v2340 = vsel %vm2332, 1.0, %v2304
        %v2341 = vsel %vm2333, 1.0, %v2305
        %v2342 = vsel %vm2334, 1.0, %v2306
        %v2343 = vsel %vm2335, 1.0, %v2307
        %v2344 = vsel %vm2336, 1.0, %v2308
        %v2345 = vsel %vm2337, 1.0, %v2309
        %2346 = vset.pattern.permute.xlu0 34
        %2347 = vperm.xlu0 %2346, %v1112
        %v2348 = vpop.permute.xlu0 %2347
        %vm2350 = vcmp.ge.f32.partialorder %v2348, %v1098
        %vm2351 = vcmp.ge.f32.partialorder %v2348, %v1099
        %vm2352 = vcmp.ge.f32.partialorder %v2348, %v1100
        %vm2353 = vcmp.ge.f32.partialorder %v2348, %v1101
        %vm2354 = vcmp.ge.f32.partialorder %v2348, %v1102
        %vm2355 = vcmp.ge.f32.partialorder %v2348, %v1103
        %vm2356 = vcmp.ge.f32.partialorder %v2348, %v1104
        %vm2357 = vcmp.ge.f32.partialorder %v2348, %v1105
        %vm2358 = vcmp.lt.f32.partialorder %v2348, %v1090
        %vm2359 = vcmp.lt.f32.partialorder %v2348, %v1091
        %vm2360 = vcmp.lt.f32.partialorder %v2348, %v1092
        %vm2361 = vcmp.lt.f32.partialorder %v2348, %v1093
        %vm2362 = vcmp.lt.f32.partialorder %v2348, %v1094
        %vm2363 = vcmp.lt.f32.partialorder %v2348, %v1095
        %vm2364 = vcmp.lt.f32.partialorder %v2348, %v1096
        %vm2365 = vcmp.lt.f32.partialorder %v2348, %v1097
        %vm2366 = vmand %vm2350, %vm2358
        %vm2367 = vmand %vm2351, %vm2359
        %vm2368 = vmand %vm2352, %vm2360
        %vm2369 = vmand %vm2353, %vm2361
        %vm2370 = vmand %vm2354, %vm2362
        %vm2371 = vmand %vm2355, %vm2363
        %vm2372 = vmand %vm2356, %vm2364
        %vm2373 = vmand %vm2357, %vm2365
        %v2374 = vsel %vm2366, 1.0, %v2338
        %v2375 = vsel %vm2367, 1.0, %v2339
        %v2376 = vsel %vm2368, 1.0, %v2340
        %v2377 = vsel %vm2369, 1.0, %v2341
        %v2378 = vsel %vm2370, 1.0, %v2342
        %v2379 = vsel %vm2371, 1.0, %v2343
        %v2380 = vsel %vm2372, 1.0, %v2344
        %v2381 = vsel %vm2373, 1.0, %v2345
        %2382 = vset.pattern.permute.xlu0 35
        %2383 = vperm.xlu0 %2382, %v1112
        %v2384 = vpop.permute.xlu0 %2383
        %vm2386 = vcmp.ge.f32.partialorder %v2384, %v1098
        %vm2387 = vcmp.ge.f32.partialorder %v2384, %v1099
        %vm2388 = vcmp.ge.f32.partialorder %v2384, %v1100
        %vm2389 = vcmp.ge.f32.partialorder %v2384, %v1101
        %vm2390 = vcmp.ge.f32.partialorder %v2384, %v1102
        %vm2391 = vcmp.ge.f32.partialorder %v2384, %v1103
        %vm2392 = vcmp.ge.f32.partialorder %v2384, %v1104
        %vm2393 = vcmp.ge.f32.partialorder %v2384, %v1105
        %vm2394 = vcmp.lt.f32.partialorder %v2384, %v1090
        %vm2395 = vcmp.lt.f32.partialorder %v2384, %v1091
        %vm2396 = vcmp.lt.f32.partialorder %v2384, %v1092
        %vm2397 = vcmp.lt.f32.partialorder %v2384, %v1093
        %vm2398 = vcmp.lt.f32.partialorder %v2384, %v1094
        %vm2399 = vcmp.lt.f32.partialorder %v2384, %v1095
        %vm2400 = vcmp.lt.f32.partialorder %v2384, %v1096
        %vm2401 = vcmp.lt.f32.partialorder %v2384, %v1097
        %vm2402 = vmand %vm2386, %vm2394
        %vm2403 = vmand %vm2387, %vm2395
        %vm2404 = vmand %vm2388, %vm2396
        %vm2405 = vmand %vm2389, %vm2397
        %vm2406 = vmand %vm2390, %vm2398
        %vm2407 = vmand %vm2391, %vm2399
        %vm2408 = vmand %vm2392, %vm2400
        %vm2409 = vmand %vm2393, %vm2401
        %v2410 = vsel %vm2402, 1.0, %v2374
        %v2411 = vsel %vm2403, 1.0, %v2375
        %v2412 = vsel %vm2404, 1.0, %v2376
        %v2413 = vsel %vm2405, 1.0, %v2377
        %v2414 = vsel %vm2406, 1.0, %v2378
        %v2415 = vsel %vm2407, 1.0, %v2379
        %v2416 = vsel %vm2408, 1.0, %v2380
        %v2417 = vsel %vm2409, 1.0, %v2381
        %2418 = vset.pattern.permute.xlu0 36
        %2419 = vperm.xlu0 %2418, %v1112
        %v2420 = vpop.permute.xlu0 %2419
        %vm2422 = vcmp.ge.f32.partialorder %v2420, %v1098
        %vm2423 = vcmp.ge.f32.partialorder %v2420, %v1099
        %vm2424 = vcmp.ge.f32.partialorder %v2420, %v1100
        %vm2425 = vcmp.ge.f32.partialorder %v2420, %v1101
        %vm2426 = vcmp.ge.f32.partialorder %v2420, %v1102
        %vm2427 = vcmp.ge.f32.partialorder %v2420, %v1103
        %vm2428 = vcmp.ge.f32.partialorder %v2420, %v1104
        %vm2429 = vcmp.ge.f32.partialorder %v2420, %v1105
        %vm2430 = vcmp.lt.f32.partialorder %v2420, %v1090
        %vm2431 = vcmp.lt.f32.partialorder %v2420, %v1091
        %vm2432 = vcmp.lt.f32.partialorder %v2420, %v1092
        %vm2433 = vcmp.lt.f32.partialorder %v2420, %v1093
        %vm2434 = vcmp.lt.f32.partialorder %v2420, %v1094
        %vm2435 = vcmp.lt.f32.partialorder %v2420, %v1095
        %vm2436 = vcmp.lt.f32.partialorder %v2420, %v1096
        %vm2437 = vcmp.lt.f32.partialorder %v2420, %v1097
        %vm2438 = vmand %vm2422, %vm2430
        %vm2439 = vmand %vm2423, %vm2431
        %vm2440 = vmand %vm2424, %vm2432
        %vm2441 = vmand %vm2425, %vm2433
        %vm2442 = vmand %vm2426, %vm2434
        %vm2443 = vmand %vm2427, %vm2435
        %vm2444 = vmand %vm2428, %vm2436
        %vm2445 = vmand %vm2429, %vm2437
        %v2446 = vsel %vm2438, 1.0, %v2410
        %v2447 = vsel %vm2439, 1.0, %v2411
        %v2448 = vsel %vm2440, 1.0, %v2412
        %v2449 = vsel %vm2441, 1.0, %v2413
        %v2450 = vsel %vm2442, 1.0, %v2414
        %v2451 = vsel %vm2443, 1.0, %v2415
        %v2452 = vsel %vm2444, 1.0, %v2416
        %v2453 = vsel %vm2445, 1.0, %v2417
        %2454 = vset.pattern.permute.xlu0 37
        %2455 = vperm.xlu0 %2454, %v1112
        %v2456 = vpop.permute.xlu0 %2455
        %vm2458 = vcmp.ge.f32.partialorder %v2456, %v1098
        %vm2459 = vcmp.ge.f32.partialorder %v2456, %v1099
        %vm2460 = vcmp.ge.f32.partialorder %v2456, %v1100
        %vm2461 = vcmp.ge.f32.partialorder %v2456, %v1101
        %vm2462 = vcmp.ge.f32.partialorder %v2456, %v1102
        %vm2463 = vcmp.ge.f32.partialorder %v2456, %v1103
        %vm2464 = vcmp.ge.f32.partialorder %v2456, %v1104
        %vm2465 = vcmp.ge.f32.partialorder %v2456, %v1105
        %vm2466 = vcmp.lt.f32.partialorder %v2456, %v1090
        %vm2467 = vcmp.lt.f32.partialorder %v2456, %v1091
        %vm2468 = vcmp.lt.f32.partialorder %v2456, %v1092
        %vm2469 = vcmp.lt.f32.partialorder %v2456, %v1093
        %vm2470 = vcmp.lt.f32.partialorder %v2456, %v1094
        %vm2471 = vcmp.lt.f32.partialorder %v2456, %v1095
        %vm2472 = vcmp.lt.f32.partialorder %v2456, %v1096
        %vm2473 = vcmp.lt.f32.partialorder %v2456, %v1097
        %vm2474 = vmand %vm2458, %vm2466
        %vm2475 = vmand %vm2459, %vm2467
        %vm2476 = vmand %vm2460, %vm2468
        %vm2477 = vmand %vm2461, %vm2469
        %vm2478 = vmand %vm2462, %vm2470
        %vm2479 = vmand %vm2463, %vm2471
        %vm2480 = vmand %vm2464, %vm2472
        %vm2481 = vmand %vm2465, %vm2473
        %v2482 = vsel %vm2474, 1.0, %v2446
        %v2483 = vsel %vm2475, 1.0, %v2447
        %v2484 = vsel %vm2476, 1.0, %v2448
        %v2485 = vsel %vm2477, 1.0, %v2449
        %v2486 = vsel %vm2478, 1.0, %v2450
        %v2487 = vsel %vm2479, 1.0, %v2451
        %v2488 = vsel %vm2480, 1.0, %v2452
        %v2489 = vsel %vm2481, 1.0, %v2453
        %2490 = vset.pattern.permute.xlu0 38
        %2491 = vperm.xlu0 %2490, %v1112
        %v2492 = vpop.permute.xlu0 %2491
        %vm2494 = vcmp.ge.f32.partialorder %v2492, %v1098
        %vm2495 = vcmp.ge.f32.partialorder %v2492, %v1099
        %vm2496 = vcmp.ge.f32.partialorder %v2492, %v1100
        %vm2497 = vcmp.ge.f32.partialorder %v2492, %v1101
        %vm2498 = vcmp.ge.f32.partialorder %v2492, %v1102
        %vm2499 = vcmp.ge.f32.partialorder %v2492, %v1103
        %vm2500 = vcmp.ge.f32.partialorder %v2492, %v1104
        %vm2501 = vcmp.ge.f32.partialorder %v2492, %v1105
        %vm2502 = vcmp.lt.f32.partialorder %v2492, %v1090
        %vm2503 = vcmp.lt.f32.partialorder %v2492, %v1091
        %vm2504 = vcmp.lt.f32.partialorder %v2492, %v1092
        %vm2505 = vcmp.lt.f32.partialorder %v2492, %v1093
        %vm2506 = vcmp.lt.f32.partialorder %v2492, %v1094
        %vm2507 = vcmp.lt.f32.partialorder %v2492, %v1095
        %vm2508 = vcmp.lt.f32.partialorder %v2492, %v1096
        %vm2509 = vcmp.lt.f32.partialorder %v2492, %v1097
        %vm2510 = vmand %vm2494, %vm2502
        %vm2511 = vmand %vm2495, %vm2503
        %vm2512 = vmand %vm2496, %vm2504
        %vm2513 = vmand %vm2497, %vm2505
        %vm2514 = vmand %vm2498, %vm2506
        %vm2515 = vmand %vm2499, %vm2507
        %vm2516 = vmand %vm2500, %vm2508
        %vm2517 = vmand %vm2501, %vm2509
        %v2518 = vsel %vm2510, 1.0, %v2482
        %v2519 = vsel %vm2511, 1.0, %v2483
        %v2520 = vsel %vm2512, 1.0, %v2484
        %v2521 = vsel %vm2513, 1.0, %v2485
        %v2522 = vsel %vm2514, 1.0, %v2486
        %v2523 = vsel %vm2515, 1.0, %v2487
        %v2524 = vsel %vm2516, 1.0, %v2488
        %v2525 = vsel %vm2517, 1.0, %v2489
        %2526 = vset.pattern.permute.xlu0 39
        %2527 = vperm.xlu0 %2526, %v1112
        %v2528 = vpop.permute.xlu0 %2527
        %vm2530 = vcmp.ge.f32.partialorder %v2528, %v1098
        %vm2531 = vcmp.ge.f32.partialorder %v2528, %v1099
        %vm2532 = vcmp.ge.f32.partialorder %v2528, %v1100
        %vm2533 = vcmp.ge.f32.partialorder %v2528, %v1101
        %vm2534 = vcmp.ge.f32.partialorder %v2528, %v1102
        %vm2535 = vcmp.ge.f32.partialorder %v2528, %v1103
        %vm2536 = vcmp.ge.f32.partialorder %v2528, %v1104
        %vm2537 = vcmp.ge.f32.partialorder %v2528, %v1105
        %vm2538 = vcmp.lt.f32.partialorder %v2528, %v1090
        %vm2539 = vcmp.lt.f32.partialorder %v2528, %v1091
        %vm2540 = vcmp.lt.f32.partialorder %v2528, %v1092
        %vm2541 = vcmp.lt.f32.partialorder %v2528, %v1093
        %vm2542 = vcmp.lt.f32.partialorder %v2528, %v1094
        %vm2543 = vcmp.lt.f32.partialorder %v2528, %v1095
        %vm2544 = vcmp.lt.f32.partialorder %v2528, %v1096
        %vm2545 = vcmp.lt.f32.partialorder %v2528, %v1097
        %vm2546 = vmand %vm2530, %vm2538
        %vm2547 = vmand %vm2531, %vm2539
        %vm2548 = vmand %vm2532, %vm2540
        %vm2549 = vmand %vm2533, %vm2541
        %vm2550 = vmand %vm2534, %vm2542
        %vm2551 = vmand %vm2535, %vm2543
        %vm2552 = vmand %vm2536, %vm2544
        %vm2553 = vmand %vm2537, %vm2545
        %v2554 = vsel %vm2546, 1.0, %v2518
        %v2555 = vsel %vm2547, 1.0, %v2519
        %v2556 = vsel %vm2548, 1.0, %v2520
        %v2557 = vsel %vm2549, 1.0, %v2521
        %v2558 = vsel %vm2550, 1.0, %v2522
        %v2559 = vsel %vm2551, 1.0, %v2523
        %v2560 = vsel %vm2552, 1.0, %v2524
        %v2561 = vsel %vm2553, 1.0, %v2525
        %2562 = vset.pattern.permute.xlu0 40
        %2563 = vperm.xlu0 %2562, %v1112
        %v2564 = vpop.permute.xlu0 %2563
        %vm2566 = vcmp.ge.f32.partialorder %v2564, %v1098
        %vm2567 = vcmp.ge.f32.partialorder %v2564, %v1099
        %vm2568 = vcmp.ge.f32.partialorder %v2564, %v1100
        %vm2569 = vcmp.ge.f32.partialorder %v2564, %v1101
        %vm2570 = vcmp.ge.f32.partialorder %v2564, %v1102
        %vm2571 = vcmp.ge.f32.partialorder %v2564, %v1103
        %vm2572 = vcmp.ge.f32.partialorder %v2564, %v1104
        %vm2573 = vcmp.ge.f32.partialorder %v2564, %v1105
        %vm2574 = vcmp.lt.f32.partialorder %v2564, %v1090
        %vm2575 = vcmp.lt.f32.partialorder %v2564, %v1091
        %vm2576 = vcmp.lt.f32.partialorder %v2564, %v1092
        %vm2577 = vcmp.lt.f32.partialorder %v2564, %v1093
        %vm2578 = vcmp.lt.f32.partialorder %v2564, %v1094
        %vm2579 = vcmp.lt.f32.partialorder %v2564, %v1095
        %vm2580 = vcmp.lt.f32.partialorder %v2564, %v1096
        %vm2581 = vcmp.lt.f32.partialorder %v2564, %v1097
        %vm2582 = vmand %vm2566, %vm2574
        %vm2583 = vmand %vm2567, %vm2575
        %vm2584 = vmand %vm2568, %vm2576
        %vm2585 = vmand %vm2569, %vm2577
        %vm2586 = vmand %vm2570, %vm2578
        %vm2587 = vmand %vm2571, %vm2579
        %vm2588 = vmand %vm2572, %vm2580
        %vm2589 = vmand %vm2573, %vm2581
        %v2590 = vsel %vm2582, 1.0, %v2554
        %v2591 = vsel %vm2583, 1.0, %v2555
        %v2592 = vsel %vm2584, 1.0, %v2556
        %v2593 = vsel %vm2585, 1.0, %v2557
        %v2594 = vsel %vm2586, 1.0, %v2558
        %v2595 = vsel %vm2587, 1.0, %v2559
        %v2596 = vsel %vm2588, 1.0, %v2560
        %v2597 = vsel %vm2589, 1.0, %v2561
        %2598 = vset.pattern.permute.xlu0 41
        %2599 = vperm.xlu0 %2598, %v1112
        %v2600 = vpop.permute.xlu0 %2599
        %vm2602 = vcmp.ge.f32.partialorder %v2600, %v1098
        %vm2603 = vcmp.ge.f32.partialorder %v2600, %v1099
        %vm2604 = vcmp.ge.f32.partialorder %v2600, %v1100
        %vm2605 = vcmp.ge.f32.partialorder %v2600, %v1101
        %vm2606 = vcmp.ge.f32.partialorder %v2600, %v1102
        %vm2607 = vcmp.ge.f32.partialorder %v2600, %v1103
        %vm2608 = vcmp.ge.f32.partialorder %v2600, %v1104
        %vm2609 = vcmp.ge.f32.partialorder %v2600, %v1105
        %vm2610 = vcmp.lt.f32.partialorder %v2600, %v1090
        %vm2611 = vcmp.lt.f32.partialorder %v2600, %v1091
        %vm2612 = vcmp.lt.f32.partialorder %v2600, %v1092
        %vm2613 = vcmp.lt.f32.partialorder %v2600, %v1093
        %vm2614 = vcmp.lt.f32.partialorder %v2600, %v1094
        %vm2615 = vcmp.lt.f32.partialorder %v2600, %v1095
        %vm2616 = vcmp.lt.f32.partialorder %v2600, %v1096
        %vm2617 = vcmp.lt.f32.partialorder %v2600, %v1097
        %vm2618 = vmand %vm2602, %vm2610
        %vm2619 = vmand %vm2603, %vm2611
        %vm2620 = vmand %vm2604, %vm2612
        %vm2621 = vmand %vm2605, %vm2613
        %vm2622 = vmand %vm2606, %vm2614
        %vm2623 = vmand %vm2607, %vm2615
        %vm2624 = vmand %vm2608, %vm2616
        %vm2625 = vmand %vm2609, %vm2617
        %v2626 = vsel %vm2618, 1.0, %v2590
        %v2627 = vsel %vm2619, 1.0, %v2591
        %v2628 = vsel %vm2620, 1.0, %v2592
        %v2629 = vsel %vm2621, 1.0, %v2593
        %v2630 = vsel %vm2622, 1.0, %v2594
        %v2631 = vsel %vm2623, 1.0, %v2595
        %v2632 = vsel %vm2624, 1.0, %v2596
        %v2633 = vsel %vm2625, 1.0, %v2597
        %2634 = vset.pattern.permute.xlu0 42
        %2635 = vperm.xlu0 %2634, %v1112
        %v2636 = vpop.permute.xlu0 %2635
        %vm2638 = vcmp.ge.f32.partialorder %v2636, %v1098
        %vm2639 = vcmp.ge.f32.partialorder %v2636, %v1099
        %vm2640 = vcmp.ge.f32.partialorder %v2636, %v1100
        %vm2641 = vcmp.ge.f32.partialorder %v2636, %v1101
        %vm2642 = vcmp.ge.f32.partialorder %v2636, %v1102
        %vm2643 = vcmp.ge.f32.partialorder %v2636, %v1103
        %vm2644 = vcmp.ge.f32.partialorder %v2636, %v1104
        %vm2645 = vcmp.ge.f32.partialorder %v2636, %v1105
        %vm2646 = vcmp.lt.f32.partialorder %v2636, %v1090
        %vm2647 = vcmp.lt.f32.partialorder %v2636, %v1091
        %vm2648 = vcmp.lt.f32.partialorder %v2636, %v1092
        %vm2649 = vcmp.lt.f32.partialorder %v2636, %v1093
        %vm2650 = vcmp.lt.f32.partialorder %v2636, %v1094
        %vm2651 = vcmp.lt.f32.partialorder %v2636, %v1095
        %vm2652 = vcmp.lt.f32.partialorder %v2636, %v1096
        %vm2653 = vcmp.lt.f32.partialorder %v2636, %v1097
        %vm2654 = vmand %vm2638, %vm2646
        %vm2655 = vmand %vm2639, %vm2647
        %vm2656 = vmand %vm2640, %vm2648
        %vm2657 = vmand %vm2641, %vm2649
        %vm2658 = vmand %vm2642, %vm2650
        %vm2659 = vmand %vm2643, %vm2651
        %vm2660 = vmand %vm2644, %vm2652
        %vm2661 = vmand %vm2645, %vm2653
        %v2662 = vsel %vm2654, 1.0, %v2626
        %v2663 = vsel %vm2655, 1.0, %v2627
        %v2664 = vsel %vm2656, 1.0, %v2628
        %v2665 = vsel %vm2657, 1.0, %v2629
        %v2666 = vsel %vm2658, 1.0, %v2630
        %v2667 = vsel %vm2659, 1.0, %v2631
        %v2668 = vsel %vm2660, 1.0, %v2632
        %v2669 = vsel %vm2661, 1.0, %v2633
        %2670 = vset.pattern.permute.xlu0 43
        %2671 = vperm.xlu0 %2670, %v1112
        %v2672 = vpop.permute.xlu0 %2671
        %vm2674 = vcmp.ge.f32.partialorder %v2672, %v1098
        %vm2675 = vcmp.ge.f32.partialorder %v2672, %v1099
        %vm2676 = vcmp.ge.f32.partialorder %v2672, %v1100
        %vm2677 = vcmp.ge.f32.partialorder %v2672, %v1101
        %vm2678 = vcmp.ge.f32.partialorder %v2672, %v1102
        %vm2679 = vcmp.ge.f32.partialorder %v2672, %v1103
        %vm2680 = vcmp.ge.f32.partialorder %v2672, %v1104
        %vm2681 = vcmp.ge.f32.partialorder %v2672, %v1105
        %vm2682 = vcmp.lt.f32.partialorder %v2672, %v1090
        %vm2683 = vcmp.lt.f32.partialorder %v2672, %v1091
        %vm2684 = vcmp.lt.f32.partialorder %v2672, %v1092
        %vm2685 = vcmp.lt.f32.partialorder %v2672, %v1093
        %vm2686 = vcmp.lt.f32.partialorder %v2672, %v1094
        %vm2687 = vcmp.lt.f32.partialorder %v2672, %v1095
        %vm2688 = vcmp.lt.f32.partialorder %v2672, %v1096
        %vm2689 = vcmp.lt.f32.partialorder %v2672, %v1097
        %vm2690 = vmand %vm2674, %vm2682
        %vm2691 = vmand %vm2675, %vm2683
        %vm2692 = vmand %vm2676, %vm2684
        %vm2693 = vmand %vm2677, %vm2685
        %vm2694 = vmand %vm2678, %vm2686
        %vm2695 = vmand %vm2679, %vm2687
        %vm2696 = vmand %vm2680, %vm2688
        %vm2697 = vmand %vm2681, %vm2689
        %v2698 = vsel %vm2690, 1.0, %v2662
        %v2699 = vsel %vm2691, 1.0, %v2663
        %v2700 = vsel %vm2692, 1.0, %v2664
        %v2701 = vsel %vm2693, 1.0, %v2665
        %v2702 = vsel %vm2694, 1.0, %v2666
        %v2703 = vsel %vm2695, 1.0, %v2667
        %v2704 = vsel %vm2696, 1.0, %v2668
        %v2705 = vsel %vm2697, 1.0, %v2669
        %2706 = vset.pattern.permute.xlu0 44
        %2707 = vperm.xlu0 %2706, %v1112
        %v2708 = vpop.permute.xlu0 %2707
        %vm2710 = vcmp.ge.f32.partialorder %v2708, %v1098
        %vm2711 = vcmp.ge.f32.partialorder %v2708, %v1099
        %vm2712 = vcmp.ge.f32.partialorder %v2708, %v1100
        %vm2713 = vcmp.ge.f32.partialorder %v2708, %v1101
        %vm2714 = vcmp.ge.f32.partialorder %v2708, %v1102
        %vm2715 = vcmp.ge.f32.partialorder %v2708, %v1103
        %vm2716 = vcmp.ge.f32.partialorder %v2708, %v1104
        %vm2717 = vcmp.ge.f32.partialorder %v2708, %v1105
        %vm2718 = vcmp.lt.f32.partialorder %v2708, %v1090
        %vm2719 = vcmp.lt.f32.partialorder %v2708, %v1091
        %vm2720 = vcmp.lt.f32.partialorder %v2708, %v1092
        %vm2721 = vcmp.lt.f32.partialorder %v2708, %v1093
        %vm2722 = vcmp.lt.f32.partialorder %v2708, %v1094
        %vm2723 = vcmp.lt.f32.partialorder %v2708, %v1095
        %vm2724 = vcmp.lt.f32.partialorder %v2708, %v1096
        %vm2725 = vcmp.lt.f32.partialorder %v2708, %v1097
        %vm2726 = vmand %vm2710, %vm2718
        %vm2727 = vmand %vm2711, %vm2719
        %vm2728 = vmand %vm2712, %vm2720
        %vm2729 = vmand %vm2713, %vm2721
        %vm2730 = vmand %vm2714, %vm2722
        %vm2731 = vmand %vm2715, %vm2723
        %vm2732 = vmand %vm2716, %vm2724
        %vm2733 = vmand %vm2717, %vm2725
        %v2734 = vsel %vm2726, 1.0, %v2698
        %v2735 = vsel %vm2727, 1.0, %v2699
        %v2736 = vsel %vm2728, 1.0, %v2700
        %v2737 = vsel %vm2729, 1.0, %v2701
        %v2738 = vsel %vm2730, 1.0, %v2702
        %v2739 = vsel %vm2731, 1.0, %v2703
        %v2740 = vsel %vm2732, 1.0, %v2704
        %v2741 = vsel %vm2733, 1.0, %v2705
        %2742 = vset.pattern.permute.xlu0 45
        %2743 = vperm.xlu0 %2742, %v1112
        %v2744 = vpop.permute.xlu0 %2743
        %vm2746 = vcmp.ge.f32.partialorder %v2744, %v1098
        %vm2747 = vcmp.ge.f32.partialorder %v2744, %v1099
        %vm2748 = vcmp.ge.f32.partialorder %v2744, %v1100
        %vm2749 = vcmp.ge.f32.partialorder %v2744, %v1101
        %vm2750 = vcmp.ge.f32.partialorder %v2744, %v1102
        %vm2751 = vcmp.ge.f32.partialorder %v2744, %v1103
        %vm2752 = vcmp.ge.f32.partialorder %v2744, %v1104
        %vm2753 = vcmp.ge.f32.partialorder %v2744, %v1105
        %vm2754 = vcmp.lt.f32.partialorder %v2744, %v1090
        %vm2755 = vcmp.lt.f32.partialorder %v2744, %v1091
        %vm2756 = vcmp.lt.f32.partialorder %v2744, %v1092
        %vm2757 = vcmp.lt.f32.partialorder %v2744, %v1093
        %vm2758 = vcmp.lt.f32.partialorder %v2744, %v1094
        %vm2759 = vcmp.lt.f32.partialorder %v2744, %v1095
        %vm2760 = vcmp.lt.f32.partialorder %v2744, %v1096
        %vm2761 = vcmp.lt.f32.partialorder %v2744, %v1097
        %vm2762 = vmand %vm2746, %vm2754
        %vm2763 = vmand %vm2747, %vm2755
        %vm2764 = vmand %vm2748, %vm2756
        %vm2765 = vmand %vm2749, %vm2757
        %vm2766 = vmand %vm2750, %vm2758
        %vm2767 = vmand %vm2751, %vm2759
        %vm2768 = vmand %vm2752, %vm2760
        %vm2769 = vmand %vm2753, %vm2761
        %v2770 = vsel %vm2762, 1.0, %v2734
        %v2771 = vsel %vm2763, 1.0, %v2735
        %v2772 = vsel %vm2764, 1.0, %v2736
        %v2773 = vsel %vm2765, 1.0, %v2737
        %v2774 = vsel %vm2766, 1.0, %v2738
        %v2775 = vsel %vm2767, 1.0, %v2739
        %v2776 = vsel %vm2768, 1.0, %v2740
        %v2777 = vsel %vm2769, 1.0, %v2741
        %2778 = vset.pattern.permute.xlu0 46
        %2779 = vperm.xlu0 %2778, %v1112
        %v2780 = vpop.permute.xlu0 %2779
        %vm2782 = vcmp.ge.f32.partialorder %v2780, %v1098
        %vm2783 = vcmp.ge.f32.partialorder %v2780, %v1099
        %vm2784 = vcmp.ge.f32.partialorder %v2780, %v1100
        %vm2785 = vcmp.ge.f32.partialorder %v2780, %v1101
        %vm2786 = vcmp.ge.f32.partialorder %v2780, %v1102
        %vm2787 = vcmp.ge.f32.partialorder %v2780, %v1103
        %vm2788 = vcmp.ge.f32.partialorder %v2780, %v1104
        %vm2789 = vcmp.ge.f32.partialorder %v2780, %v1105
        %vm2790 = vcmp.lt.f32.partialorder %v2780, %v1090
        %vm2791 = vcmp.lt.f32.partialorder %v2780, %v1091
        %vm2792 = vcmp.lt.f32.partialorder %v2780, %v1092
        %vm2793 = vcmp.lt.f32.partialorder %v2780, %v1093
        %vm2794 = vcmp.lt.f32.partialorder %v2780, %v1094
        %vm2795 = vcmp.lt.f32.partialorder %v2780, %v1095
        %vm2796 = vcmp.lt.f32.partialorder %v2780, %v1096
        %vm2797 = vcmp.lt.f32.partialorder %v2780, %v1097
        %vm2798 = vmand %vm2782, %vm2790
        %vm2799 = vmand %vm2783, %vm2791
        %vm2800 = vmand %vm2784, %vm2792
        %vm2801 = vmand %vm2785, %vm2793
        %vm2802 = vmand %vm2786, %vm2794
        %vm2803 = vmand %vm2787, %vm2795
        %vm2804 = vmand %vm2788, %vm2796
        %vm2805 = vmand %vm2789, %vm2797
        %v2806 = vsel %vm2798, 1.0, %v2770
        %v2807 = vsel %vm2799, 1.0, %v2771
        %v2808 = vsel %vm2800, 1.0, %v2772
        %v2809 = vsel %vm2801, 1.0, %v2773
        %v2810 = vsel %vm2802, 1.0, %v2774
        %v2811 = vsel %vm2803, 1.0, %v2775
        %v2812 = vsel %vm2804, 1.0, %v2776
        %v2813 = vsel %vm2805, 1.0, %v2777
        %2814 = vset.pattern.permute.xlu0 47
        %2815 = vperm.xlu0 %2814, %v1112
        %v2816 = vpop.permute.xlu0 %2815
        %vm2818 = vcmp.ge.f32.partialorder %v2816, %v1098
        %vm2819 = vcmp.ge.f32.partialorder %v2816, %v1099
        %vm2820 = vcmp.ge.f32.partialorder %v2816, %v1100
        %vm2821 = vcmp.ge.f32.partialorder %v2816, %v1101
        %vm2822 = vcmp.ge.f32.partialorder %v2816, %v1102
        %vm2823 = vcmp.ge.f32.partialorder %v2816, %v1103
        %vm2824 = vcmp.ge.f32.partialorder %v2816, %v1104
        %vm2825 = vcmp.ge.f32.partialorder %v2816, %v1105
        %vm2826 = vcmp.lt.f32.partialorder %v2816, %v1090
        %vm2827 = vcmp.lt.f32.partialorder %v2816, %v1091
        %vm2828 = vcmp.lt.f32.partialorder %v2816, %v1092
        %vm2829 = vcmp.lt.f32.partialorder %v2816, %v1093
        %vm2830 = vcmp.lt.f32.partialorder %v2816, %v1094
        %vm2831 = vcmp.lt.f32.partialorder %v2816, %v1095
        %vm2832 = vcmp.lt.f32.partialorder %v2816, %v1096
        %vm2833 = vcmp.lt.f32.partialorder %v2816, %v1097
        %vm2834 = vmand %vm2818, %vm2826
        %vm2835 = vmand %vm2819, %vm2827
        %vm2836 = vmand %vm2820, %vm2828
        %vm2837 = vmand %vm2821, %vm2829
        %vm2838 = vmand %vm2822, %vm2830
        %vm2839 = vmand %vm2823, %vm2831
        %vm2840 = vmand %vm2824, %vm2832
        %vm2841 = vmand %vm2825, %vm2833
        %v2842 = vsel %vm2834, 1.0, %v2806
        %v2843 = vsel %vm2835, 1.0, %v2807
        %v2844 = vsel %vm2836, 1.0, %v2808
        %v2845 = vsel %vm2837, 1.0, %v2809
        %v2846 = vsel %vm2838, 1.0, %v2810
        %v2847 = vsel %vm2839, 1.0, %v2811
        %v2848 = vsel %vm2840, 1.0, %v2812
        %v2849 = vsel %vm2841, 1.0, %v2813
        %2850 = vset.pattern.permute.xlu0 48
        %2851 = vperm.xlu0 %2850, %v1112
        %v2852 = vpop.permute.xlu0 %2851
        %vm2854 = vcmp.ge.f32.partialorder %v2852, %v1098
        %vm2855 = vcmp.ge.f32.partialorder %v2852, %v1099
        %vm2856 = vcmp.ge.f32.partialorder %v2852, %v1100
        %vm2857 = vcmp.ge.f32.partialorder %v2852, %v1101
        %vm2858 = vcmp.ge.f32.partialorder %v2852, %v1102
        %vm2859 = vcmp.ge.f32.partialorder %v2852, %v1103
        %vm2860 = vcmp.ge.f32.partialorder %v2852, %v1104
        %vm2861 = vcmp.ge.f32.partialorder %v2852, %v1105
        %vm2862 = vcmp.lt.f32.partialorder %v2852, %v1090
        %vm2863 = vcmp.lt.f32.partialorder %v2852, %v1091
        %vm2864 = vcmp.lt.f32.partialorder %v2852, %v1092
        %vm2865 = vcmp.lt.f32.partialorder %v2852, %v1093
        %vm2866 = vcmp.lt.f32.partialorder %v2852, %v1094
        %vm2867 = vcmp.lt.f32.partialorder %v2852, %v1095
        %vm2868 = vcmp.lt.f32.partialorder %v2852, %v1096
        %vm2869 = vcmp.lt.f32.partialorder %v2852, %v1097
        %vm2870 = vmand %vm2854, %vm2862
        %vm2871 = vmand %vm2855, %vm2863
        %vm2872 = vmand %vm2856, %vm2864
        %vm2873 = vmand %vm2857, %vm2865
        %vm2874 = vmand %vm2858, %vm2866
        %vm2875 = vmand %vm2859, %vm2867
        %vm2876 = vmand %vm2860, %vm2868
        %vm2877 = vmand %vm2861, %vm2869
        %v2878 = vsel %vm2870, 1.0, %v2842
        %v2879 = vsel %vm2871, 1.0, %v2843
        %v2880 = vsel %vm2872, 1.0, %v2844
        %v2881 = vsel %vm2873, 1.0, %v2845
        %v2882 = vsel %vm2874, 1.0, %v2846
        %v2883 = vsel %vm2875, 1.0, %v2847
        %v2884 = vsel %vm2876, 1.0, %v2848
        %v2885 = vsel %vm2877, 1.0, %v2849
        %2886 = vset.pattern.permute.xlu0 49
        %2887 = vperm.xlu0 %2886, %v1112
        %v2888 = vpop.permute.xlu0 %2887
        %vm2890 = vcmp.ge.f32.partialorder %v2888, %v1098
        %vm2891 = vcmp.ge.f32.partialorder %v2888, %v1099
        %vm2892 = vcmp.ge.f32.partialorder %v2888, %v1100
        %vm2893 = vcmp.ge.f32.partialorder %v2888, %v1101
        %vm2894 = vcmp.ge.f32.partialorder %v2888, %v1102
        %vm2895 = vcmp.ge.f32.partialorder %v2888, %v1103
        %vm2896 = vcmp.ge.f32.partialorder %v2888, %v1104
        %vm2897 = vcmp.ge.f32.partialorder %v2888, %v1105
        %vm2898 = vcmp.lt.f32.partialorder %v2888, %v1090
        %vm2899 = vcmp.lt.f32.partialorder %v2888, %v1091
        %vm2900 = vcmp.lt.f32.partialorder %v2888, %v1092
        %vm2901 = vcmp.lt.f32.partialorder %v2888, %v1093
        %vm2902 = vcmp.lt.f32.partialorder %v2888, %v1094
        %vm2903 = vcmp.lt.f32.partialorder %v2888, %v1095
        %vm2904 = vcmp.lt.f32.partialorder %v2888, %v1096
        %vm2905 = vcmp.lt.f32.partialorder %v2888, %v1097
        %vm2906 = vmand %vm2890, %vm2898
        %vm2907 = vmand %vm2891, %vm2899
        %vm2908 = vmand %vm2892, %vm2900
        %vm2909 = vmand %vm2893, %vm2901
        %vm2910 = vmand %vm2894, %vm2902
        %vm2911 = vmand %vm2895, %vm2903
        %vm2912 = vmand %vm2896, %vm2904
        %vm2913 = vmand %vm2897, %vm2905
        %v2914 = vsel %vm2906, 1.0, %v2878
        %v2915 = vsel %vm2907, 1.0, %v2879
        %v2916 = vsel %vm2908, 1.0, %v2880
        %v2917 = vsel %vm2909, 1.0, %v2881
        %v2918 = vsel %vm2910, 1.0, %v2882
        %v2919 = vsel %vm2911, 1.0, %v2883
        %v2920 = vsel %vm2912, 1.0, %v2884
        %v2921 = vsel %vm2913, 1.0, %v2885
        %2922 = vset.pattern.permute.xlu0 50
        %2923 = vperm.xlu0 %2922, %v1112
        %v2924 = vpop.permute.xlu0 %2923
        %vm2926 = vcmp.ge.f32.partialorder %v2924, %v1098
        %vm2927 = vcmp.ge.f32.partialorder %v2924, %v1099
        %vm2928 = vcmp.ge.f32.partialorder %v2924, %v1100
        %vm2929 = vcmp.ge.f32.partialorder %v2924, %v1101
        %vm2930 = vcmp.ge.f32.partialorder %v2924, %v1102
        %vm2931 = vcmp.ge.f32.partialorder %v2924, %v1103
        %vm2932 = vcmp.ge.f32.partialorder %v2924, %v1104
        %vm2933 = vcmp.ge.f32.partialorder %v2924, %v1105
        %vm2934 = vcmp.lt.f32.partialorder %v2924, %v1090
        %vm2935 = vcmp.lt.f32.partialorder %v2924, %v1091
        %vm2936 = vcmp.lt.f32.partialorder %v2924, %v1092
        %vm2937 = vcmp.lt.f32.partialorder %v2924, %v1093
        %vm2938 = vcmp.lt.f32.partialorder %v2924, %v1094
        %vm2939 = vcmp.lt.f32.partialorder %v2924, %v1095
        %vm2940 = vcmp.lt.f32.partialorder %v2924, %v1096
        %vm2941 = vcmp.lt.f32.partialorder %v2924, %v1097
        %vm2942 = vmand %vm2926, %vm2934
        %vm2943 = vmand %vm2927, %vm2935
        %vm2944 = vmand %vm2928, %vm2936
        %vm2945 = vmand %vm2929, %vm2937
        %vm2946 = vmand %vm2930, %vm2938
        %vm2947 = vmand %vm2931, %vm2939
        %vm2948 = vmand %vm2932, %vm2940
        %vm2949 = vmand %vm2933, %vm2941
        %v2950 = vsel %vm2942, 1.0, %v2914
        %v2951 = vsel %vm2943, 1.0, %v2915
        %v2952 = vsel %vm2944, 1.0, %v2916
        %v2953 = vsel %vm2945, 1.0, %v2917
        %v2954 = vsel %vm2946, 1.0, %v2918
        %v2955 = vsel %vm2947, 1.0, %v2919
        %v2956 = vsel %vm2948, 1.0, %v2920
        %v2957 = vsel %vm2949, 1.0, %v2921
        %2958 = vset.pattern.permute.xlu0 51
        %2959 = vperm.xlu0 %2958, %v1112
        %v2960 = vpop.permute.xlu0 %2959
        %vm2962 = vcmp.ge.f32.partialorder %v2960, %v1098
        %vm2963 = vcmp.ge.f32.partialorder %v2960, %v1099
        %vm2964 = vcmp.ge.f32.partialorder %v2960, %v1100
        %vm2965 = vcmp.ge.f32.partialorder %v2960, %v1101
        %vm2966 = vcmp.ge.f32.partialorder %v2960, %v1102
        %vm2967 = vcmp.ge.f32.partialorder %v2960, %v1103
        %vm2968 = vcmp.ge.f32.partialorder %v2960, %v1104
        %vm2969 = vcmp.ge.f32.partialorder %v2960, %v1105
        %vm2970 = vcmp.lt.f32.partialorder %v2960, %v1090
        %vm2971 = vcmp.lt.f32.partialorder %v2960, %v1091
        %vm2972 = vcmp.lt.f32.partialorder %v2960, %v1092
        %vm2973 = vcmp.lt.f32.partialorder %v2960, %v1093
        %vm2974 = vcmp.lt.f32.partialorder %v2960, %v1094
        %vm2975 = vcmp.lt.f32.partialorder %v2960, %v1095
        %vm2976 = vcmp.lt.f32.partialorder %v2960, %v1096
        %vm2977 = vcmp.lt.f32.partialorder %v2960, %v1097
        %vm2978 = vmand %vm2962, %vm2970
        %vm2979 = vmand %vm2963, %vm2971
        %vm2980 = vmand %vm2964, %vm2972
        %vm2981 = vmand %vm2965, %vm2973
        %vm2982 = vmand %vm2966, %vm2974
        %vm2983 = vmand %vm2967, %vm2975
        %vm2984 = vmand %vm2968, %vm2976
        %vm2985 = vmand %vm2969, %vm2977
        %v2986 = vsel %vm2978, 1.0, %v2950
        %v2987 = vsel %vm2979, 1.0, %v2951
        %v2988 = vsel %vm2980, 1.0, %v2952
        %v2989 = vsel %vm2981, 1.0, %v2953
        %v2990 = vsel %vm2982, 1.0, %v2954
        %v2991 = vsel %vm2983, 1.0, %v2955
        %v2992 = vsel %vm2984, 1.0, %v2956
        %v2993 = vsel %vm2985, 1.0, %v2957
        %2994 = vset.pattern.permute.xlu0 52
        %2995 = vperm.xlu0 %2994, %v1112
        %v2996 = vpop.permute.xlu0 %2995
        %vm2998 = vcmp.ge.f32.partialorder %v2996, %v1098
        %vm2999 = vcmp.ge.f32.partialorder %v2996, %v1099
        %vm3000 = vcmp.ge.f32.partialorder %v2996, %v1100
        %vm3001 = vcmp.ge.f32.partialorder %v2996, %v1101
        %vm3002 = vcmp.ge.f32.partialorder %v2996, %v1102
        %vm3003 = vcmp.ge.f32.partialorder %v2996, %v1103
        %vm3004 = vcmp.ge.f32.partialorder %v2996, %v1104
        %vm3005 = vcmp.ge.f32.partialorder %v2996, %v1105
        %vm3006 = vcmp.lt.f32.partialorder %v2996, %v1090
        %vm3007 = vcmp.lt.f32.partialorder %v2996, %v1091
        %vm3008 = vcmp.lt.f32.partialorder %v2996, %v1092
        %vm3009 = vcmp.lt.f32.partialorder %v2996, %v1093
        %vm3010 = vcmp.lt.f32.partialorder %v2996, %v1094
        %vm3011 = vcmp.lt.f32.partialorder %v2996, %v1095
        %vm3012 = vcmp.lt.f32.partialorder %v2996, %v1096
        %vm3013 = vcmp.lt.f32.partialorder %v2996, %v1097
        %vm3014 = vmand %vm2998, %vm3006
        %vm3015 = vmand %vm2999, %vm3007
        %vm3016 = vmand %vm3000, %vm3008
        %vm3017 = vmand %vm3001, %vm3009
        %vm3018 = vmand %vm3002, %vm3010
        %vm3019 = vmand %vm3003, %vm3011
        %vm3020 = vmand %vm3004, %vm3012
        %vm3021 = vmand %vm3005, %vm3013
        %v3022 = vsel %vm3014, 1.0, %v2986
        %v3023 = vsel %vm3015, 1.0, %v2987
        %v3024 = vsel %vm3016, 1.0, %v2988
        %v3025 = vsel %vm3017, 1.0, %v2989
        %v3026 = vsel %vm3018, 1.0, %v2990
        %v3027 = vsel %vm3019, 1.0, %v2991
        %v3028 = vsel %vm3020, 1.0, %v2992
        %v3029 = vsel %vm3021, 1.0, %v2993
        %3030 = vset.pattern.permute.xlu0 53
        %3031 = vperm.xlu0 %3030, %v1112
        %v3032 = vpop.permute.xlu0 %3031
        %vm3034 = vcmp.ge.f32.partialorder %v3032, %v1098
        %vm3035 = vcmp.ge.f32.partialorder %v3032, %v1099
        %vm3036 = vcmp.ge.f32.partialorder %v3032, %v1100
        %vm3037 = vcmp.ge.f32.partialorder %v3032, %v1101
        %vm3038 = vcmp.ge.f32.partialorder %v3032, %v1102
        %vm3039 = vcmp.ge.f32.partialorder %v3032, %v1103
        %vm3040 = vcmp.ge.f32.partialorder %v3032, %v1104
        %vm3041 = vcmp.ge.f32.partialorder %v3032, %v1105
        %vm3042 = vcmp.lt.f32.partialorder %v3032, %v1090
        %vm3043 = vcmp.lt.f32.partialorder %v3032, %v1091
        %vm3044 = vcmp.lt.f32.partialorder %v3032, %v1092
        %vm3045 = vcmp.lt.f32.partialorder %v3032, %v1093
        %vm3046 = vcmp.lt.f32.partialorder %v3032, %v1094
        %vm3047 = vcmp.lt.f32.partialorder %v3032, %v1095
        %vm3048 = vcmp.lt.f32.partialorder %v3032, %v1096
        %vm3049 = vcmp.lt.f32.partialorder %v3032, %v1097
        %vm3050 = vmand %vm3034, %vm3042
        %vm3051 = vmand %vm3035, %vm3043
        %vm3052 = vmand %vm3036, %vm3044
        %vm3053 = vmand %vm3037, %vm3045
        %vm3054 = vmand %vm3038, %vm3046
        %vm3055 = vmand %vm3039, %vm3047
        %vm3056 = vmand %vm3040, %vm3048
        %vm3057 = vmand %vm3041, %vm3049
        %v3058 = vsel %vm3050, 1.0, %v3022
        %v3059 = vsel %vm3051, 1.0, %v3023
        %v3060 = vsel %vm3052, 1.0, %v3024
        %v3061 = vsel %vm3053, 1.0, %v3025
        %v3062 = vsel %vm3054, 1.0, %v3026
        %v3063 = vsel %vm3055, 1.0, %v3027
        %v3064 = vsel %vm3056, 1.0, %v3028
        %v3065 = vsel %vm3057, 1.0, %v3029
        %3066 = vset.pattern.permute.xlu0 54
        %3067 = vperm.xlu0 %3066, %v1112
        %v3068 = vpop.permute.xlu0 %3067
        %vm3070 = vcmp.ge.f32.partialorder %v3068, %v1098
        %vm3071 = vcmp.ge.f32.partialorder %v3068, %v1099
        %vm3072 = vcmp.ge.f32.partialorder %v3068, %v1100
        %vm3073 = vcmp.ge.f32.partialorder %v3068, %v1101
        %vm3074 = vcmp.ge.f32.partialorder %v3068, %v1102
        %vm3075 = vcmp.ge.f32.partialorder %v3068, %v1103
        %vm3076 = vcmp.ge.f32.partialorder %v3068, %v1104
        %vm3077 = vcmp.ge.f32.partialorder %v3068, %v1105
        %vm3078 = vcmp.lt.f32.partialorder %v3068, %v1090
        %vm3079 = vcmp.lt.f32.partialorder %v3068, %v1091
        %vm3080 = vcmp.lt.f32.partialorder %v3068, %v1092
        %vm3081 = vcmp.lt.f32.partialorder %v3068, %v1093
        %vm3082 = vcmp.lt.f32.partialorder %v3068, %v1094
        %vm3083 = vcmp.lt.f32.partialorder %v3068, %v1095
        %vm3084 = vcmp.lt.f32.partialorder %v3068, %v1096
        %vm3085 = vcmp.lt.f32.partialorder %v3068, %v1097
        %vm3086 = vmand %vm3070, %vm3078
        %vm3087 = vmand %vm3071, %vm3079
        %vm3088 = vmand %vm3072, %vm3080
        %vm3089 = vmand %vm3073, %vm3081
        %vm3090 = vmand %vm3074, %vm3082
        %vm3091 = vmand %vm3075, %vm3083
        %vm3092 = vmand %vm3076, %vm3084
        %vm3093 = vmand %vm3077, %vm3085
        %v3094 = vsel %vm3086, 1.0, %v3058
        %v3095 = vsel %vm3087, 1.0, %v3059
        %v3096 = vsel %vm3088, 1.0, %v3060
        %v3097 = vsel %vm3089, 1.0, %v3061
        %v3098 = vsel %vm3090, 1.0, %v3062
        %v3099 = vsel %vm3091, 1.0, %v3063
        %v3100 = vsel %vm3092, 1.0, %v3064
        %v3101 = vsel %vm3093, 1.0, %v3065
        %3102 = vset.pattern.permute.xlu0 55
        %3103 = vperm.xlu0 %3102, %v1112
        %v3104 = vpop.permute.xlu0 %3103
        %vm3106 = vcmp.ge.f32.partialorder %v3104, %v1098
        %vm3107 = vcmp.ge.f32.partialorder %v3104, %v1099
        %vm3108 = vcmp.ge.f32.partialorder %v3104, %v1100
        %vm3109 = vcmp.ge.f32.partialorder %v3104, %v1101
        %vm3110 = vcmp.ge.f32.partialorder %v3104, %v1102
        %vm3111 = vcmp.ge.f32.partialorder %v3104, %v1103
        %vm3112 = vcmp.ge.f32.partialorder %v3104, %v1104
        %vm3113 = vcmp.ge.f32.partialorder %v3104, %v1105
        %vm3114 = vcmp.lt.f32.partialorder %v3104, %v1090
        %vm3115 = vcmp.lt.f32.partialorder %v3104, %v1091
        %vm3116 = vcmp.lt.f32.partialorder %v3104, %v1092
        %vm3117 = vcmp.lt.f32.partialorder %v3104, %v1093
        %vm3118 = vcmp.lt.f32.partialorder %v3104, %v1094
        %vm3119 = vcmp.lt.f32.partialorder %v3104, %v1095
        %vm3120 = vcmp.lt.f32.partialorder %v3104, %v1096
        %vm3121 = vcmp.lt.f32.partialorder %v3104, %v1097
        %vm3122 = vmand %vm3106, %vm3114
        %vm3123 = vmand %vm3107, %vm3115
        %vm3124 = vmand %vm3108, %vm3116
        %vm3125 = vmand %vm3109, %vm3117
        %vm3126 = vmand %vm3110, %vm3118
        %vm3127 = vmand %vm3111, %vm3119
        %vm3128 = vmand %vm3112, %vm3120
        %vm3129 = vmand %vm3113, %vm3121
        %v3130 = vsel %vm3122, 1.0, %v3094
        %v3131 = vsel %vm3123, 1.0, %v3095
        %v3132 = vsel %vm3124, 1.0, %v3096
        %v3133 = vsel %vm3125, 1.0, %v3097
        %v3134 = vsel %vm3126, 1.0, %v3098
        %v3135 = vsel %vm3127, 1.0, %v3099
        %v3136 = vsel %vm3128, 1.0, %v3100
        %v3137 = vsel %vm3129, 1.0, %v3101
        %3138 = vset.pattern.permute.xlu0 56
        %3139 = vperm.xlu0 %3138, %v1112
        %v3140 = vpop.permute.xlu0 %3139
        %vm3142 = vcmp.ge.f32.partialorder %v3140, %v1098
        %vm3143 = vcmp.ge.f32.partialorder %v3140, %v1099
        %vm3144 = vcmp.ge.f32.partialorder %v3140, %v1100
        %vm3145 = vcmp.ge.f32.partialorder %v3140, %v1101
        %vm3146 = vcmp.ge.f32.partialorder %v3140, %v1102
        %vm3147 = vcmp.ge.f32.partialorder %v3140, %v1103
        %vm3148 = vcmp.ge.f32.partialorder %v3140, %v1104
        %vm3149 = vcmp.ge.f32.partialorder %v3140, %v1105
        %vm3150 = vcmp.lt.f32.partialorder %v3140, %v1090
        %vm3151 = vcmp.lt.f32.partialorder %v3140, %v1091
        %vm3152 = vcmp.lt.f32.partialorder %v3140, %v1092
        %vm3153 = vcmp.lt.f32.partialorder %v3140, %v1093
        %vm3154 = vcmp.lt.f32.partialorder %v3140, %v1094
        %vm3155 = vcmp.lt.f32.partialorder %v3140, %v1095
        %vm3156 = vcmp.lt.f32.partialorder %v3140, %v1096
        %vm3157 = vcmp.lt.f32.partialorder %v3140, %v1097
        %vm3158 = vmand %vm3142, %vm3150
        %vm3159 = vmand %vm3143, %vm3151
        %vm3160 = vmand %vm3144, %vm3152
        %vm3161 = vmand %vm3145, %vm3153
        %vm3162 = vmand %vm3146, %vm3154
        %vm3163 = vmand %vm3147, %vm3155
        %vm3164 = vmand %vm3148, %vm3156
        %vm3165 = vmand %vm3149, %vm3157
        %v3166 = vsel %vm3158, 1.0, %v3130
        %v3167 = vsel %vm3159, 1.0, %v3131
        %v3168 = vsel %vm3160, 1.0, %v3132
        %v3169 = vsel %vm3161, 1.0, %v3133
        %v3170 = vsel %vm3162, 1.0, %v3134
        %v3171 = vsel %vm3163, 1.0, %v3135
        %v3172 = vsel %vm3164, 1.0, %v3136
        %v3173 = vsel %vm3165, 1.0, %v3137
        %3174 = vset.pattern.permute.xlu0 57
        %3175 = vperm.xlu0 %3174, %v1112
        %v3176 = vpop.permute.xlu0 %3175
        %vm3178 = vcmp.ge.f32.partialorder %v3176, %v1098
        %vm3179 = vcmp.ge.f32.partialorder %v3176, %v1099
        %vm3180 = vcmp.ge.f32.partialorder %v3176, %v1100
        %vm3181 = vcmp.ge.f32.partialorder %v3176, %v1101
        %vm3182 = vcmp.ge.f32.partialorder %v3176, %v1102
        %vm3183 = vcmp.ge.f32.partialorder %v3176, %v1103
        %vm3184 = vcmp.ge.f32.partialorder %v3176, %v1104
        %vm3185 = vcmp.ge.f32.partialorder %v3176, %v1105
        %vm3186 = vcmp.lt.f32.partialorder %v3176, %v1090
        %vm3187 = vcmp.lt.f32.partialorder %v3176, %v1091
        %vm3188 = vcmp.lt.f32.partialorder %v3176, %v1092
        %vm3189 = vcmp.lt.f32.partialorder %v3176, %v1093
        %vm3190 = vcmp.lt.f32.partialorder %v3176, %v1094
        %vm3191 = vcmp.lt.f32.partialorder %v3176, %v1095
        %vm3192 = vcmp.lt.f32.partialorder %v3176, %v1096
        %vm3193 = vcmp.lt.f32.partialorder %v3176, %v1097
        %vm3194 = vmand %vm3178, %vm3186
        %vm3195 = vmand %vm3179, %vm3187
        %vm3196 = vmand %vm3180, %vm3188
        %vm3197 = vmand %vm3181, %vm3189
        %vm3198 = vmand %vm3182, %vm3190
        %vm3199 = vmand %vm3183, %vm3191
        %vm3200 = vmand %vm3184, %vm3192
        %vm3201 = vmand %vm3185, %vm3193
        %v3202 = vsel %vm3194, 1.0, %v3166
        %v3203 = vsel %vm3195, 1.0, %v3167
        %v3204 = vsel %vm3196, 1.0, %v3168
        %v3205 = vsel %vm3197, 1.0, %v3169
        %v3206 = vsel %vm3198, 1.0, %v3170
        %v3207 = vsel %vm3199, 1.0, %v3171
        %v3208 = vsel %vm3200, 1.0, %v3172
        %v3209 = vsel %vm3201, 1.0, %v3173
        %3210 = vset.pattern.permute.xlu0 58
        %3211 = vperm.xlu0 %3210, %v1112
        %v3212 = vpop.permute.xlu0 %3211
        %vm3214 = vcmp.ge.f32.partialorder %v3212, %v1098
        %vm3215 = vcmp.ge.f32.partialorder %v3212, %v1099
        %vm3216 = vcmp.ge.f32.partialorder %v3212, %v1100
        %vm3217 = vcmp.ge.f32.partialorder %v3212, %v1101
        %vm3218 = vcmp.ge.f32.partialorder %v3212, %v1102
        %vm3219 = vcmp.ge.f32.partialorder %v3212, %v1103
        %vm3220 = vcmp.ge.f32.partialorder %v3212, %v1104
        %vm3221 = vcmp.ge.f32.partialorder %v3212, %v1105
        %vm3222 = vcmp.lt.f32.partialorder %v3212, %v1090
        %vm3223 = vcmp.lt.f32.partialorder %v3212, %v1091
        %vm3224 = vcmp.lt.f32.partialorder %v3212, %v1092
        %vm3225 = vcmp.lt.f32.partialorder %v3212, %v1093
        %vm3226 = vcmp.lt.f32.partialorder %v3212, %v1094
        %vm3227 = vcmp.lt.f32.partialorder %v3212, %v1095
        %vm3228 = vcmp.lt.f32.partialorder %v3212, %v1096
        %vm3229 = vcmp.lt.f32.partialorder %v3212, %v1097
        %vm3230 = vmand %vm3214, %vm3222
        %vm3231 = vmand %vm3215, %vm3223
        %vm3232 = vmand %vm3216, %vm3224
        %vm3233 = vmand %vm3217, %vm3225
        %vm3234 = vmand %vm3218, %vm3226
        %vm3235 = vmand %vm3219, %vm3227
        %vm3236 = vmand %vm3220, %vm3228
        %vm3237 = vmand %vm3221, %vm3229
        %v3238 = vsel %vm3230, 1.0, %v3202
        %v3239 = vsel %vm3231, 1.0, %v3203
        %v3240 = vsel %vm3232, 1.0, %v3204
        %v3241 = vsel %vm3233, 1.0, %v3205
        %v3242 = vsel %vm3234, 1.0, %v3206
        %v3243 = vsel %vm3235, 1.0, %v3207
        %v3244 = vsel %vm3236, 1.0, %v3208
        %v3245 = vsel %vm3237, 1.0, %v3209
        %3246 = vset.pattern.permute.xlu0 59
        %3247 = vperm.xlu0 %3246, %v1112
        %v3248 = vpop.permute.xlu0 %3247
        %vm3250 = vcmp.ge.f32.partialorder %v3248, %v1098
        %vm3251 = vcmp.ge.f32.partialorder %v3248, %v1099
        %vm3252 = vcmp.ge.f32.partialorder %v3248, %v1100
        %vm3253 = vcmp.ge.f32.partialorder %v3248, %v1101
        %vm3254 = vcmp.ge.f32.partialorder %v3248, %v1102
        %vm3255 = vcmp.ge.f32.partialorder %v3248, %v1103
        %vm3256 = vcmp.ge.f32.partialorder %v3248, %v1104
        %vm3257 = vcmp.ge.f32.partialorder %v3248, %v1105
        %vm3258 = vcmp.lt.f32.partialorder %v3248, %v1090
        %vm3259 = vcmp.lt.f32.partialorder %v3248, %v1091
        %vm3260 = vcmp.lt.f32.partialorder %v3248, %v1092
        %vm3261 = vcmp.lt.f32.partialorder %v3248, %v1093
        %vm3262 = vcmp.lt.f32.partialorder %v3248, %v1094
        %vm3263 = vcmp.lt.f32.partialorder %v3248, %v1095
        %vm3264 = vcmp.lt.f32.partialorder %v3248, %v1096
        %vm3265 = vcmp.lt.f32.partialorder %v3248, %v1097
        %vm3266 = vmand %vm3250, %vm3258
        %vm3267 = vmand %vm3251, %vm3259
        %vm3268 = vmand %vm3252, %vm3260
        %vm3269 = vmand %vm3253, %vm3261
        %vm3270 = vmand %vm3254, %vm3262
        %vm3271 = vmand %vm3255, %vm3263
        %vm3272 = vmand %vm3256, %vm3264
        %vm3273 = vmand %vm3257, %vm3265
        %v3274 = vsel %vm3266, 1.0, %v3238
        %v3275 = vsel %vm3267, 1.0, %v3239
        %v3276 = vsel %vm3268, 1.0, %v3240
        %v3277 = vsel %vm3269, 1.0, %v3241
        %v3278 = vsel %vm3270, 1.0, %v3242
        %v3279 = vsel %vm3271, 1.0, %v3243
        %v3280 = vsel %vm3272, 1.0, %v3244
        %v3281 = vsel %vm3273, 1.0, %v3245
        %3282 = vset.pattern.permute.xlu0 60
        %3283 = vperm.xlu0 %3282, %v1112
        %v3284 = vpop.permute.xlu0 %3283
        %vm3286 = vcmp.ge.f32.partialorder %v3284, %v1098
        %vm3287 = vcmp.ge.f32.partialorder %v3284, %v1099
        %vm3288 = vcmp.ge.f32.partialorder %v3284, %v1100
        %vm3289 = vcmp.ge.f32.partialorder %v3284, %v1101
        %vm3290 = vcmp.ge.f32.partialorder %v3284, %v1102
        %vm3291 = vcmp.ge.f32.partialorder %v3284, %v1103
        %vm3292 = vcmp.ge.f32.partialorder %v3284, %v1104
        %vm3293 = vcmp.ge.f32.partialorder %v3284, %v1105
        %vm3294 = vcmp.lt.f32.partialorder %v3284, %v1090
        %vm3295 = vcmp.lt.f32.partialorder %v3284, %v1091
        %vm3296 = vcmp.lt.f32.partialorder %v3284, %v1092
        %vm3297 = vcmp.lt.f32.partialorder %v3284, %v1093
        %vm3298 = vcmp.lt.f32.partialorder %v3284, %v1094
        %vm3299 = vcmp.lt.f32.partialorder %v3284, %v1095
        %vm3300 = vcmp.lt.f32.partialorder %v3284, %v1096
        %vm3301 = vcmp.lt.f32.partialorder %v3284, %v1097
        %vm3302 = vmand %vm3286, %vm3294
        %vm3303 = vmand %vm3287, %vm3295
        %vm3304 = vmand %vm3288, %vm3296
        %vm3305 = vmand %vm3289, %vm3297
        %vm3306 = vmand %vm3290, %vm3298
        %vm3307 = vmand %vm3291, %vm3299
        %vm3308 = vmand %vm3292, %vm3300
        %vm3309 = vmand %vm3293, %vm3301
        %v3310 = vsel %vm3302, 1.0, %v3274
        %v3311 = vsel %vm3303, 1.0, %v3275
        %v3312 = vsel %vm3304, 1.0, %v3276
        %v3313 = vsel %vm3305, 1.0, %v3277
        %v3314 = vsel %vm3306, 1.0, %v3278
        %v3315 = vsel %vm3307, 1.0, %v3279
        %v3316 = vsel %vm3308, 1.0, %v3280
        %v3317 = vsel %vm3309, 1.0, %v3281
        %3318 = vset.pattern.permute.xlu0 61
        %3319 = vperm.xlu0 %3318, %v1112
        %v3320 = vpop.permute.xlu0 %3319
        %vm3322 = vcmp.ge.f32.partialorder %v3320, %v1098
        %vm3323 = vcmp.ge.f32.partialorder %v3320, %v1099
        %vm3324 = vcmp.ge.f32.partialorder %v3320, %v1100
        %vm3325 = vcmp.ge.f32.partialorder %v3320, %v1101
        %vm3326 = vcmp.ge.f32.partialorder %v3320, %v1102
        %vm3327 = vcmp.ge.f32.partialorder %v3320, %v1103
        %vm3328 = vcmp.ge.f32.partialorder %v3320, %v1104
        %vm3329 = vcmp.ge.f32.partialorder %v3320, %v1105
        %vm3330 = vcmp.lt.f32.partialorder %v3320, %v1090
        %vm3331 = vcmp.lt.f32.partialorder %v3320, %v1091
        %vm3332 = vcmp.lt.f32.partialorder %v3320, %v1092
        %vm3333 = vcmp.lt.f32.partialorder %v3320, %v1093
        %vm3334 = vcmp.lt.f32.partialorder %v3320, %v1094
        %vm3335 = vcmp.lt.f32.partialorder %v3320, %v1095
        %vm3336 = vcmp.lt.f32.partialorder %v3320, %v1096
        %vm3337 = vcmp.lt.f32.partialorder %v3320, %v1097
        %vm3338 = vmand %vm3322, %vm3330
        %vm3339 = vmand %vm3323, %vm3331
        %vm3340 = vmand %vm3324, %vm3332
        %vm3341 = vmand %vm3325, %vm3333
        %vm3342 = vmand %vm3326, %vm3334
        %vm3343 = vmand %vm3327, %vm3335
        %vm3344 = vmand %vm3328, %vm3336
        %vm3345 = vmand %vm3329, %vm3337
        %v3346 = vsel %vm3338, 1.0, %v3310
        %v3347 = vsel %vm3339, 1.0, %v3311
        %v3348 = vsel %vm3340, 1.0, %v3312
        %v3349 = vsel %vm3341, 1.0, %v3313
        %v3350 = vsel %vm3342, 1.0, %v3314
        %v3351 = vsel %vm3343, 1.0, %v3315
        %v3352 = vsel %vm3344, 1.0, %v3316
        %v3353 = vsel %vm3345, 1.0, %v3317
        %3354 = vset.pattern.permute.xlu0 62
        %3355 = vperm.xlu0 %3354, %v1112
        %v3356 = vpop.permute.xlu0 %3355
        %vm3358 = vcmp.ge.f32.partialorder %v3356, %v1098
        %vm3359 = vcmp.ge.f32.partialorder %v3356, %v1099
        %vm3360 = vcmp.ge.f32.partialorder %v3356, %v1100
        %vm3361 = vcmp.ge.f32.partialorder %v3356, %v1101
        %vm3362 = vcmp.ge.f32.partialorder %v3356, %v1102
        %vm3363 = vcmp.ge.f32.partialorder %v3356, %v1103
        %vm3364 = vcmp.ge.f32.partialorder %v3356, %v1104
        %vm3365 = vcmp.ge.f32.partialorder %v3356, %v1105
        %vm3366 = vcmp.lt.f32.partialorder %v3356, %v1090
        %vm3367 = vcmp.lt.f32.partialorder %v3356, %v1091
        %vm3368 = vcmp.lt.f32.partialorder %v3356, %v1092
        %vm3369 = vcmp.lt.f32.partialorder %v3356, %v1093
        %vm3370 = vcmp.lt.f32.partialorder %v3356, %v1094
        %vm3371 = vcmp.lt.f32.partialorder %v3356, %v1095
        %vm3372 = vcmp.lt.f32.partialorder %v3356, %v1096
        %vm3373 = vcmp.lt.f32.partialorder %v3356, %v1097
        %vm3374 = vmand %vm3358, %vm3366
        %vm3375 = vmand %vm3359, %vm3367
        %vm3376 = vmand %vm3360, %vm3368
        %vm3377 = vmand %vm3361, %vm3369
        %vm3378 = vmand %vm3362, %vm3370
        %vm3379 = vmand %vm3363, %vm3371
        %vm3380 = vmand %vm3364, %vm3372
        %vm3381 = vmand %vm3365, %vm3373
        %v3382 = vsel %vm3374, 1.0, %v3346
        %v3383 = vsel %vm3375, 1.0, %v3347
        %v3384 = vsel %vm3376, 1.0, %v3348
        %v3385 = vsel %vm3377, 1.0, %v3349
        %v3386 = vsel %vm3378, 1.0, %v3350
        %v3387 = vsel %vm3379, 1.0, %v3351
        %v3388 = vsel %vm3380, 1.0, %v3352
        %v3389 = vsel %vm3381, 1.0, %v3353
        %3390 = vset.pattern.permute.xlu0 63
        %3391 = vperm.xlu0 %3390, %v1112
        %v3392 = vpop.permute.xlu0 %3391
        %vm3394 = vcmp.ge.f32.partialorder %v3392, %v1098
        %vm3395 = vcmp.ge.f32.partialorder %v3392, %v1099
        %vm3396 = vcmp.ge.f32.partialorder %v3392, %v1100
        %vm3397 = vcmp.ge.f32.partialorder %v3392, %v1101
        %vm3398 = vcmp.ge.f32.partialorder %v3392, %v1102
        %vm3399 = vcmp.ge.f32.partialorder %v3392, %v1103
        %vm3400 = vcmp.ge.f32.partialorder %v3392, %v1104
        %vm3401 = vcmp.ge.f32.partialorder %v3392, %v1105
        %vm3402 = vcmp.lt.f32.partialorder %v3392, %v1090
        %vm3403 = vcmp.lt.f32.partialorder %v3392, %v1091
        %vm3404 = vcmp.lt.f32.partialorder %v3392, %v1092
        %vm3405 = vcmp.lt.f32.partialorder %v3392, %v1093
        %vm3406 = vcmp.lt.f32.partialorder %v3392, %v1094
        %vm3407 = vcmp.lt.f32.partialorder %v3392, %v1095
        %vm3408 = vcmp.lt.f32.partialorder %v3392, %v1096
        %vm3409 = vcmp.lt.f32.partialorder %v3392, %v1097
        %vm3410 = vmand %vm3394, %vm3402
        %vm3411 = vmand %vm3395, %vm3403
        %vm3412 = vmand %vm3396, %vm3404
        %vm3413 = vmand %vm3397, %vm3405
        %vm3414 = vmand %vm3398, %vm3406
        %vm3415 = vmand %vm3399, %vm3407
        %vm3416 = vmand %vm3400, %vm3408
        %vm3417 = vmand %vm3401, %vm3409
        %v3418 = vsel %vm3410, 1.0, %v3382
        %v3419 = vsel %vm3411, 1.0, %v3383
        %v3420 = vsel %vm3412, 1.0, %v3384
        %v3421 = vsel %vm3413, 1.0, %v3385
        %v3422 = vsel %vm3414, 1.0, %v3386
        %v3423 = vsel %vm3415, 1.0, %v3387
        %v3424 = vsel %vm3416, 1.0, %v3388
        %v3425 = vsel %vm3417, 1.0, %v3389
        %3426 = vset.pattern.permute.xlu0 64
        %3427 = vperm.xlu0 %3426, %v1112
        %v3428 = vpop.permute.xlu0 %3427
        %vm3430 = vcmp.ge.f32.partialorder %v3428, %v1098
        %vm3431 = vcmp.ge.f32.partialorder %v3428, %v1099
        %vm3432 = vcmp.ge.f32.partialorder %v3428, %v1100
        %vm3433 = vcmp.ge.f32.partialorder %v3428, %v1101
        %vm3434 = vcmp.ge.f32.partialorder %v3428, %v1102
        %vm3435 = vcmp.ge.f32.partialorder %v3428, %v1103
        %vm3436 = vcmp.ge.f32.partialorder %v3428, %v1104
        %vm3437 = vcmp.ge.f32.partialorder %v3428, %v1105
        %vm3438 = vcmp.lt.f32.partialorder %v3428, %v1090
        %vm3439 = vcmp.lt.f32.partialorder %v3428, %v1091
        %vm3440 = vcmp.lt.f32.partialorder %v3428, %v1092
        %vm3441 = vcmp.lt.f32.partialorder %v3428, %v1093
        %vm3442 = vcmp.lt.f32.partialorder %v3428, %v1094
        %vm3443 = vcmp.lt.f32.partialorder %v3428, %v1095
        %vm3444 = vcmp.lt.f32.partialorder %v3428, %v1096
        %vm3445 = vcmp.lt.f32.partialorder %v3428, %v1097
        %vm3446 = vmand %vm3430, %vm3438
        %vm3447 = vmand %vm3431, %vm3439
        %vm3448 = vmand %vm3432, %vm3440
        %vm3449 = vmand %vm3433, %vm3441
        %vm3450 = vmand %vm3434, %vm3442
        %vm3451 = vmand %vm3435, %vm3443
        %vm3452 = vmand %vm3436, %vm3444
        %vm3453 = vmand %vm3437, %vm3445
        %v3454 = vsel %vm3446, 1.0, %v3418
        %v3455 = vsel %vm3447, 1.0, %v3419
        %v3456 = vsel %vm3448, 1.0, %v3420
        %v3457 = vsel %vm3449, 1.0, %v3421
        %v3458 = vsel %vm3450, 1.0, %v3422
        %v3459 = vsel %vm3451, 1.0, %v3423
        %v3460 = vsel %vm3452, 1.0, %v3424
        %v3461 = vsel %vm3453, 1.0, %v3425
        %3462 = vset.pattern.permute.xlu0 65
        %3463 = vperm.xlu0 %3462, %v1112
        %v3464 = vpop.permute.xlu0 %3463
        %vm3466 = vcmp.ge.f32.partialorder %v3464, %v1098
        %vm3467 = vcmp.ge.f32.partialorder %v3464, %v1099
        %vm3468 = vcmp.ge.f32.partialorder %v3464, %v1100
        %vm3469 = vcmp.ge.f32.partialorder %v3464, %v1101
        %vm3470 = vcmp.ge.f32.partialorder %v3464, %v1102
        %vm3471 = vcmp.ge.f32.partialorder %v3464, %v1103
        %vm3472 = vcmp.ge.f32.partialorder %v3464, %v1104
        %vm3473 = vcmp.ge.f32.partialorder %v3464, %v1105
        %vm3474 = vcmp.lt.f32.partialorder %v3464, %v1090
        %vm3475 = vcmp.lt.f32.partialorder %v3464, %v1091
        %vm3476 = vcmp.lt.f32.partialorder %v3464, %v1092
        %vm3477 = vcmp.lt.f32.partialorder %v3464, %v1093
        %vm3478 = vcmp.lt.f32.partialorder %v3464, %v1094
        %vm3479 = vcmp.lt.f32.partialorder %v3464, %v1095
        %vm3480 = vcmp.lt.f32.partialorder %v3464, %v1096
        %vm3481 = vcmp.lt.f32.partialorder %v3464, %v1097
        %vm3482 = vmand %vm3466, %vm3474
        %vm3483 = vmand %vm3467, %vm3475
        %vm3484 = vmand %vm3468, %vm3476
        %vm3485 = vmand %vm3469, %vm3477
        %vm3486 = vmand %vm3470, %vm3478
        %vm3487 = vmand %vm3471, %vm3479
        %vm3488 = vmand %vm3472, %vm3480
        %vm3489 = vmand %vm3473, %vm3481
        %v3490 = vsel %vm3482, 1.0, %v3454
        %v3491 = vsel %vm3483, 1.0, %v3455
        %v3492 = vsel %vm3484, 1.0, %v3456
        %v3493 = vsel %vm3485, 1.0, %v3457
        %v3494 = vsel %vm3486, 1.0, %v3458
        %v3495 = vsel %vm3487, 1.0, %v3459
        %v3496 = vsel %vm3488, 1.0, %v3460
        %v3497 = vsel %vm3489, 1.0, %v3461
        %3498 = vset.pattern.permute.xlu0 66
        %3499 = vperm.xlu0 %3498, %v1112
        %v3500 = vpop.permute.xlu0 %3499
        %vm3502 = vcmp.ge.f32.partialorder %v3500, %v1098
        %vm3503 = vcmp.ge.f32.partialorder %v3500, %v1099
        %vm3504 = vcmp.ge.f32.partialorder %v3500, %v1100
        %vm3505 = vcmp.ge.f32.partialorder %v3500, %v1101
        %vm3506 = vcmp.ge.f32.partialorder %v3500, %v1102
        %vm3507 = vcmp.ge.f32.partialorder %v3500, %v1103
        %vm3508 = vcmp.ge.f32.partialorder %v3500, %v1104
        %vm3509 = vcmp.ge.f32.partialorder %v3500, %v1105
        %vm3510 = vcmp.lt.f32.partialorder %v3500, %v1090
        %vm3511 = vcmp.lt.f32.partialorder %v3500, %v1091
        %vm3512 = vcmp.lt.f32.partialorder %v3500, %v1092
        %vm3513 = vcmp.lt.f32.partialorder %v3500, %v1093
        %vm3514 = vcmp.lt.f32.partialorder %v3500, %v1094
        %vm3515 = vcmp.lt.f32.partialorder %v3500, %v1095
        %vm3516 = vcmp.lt.f32.partialorder %v3500, %v1096
        %vm3517 = vcmp.lt.f32.partialorder %v3500, %v1097
        %vm3518 = vmand %vm3502, %vm3510
        %vm3519 = vmand %vm3503, %vm3511
        %vm3520 = vmand %vm3504, %vm3512
        %vm3521 = vmand %vm3505, %vm3513
        %vm3522 = vmand %vm3506, %vm3514
        %vm3523 = vmand %vm3507, %vm3515
        %vm3524 = vmand %vm3508, %vm3516
        %vm3525 = vmand %vm3509, %vm3517
        %v3526 = vsel %vm3518, 1.0, %v3490
        %v3527 = vsel %vm3519, 1.0, %v3491
        %v3528 = vsel %vm3520, 1.0, %v3492
        %v3529 = vsel %vm3521, 1.0, %v3493
        %v3530 = vsel %vm3522, 1.0, %v3494
        %v3531 = vsel %vm3523, 1.0, %v3495
        %v3532 = vsel %vm3524, 1.0, %v3496
        %v3533 = vsel %vm3525, 1.0, %v3497
        %3534 = vset.pattern.permute.xlu0 67
        %3535 = vperm.xlu0 %3534, %v1112
        %v3536 = vpop.permute.xlu0 %3535
        %vm3538 = vcmp.ge.f32.partialorder %v3536, %v1098
        %vm3539 = vcmp.ge.f32.partialorder %v3536, %v1099
        %vm3540 = vcmp.ge.f32.partialorder %v3536, %v1100
        %vm3541 = vcmp.ge.f32.partialorder %v3536, %v1101
        %vm3542 = vcmp.ge.f32.partialorder %v3536, %v1102
        %vm3543 = vcmp.ge.f32.partialorder %v3536, %v1103
        %vm3544 = vcmp.ge.f32.partialorder %v3536, %v1104
        %vm3545 = vcmp.ge.f32.partialorder %v3536, %v1105
        %vm3546 = vcmp.lt.f32.partialorder %v3536, %v1090
        %vm3547 = vcmp.lt.f32.partialorder %v3536, %v1091
        %vm3548 = vcmp.lt.f32.partialorder %v3536, %v1092
        %vm3549 = vcmp.lt.f32.partialorder %v3536, %v1093
        %vm3550 = vcmp.lt.f32.partialorder %v3536, %v1094
        %vm3551 = vcmp.lt.f32.partialorder %v3536, %v1095
        %vm3552 = vcmp.lt.f32.partialorder %v3536, %v1096
        %vm3553 = vcmp.lt.f32.partialorder %v3536, %v1097
        %vm3554 = vmand %vm3538, %vm3546
        %vm3555 = vmand %vm3539, %vm3547
        %vm3556 = vmand %vm3540, %vm3548
        %vm3557 = vmand %vm3541, %vm3549
        %vm3558 = vmand %vm3542, %vm3550
        %vm3559 = vmand %vm3543, %vm3551
        %vm3560 = vmand %vm3544, %vm3552
        %vm3561 = vmand %vm3545, %vm3553
        %v3562 = vsel %vm3554, 1.0, %v3526
        %v3563 = vsel %vm3555, 1.0, %v3527
        %v3564 = vsel %vm3556, 1.0, %v3528
        %v3565 = vsel %vm3557, 1.0, %v3529
        %v3566 = vsel %vm3558, 1.0, %v3530
        %v3567 = vsel %vm3559, 1.0, %v3531
        %v3568 = vsel %vm3560, 1.0, %v3532
        %v3569 = vsel %vm3561, 1.0, %v3533
        %3570 = vset.pattern.permute.xlu0 68
        %3571 = vperm.xlu0 %3570, %v1112
        %v3572 = vpop.permute.xlu0 %3571
        %vm3574 = vcmp.ge.f32.partialorder %v3572, %v1098
        %vm3575 = vcmp.ge.f32.partialorder %v3572, %v1099
        %vm3576 = vcmp.ge.f32.partialorder %v3572, %v1100
        %vm3577 = vcmp.ge.f32.partialorder %v3572, %v1101
        %vm3578 = vcmp.ge.f32.partialorder %v3572, %v1102
        %vm3579 = vcmp.ge.f32.partialorder %v3572, %v1103
        %vm3580 = vcmp.ge.f32.partialorder %v3572, %v1104
        %vm3581 = vcmp.ge.f32.partialorder %v3572, %v1105
        %vm3582 = vcmp.lt.f32.partialorder %v3572, %v1090
        %vm3583 = vcmp.lt.f32.partialorder %v3572, %v1091
        %vm3584 = vcmp.lt.f32.partialorder %v3572, %v1092
        %vm3585 = vcmp.lt.f32.partialorder %v3572, %v1093
        %vm3586 = vcmp.lt.f32.partialorder %v3572, %v1094
        %vm3587 = vcmp.lt.f32.partialorder %v3572, %v1095
        %vm3588 = vcmp.lt.f32.partialorder %v3572, %v1096
        %vm3589 = vcmp.lt.f32.partialorder %v3572, %v1097
        %vm3590 = vmand %vm3574, %vm3582
        %vm3591 = vmand %vm3575, %vm3583
        %vm3592 = vmand %vm3576, %vm3584
        %vm3593 = vmand %vm3577, %vm3585
        %vm3594 = vmand %vm3578, %vm3586
        %vm3595 = vmand %vm3579, %vm3587
        %vm3596 = vmand %vm3580, %vm3588
        %vm3597 = vmand %vm3581, %vm3589
        %v3598 = vsel %vm3590, 1.0, %v3562
        %v3599 = vsel %vm3591, 1.0, %v3563
        %v3600 = vsel %vm3592, 1.0, %v3564
        %v3601 = vsel %vm3593, 1.0, %v3565
        %v3602 = vsel %vm3594, 1.0, %v3566
        %v3603 = vsel %vm3595, 1.0, %v3567
        %v3604 = vsel %vm3596, 1.0, %v3568
        %v3605 = vsel %vm3597, 1.0, %v3569
        %3606 = vset.pattern.permute.xlu0 69
        %3607 = vperm.xlu0 %3606, %v1112
        %v3608 = vpop.permute.xlu0 %3607
        %vm3610 = vcmp.ge.f32.partialorder %v3608, %v1098
        %vm3611 = vcmp.ge.f32.partialorder %v3608, %v1099
        %vm3612 = vcmp.ge.f32.partialorder %v3608, %v1100
        %vm3613 = vcmp.ge.f32.partialorder %v3608, %v1101
        %vm3614 = vcmp.ge.f32.partialorder %v3608, %v1102
        %vm3615 = vcmp.ge.f32.partialorder %v3608, %v1103
        %vm3616 = vcmp.ge.f32.partialorder %v3608, %v1104
        %vm3617 = vcmp.ge.f32.partialorder %v3608, %v1105
        %vm3618 = vcmp.lt.f32.partialorder %v3608, %v1090
        %vm3619 = vcmp.lt.f32.partialorder %v3608, %v1091
        %vm3620 = vcmp.lt.f32.partialorder %v3608, %v1092
        %vm3621 = vcmp.lt.f32.partialorder %v3608, %v1093
        %vm3622 = vcmp.lt.f32.partialorder %v3608, %v1094
        %vm3623 = vcmp.lt.f32.partialorder %v3608, %v1095
        %vm3624 = vcmp.lt.f32.partialorder %v3608, %v1096
        %vm3625 = vcmp.lt.f32.partialorder %v3608, %v1097
        %vm3626 = vmand %vm3610, %vm3618
        %vm3627 = vmand %vm3611, %vm3619
        %vm3628 = vmand %vm3612, %vm3620
        %vm3629 = vmand %vm3613, %vm3621
        %vm3630 = vmand %vm3614, %vm3622
        %vm3631 = vmand %vm3615, %vm3623
        %vm3632 = vmand %vm3616, %vm3624
        %vm3633 = vmand %vm3617, %vm3625
        %v3634 = vsel %vm3626, 1.0, %v3598
        %v3635 = vsel %vm3627, 1.0, %v3599
        %v3636 = vsel %vm3628, 1.0, %v3600
        %v3637 = vsel %vm3629, 1.0, %v3601
        %v3638 = vsel %vm3630, 1.0, %v3602
        %v3639 = vsel %vm3631, 1.0, %v3603
        %v3640 = vsel %vm3632, 1.0, %v3604
        %v3641 = vsel %vm3633, 1.0, %v3605
        %3642 = vset.pattern.permute.xlu0 70
        %3643 = vperm.xlu0 %3642, %v1112
        %v3644 = vpop.permute.xlu0 %3643
        %vm3646 = vcmp.ge.f32.partialorder %v3644, %v1098
        %vm3647 = vcmp.ge.f32.partialorder %v3644, %v1099
        %vm3648 = vcmp.ge.f32.partialorder %v3644, %v1100
        %vm3649 = vcmp.ge.f32.partialorder %v3644, %v1101
        %vm3650 = vcmp.ge.f32.partialorder %v3644, %v1102
        %vm3651 = vcmp.ge.f32.partialorder %v3644, %v1103
        %vm3652 = vcmp.ge.f32.partialorder %v3644, %v1104
        %vm3653 = vcmp.ge.f32.partialorder %v3644, %v1105
        %vm3654 = vcmp.lt.f32.partialorder %v3644, %v1090
        %vm3655 = vcmp.lt.f32.partialorder %v3644, %v1091
        %vm3656 = vcmp.lt.f32.partialorder %v3644, %v1092
        %vm3657 = vcmp.lt.f32.partialorder %v3644, %v1093
        %vm3658 = vcmp.lt.f32.partialorder %v3644, %v1094
        %vm3659 = vcmp.lt.f32.partialorder %v3644, %v1095
        %vm3660 = vcmp.lt.f32.partialorder %v3644, %v1096
        %vm3661 = vcmp.lt.f32.partialorder %v3644, %v1097
        %vm3662 = vmand %vm3646, %vm3654
        %vm3663 = vmand %vm3647, %vm3655
        %vm3664 = vmand %vm3648, %vm3656
        %vm3665 = vmand %vm3649, %vm3657
        %vm3666 = vmand %vm3650, %vm3658
        %vm3667 = vmand %vm3651, %vm3659
        %vm3668 = vmand %vm3652, %vm3660
        %vm3669 = vmand %vm3653, %vm3661
        %v3670 = vsel %vm3662, 1.0, %v3634
        %v3671 = vsel %vm3663, 1.0, %v3635
        %v3672 = vsel %vm3664, 1.0, %v3636
        %v3673 = vsel %vm3665, 1.0, %v3637
        %v3674 = vsel %vm3666, 1.0, %v3638
        %v3675 = vsel %vm3667, 1.0, %v3639
        %v3676 = vsel %vm3668, 1.0, %v3640
        %v3677 = vsel %vm3669, 1.0, %v3641
        %3678 = vset.pattern.permute.xlu0 71
        %3679 = vperm.xlu0 %3678, %v1112
        %v3680 = vpop.permute.xlu0 %3679
        %vm3682 = vcmp.ge.f32.partialorder %v3680, %v1098
        %vm3683 = vcmp.ge.f32.partialorder %v3680, %v1099
        %vm3684 = vcmp.ge.f32.partialorder %v3680, %v1100
        %vm3685 = vcmp.ge.f32.partialorder %v3680, %v1101
        %vm3686 = vcmp.ge.f32.partialorder %v3680, %v1102
        %vm3687 = vcmp.ge.f32.partialorder %v3680, %v1103
        %vm3688 = vcmp.ge.f32.partialorder %v3680, %v1104
        %vm3689 = vcmp.ge.f32.partialorder %v3680, %v1105
        %vm3690 = vcmp.lt.f32.partialorder %v3680, %v1090
        %vm3691 = vcmp.lt.f32.partialorder %v3680, %v1091
        %vm3692 = vcmp.lt.f32.partialorder %v3680, %v1092
        %vm3693 = vcmp.lt.f32.partialorder %v3680, %v1093
        %vm3694 = vcmp.lt.f32.partialorder %v3680, %v1094
        %vm3695 = vcmp.lt.f32.partialorder %v3680, %v1095
        %vm3696 = vcmp.lt.f32.partialorder %v3680, %v1096
        %vm3697 = vcmp.lt.f32.partialorder %v3680, %v1097
        %vm3698 = vmand %vm3682, %vm3690
        %vm3699 = vmand %vm3683, %vm3691
        %vm3700 = vmand %vm3684, %vm3692
        %vm3701 = vmand %vm3685, %vm3693
        %vm3702 = vmand %vm3686, %vm3694
        %vm3703 = vmand %vm3687, %vm3695
        %vm3704 = vmand %vm3688, %vm3696
        %vm3705 = vmand %vm3689, %vm3697
        %v3706 = vsel %vm3698, 1.0, %v3670
        %v3707 = vsel %vm3699, 1.0, %v3671
        %v3708 = vsel %vm3700, 1.0, %v3672
        %v3709 = vsel %vm3701, 1.0, %v3673
        %v3710 = vsel %vm3702, 1.0, %v3674
        %v3711 = vsel %vm3703, 1.0, %v3675
        %v3712 = vsel %vm3704, 1.0, %v3676
        %v3713 = vsel %vm3705, 1.0, %v3677
        %3714 = vset.pattern.permute.xlu0 72
        %3715 = vperm.xlu0 %3714, %v1112
        %v3716 = vpop.permute.xlu0 %3715
        %vm3718 = vcmp.ge.f32.partialorder %v3716, %v1098
        %vm3719 = vcmp.ge.f32.partialorder %v3716, %v1099
        %vm3720 = vcmp.ge.f32.partialorder %v3716, %v1100
        %vm3721 = vcmp.ge.f32.partialorder %v3716, %v1101
        %vm3722 = vcmp.ge.f32.partialorder %v3716, %v1102
        %vm3723 = vcmp.ge.f32.partialorder %v3716, %v1103
        %vm3724 = vcmp.ge.f32.partialorder %v3716, %v1104
        %vm3725 = vcmp.ge.f32.partialorder %v3716, %v1105
        %vm3726 = vcmp.lt.f32.partialorder %v3716, %v1090
        %vm3727 = vcmp.lt.f32.partialorder %v3716, %v1091
        %vm3728 = vcmp.lt.f32.partialorder %v3716, %v1092
        %vm3729 = vcmp.lt.f32.partialorder %v3716, %v1093
        %vm3730 = vcmp.lt.f32.partialorder %v3716, %v1094
        %vm3731 = vcmp.lt.f32.partialorder %v3716, %v1095
        %vm3732 = vcmp.lt.f32.partialorder %v3716, %v1096
        %vm3733 = vcmp.lt.f32.partialorder %v3716, %v1097
        %vm3734 = vmand %vm3718, %vm3726
        %vm3735 = vmand %vm3719, %vm3727
        %vm3736 = vmand %vm3720, %vm3728
        %vm3737 = vmand %vm3721, %vm3729
        %vm3738 = vmand %vm3722, %vm3730
        %vm3739 = vmand %vm3723, %vm3731
        %vm3740 = vmand %vm3724, %vm3732
        %vm3741 = vmand %vm3725, %vm3733
        %v3742 = vsel %vm3734, 1.0, %v3706
        %v3743 = vsel %vm3735, 1.0, %v3707
        %v3744 = vsel %vm3736, 1.0, %v3708
        %v3745 = vsel %vm3737, 1.0, %v3709
        %v3746 = vsel %vm3738, 1.0, %v3710
        %v3747 = vsel %vm3739, 1.0, %v3711
        %v3748 = vsel %vm3740, 1.0, %v3712
        %v3749 = vsel %vm3741, 1.0, %v3713
        %3750 = vset.pattern.permute.xlu0 73
        %3751 = vperm.xlu0 %3750, %v1112
        %v3752 = vpop.permute.xlu0 %3751
        %vm3754 = vcmp.ge.f32.partialorder %v3752, %v1098
        %vm3755 = vcmp.ge.f32.partialorder %v3752, %v1099
        %vm3756 = vcmp.ge.f32.partialorder %v3752, %v1100
        %vm3757 = vcmp.ge.f32.partialorder %v3752, %v1101
        %vm3758 = vcmp.ge.f32.partialorder %v3752, %v1102
        %vm3759 = vcmp.ge.f32.partialorder %v3752, %v1103
        %vm3760 = vcmp.ge.f32.partialorder %v3752, %v1104
        %vm3761 = vcmp.ge.f32.partialorder %v3752, %v1105
        %vm3762 = vcmp.lt.f32.partialorder %v3752, %v1090
        %vm3763 = vcmp.lt.f32.partialorder %v3752, %v1091
        %vm3764 = vcmp.lt.f32.partialorder %v3752, %v1092
        %vm3765 = vcmp.lt.f32.partialorder %v3752, %v1093
        %vm3766 = vcmp.lt.f32.partialorder %v3752, %v1094
        %vm3767 = vcmp.lt.f32.partialorder %v3752, %v1095
        %vm3768 = vcmp.lt.f32.partialorder %v3752, %v1096
        %vm3769 = vcmp.lt.f32.partialorder %v3752, %v1097
        %vm3770 = vmand %vm3754, %vm3762
        %vm3771 = vmand %vm3755, %vm3763
        %vm3772 = vmand %vm3756, %vm3764
        %vm3773 = vmand %vm3757, %vm3765
        %vm3774 = vmand %vm3758, %vm3766
        %vm3775 = vmand %vm3759, %vm3767
        %vm3776 = vmand %vm3760, %vm3768
        %vm3777 = vmand %vm3761, %vm3769
        %v3778 = vsel %vm3770, 1.0, %v3742
        %v3779 = vsel %vm3771, 1.0, %v3743
        %v3780 = vsel %vm3772, 1.0, %v3744
        %v3781 = vsel %vm3773, 1.0, %v3745
        %v3782 = vsel %vm3774, 1.0, %v3746
        %v3783 = vsel %vm3775, 1.0, %v3747
        %v3784 = vsel %vm3776, 1.0, %v3748
        %v3785 = vsel %vm3777, 1.0, %v3749
        %3786 = vset.pattern.permute.xlu0 74
        %3787 = vperm.xlu0 %3786, %v1112
        %v3788 = vpop.permute.xlu0 %3787
        %vm3790 = vcmp.ge.f32.partialorder %v3788, %v1098
        %vm3791 = vcmp.ge.f32.partialorder %v3788, %v1099
        %vm3792 = vcmp.ge.f32.partialorder %v3788, %v1100
        %vm3793 = vcmp.ge.f32.partialorder %v3788, %v1101
        %vm3794 = vcmp.ge.f32.partialorder %v3788, %v1102
        %vm3795 = vcmp.ge.f32.partialorder %v3788, %v1103
        %vm3796 = vcmp.ge.f32.partialorder %v3788, %v1104
        %vm3797 = vcmp.ge.f32.partialorder %v3788, %v1105
        %vm3798 = vcmp.lt.f32.partialorder %v3788, %v1090
        %vm3799 = vcmp.lt.f32.partialorder %v3788, %v1091
        %vm3800 = vcmp.lt.f32.partialorder %v3788, %v1092
        %vm3801 = vcmp.lt.f32.partialorder %v3788, %v1093
        %vm3802 = vcmp.lt.f32.partialorder %v3788, %v1094
        %vm3803 = vcmp.lt.f32.partialorder %v3788, %v1095
        %vm3804 = vcmp.lt.f32.partialorder %v3788, %v1096
        %vm3805 = vcmp.lt.f32.partialorder %v3788, %v1097
        %vm3806 = vmand %vm3790, %vm3798
        %vm3807 = vmand %vm3791, %vm3799
        %vm3808 = vmand %vm3792, %vm3800
        %vm3809 = vmand %vm3793, %vm3801
        %vm3810 = vmand %vm3794, %vm3802
        %vm3811 = vmand %vm3795, %vm3803
        %vm3812 = vmand %vm3796, %vm3804
        %vm3813 = vmand %vm3797, %vm3805
        %v3814 = vsel %vm3806, 1.0, %v3778
        %v3815 = vsel %vm3807, 1.0, %v3779
        %v3816 = vsel %vm3808, 1.0, %v3780
        %v3817 = vsel %vm3809, 1.0, %v3781
        %v3818 = vsel %vm3810, 1.0, %v3782
        %v3819 = vsel %vm3811, 1.0, %v3783
        %v3820 = vsel %vm3812, 1.0, %v3784
        %v3821 = vsel %vm3813, 1.0, %v3785
        %3822 = vset.pattern.permute.xlu0 75
        %3823 = vperm.xlu0 %3822, %v1112
        %v3824 = vpop.permute.xlu0 %3823
        %vm3826 = vcmp.ge.f32.partialorder %v3824, %v1098
        %vm3827 = vcmp.ge.f32.partialorder %v3824, %v1099
        %vm3828 = vcmp.ge.f32.partialorder %v3824, %v1100
        %vm3829 = vcmp.ge.f32.partialorder %v3824, %v1101
        %vm3830 = vcmp.ge.f32.partialorder %v3824, %v1102
        %vm3831 = vcmp.ge.f32.partialorder %v3824, %v1103
        %vm3832 = vcmp.ge.f32.partialorder %v3824, %v1104
        %vm3833 = vcmp.ge.f32.partialorder %v3824, %v1105
        %vm3834 = vcmp.lt.f32.partialorder %v3824, %v1090
        %vm3835 = vcmp.lt.f32.partialorder %v3824, %v1091
        %vm3836 = vcmp.lt.f32.partialorder %v3824, %v1092
        %vm3837 = vcmp.lt.f32.partialorder %v3824, %v1093
        %vm3838 = vcmp.lt.f32.partialorder %v3824, %v1094
        %vm3839 = vcmp.lt.f32.partialorder %v3824, %v1095
        %vm3840 = vcmp.lt.f32.partialorder %v3824, %v1096
        %vm3841 = vcmp.lt.f32.partialorder %v3824, %v1097
        %vm3842 = vmand %vm3826, %vm3834
        %vm3843 = vmand %vm3827, %vm3835
        %vm3844 = vmand %vm3828, %vm3836
        %vm3845 = vmand %vm3829, %vm3837
        %vm3846 = vmand %vm3830, %vm3838
        %vm3847 = vmand %vm3831, %vm3839
        %vm3848 = vmand %vm3832, %vm3840
        %vm3849 = vmand %vm3833, %vm3841
        %v3850 = vsel %vm3842, 1.0, %v3814
        %v3851 = vsel %vm3843, 1.0, %v3815
        %v3852 = vsel %vm3844, 1.0, %v3816
        %v3853 = vsel %vm3845, 1.0, %v3817
        %v3854 = vsel %vm3846, 1.0, %v3818
        %v3855 = vsel %vm3847, 1.0, %v3819
        %v3856 = vsel %vm3848, 1.0, %v3820
        %v3857 = vsel %vm3849, 1.0, %v3821
        %3858 = vset.pattern.permute.xlu0 76
        %3859 = vperm.xlu0 %3858, %v1112
        %v3860 = vpop.permute.xlu0 %3859
        %vm3862 = vcmp.ge.f32.partialorder %v3860, %v1098
        %vm3863 = vcmp.ge.f32.partialorder %v3860, %v1099
        %vm3864 = vcmp.ge.f32.partialorder %v3860, %v1100
        %vm3865 = vcmp.ge.f32.partialorder %v3860, %v1101
        %vm3866 = vcmp.ge.f32.partialorder %v3860, %v1102
        %vm3867 = vcmp.ge.f32.partialorder %v3860, %v1103
        %vm3868 = vcmp.ge.f32.partialorder %v3860, %v1104
        %vm3869 = vcmp.ge.f32.partialorder %v3860, %v1105
        %vm3870 = vcmp.lt.f32.partialorder %v3860, %v1090
        %vm3871 = vcmp.lt.f32.partialorder %v3860, %v1091
        %vm3872 = vcmp.lt.f32.partialorder %v3860, %v1092
        %vm3873 = vcmp.lt.f32.partialorder %v3860, %v1093
        %vm3874 = vcmp.lt.f32.partialorder %v3860, %v1094
        %vm3875 = vcmp.lt.f32.partialorder %v3860, %v1095
        %vm3876 = vcmp.lt.f32.partialorder %v3860, %v1096
        %vm3877 = vcmp.lt.f32.partialorder %v3860, %v1097
        %vm3878 = vmand %vm3862, %vm3870
        %vm3879 = vmand %vm3863, %vm3871
        %vm3880 = vmand %vm3864, %vm3872
        %vm3881 = vmand %vm3865, %vm3873
        %vm3882 = vmand %vm3866, %vm3874
        %vm3883 = vmand %vm3867, %vm3875
        %vm3884 = vmand %vm3868, %vm3876
        %vm3885 = vmand %vm3869, %vm3877
        %v3886 = vsel %vm3878, 1.0, %v3850
        %v3887 = vsel %vm3879, 1.0, %v3851
        %v3888 = vsel %vm3880, 1.0, %v3852
        %v3889 = vsel %vm3881, 1.0, %v3853
        %v3890 = vsel %vm3882, 1.0, %v3854
        %v3891 = vsel %vm3883, 1.0, %v3855
        %v3892 = vsel %vm3884, 1.0, %v3856
        %v3893 = vsel %vm3885, 1.0, %v3857
        %3894 = vset.pattern.permute.xlu0 77
        %3895 = vperm.xlu0 %3894, %v1112
        %v3896 = vpop.permute.xlu0 %3895
        %vm3898 = vcmp.ge.f32.partialorder %v3896, %v1098
        %vm3899 = vcmp.ge.f32.partialorder %v3896, %v1099
        %vm3900 = vcmp.ge.f32.partialorder %v3896, %v1100
        %vm3901 = vcmp.ge.f32.partialorder %v3896, %v1101
        %vm3902 = vcmp.ge.f32.partialorder %v3896, %v1102
        %vm3903 = vcmp.ge.f32.partialorder %v3896, %v1103
        %vm3904 = vcmp.ge.f32.partialorder %v3896, %v1104
        %vm3905 = vcmp.ge.f32.partialorder %v3896, %v1105
        %vm3906 = vcmp.lt.f32.partialorder %v3896, %v1090
        %vm3907 = vcmp.lt.f32.partialorder %v3896, %v1091
        %vm3908 = vcmp.lt.f32.partialorder %v3896, %v1092
        %vm3909 = vcmp.lt.f32.partialorder %v3896, %v1093
        %vm3910 = vcmp.lt.f32.partialorder %v3896, %v1094
        %vm3911 = vcmp.lt.f32.partialorder %v3896, %v1095
        %vm3912 = vcmp.lt.f32.partialorder %v3896, %v1096
        %vm3913 = vcmp.lt.f32.partialorder %v3896, %v1097
        %vm3914 = vmand %vm3898, %vm3906
        %vm3915 = vmand %vm3899, %vm3907
        %vm3916 = vmand %vm3900, %vm3908
        %vm3917 = vmand %vm3901, %vm3909
        %vm3918 = vmand %vm3902, %vm3910
        %vm3919 = vmand %vm3903, %vm3911
        %vm3920 = vmand %vm3904, %vm3912
        %vm3921 = vmand %vm3905, %vm3913
        %v3922 = vsel %vm3914, 1.0, %v3886
        %v3923 = vsel %vm3915, 1.0, %v3887
        %v3924 = vsel %vm3916, 1.0, %v3888
        %v3925 = vsel %vm3917, 1.0, %v3889
        %v3926 = vsel %vm3918, 1.0, %v3890
        %v3927 = vsel %vm3919, 1.0, %v3891
        %v3928 = vsel %vm3920, 1.0, %v3892
        %v3929 = vsel %vm3921, 1.0, %v3893
        %3930 = vset.pattern.permute.xlu0 78
        %3931 = vperm.xlu0 %3930, %v1112
        %v3932 = vpop.permute.xlu0 %3931
        %vm3934 = vcmp.ge.f32.partialorder %v3932, %v1098
        %vm3935 = vcmp.ge.f32.partialorder %v3932, %v1099
        %vm3936 = vcmp.ge.f32.partialorder %v3932, %v1100
        %vm3937 = vcmp.ge.f32.partialorder %v3932, %v1101
        %vm3938 = vcmp.ge.f32.partialorder %v3932, %v1102
        %vm3939 = vcmp.ge.f32.partialorder %v3932, %v1103
        %vm3940 = vcmp.ge.f32.partialorder %v3932, %v1104
        %vm3941 = vcmp.ge.f32.partialorder %v3932, %v1105
        %vm3942 = vcmp.lt.f32.partialorder %v3932, %v1090
        %vm3943 = vcmp.lt.f32.partialorder %v3932, %v1091
        %vm3944 = vcmp.lt.f32.partialorder %v3932, %v1092
        %vm3945 = vcmp.lt.f32.partialorder %v3932, %v1093
        %vm3946 = vcmp.lt.f32.partialorder %v3932, %v1094
        %vm3947 = vcmp.lt.f32.partialorder %v3932, %v1095
        %vm3948 = vcmp.lt.f32.partialorder %v3932, %v1096
        %vm3949 = vcmp.lt.f32.partialorder %v3932, %v1097
        %vm3950 = vmand %vm3934, %vm3942
        %vm3951 = vmand %vm3935, %vm3943
        %vm3952 = vmand %vm3936, %vm3944
        %vm3953 = vmand %vm3937, %vm3945
        %vm3954 = vmand %vm3938, %vm3946
        %vm3955 = vmand %vm3939, %vm3947
        %vm3956 = vmand %vm3940, %vm3948
        %vm3957 = vmand %vm3941, %vm3949
        %v3958 = vsel %vm3950, 1.0, %v3922
        %v3959 = vsel %vm3951, 1.0, %v3923
        %v3960 = vsel %vm3952, 1.0, %v3924
        %v3961 = vsel %vm3953, 1.0, %v3925
        %v3962 = vsel %vm3954, 1.0, %v3926
        %v3963 = vsel %vm3955, 1.0, %v3927
        %v3964 = vsel %vm3956, 1.0, %v3928
        %v3965 = vsel %vm3957, 1.0, %v3929
        %3966 = vset.pattern.permute.xlu0 79
        %3967 = vperm.xlu0 %3966, %v1112
        %v3968 = vpop.permute.xlu0 %3967
        %vm3970 = vcmp.ge.f32.partialorder %v3968, %v1098
        %vm3971 = vcmp.ge.f32.partialorder %v3968, %v1099
        %vm3972 = vcmp.ge.f32.partialorder %v3968, %v1100
        %vm3973 = vcmp.ge.f32.partialorder %v3968, %v1101
        %vm3974 = vcmp.ge.f32.partialorder %v3968, %v1102
        %vm3975 = vcmp.ge.f32.partialorder %v3968, %v1103
        %vm3976 = vcmp.ge.f32.partialorder %v3968, %v1104
        %vm3977 = vcmp.ge.f32.partialorder %v3968, %v1105
        %vm3978 = vcmp.lt.f32.partialorder %v3968, %v1090
        %vm3979 = vcmp.lt.f32.partialorder %v3968, %v1091
        %vm3980 = vcmp.lt.f32.partialorder %v3968, %v1092
        %vm3981 = vcmp.lt.f32.partialorder %v3968, %v1093
        %vm3982 = vcmp.lt.f32.partialorder %v3968, %v1094
        %vm3983 = vcmp.lt.f32.partialorder %v3968, %v1095
        %vm3984 = vcmp.lt.f32.partialorder %v3968, %v1096
        %vm3985 = vcmp.lt.f32.partialorder %v3968, %v1097
        %vm3986 = vmand %vm3970, %vm3978
        %vm3987 = vmand %vm3971, %vm3979
        %vm3988 = vmand %vm3972, %vm3980
        %vm3989 = vmand %vm3973, %vm3981
        %vm3990 = vmand %vm3974, %vm3982
        %vm3991 = vmand %vm3975, %vm3983
        %vm3992 = vmand %vm3976, %vm3984
        %vm3993 = vmand %vm3977, %vm3985
        %v3994 = vsel %vm3986, 1.0, %v3958
        %v3995 = vsel %vm3987, 1.0, %v3959
        %v3996 = vsel %vm3988, 1.0, %v3960
        %v3997 = vsel %vm3989, 1.0, %v3961
        %v3998 = vsel %vm3990, 1.0, %v3962
        %v3999 = vsel %vm3991, 1.0, %v3963
        %v4000 = vsel %vm3992, 1.0, %v3964
        %v4001 = vsel %vm3993, 1.0, %v3965
        %4002 = vset.pattern.permute.xlu0 80
        %4003 = vperm.xlu0 %4002, %v1112
        %v4004 = vpop.permute.xlu0 %4003
        %vm4006 = vcmp.ge.f32.partialorder %v4004, %v1098
        %vm4007 = vcmp.ge.f32.partialorder %v4004, %v1099
        %vm4008 = vcmp.ge.f32.partialorder %v4004, %v1100
        %vm4009 = vcmp.ge.f32.partialorder %v4004, %v1101
        %vm4010 = vcmp.ge.f32.partialorder %v4004, %v1102
        %vm4011 = vcmp.ge.f32.partialorder %v4004, %v1103
        %vm4012 = vcmp.ge.f32.partialorder %v4004, %v1104
        %vm4013 = vcmp.ge.f32.partialorder %v4004, %v1105
        %vm4014 = vcmp.lt.f32.partialorder %v4004, %v1090
        %vm4015 = vcmp.lt.f32.partialorder %v4004, %v1091
        %vm4016 = vcmp.lt.f32.partialorder %v4004, %v1092
        %vm4017 = vcmp.lt.f32.partialorder %v4004, %v1093
        %vm4018 = vcmp.lt.f32.partialorder %v4004, %v1094
        %vm4019 = vcmp.lt.f32.partialorder %v4004, %v1095
        %vm4020 = vcmp.lt.f32.partialorder %v4004, %v1096
        %vm4021 = vcmp.lt.f32.partialorder %v4004, %v1097
        %vm4022 = vmand %vm4006, %vm4014
        %vm4023 = vmand %vm4007, %vm4015
        %vm4024 = vmand %vm4008, %vm4016
        %vm4025 = vmand %vm4009, %vm4017
        %vm4026 = vmand %vm4010, %vm4018
        %vm4027 = vmand %vm4011, %vm4019
        %vm4028 = vmand %vm4012, %vm4020
        %vm4029 = vmand %vm4013, %vm4021
        %v4030 = vsel %vm4022, 1.0, %v3994
        %v4031 = vsel %vm4023, 1.0, %v3995
        %v4032 = vsel %vm4024, 1.0, %v3996
        %v4033 = vsel %vm4025, 1.0, %v3997
        %v4034 = vsel %vm4026, 1.0, %v3998
        %v4035 = vsel %vm4027, 1.0, %v3999
        %v4036 = vsel %vm4028, 1.0, %v4000
        %v4037 = vsel %vm4029, 1.0, %v4001
        %4038 = vset.pattern.permute.xlu0 81
        %4039 = vperm.xlu0 %4038, %v1112
        %v4040 = vpop.permute.xlu0 %4039
        %vm4042 = vcmp.ge.f32.partialorder %v4040, %v1098
        %vm4043 = vcmp.ge.f32.partialorder %v4040, %v1099
        %vm4044 = vcmp.ge.f32.partialorder %v4040, %v1100
        %vm4045 = vcmp.ge.f32.partialorder %v4040, %v1101
        %vm4046 = vcmp.ge.f32.partialorder %v4040, %v1102
        %vm4047 = vcmp.ge.f32.partialorder %v4040, %v1103
        %vm4048 = vcmp.ge.f32.partialorder %v4040, %v1104
        %vm4049 = vcmp.ge.f32.partialorder %v4040, %v1105
        %vm4050 = vcmp.lt.f32.partialorder %v4040, %v1090
        %vm4051 = vcmp.lt.f32.partialorder %v4040, %v1091
        %vm4052 = vcmp.lt.f32.partialorder %v4040, %v1092
        %vm4053 = vcmp.lt.f32.partialorder %v4040, %v1093
        %vm4054 = vcmp.lt.f32.partialorder %v4040, %v1094
        %vm4055 = vcmp.lt.f32.partialorder %v4040, %v1095
        %vm4056 = vcmp.lt.f32.partialorder %v4040, %v1096
        %vm4057 = vcmp.lt.f32.partialorder %v4040, %v1097
        %vm4058 = vmand %vm4042, %vm4050
        %vm4059 = vmand %vm4043, %vm4051
        %vm4060 = vmand %vm4044, %vm4052
        %vm4061 = vmand %vm4045, %vm4053
        %vm4062 = vmand %vm4046, %vm4054
        %vm4063 = vmand %vm4047, %vm4055
        %vm4064 = vmand %vm4048, %vm4056
        %vm4065 = vmand %vm4049, %vm4057
        %v4066 = vsel %vm4058, 1.0, %v4030
        %v4067 = vsel %vm4059, 1.0, %v4031
        %v4068 = vsel %vm4060, 1.0, %v4032
        %v4069 = vsel %vm4061, 1.0, %v4033
        %v4070 = vsel %vm4062, 1.0, %v4034
        %v4071 = vsel %vm4063, 1.0, %v4035
        %v4072 = vsel %vm4064, 1.0, %v4036
        %v4073 = vsel %vm4065, 1.0, %v4037
        %4074 = vset.pattern.permute.xlu0 82
        %4075 = vperm.xlu0 %4074, %v1112
        %v4076 = vpop.permute.xlu0 %4075
        %vm4078 = vcmp.ge.f32.partialorder %v4076, %v1098
        %vm4079 = vcmp.ge.f32.partialorder %v4076, %v1099
        %vm4080 = vcmp.ge.f32.partialorder %v4076, %v1100
        %vm4081 = vcmp.ge.f32.partialorder %v4076, %v1101
        %vm4082 = vcmp.ge.f32.partialorder %v4076, %v1102
        %vm4083 = vcmp.ge.f32.partialorder %v4076, %v1103
        %vm4084 = vcmp.ge.f32.partialorder %v4076, %v1104
        %vm4085 = vcmp.ge.f32.partialorder %v4076, %v1105
        %vm4086 = vcmp.lt.f32.partialorder %v4076, %v1090
        %vm4087 = vcmp.lt.f32.partialorder %v4076, %v1091
        %vm4088 = vcmp.lt.f32.partialorder %v4076, %v1092
        %vm4089 = vcmp.lt.f32.partialorder %v4076, %v1093
        %vm4090 = vcmp.lt.f32.partialorder %v4076, %v1094
        %vm4091 = vcmp.lt.f32.partialorder %v4076, %v1095
        %vm4092 = vcmp.lt.f32.partialorder %v4076, %v1096
        %vm4093 = vcmp.lt.f32.partialorder %v4076, %v1097
        %vm4094 = vmand %vm4078, %vm4086
        %vm4095 = vmand %vm4079, %vm4087
        %vm4096 = vmand %vm4080, %vm4088
        %vm4097 = vmand %vm4081, %vm4089
        %vm4098 = vmand %vm4082, %vm4090
        %vm4099 = vmand %vm4083, %vm4091
        %vm4100 = vmand %vm4084, %vm4092
        %vm4101 = vmand %vm4085, %vm4093
        %v4102 = vsel %vm4094, 1.0, %v4066
        %v4103 = vsel %vm4095, 1.0, %v4067
        %v4104 = vsel %vm4096, 1.0, %v4068
        %v4105 = vsel %vm4097, 1.0, %v4069
        %v4106 = vsel %vm4098, 1.0, %v4070
        %v4107 = vsel %vm4099, 1.0, %v4071
        %v4108 = vsel %vm4100, 1.0, %v4072
        %v4109 = vsel %vm4101, 1.0, %v4073
        %4110 = vset.pattern.permute.xlu0 83
        %4111 = vperm.xlu0 %4110, %v1112
        %v4112 = vpop.permute.xlu0 %4111
        %vm4114 = vcmp.ge.f32.partialorder %v4112, %v1098
        %vm4115 = vcmp.ge.f32.partialorder %v4112, %v1099
        %vm4116 = vcmp.ge.f32.partialorder %v4112, %v1100
        %vm4117 = vcmp.ge.f32.partialorder %v4112, %v1101
        %vm4118 = vcmp.ge.f32.partialorder %v4112, %v1102
        %vm4119 = vcmp.ge.f32.partialorder %v4112, %v1103
        %vm4120 = vcmp.ge.f32.partialorder %v4112, %v1104
        %vm4121 = vcmp.ge.f32.partialorder %v4112, %v1105
        %vm4122 = vcmp.lt.f32.partialorder %v4112, %v1090
        %vm4123 = vcmp.lt.f32.partialorder %v4112, %v1091
        %vm4124 = vcmp.lt.f32.partialorder %v4112, %v1092
        %vm4125 = vcmp.lt.f32.partialorder %v4112, %v1093
        %vm4126 = vcmp.lt.f32.partialorder %v4112, %v1094
        %vm4127 = vcmp.lt.f32.partialorder %v4112, %v1095
        %vm4128 = vcmp.lt.f32.partialorder %v4112, %v1096
        %vm4129 = vcmp.lt.f32.partialorder %v4112, %v1097
        %vm4130 = vmand %vm4114, %vm4122
        %vm4131 = vmand %vm4115, %vm4123
        %vm4132 = vmand %vm4116, %vm4124
        %vm4133 = vmand %vm4117, %vm4125
        %vm4134 = vmand %vm4118, %vm4126
        %vm4135 = vmand %vm4119, %vm4127
        %vm4136 = vmand %vm4120, %vm4128
        %vm4137 = vmand %vm4121, %vm4129
        %v4138 = vsel %vm4130, 1.0, %v4102
        %v4139 = vsel %vm4131, 1.0, %v4103
        %v4140 = vsel %vm4132, 1.0, %v4104
        %v4141 = vsel %vm4133, 1.0, %v4105
        %v4142 = vsel %vm4134, 1.0, %v4106
        %v4143 = vsel %vm4135, 1.0, %v4107
        %v4144 = vsel %vm4136, 1.0, %v4108
        %v4145 = vsel %vm4137, 1.0, %v4109
        %4146 = vset.pattern.permute.xlu0 84
        %4147 = vperm.xlu0 %4146, %v1112
        %v4148 = vpop.permute.xlu0 %4147
        %vm4150 = vcmp.ge.f32.partialorder %v4148, %v1098
        %vm4151 = vcmp.ge.f32.partialorder %v4148, %v1099
        %vm4152 = vcmp.ge.f32.partialorder %v4148, %v1100
        %vm4153 = vcmp.ge.f32.partialorder %v4148, %v1101
        %vm4154 = vcmp.ge.f32.partialorder %v4148, %v1102
        %vm4155 = vcmp.ge.f32.partialorder %v4148, %v1103
        %vm4156 = vcmp.ge.f32.partialorder %v4148, %v1104
        %vm4157 = vcmp.ge.f32.partialorder %v4148, %v1105
        %vm4158 = vcmp.lt.f32.partialorder %v4148, %v1090
        %vm4159 = vcmp.lt.f32.partialorder %v4148, %v1091
        %vm4160 = vcmp.lt.f32.partialorder %v4148, %v1092
        %vm4161 = vcmp.lt.f32.partialorder %v4148, %v1093
        %vm4162 = vcmp.lt.f32.partialorder %v4148, %v1094
        %vm4163 = vcmp.lt.f32.partialorder %v4148, %v1095
        %vm4164 = vcmp.lt.f32.partialorder %v4148, %v1096
        %vm4165 = vcmp.lt.f32.partialorder %v4148, %v1097
        %vm4166 = vmand %vm4150, %vm4158
        %vm4167 = vmand %vm4151, %vm4159
        %vm4168 = vmand %vm4152, %vm4160
        %vm4169 = vmand %vm4153, %vm4161
        %vm4170 = vmand %vm4154, %vm4162
        %vm4171 = vmand %vm4155, %vm4163
        %vm4172 = vmand %vm4156, %vm4164
        %vm4173 = vmand %vm4157, %vm4165
        %v4174 = vsel %vm4166, 1.0, %v4138
        %v4175 = vsel %vm4167, 1.0, %v4139
        %v4176 = vsel %vm4168, 1.0, %v4140
        %v4177 = vsel %vm4169, 1.0, %v4141
        %v4178 = vsel %vm4170, 1.0, %v4142
        %v4179 = vsel %vm4171, 1.0, %v4143
        %v4180 = vsel %vm4172, 1.0, %v4144
        %v4181 = vsel %vm4173, 1.0, %v4145
        %4182 = vset.pattern.permute.xlu0 85
        %4183 = vperm.xlu0 %4182, %v1112
        %v4184 = vpop.permute.xlu0 %4183
        %vm4186 = vcmp.ge.f32.partialorder %v4184, %v1098
        %vm4187 = vcmp.ge.f32.partialorder %v4184, %v1099
        %vm4188 = vcmp.ge.f32.partialorder %v4184, %v1100
        %vm4189 = vcmp.ge.f32.partialorder %v4184, %v1101
        %vm4190 = vcmp.ge.f32.partialorder %v4184, %v1102
        %vm4191 = vcmp.ge.f32.partialorder %v4184, %v1103
        %vm4192 = vcmp.ge.f32.partialorder %v4184, %v1104
        %vm4193 = vcmp.ge.f32.partialorder %v4184, %v1105
        %vm4194 = vcmp.lt.f32.partialorder %v4184, %v1090
        %vm4195 = vcmp.lt.f32.partialorder %v4184, %v1091
        %vm4196 = vcmp.lt.f32.partialorder %v4184, %v1092
        %vm4197 = vcmp.lt.f32.partialorder %v4184, %v1093
        %vm4198 = vcmp.lt.f32.partialorder %v4184, %v1094
        %vm4199 = vcmp.lt.f32.partialorder %v4184, %v1095
        %vm4200 = vcmp.lt.f32.partialorder %v4184, %v1096
        %vm4201 = vcmp.lt.f32.partialorder %v4184, %v1097
        %vm4202 = vmand %vm4186, %vm4194
        %vm4203 = vmand %vm4187, %vm4195
        %vm4204 = vmand %vm4188, %vm4196
        %vm4205 = vmand %vm4189, %vm4197
        %vm4206 = vmand %vm4190, %vm4198
        %vm4207 = vmand %vm4191, %vm4199
        %vm4208 = vmand %vm4192, %vm4200
        %vm4209 = vmand %vm4193, %vm4201
        %v4210 = vsel %vm4202, 1.0, %v4174
        %v4211 = vsel %vm4203, 1.0, %v4175
        %v4212 = vsel %vm4204, 1.0, %v4176
        %v4213 = vsel %vm4205, 1.0, %v4177
        %v4214 = vsel %vm4206, 1.0, %v4178
        %v4215 = vsel %vm4207, 1.0, %v4179
        %v4216 = vsel %vm4208, 1.0, %v4180
        %v4217 = vsel %vm4209, 1.0, %v4181
        %4218 = vset.pattern.permute.xlu0 86
        %4219 = vperm.xlu0 %4218, %v1112
        %v4220 = vpop.permute.xlu0 %4219
        %vm4222 = vcmp.ge.f32.partialorder %v4220, %v1098
        %vm4223 = vcmp.ge.f32.partialorder %v4220, %v1099
        %vm4224 = vcmp.ge.f32.partialorder %v4220, %v1100
        %vm4225 = vcmp.ge.f32.partialorder %v4220, %v1101
        %vm4226 = vcmp.ge.f32.partialorder %v4220, %v1102
        %vm4227 = vcmp.ge.f32.partialorder %v4220, %v1103
        %vm4228 = vcmp.ge.f32.partialorder %v4220, %v1104
        %vm4229 = vcmp.ge.f32.partialorder %v4220, %v1105
        %vm4230 = vcmp.lt.f32.partialorder %v4220, %v1090
        %vm4231 = vcmp.lt.f32.partialorder %v4220, %v1091
        %vm4232 = vcmp.lt.f32.partialorder %v4220, %v1092
        %vm4233 = vcmp.lt.f32.partialorder %v4220, %v1093
        %vm4234 = vcmp.lt.f32.partialorder %v4220, %v1094
        %vm4235 = vcmp.lt.f32.partialorder %v4220, %v1095
        %vm4236 = vcmp.lt.f32.partialorder %v4220, %v1096
        %vm4237 = vcmp.lt.f32.partialorder %v4220, %v1097
        %vm4238 = vmand %vm4222, %vm4230
        %vm4239 = vmand %vm4223, %vm4231
        %vm4240 = vmand %vm4224, %vm4232
        %vm4241 = vmand %vm4225, %vm4233
        %vm4242 = vmand %vm4226, %vm4234
        %vm4243 = vmand %vm4227, %vm4235
        %vm4244 = vmand %vm4228, %vm4236
        %vm4245 = vmand %vm4229, %vm4237
        %v4246 = vsel %vm4238, 1.0, %v4210
        %v4247 = vsel %vm4239, 1.0, %v4211
        %v4248 = vsel %vm4240, 1.0, %v4212
        %v4249 = vsel %vm4241, 1.0, %v4213
        %v4250 = vsel %vm4242, 1.0, %v4214
        %v4251 = vsel %vm4243, 1.0, %v4215
        %v4252 = vsel %vm4244, 1.0, %v4216
        %v4253 = vsel %vm4245, 1.0, %v4217
        %4254 = vset.pattern.permute.xlu0 87
        %4255 = vperm.xlu0 %4254, %v1112
        %v4256 = vpop.permute.xlu0 %4255
        %vm4258 = vcmp.ge.f32.partialorder %v4256, %v1098
        %vm4259 = vcmp.ge.f32.partialorder %v4256, %v1099
        %vm4260 = vcmp.ge.f32.partialorder %v4256, %v1100
        %vm4261 = vcmp.ge.f32.partialorder %v4256, %v1101
        %vm4262 = vcmp.ge.f32.partialorder %v4256, %v1102
        %vm4263 = vcmp.ge.f32.partialorder %v4256, %v1103
        %vm4264 = vcmp.ge.f32.partialorder %v4256, %v1104
        %vm4265 = vcmp.ge.f32.partialorder %v4256, %v1105
        %vm4266 = vcmp.lt.f32.partialorder %v4256, %v1090
        %vm4267 = vcmp.lt.f32.partialorder %v4256, %v1091
        %vm4268 = vcmp.lt.f32.partialorder %v4256, %v1092
        %vm4269 = vcmp.lt.f32.partialorder %v4256, %v1093
        %vm4270 = vcmp.lt.f32.partialorder %v4256, %v1094
        %vm4271 = vcmp.lt.f32.partialorder %v4256, %v1095
        %vm4272 = vcmp.lt.f32.partialorder %v4256, %v1096
        %vm4273 = vcmp.lt.f32.partialorder %v4256, %v1097
        %vm4274 = vmand %vm4258, %vm4266
        %vm4275 = vmand %vm4259, %vm4267
        %vm4276 = vmand %vm4260, %vm4268
        %vm4277 = vmand %vm4261, %vm4269
        %vm4278 = vmand %vm4262, %vm4270
        %vm4279 = vmand %vm4263, %vm4271
        %vm4280 = vmand %vm4264, %vm4272
        %vm4281 = vmand %vm4265, %vm4273
        %v4282 = vsel %vm4274, 1.0, %v4246
        %v4283 = vsel %vm4275, 1.0, %v4247
        %v4284 = vsel %vm4276, 1.0, %v4248
        %v4285 = vsel %vm4277, 1.0, %v4249
        %v4286 = vsel %vm4278, 1.0, %v4250
        %v4287 = vsel %vm4279, 1.0, %v4251
        %v4288 = vsel %vm4280, 1.0, %v4252
        %v4289 = vsel %vm4281, 1.0, %v4253
        %4290 = vset.pattern.permute.xlu0 88
        %4291 = vperm.xlu0 %4290, %v1112
        %v4292 = vpop.permute.xlu0 %4291
        %vm4294 = vcmp.ge.f32.partialorder %v4292, %v1098
        %vm4295 = vcmp.ge.f32.partialorder %v4292, %v1099
        %vm4296 = vcmp.ge.f32.partialorder %v4292, %v1100
        %vm4297 = vcmp.ge.f32.partialorder %v4292, %v1101
        %vm4298 = vcmp.ge.f32.partialorder %v4292, %v1102
        %vm4299 = vcmp.ge.f32.partialorder %v4292, %v1103
        %vm4300 = vcmp.ge.f32.partialorder %v4292, %v1104
        %vm4301 = vcmp.ge.f32.partialorder %v4292, %v1105
        %vm4302 = vcmp.lt.f32.partialorder %v4292, %v1090
        %vm4303 = vcmp.lt.f32.partialorder %v4292, %v1091
        %vm4304 = vcmp.lt.f32.partialorder %v4292, %v1092
        %vm4305 = vcmp.lt.f32.partialorder %v4292, %v1093
        %vm4306 = vcmp.lt.f32.partialorder %v4292, %v1094
        %vm4307 = vcmp.lt.f32.partialorder %v4292, %v1095
        %vm4308 = vcmp.lt.f32.partialorder %v4292, %v1096
        %vm4309 = vcmp.lt.f32.partialorder %v4292, %v1097
        %vm4310 = vmand %vm4294, %vm4302
        %vm4311 = vmand %vm4295, %vm4303
        %vm4312 = vmand %vm4296, %vm4304
        %vm4313 = vmand %vm4297, %vm4305
        %vm4314 = vmand %vm4298, %vm4306
        %vm4315 = vmand %vm4299, %vm4307
        %vm4316 = vmand %vm4300, %vm4308
        %vm4317 = vmand %vm4301, %vm4309
        %v4318 = vsel %vm4310, 1.0, %v4282
        %v4319 = vsel %vm4311, 1.0, %v4283
        %v4320 = vsel %vm4312, 1.0, %v4284
        %v4321 = vsel %vm4313, 1.0, %v4285
        %v4322 = vsel %vm4314, 1.0, %v4286
        %v4323 = vsel %vm4315, 1.0, %v4287
        %v4324 = vsel %vm4316, 1.0, %v4288
        %v4325 = vsel %vm4317, 1.0, %v4289
        %4326 = vset.pattern.permute.xlu0 89
        %4327 = vperm.xlu0 %4326, %v1112
        %v4328 = vpop.permute.xlu0 %4327
        %vm4330 = vcmp.ge.f32.partialorder %v4328, %v1098
        %vm4331 = vcmp.ge.f32.partialorder %v4328, %v1099
        %vm4332 = vcmp.ge.f32.partialorder %v4328, %v1100
        %vm4333 = vcmp.ge.f32.partialorder %v4328, %v1101
        %vm4334 = vcmp.ge.f32.partialorder %v4328, %v1102
        %vm4335 = vcmp.ge.f32.partialorder %v4328, %v1103
        %vm4336 = vcmp.ge.f32.partialorder %v4328, %v1104
        %vm4337 = vcmp.ge.f32.partialorder %v4328, %v1105
        %vm4338 = vcmp.lt.f32.partialorder %v4328, %v1090
        %vm4339 = vcmp.lt.f32.partialorder %v4328, %v1091
        %vm4340 = vcmp.lt.f32.partialorder %v4328, %v1092
        %vm4341 = vcmp.lt.f32.partialorder %v4328, %v1093
        %vm4342 = vcmp.lt.f32.partialorder %v4328, %v1094
        %vm4343 = vcmp.lt.f32.partialorder %v4328, %v1095
        %vm4344 = vcmp.lt.f32.partialorder %v4328, %v1096
        %vm4345 = vcmp.lt.f32.partialorder %v4328, %v1097
        %vm4346 = vmand %vm4330, %vm4338
        %vm4347 = vmand %vm4331, %vm4339
        %vm4348 = vmand %vm4332, %vm4340
        %vm4349 = vmand %vm4333, %vm4341
        %vm4350 = vmand %vm4334, %vm4342
        %vm4351 = vmand %vm4335, %vm4343
        %vm4352 = vmand %vm4336, %vm4344
        %vm4353 = vmand %vm4337, %vm4345
        %v4354 = vsel %vm4346, 1.0, %v4318
        %v4355 = vsel %vm4347, 1.0, %v4319
        %v4356 = vsel %vm4348, 1.0, %v4320
        %v4357 = vsel %vm4349, 1.0, %v4321
        %v4358 = vsel %vm4350, 1.0, %v4322
        %v4359 = vsel %vm4351, 1.0, %v4323
        %v4360 = vsel %vm4352, 1.0, %v4324
        %v4361 = vsel %vm4353, 1.0, %v4325
        %4362 = vset.pattern.permute.xlu0 90
        %4363 = vperm.xlu0 %4362, %v1112
        %v4364 = vpop.permute.xlu0 %4363
        %vm4366 = vcmp.ge.f32.partialorder %v4364, %v1098
        %vm4367 = vcmp.ge.f32.partialorder %v4364, %v1099
        %vm4368 = vcmp.ge.f32.partialorder %v4364, %v1100
        %vm4369 = vcmp.ge.f32.partialorder %v4364, %v1101
        %vm4370 = vcmp.ge.f32.partialorder %v4364, %v1102
        %vm4371 = vcmp.ge.f32.partialorder %v4364, %v1103
        %vm4372 = vcmp.ge.f32.partialorder %v4364, %v1104
        %vm4373 = vcmp.ge.f32.partialorder %v4364, %v1105
        %vm4374 = vcmp.lt.f32.partialorder %v4364, %v1090
        %vm4375 = vcmp.lt.f32.partialorder %v4364, %v1091
        %vm4376 = vcmp.lt.f32.partialorder %v4364, %v1092
        %vm4377 = vcmp.lt.f32.partialorder %v4364, %v1093
        %vm4378 = vcmp.lt.f32.partialorder %v4364, %v1094
        %vm4379 = vcmp.lt.f32.partialorder %v4364, %v1095
        %vm4380 = vcmp.lt.f32.partialorder %v4364, %v1096
        %vm4381 = vcmp.lt.f32.partialorder %v4364, %v1097
        %vm4382 = vmand %vm4366, %vm4374
        %vm4383 = vmand %vm4367, %vm4375
        %vm4384 = vmand %vm4368, %vm4376
        %vm4385 = vmand %vm4369, %vm4377
        %vm4386 = vmand %vm4370, %vm4378
        %vm4387 = vmand %vm4371, %vm4379
        %vm4388 = vmand %vm4372, %vm4380
        %vm4389 = vmand %vm4373, %vm4381
        %v4390 = vsel %vm4382, 1.0, %v4354
        %v4391 = vsel %vm4383, 1.0, %v4355
        %v4392 = vsel %vm4384, 1.0, %v4356
        %v4393 = vsel %vm4385, 1.0, %v4357
        %v4394 = vsel %vm4386, 1.0, %v4358
        %v4395 = vsel %vm4387, 1.0, %v4359
        %v4396 = vsel %vm4388, 1.0, %v4360
        %v4397 = vsel %vm4389, 1.0, %v4361
        %4398 = vset.pattern.permute.xlu0 91
        %4399 = vperm.xlu0 %4398, %v1112
        %v4400 = vpop.permute.xlu0 %4399
        %vm4402 = vcmp.ge.f32.partialorder %v4400, %v1098
        %vm4403 = vcmp.ge.f32.partialorder %v4400, %v1099
        %vm4404 = vcmp.ge.f32.partialorder %v4400, %v1100
        %vm4405 = vcmp.ge.f32.partialorder %v4400, %v1101
        %vm4406 = vcmp.ge.f32.partialorder %v4400, %v1102
        %vm4407 = vcmp.ge.f32.partialorder %v4400, %v1103
        %vm4408 = vcmp.ge.f32.partialorder %v4400, %v1104
        %vm4409 = vcmp.ge.f32.partialorder %v4400, %v1105
        %vm4410 = vcmp.lt.f32.partialorder %v4400, %v1090
        %vm4411 = vcmp.lt.f32.partialorder %v4400, %v1091
        %vm4412 = vcmp.lt.f32.partialorder %v4400, %v1092
        %vm4413 = vcmp.lt.f32.partialorder %v4400, %v1093
        %vm4414 = vcmp.lt.f32.partialorder %v4400, %v1094
        %vm4415 = vcmp.lt.f32.partialorder %v4400, %v1095
        %vm4416 = vcmp.lt.f32.partialorder %v4400, %v1096
        %vm4417 = vcmp.lt.f32.partialorder %v4400, %v1097
        %vm4418 = vmand %vm4402, %vm4410
        %vm4419 = vmand %vm4403, %vm4411
        %vm4420 = vmand %vm4404, %vm4412
        %vm4421 = vmand %vm4405, %vm4413
        %vm4422 = vmand %vm4406, %vm4414
        %vm4423 = vmand %vm4407, %vm4415
        %vm4424 = vmand %vm4408, %vm4416
        %vm4425 = vmand %vm4409, %vm4417
        %v4426 = vsel %vm4418, 1.0, %v4390
        %v4427 = vsel %vm4419, 1.0, %v4391
        %v4428 = vsel %vm4420, 1.0, %v4392
        %v4429 = vsel %vm4421, 1.0, %v4393
        %v4430 = vsel %vm4422, 1.0, %v4394
        %v4431 = vsel %vm4423, 1.0, %v4395
        %v4432 = vsel %vm4424, 1.0, %v4396
        %v4433 = vsel %vm4425, 1.0, %v4397
        %4434 = vset.pattern.permute.xlu0 92
        %4435 = vperm.xlu0 %4434, %v1112
        %v4436 = vpop.permute.xlu0 %4435
        %vm4438 = vcmp.ge.f32.partialorder %v4436, %v1098
        %vm4439 = vcmp.ge.f32.partialorder %v4436, %v1099
        %vm4440 = vcmp.ge.f32.partialorder %v4436, %v1100
        %vm4441 = vcmp.ge.f32.partialorder %v4436, %v1101
        %vm4442 = vcmp.ge.f32.partialorder %v4436, %v1102
        %vm4443 = vcmp.ge.f32.partialorder %v4436, %v1103
        %vm4444 = vcmp.ge.f32.partialorder %v4436, %v1104
        %vm4445 = vcmp.ge.f32.partialorder %v4436, %v1105
        %vm4446 = vcmp.lt.f32.partialorder %v4436, %v1090
        %vm4447 = vcmp.lt.f32.partialorder %v4436, %v1091
        %vm4448 = vcmp.lt.f32.partialorder %v4436, %v1092
        %vm4449 = vcmp.lt.f32.partialorder %v4436, %v1093
        %vm4450 = vcmp.lt.f32.partialorder %v4436, %v1094
        %vm4451 = vcmp.lt.f32.partialorder %v4436, %v1095
        %vm4452 = vcmp.lt.f32.partialorder %v4436, %v1096
        %vm4453 = vcmp.lt.f32.partialorder %v4436, %v1097
        %vm4454 = vmand %vm4438, %vm4446
        %vm4455 = vmand %vm4439, %vm4447
        %vm4456 = vmand %vm4440, %vm4448
        %vm4457 = vmand %vm4441, %vm4449
        %vm4458 = vmand %vm4442, %vm4450
        %vm4459 = vmand %vm4443, %vm4451
        %vm4460 = vmand %vm4444, %vm4452
        %vm4461 = vmand %vm4445, %vm4453
        %v4462 = vsel %vm4454, 1.0, %v4426
        %v4463 = vsel %vm4455, 1.0, %v4427
        %v4464 = vsel %vm4456, 1.0, %v4428
        %v4465 = vsel %vm4457, 1.0, %v4429
        %v4466 = vsel %vm4458, 1.0, %v4430
        %v4467 = vsel %vm4459, 1.0, %v4431
        %v4468 = vsel %vm4460, 1.0, %v4432
        %v4469 = vsel %vm4461, 1.0, %v4433
        %4470 = vset.pattern.permute.xlu0 93
        %4471 = vperm.xlu0 %4470, %v1112
        %v4472 = vpop.permute.xlu0 %4471
        %vm4474 = vcmp.ge.f32.partialorder %v4472, %v1098
        %vm4475 = vcmp.ge.f32.partialorder %v4472, %v1099
        %vm4476 = vcmp.ge.f32.partialorder %v4472, %v1100
        %vm4477 = vcmp.ge.f32.partialorder %v4472, %v1101
        %vm4478 = vcmp.ge.f32.partialorder %v4472, %v1102
        %vm4479 = vcmp.ge.f32.partialorder %v4472, %v1103
        %vm4480 = vcmp.ge.f32.partialorder %v4472, %v1104
        %vm4481 = vcmp.ge.f32.partialorder %v4472, %v1105
        %vm4482 = vcmp.lt.f32.partialorder %v4472, %v1090
        %vm4483 = vcmp.lt.f32.partialorder %v4472, %v1091
        %vm4484 = vcmp.lt.f32.partialorder %v4472, %v1092
        %vm4485 = vcmp.lt.f32.partialorder %v4472, %v1093
        %vm4486 = vcmp.lt.f32.partialorder %v4472, %v1094
        %vm4487 = vcmp.lt.f32.partialorder %v4472, %v1095
        %vm4488 = vcmp.lt.f32.partialorder %v4472, %v1096
        %vm4489 = vcmp.lt.f32.partialorder %v4472, %v1097
        %vm4490 = vmand %vm4474, %vm4482
        %vm4491 = vmand %vm4475, %vm4483
        %vm4492 = vmand %vm4476, %vm4484
        %vm4493 = vmand %vm4477, %vm4485
        %vm4494 = vmand %vm4478, %vm4486
        %vm4495 = vmand %vm4479, %vm4487
        %vm4496 = vmand %vm4480, %vm4488
        %vm4497 = vmand %vm4481, %vm4489
        %v4498 = vsel %vm4490, 1.0, %v4462
        %v4499 = vsel %vm4491, 1.0, %v4463
        %v4500 = vsel %vm4492, 1.0, %v4464
        %v4501 = vsel %vm4493, 1.0, %v4465
        %v4502 = vsel %vm4494, 1.0, %v4466
        %v4503 = vsel %vm4495, 1.0, %v4467
        %v4504 = vsel %vm4496, 1.0, %v4468
        %v4505 = vsel %vm4497, 1.0, %v4469
        %4506 = vset.pattern.permute.xlu0 94
        %4507 = vperm.xlu0 %4506, %v1112
        %v4508 = vpop.permute.xlu0 %4507
        %vm4510 = vcmp.ge.f32.partialorder %v4508, %v1098
        %vm4511 = vcmp.ge.f32.partialorder %v4508, %v1099
        %vm4512 = vcmp.ge.f32.partialorder %v4508, %v1100
        %vm4513 = vcmp.ge.f32.partialorder %v4508, %v1101
        %vm4514 = vcmp.ge.f32.partialorder %v4508, %v1102
        %vm4515 = vcmp.ge.f32.partialorder %v4508, %v1103
        %vm4516 = vcmp.ge.f32.partialorder %v4508, %v1104
        %vm4517 = vcmp.ge.f32.partialorder %v4508, %v1105
        %vm4518 = vcmp.lt.f32.partialorder %v4508, %v1090
        %vm4519 = vcmp.lt.f32.partialorder %v4508, %v1091
        %vm4520 = vcmp.lt.f32.partialorder %v4508, %v1092
        %vm4521 = vcmp.lt.f32.partialorder %v4508, %v1093
        %vm4522 = vcmp.lt.f32.partialorder %v4508, %v1094
        %vm4523 = vcmp.lt.f32.partialorder %v4508, %v1095
        %vm4524 = vcmp.lt.f32.partialorder %v4508, %v1096
        %vm4525 = vcmp.lt.f32.partialorder %v4508, %v1097
        %vm4526 = vmand %vm4510, %vm4518
        %vm4527 = vmand %vm4511, %vm4519
        %vm4528 = vmand %vm4512, %vm4520
        %vm4529 = vmand %vm4513, %vm4521
        %vm4530 = vmand %vm4514, %vm4522
        %vm4531 = vmand %vm4515, %vm4523
        %vm4532 = vmand %vm4516, %vm4524
        %vm4533 = vmand %vm4517, %vm4525
        %v4534 = vsel %vm4526, 1.0, %v4498
        %v4535 = vsel %vm4527, 1.0, %v4499
        %v4536 = vsel %vm4528, 1.0, %v4500
        %v4537 = vsel %vm4529, 1.0, %v4501
        %v4538 = vsel %vm4530, 1.0, %v4502
        %v4539 = vsel %vm4531, 1.0, %v4503
        %v4540 = vsel %vm4532, 1.0, %v4504
        %v4541 = vsel %vm4533, 1.0, %v4505
        %4542 = vset.pattern.permute.xlu0 95
        %4543 = vperm.xlu0 %4542, %v1112
        %v4544 = vpop.permute.xlu0 %4543
        %vm4546 = vcmp.ge.f32.partialorder %v4544, %v1098
        %vm4547 = vcmp.ge.f32.partialorder %v4544, %v1099
        %vm4548 = vcmp.ge.f32.partialorder %v4544, %v1100
        %vm4549 = vcmp.ge.f32.partialorder %v4544, %v1101
        %vm4550 = vcmp.ge.f32.partialorder %v4544, %v1102
        %vm4551 = vcmp.ge.f32.partialorder %v4544, %v1103
        %vm4552 = vcmp.ge.f32.partialorder %v4544, %v1104
        %vm4553 = vcmp.ge.f32.partialorder %v4544, %v1105
        %vm4554 = vcmp.lt.f32.partialorder %v4544, %v1090
        %vm4555 = vcmp.lt.f32.partialorder %v4544, %v1091
        %vm4556 = vcmp.lt.f32.partialorder %v4544, %v1092
        %vm4557 = vcmp.lt.f32.partialorder %v4544, %v1093
        %vm4558 = vcmp.lt.f32.partialorder %v4544, %v1094
        %vm4559 = vcmp.lt.f32.partialorder %v4544, %v1095
        %vm4560 = vcmp.lt.f32.partialorder %v4544, %v1096
        %vm4561 = vcmp.lt.f32.partialorder %v4544, %v1097
        %vm4562 = vmand %vm4546, %vm4554
        %vm4563 = vmand %vm4547, %vm4555
        %vm4564 = vmand %vm4548, %vm4556
        %vm4565 = vmand %vm4549, %vm4557
        %vm4566 = vmand %vm4550, %vm4558
        %vm4567 = vmand %vm4551, %vm4559
        %vm4568 = vmand %vm4552, %vm4560
        %vm4569 = vmand %vm4553, %vm4561
        %v4570 = vsel %vm4562, 1.0, %v4534
        %v4571 = vsel %vm4563, 1.0, %v4535
        %v4572 = vsel %vm4564, 1.0, %v4536
        %v4573 = vsel %vm4565, 1.0, %v4537
        %v4574 = vsel %vm4566, 1.0, %v4538
        %v4575 = vsel %vm4567, 1.0, %v4539
        %v4576 = vsel %vm4568, 1.0, %v4540
        %v4577 = vsel %vm4569, 1.0, %v4541
        %4578 = vset.pattern.permute.xlu0 96
        %4579 = vperm.xlu0 %4578, %v1112
        %v4580 = vpop.permute.xlu0 %4579
        %vm4582 = vcmp.ge.f32.partialorder %v4580, %v1098
        %vm4583 = vcmp.ge.f32.partialorder %v4580, %v1099
        %vm4584 = vcmp.ge.f32.partialorder %v4580, %v1100
        %vm4585 = vcmp.ge.f32.partialorder %v4580, %v1101
        %vm4586 = vcmp.ge.f32.partialorder %v4580, %v1102
        %vm4587 = vcmp.ge.f32.partialorder %v4580, %v1103
        %vm4588 = vcmp.ge.f32.partialorder %v4580, %v1104
        %vm4589 = vcmp.ge.f32.partialorder %v4580, %v1105
        %vm4590 = vcmp.lt.f32.partialorder %v4580, %v1090
        %vm4591 = vcmp.lt.f32.partialorder %v4580, %v1091
        %vm4592 = vcmp.lt.f32.partialorder %v4580, %v1092
        %vm4593 = vcmp.lt.f32.partialorder %v4580, %v1093
        %vm4594 = vcmp.lt.f32.partialorder %v4580, %v1094
        %vm4595 = vcmp.lt.f32.partialorder %v4580, %v1095
        %vm4596 = vcmp.lt.f32.partialorder %v4580, %v1096
        %vm4597 = vcmp.lt.f32.partialorder %v4580, %v1097
        %vm4598 = vmand %vm4582, %vm4590
        %vm4599 = vmand %vm4583, %vm4591
        %vm4600 = vmand %vm4584, %vm4592
        %vm4601 = vmand %vm4585, %vm4593
        %vm4602 = vmand %vm4586, %vm4594
        %vm4603 = vmand %vm4587, %vm4595
        %vm4604 = vmand %vm4588, %vm4596
        %vm4605 = vmand %vm4589, %vm4597
        %v4606 = vsel %vm4598, 1.0, %v4570
        %v4607 = vsel %vm4599, 1.0, %v4571
        %v4608 = vsel %vm4600, 1.0, %v4572
        %v4609 = vsel %vm4601, 1.0, %v4573
        %v4610 = vsel %vm4602, 1.0, %v4574
        %v4611 = vsel %vm4603, 1.0, %v4575
        %v4612 = vsel %vm4604, 1.0, %v4576
        %v4613 = vsel %vm4605, 1.0, %v4577
        %4614 = vset.pattern.permute.xlu0 97
        %4615 = vperm.xlu0 %4614, %v1112
        %v4616 = vpop.permute.xlu0 %4615
        %vm4618 = vcmp.ge.f32.partialorder %v4616, %v1098
        %vm4619 = vcmp.ge.f32.partialorder %v4616, %v1099
        %vm4620 = vcmp.ge.f32.partialorder %v4616, %v1100
        %vm4621 = vcmp.ge.f32.partialorder %v4616, %v1101
        %vm4622 = vcmp.ge.f32.partialorder %v4616, %v1102
        %vm4623 = vcmp.ge.f32.partialorder %v4616, %v1103
        %vm4624 = vcmp.ge.f32.partialorder %v4616, %v1104
        %vm4625 = vcmp.ge.f32.partialorder %v4616, %v1105
        %vm4626 = vcmp.lt.f32.partialorder %v4616, %v1090
        %vm4627 = vcmp.lt.f32.partialorder %v4616, %v1091
        %vm4628 = vcmp.lt.f32.partialorder %v4616, %v1092
        %vm4629 = vcmp.lt.f32.partialorder %v4616, %v1093
        %vm4630 = vcmp.lt.f32.partialorder %v4616, %v1094
        %vm4631 = vcmp.lt.f32.partialorder %v4616, %v1095
        %vm4632 = vcmp.lt.f32.partialorder %v4616, %v1096
        %vm4633 = vcmp.lt.f32.partialorder %v4616, %v1097
        %vm4634 = vmand %vm4618, %vm4626
        %vm4635 = vmand %vm4619, %vm4627
        %vm4636 = vmand %vm4620, %vm4628
        %vm4637 = vmand %vm4621, %vm4629
        %vm4638 = vmand %vm4622, %vm4630
        %vm4639 = vmand %vm4623, %vm4631
        %vm4640 = vmand %vm4624, %vm4632
        %vm4641 = vmand %vm4625, %vm4633
        %v4642 = vsel %vm4634, 1.0, %v4606
        %v4643 = vsel %vm4635, 1.0, %v4607
        %v4644 = vsel %vm4636, 1.0, %v4608
        %v4645 = vsel %vm4637, 1.0, %v4609
        %v4646 = vsel %vm4638, 1.0, %v4610
        %v4647 = vsel %vm4639, 1.0, %v4611
        %v4648 = vsel %vm4640, 1.0, %v4612
        %v4649 = vsel %vm4641, 1.0, %v4613
        %4650 = vset.pattern.permute.xlu0 98
        %4651 = vperm.xlu0 %4650, %v1112
        %v4652 = vpop.permute.xlu0 %4651
        %vm4654 = vcmp.ge.f32.partialorder %v4652, %v1098
        %vm4655 = vcmp.ge.f32.partialorder %v4652, %v1099
        %vm4656 = vcmp.ge.f32.partialorder %v4652, %v1100
        %vm4657 = vcmp.ge.f32.partialorder %v4652, %v1101
        %vm4658 = vcmp.ge.f32.partialorder %v4652, %v1102
        %vm4659 = vcmp.ge.f32.partialorder %v4652, %v1103
        %vm4660 = vcmp.ge.f32.partialorder %v4652, %v1104
        %vm4661 = vcmp.ge.f32.partialorder %v4652, %v1105
        %vm4662 = vcmp.lt.f32.partialorder %v4652, %v1090
        %vm4663 = vcmp.lt.f32.partialorder %v4652, %v1091
        %vm4664 = vcmp.lt.f32.partialorder %v4652, %v1092
        %vm4665 = vcmp.lt.f32.partialorder %v4652, %v1093
        %vm4666 = vcmp.lt.f32.partialorder %v4652, %v1094
        %vm4667 = vcmp.lt.f32.partialorder %v4652, %v1095
        %vm4668 = vcmp.lt.f32.partialorder %v4652, %v1096
        %vm4669 = vcmp.lt.f32.partialorder %v4652, %v1097
        %vm4670 = vmand %vm4654, %vm4662
        %vm4671 = vmand %vm4655, %vm4663
        %vm4672 = vmand %vm4656, %vm4664
        %vm4673 = vmand %vm4657, %vm4665
        %vm4674 = vmand %vm4658, %vm4666
        %vm4675 = vmand %vm4659, %vm4667
        %vm4676 = vmand %vm4660, %vm4668
        %vm4677 = vmand %vm4661, %vm4669
        %v4678 = vsel %vm4670, 1.0, %v4642
        %v4679 = vsel %vm4671, 1.0, %v4643
        %v4680 = vsel %vm4672, 1.0, %v4644
        %v4681 = vsel %vm4673, 1.0, %v4645
        %v4682 = vsel %vm4674, 1.0, %v4646
        %v4683 = vsel %vm4675, 1.0, %v4647
        %v4684 = vsel %vm4676, 1.0, %v4648
        %v4685 = vsel %vm4677, 1.0, %v4649
        %4686 = vset.pattern.permute.xlu0 99
        %4687 = vperm.xlu0 %4686, %v1112
        %v4688 = vpop.permute.xlu0 %4687
        %vm4690 = vcmp.ge.f32.partialorder %v4688, %v1098
        %vm4691 = vcmp.ge.f32.partialorder %v4688, %v1099
        %vm4692 = vcmp.ge.f32.partialorder %v4688, %v1100
        %vm4693 = vcmp.ge.f32.partialorder %v4688, %v1101
        %vm4694 = vcmp.ge.f32.partialorder %v4688, %v1102
        %vm4695 = vcmp.ge.f32.partialorder %v4688, %v1103
        %vm4696 = vcmp.ge.f32.partialorder %v4688, %v1104
        %vm4697 = vcmp.ge.f32.partialorder %v4688, %v1105
        %vm4698 = vcmp.lt.f32.partialorder %v4688, %v1090
        %vm4699 = vcmp.lt.f32.partialorder %v4688, %v1091
        %vm4700 = vcmp.lt.f32.partialorder %v4688, %v1092
        %vm4701 = vcmp.lt.f32.partialorder %v4688, %v1093
        %vm4702 = vcmp.lt.f32.partialorder %v4688, %v1094
        %vm4703 = vcmp.lt.f32.partialorder %v4688, %v1095
        %vm4704 = vcmp.lt.f32.partialorder %v4688, %v1096
        %vm4705 = vcmp.lt.f32.partialorder %v4688, %v1097
        %vm4706 = vmand %vm4690, %vm4698
        %vm4707 = vmand %vm4691, %vm4699
        %vm4708 = vmand %vm4692, %vm4700
        %vm4709 = vmand %vm4693, %vm4701
        %vm4710 = vmand %vm4694, %vm4702
        %vm4711 = vmand %vm4695, %vm4703
        %vm4712 = vmand %vm4696, %vm4704
        %vm4713 = vmand %vm4697, %vm4705
        %v4714 = vsel %vm4706, 1.0, %v4678
        %v4715 = vsel %vm4707, 1.0, %v4679
        %v4716 = vsel %vm4708, 1.0, %v4680
        %v4717 = vsel %vm4709, 1.0, %v4681
        %v4718 = vsel %vm4710, 1.0, %v4682
        %v4719 = vsel %vm4711, 1.0, %v4683
        %v4720 = vsel %vm4712, 1.0, %v4684
        %v4721 = vsel %vm4713, 1.0, %v4685
        %4722 = vset.pattern.permute.xlu0 100
        %4723 = vperm.xlu0 %4722, %v1112
        %v4724 = vpop.permute.xlu0 %4723
        %vm4726 = vcmp.ge.f32.partialorder %v4724, %v1098
        %vm4727 = vcmp.ge.f32.partialorder %v4724, %v1099
        %vm4728 = vcmp.ge.f32.partialorder %v4724, %v1100
        %vm4729 = vcmp.ge.f32.partialorder %v4724, %v1101
        %vm4730 = vcmp.ge.f32.partialorder %v4724, %v1102
        %vm4731 = vcmp.ge.f32.partialorder %v4724, %v1103
        %vm4732 = vcmp.ge.f32.partialorder %v4724, %v1104
        %vm4733 = vcmp.ge.f32.partialorder %v4724, %v1105
        %vm4734 = vcmp.lt.f32.partialorder %v4724, %v1090
        %vm4735 = vcmp.lt.f32.partialorder %v4724, %v1091
        %vm4736 = vcmp.lt.f32.partialorder %v4724, %v1092
        %vm4737 = vcmp.lt.f32.partialorder %v4724, %v1093
        %vm4738 = vcmp.lt.f32.partialorder %v4724, %v1094
        %vm4739 = vcmp.lt.f32.partialorder %v4724, %v1095
        %vm4740 = vcmp.lt.f32.partialorder %v4724, %v1096
        %vm4741 = vcmp.lt.f32.partialorder %v4724, %v1097
        %vm4742 = vmand %vm4726, %vm4734
        %vm4743 = vmand %vm4727, %vm4735
        %vm4744 = vmand %vm4728, %vm4736
        %vm4745 = vmand %vm4729, %vm4737
        %vm4746 = vmand %vm4730, %vm4738
        %vm4747 = vmand %vm4731, %vm4739
        %vm4748 = vmand %vm4732, %vm4740
        %vm4749 = vmand %vm4733, %vm4741
        %v4750 = vsel %vm4742, 1.0, %v4714
        %v4751 = vsel %vm4743, 1.0, %v4715
        %v4752 = vsel %vm4744, 1.0, %v4716
        %v4753 = vsel %vm4745, 1.0, %v4717
        %v4754 = vsel %vm4746, 1.0, %v4718
        %v4755 = vsel %vm4747, 1.0, %v4719
        %v4756 = vsel %vm4748, 1.0, %v4720
        %v4757 = vsel %vm4749, 1.0, %v4721
        %4758 = vset.pattern.permute.xlu0 101
        %4759 = vperm.xlu0 %4758, %v1112
        %v4760 = vpop.permute.xlu0 %4759
        %vm4762 = vcmp.ge.f32.partialorder %v4760, %v1098
        %vm4763 = vcmp.ge.f32.partialorder %v4760, %v1099
        %vm4764 = vcmp.ge.f32.partialorder %v4760, %v1100
        %vm4765 = vcmp.ge.f32.partialorder %v4760, %v1101
        %vm4766 = vcmp.ge.f32.partialorder %v4760, %v1102
        %vm4767 = vcmp.ge.f32.partialorder %v4760, %v1103
        %vm4768 = vcmp.ge.f32.partialorder %v4760, %v1104
        %vm4769 = vcmp.ge.f32.partialorder %v4760, %v1105
        %vm4770 = vcmp.lt.f32.partialorder %v4760, %v1090
        %vm4771 = vcmp.lt.f32.partialorder %v4760, %v1091
        %vm4772 = vcmp.lt.f32.partialorder %v4760, %v1092
        %vm4773 = vcmp.lt.f32.partialorder %v4760, %v1093
        %vm4774 = vcmp.lt.f32.partialorder %v4760, %v1094
        %vm4775 = vcmp.lt.f32.partialorder %v4760, %v1095
        %vm4776 = vcmp.lt.f32.partialorder %v4760, %v1096
        %vm4777 = vcmp.lt.f32.partialorder %v4760, %v1097
        %vm4778 = vmand %vm4762, %vm4770
        %vm4779 = vmand %vm4763, %vm4771
        %vm4780 = vmand %vm4764, %vm4772
        %vm4781 = vmand %vm4765, %vm4773
        %vm4782 = vmand %vm4766, %vm4774
        %vm4783 = vmand %vm4767, %vm4775
        %vm4784 = vmand %vm4768, %vm4776
        %vm4785 = vmand %vm4769, %vm4777
        %v4786 = vsel %vm4778, 1.0, %v4750
        %v4787 = vsel %vm4779, 1.0, %v4751
        %v4788 = vsel %vm4780, 1.0, %v4752
        %v4789 = vsel %vm4781, 1.0, %v4753
        %v4790 = vsel %vm4782, 1.0, %v4754
        %v4791 = vsel %vm4783, 1.0, %v4755
        %v4792 = vsel %vm4784, 1.0, %v4756
        %v4793 = vsel %vm4785, 1.0, %v4757
        %4794 = vset.pattern.permute.xlu0 102
        %4795 = vperm.xlu0 %4794, %v1112
        %v4796 = vpop.permute.xlu0 %4795
        %vm4798 = vcmp.ge.f32.partialorder %v4796, %v1098
        %vm4799 = vcmp.ge.f32.partialorder %v4796, %v1099
        %vm4800 = vcmp.ge.f32.partialorder %v4796, %v1100
        %vm4801 = vcmp.ge.f32.partialorder %v4796, %v1101
        %vm4802 = vcmp.ge.f32.partialorder %v4796, %v1102
        %vm4803 = vcmp.ge.f32.partialorder %v4796, %v1103
        %vm4804 = vcmp.ge.f32.partialorder %v4796, %v1104
        %vm4805 = vcmp.ge.f32.partialorder %v4796, %v1105
        %vm4806 = vcmp.lt.f32.partialorder %v4796, %v1090
        %vm4807 = vcmp.lt.f32.partialorder %v4796, %v1091
        %vm4808 = vcmp.lt.f32.partialorder %v4796, %v1092
        %vm4809 = vcmp.lt.f32.partialorder %v4796, %v1093
        %vm4810 = vcmp.lt.f32.partialorder %v4796, %v1094
        %vm4811 = vcmp.lt.f32.partialorder %v4796, %v1095
        %vm4812 = vcmp.lt.f32.partialorder %v4796, %v1096
        %vm4813 = vcmp.lt.f32.partialorder %v4796, %v1097
        %vm4814 = vmand %vm4798, %vm4806
        %vm4815 = vmand %vm4799, %vm4807
        %vm4816 = vmand %vm4800, %vm4808
        %vm4817 = vmand %vm4801, %vm4809
        %vm4818 = vmand %vm4802, %vm4810
        %vm4819 = vmand %vm4803, %vm4811
        %vm4820 = vmand %vm4804, %vm4812
        %vm4821 = vmand %vm4805, %vm4813
        %v4822 = vsel %vm4814, 1.0, %v4786
        %v4823 = vsel %vm4815, 1.0, %v4787
        %v4824 = vsel %vm4816, 1.0, %v4788
        %v4825 = vsel %vm4817, 1.0, %v4789
        %v4826 = vsel %vm4818, 1.0, %v4790
        %v4827 = vsel %vm4819, 1.0, %v4791
        %v4828 = vsel %vm4820, 1.0, %v4792
        %v4829 = vsel %vm4821, 1.0, %v4793
        %4830 = vset.pattern.permute.xlu0 103
        %4831 = vperm.xlu0 %4830, %v1112
        %v4832 = vpop.permute.xlu0 %4831
        %vm4834 = vcmp.ge.f32.partialorder %v4832, %v1098
        %vm4835 = vcmp.ge.f32.partialorder %v4832, %v1099
        %vm4836 = vcmp.ge.f32.partialorder %v4832, %v1100
        %vm4837 = vcmp.ge.f32.partialorder %v4832, %v1101
        %vm4838 = vcmp.ge.f32.partialorder %v4832, %v1102
        %vm4839 = vcmp.ge.f32.partialorder %v4832, %v1103
        %vm4840 = vcmp.ge.f32.partialorder %v4832, %v1104
        %vm4841 = vcmp.ge.f32.partialorder %v4832, %v1105
        %vm4842 = vcmp.lt.f32.partialorder %v4832, %v1090
        %vm4843 = vcmp.lt.f32.partialorder %v4832, %v1091
        %vm4844 = vcmp.lt.f32.partialorder %v4832, %v1092
        %vm4845 = vcmp.lt.f32.partialorder %v4832, %v1093
        %vm4846 = vcmp.lt.f32.partialorder %v4832, %v1094
        %vm4847 = vcmp.lt.f32.partialorder %v4832, %v1095
        %vm4848 = vcmp.lt.f32.partialorder %v4832, %v1096
        %vm4849 = vcmp.lt.f32.partialorder %v4832, %v1097
        %vm4850 = vmand %vm4834, %vm4842
        %vm4851 = vmand %vm4835, %vm4843
        %vm4852 = vmand %vm4836, %vm4844
        %vm4853 = vmand %vm4837, %vm4845
        %vm4854 = vmand %vm4838, %vm4846
        %vm4855 = vmand %vm4839, %vm4847
        %vm4856 = vmand %vm4840, %vm4848
        %vm4857 = vmand %vm4841, %vm4849
        %v4858 = vsel %vm4850, 1.0, %v4822
        %v4859 = vsel %vm4851, 1.0, %v4823
        %v4860 = vsel %vm4852, 1.0, %v4824
        %v4861 = vsel %vm4853, 1.0, %v4825
        %v4862 = vsel %vm4854, 1.0, %v4826
        %v4863 = vsel %vm4855, 1.0, %v4827
        %v4864 = vsel %vm4856, 1.0, %v4828
        %v4865 = vsel %vm4857, 1.0, %v4829
        %4866 = vset.pattern.permute.xlu0 104
        %4867 = vperm.xlu0 %4866, %v1112
        %v4868 = vpop.permute.xlu0 %4867
        %vm4870 = vcmp.ge.f32.partialorder %v4868, %v1098
        %vm4871 = vcmp.ge.f32.partialorder %v4868, %v1099
        %vm4872 = vcmp.ge.f32.partialorder %v4868, %v1100
        %vm4873 = vcmp.ge.f32.partialorder %v4868, %v1101
        %vm4874 = vcmp.ge.f32.partialorder %v4868, %v1102
        %vm4875 = vcmp.ge.f32.partialorder %v4868, %v1103
        %vm4876 = vcmp.ge.f32.partialorder %v4868, %v1104
        %vm4877 = vcmp.ge.f32.partialorder %v4868, %v1105
        %vm4878 = vcmp.lt.f32.partialorder %v4868, %v1090
        %vm4879 = vcmp.lt.f32.partialorder %v4868, %v1091
        %vm4880 = vcmp.lt.f32.partialorder %v4868, %v1092
        %vm4881 = vcmp.lt.f32.partialorder %v4868, %v1093
        %vm4882 = vcmp.lt.f32.partialorder %v4868, %v1094
        %vm4883 = vcmp.lt.f32.partialorder %v4868, %v1095
        %vm4884 = vcmp.lt.f32.partialorder %v4868, %v1096
        %vm4885 = vcmp.lt.f32.partialorder %v4868, %v1097
        %vm4886 = vmand %vm4870, %vm4878
        %vm4887 = vmand %vm4871, %vm4879
        %vm4888 = vmand %vm4872, %vm4880
        %vm4889 = vmand %vm4873, %vm4881
        %vm4890 = vmand %vm4874, %vm4882
        %vm4891 = vmand %vm4875, %vm4883
        %vm4892 = vmand %vm4876, %vm4884
        %vm4893 = vmand %vm4877, %vm4885
        %v4894 = vsel %vm4886, 1.0, %v4858
        %v4895 = vsel %vm4887, 1.0, %v4859
        %v4896 = vsel %vm4888, 1.0, %v4860
        %v4897 = vsel %vm4889, 1.0, %v4861
        %v4898 = vsel %vm4890, 1.0, %v4862
        %v4899 = vsel %vm4891, 1.0, %v4863
        %v4900 = vsel %vm4892, 1.0, %v4864
        %v4901 = vsel %vm4893, 1.0, %v4865
        %4902 = vset.pattern.permute.xlu0 105
        %4903 = vperm.xlu0 %4902, %v1112
        %v4904 = vpop.permute.xlu0 %4903
        %vm4906 = vcmp.ge.f32.partialorder %v4904, %v1098
        %vm4907 = vcmp.ge.f32.partialorder %v4904, %v1099
        %vm4908 = vcmp.ge.f32.partialorder %v4904, %v1100
        %vm4909 = vcmp.ge.f32.partialorder %v4904, %v1101
        %vm4910 = vcmp.ge.f32.partialorder %v4904, %v1102
        %vm4911 = vcmp.ge.f32.partialorder %v4904, %v1103
        %vm4912 = vcmp.ge.f32.partialorder %v4904, %v1104
        %vm4913 = vcmp.ge.f32.partialorder %v4904, %v1105
        %vm4914 = vcmp.lt.f32.partialorder %v4904, %v1090
        %vm4915 = vcmp.lt.f32.partialorder %v4904, %v1091
        %vm4916 = vcmp.lt.f32.partialorder %v4904, %v1092
        %vm4917 = vcmp.lt.f32.partialorder %v4904, %v1093
        %vm4918 = vcmp.lt.f32.partialorder %v4904, %v1094
        %vm4919 = vcmp.lt.f32.partialorder %v4904, %v1095
        %vm4920 = vcmp.lt.f32.partialorder %v4904, %v1096
        %vm4921 = vcmp.lt.f32.partialorder %v4904, %v1097
        %vm4922 = vmand %vm4906, %vm4914
        %vm4923 = vmand %vm4907, %vm4915
        %vm4924 = vmand %vm4908, %vm4916
        %vm4925 = vmand %vm4909, %vm4917
        %vm4926 = vmand %vm4910, %vm4918
        %vm4927 = vmand %vm4911, %vm4919
        %vm4928 = vmand %vm4912, %vm4920
        %vm4929 = vmand %vm4913, %vm4921
        %v4930 = vsel %vm4922, 1.0, %v4894
        %v4931 = vsel %vm4923, 1.0, %v4895
        %v4932 = vsel %vm4924, 1.0, %v4896
        %v4933 = vsel %vm4925, 1.0, %v4897
        %v4934 = vsel %vm4926, 1.0, %v4898
        %v4935 = vsel %vm4927, 1.0, %v4899
        %v4936 = vsel %vm4928, 1.0, %v4900
        %v4937 = vsel %vm4929, 1.0, %v4901
        %4938 = vset.pattern.permute.xlu0 106
        %4939 = vperm.xlu0 %4938, %v1112
        %v4940 = vpop.permute.xlu0 %4939
        %vm4942 = vcmp.ge.f32.partialorder %v4940, %v1098
        %vm4943 = vcmp.ge.f32.partialorder %v4940, %v1099
        %vm4944 = vcmp.ge.f32.partialorder %v4940, %v1100
        %vm4945 = vcmp.ge.f32.partialorder %v4940, %v1101
        %vm4946 = vcmp.ge.f32.partialorder %v4940, %v1102
        %vm4947 = vcmp.ge.f32.partialorder %v4940, %v1103
        %vm4948 = vcmp.ge.f32.partialorder %v4940, %v1104
        %vm4949 = vcmp.ge.f32.partialorder %v4940, %v1105
        %vm4950 = vcmp.lt.f32.partialorder %v4940, %v1090
        %vm4951 = vcmp.lt.f32.partialorder %v4940, %v1091
        %vm4952 = vcmp.lt.f32.partialorder %v4940, %v1092
        %vm4953 = vcmp.lt.f32.partialorder %v4940, %v1093
        %vm4954 = vcmp.lt.f32.partialorder %v4940, %v1094
        %vm4955 = vcmp.lt.f32.partialorder %v4940, %v1095
        %vm4956 = vcmp.lt.f32.partialorder %v4940, %v1096
        %vm4957 = vcmp.lt.f32.partialorder %v4940, %v1097
        %vm4958 = vmand %vm4942, %vm4950
        %vm4959 = vmand %vm4943, %vm4951
        %vm4960 = vmand %vm4944, %vm4952
        %vm4961 = vmand %vm4945, %vm4953
        %vm4962 = vmand %vm4946, %vm4954
        %vm4963 = vmand %vm4947, %vm4955
        %vm4964 = vmand %vm4948, %vm4956
        %vm4965 = vmand %vm4949, %vm4957
        %v4966 = vsel %vm4958, 1.0, %v4930
        %v4967 = vsel %vm4959, 1.0, %v4931
        %v4968 = vsel %vm4960, 1.0, %v4932
        %v4969 = vsel %vm4961, 1.0, %v4933
        %v4970 = vsel %vm4962, 1.0, %v4934
        %v4971 = vsel %vm4963, 1.0, %v4935
        %v4972 = vsel %vm4964, 1.0, %v4936
        %v4973 = vsel %vm4965, 1.0, %v4937
        %4974 = vset.pattern.permute.xlu0 107
        %4975 = vperm.xlu0 %4974, %v1112
        %v4976 = vpop.permute.xlu0 %4975
        %vm4978 = vcmp.ge.f32.partialorder %v4976, %v1098
        %vm4979 = vcmp.ge.f32.partialorder %v4976, %v1099
        %vm4980 = vcmp.ge.f32.partialorder %v4976, %v1100
        %vm4981 = vcmp.ge.f32.partialorder %v4976, %v1101
        %vm4982 = vcmp.ge.f32.partialorder %v4976, %v1102
        %vm4983 = vcmp.ge.f32.partialorder %v4976, %v1103
        %vm4984 = vcmp.ge.f32.partialorder %v4976, %v1104
        %vm4985 = vcmp.ge.f32.partialorder %v4976, %v1105
        %vm4986 = vcmp.lt.f32.partialorder %v4976, %v1090
        %vm4987 = vcmp.lt.f32.partialorder %v4976, %v1091
        %vm4988 = vcmp.lt.f32.partialorder %v4976, %v1092
        %vm4989 = vcmp.lt.f32.partialorder %v4976, %v1093
        %vm4990 = vcmp.lt.f32.partialorder %v4976, %v1094
        %vm4991 = vcmp.lt.f32.partialorder %v4976, %v1095
        %vm4992 = vcmp.lt.f32.partialorder %v4976, %v1096
        %vm4993 = vcmp.lt.f32.partialorder %v4976, %v1097
        %vm4994 = vmand %vm4978, %vm4986
        %vm4995 = vmand %vm4979, %vm4987
        %vm4996 = vmand %vm4980, %vm4988
        %vm4997 = vmand %vm4981, %vm4989
        %vm4998 = vmand %vm4982, %vm4990
        %vm4999 = vmand %vm4983, %vm4991
        %vm5000 = vmand %vm4984, %vm4992
        %vm5001 = vmand %vm4985, %vm4993
        %v5002 = vsel %vm4994, 1.0, %v4966
        %v5003 = vsel %vm4995, 1.0, %v4967
        %v5004 = vsel %vm4996, 1.0, %v4968
        %v5005 = vsel %vm4997, 1.0, %v4969
        %v5006 = vsel %vm4998, 1.0, %v4970
        %v5007 = vsel %vm4999, 1.0, %v4971
        %v5008 = vsel %vm5000, 1.0, %v4972
        %v5009 = vsel %vm5001, 1.0, %v4973
        %5010 = vset.pattern.permute.xlu0 108
        %5011 = vperm.xlu0 %5010, %v1112
        %v5012 = vpop.permute.xlu0 %5011
        %vm5014 = vcmp.ge.f32.partialorder %v5012, %v1098
        %vm5015 = vcmp.ge.f32.partialorder %v5012, %v1099
        %vm5016 = vcmp.ge.f32.partialorder %v5012, %v1100
        %vm5017 = vcmp.ge.f32.partialorder %v5012, %v1101
        %vm5018 = vcmp.ge.f32.partialorder %v5012, %v1102
        %vm5019 = vcmp.ge.f32.partialorder %v5012, %v1103
        %vm5020 = vcmp.ge.f32.partialorder %v5012, %v1104
        %vm5021 = vcmp.ge.f32.partialorder %v5012, %v1105
        %vm5022 = vcmp.lt.f32.partialorder %v5012, %v1090
        %vm5023 = vcmp.lt.f32.partialorder %v5012, %v1091
        %vm5024 = vcmp.lt.f32.partialorder %v5012, %v1092
        %vm5025 = vcmp.lt.f32.partialorder %v5012, %v1093
        %vm5026 = vcmp.lt.f32.partialorder %v5012, %v1094
        %vm5027 = vcmp.lt.f32.partialorder %v5012, %v1095
        %vm5028 = vcmp.lt.f32.partialorder %v5012, %v1096
        %vm5029 = vcmp.lt.f32.partialorder %v5012, %v1097
        %vm5030 = vmand %vm5014, %vm5022
        %vm5031 = vmand %vm5015, %vm5023
        %vm5032 = vmand %vm5016, %vm5024
        %vm5033 = vmand %vm5017, %vm5025
        %vm5034 = vmand %vm5018, %vm5026
        %vm5035 = vmand %vm5019, %vm5027
        %vm5036 = vmand %vm5020, %vm5028
        %vm5037 = vmand %vm5021, %vm5029
        %v5038 = vsel %vm5030, 1.0, %v5002
        %v5039 = vsel %vm5031, 1.0, %v5003
        %v5040 = vsel %vm5032, 1.0, %v5004
        %v5041 = vsel %vm5033, 1.0, %v5005
        %v5042 = vsel %vm5034, 1.0, %v5006
        %v5043 = vsel %vm5035, 1.0, %v5007
        %v5044 = vsel %vm5036, 1.0, %v5008
        %v5045 = vsel %vm5037, 1.0, %v5009
        %5046 = vset.pattern.permute.xlu0 109
        %5047 = vperm.xlu0 %5046, %v1112
        %v5048 = vpop.permute.xlu0 %5047
        %vm5050 = vcmp.ge.f32.partialorder %v5048, %v1098
        %vm5051 = vcmp.ge.f32.partialorder %v5048, %v1099
        %vm5052 = vcmp.ge.f32.partialorder %v5048, %v1100
        %vm5053 = vcmp.ge.f32.partialorder %v5048, %v1101
        %vm5054 = vcmp.ge.f32.partialorder %v5048, %v1102
        %vm5055 = vcmp.ge.f32.partialorder %v5048, %v1103
        %vm5056 = vcmp.ge.f32.partialorder %v5048, %v1104
        %vm5057 = vcmp.ge.f32.partialorder %v5048, %v1105
        %vm5058 = vcmp.lt.f32.partialorder %v5048, %v1090
        %vm5059 = vcmp.lt.f32.partialorder %v5048, %v1091
        %vm5060 = vcmp.lt.f32.partialorder %v5048, %v1092
        %vm5061 = vcmp.lt.f32.partialorder %v5048, %v1093
        %vm5062 = vcmp.lt.f32.partialorder %v5048, %v1094
        %vm5063 = vcmp.lt.f32.partialorder %v5048, %v1095
        %vm5064 = vcmp.lt.f32.partialorder %v5048, %v1096
        %vm5065 = vcmp.lt.f32.partialorder %v5048, %v1097
        %vm5066 = vmand %vm5050, %vm5058
        %vm5067 = vmand %vm5051, %vm5059
        %vm5068 = vmand %vm5052, %vm5060
        %vm5069 = vmand %vm5053, %vm5061
        %vm5070 = vmand %vm5054, %vm5062
        %vm5071 = vmand %vm5055, %vm5063
        %vm5072 = vmand %vm5056, %vm5064
        %vm5073 = vmand %vm5057, %vm5065
        %v5074 = vsel %vm5066, 1.0, %v5038
        %v5075 = vsel %vm5067, 1.0, %v5039
        %v5076 = vsel %vm5068, 1.0, %v5040
        %v5077 = vsel %vm5069, 1.0, %v5041
        %v5078 = vsel %vm5070, 1.0, %v5042
        %v5079 = vsel %vm5071, 1.0, %v5043
        %v5080 = vsel %vm5072, 1.0, %v5044
        %v5081 = vsel %vm5073, 1.0, %v5045
        %5082 = vset.pattern.permute.xlu0 110
        %5083 = vperm.xlu0 %5082, %v1112
        %v5084 = vpop.permute.xlu0 %5083
        %vm5086 = vcmp.ge.f32.partialorder %v5084, %v1098
        %vm5087 = vcmp.ge.f32.partialorder %v5084, %v1099
        %vm5088 = vcmp.ge.f32.partialorder %v5084, %v1100
        %vm5089 = vcmp.ge.f32.partialorder %v5084, %v1101
        %vm5090 = vcmp.ge.f32.partialorder %v5084, %v1102
        %vm5091 = vcmp.ge.f32.partialorder %v5084, %v1103
        %vm5092 = vcmp.ge.f32.partialorder %v5084, %v1104
        %vm5093 = vcmp.ge.f32.partialorder %v5084, %v1105
        %vm5094 = vcmp.lt.f32.partialorder %v5084, %v1090
        %vm5095 = vcmp.lt.f32.partialorder %v5084, %v1091
        %vm5096 = vcmp.lt.f32.partialorder %v5084, %v1092
        %vm5097 = vcmp.lt.f32.partialorder %v5084, %v1093
        %vm5098 = vcmp.lt.f32.partialorder %v5084, %v1094
        %vm5099 = vcmp.lt.f32.partialorder %v5084, %v1095
        %vm5100 = vcmp.lt.f32.partialorder %v5084, %v1096
        %vm5101 = vcmp.lt.f32.partialorder %v5084, %v1097
        %vm5102 = vmand %vm5086, %vm5094
        %vm5103 = vmand %vm5087, %vm5095
        %vm5104 = vmand %vm5088, %vm5096
        %vm5105 = vmand %vm5089, %vm5097
        %vm5106 = vmand %vm5090, %vm5098
        %vm5107 = vmand %vm5091, %vm5099
        %vm5108 = vmand %vm5092, %vm5100
        %vm5109 = vmand %vm5093, %vm5101
        %v5110 = vsel %vm5102, 1.0, %v5074
        %v5111 = vsel %vm5103, 1.0, %v5075
        %v5112 = vsel %vm5104, 1.0, %v5076
        %v5113 = vsel %vm5105, 1.0, %v5077
        %v5114 = vsel %vm5106, 1.0, %v5078
        %v5115 = vsel %vm5107, 1.0, %v5079
        %v5116 = vsel %vm5108, 1.0, %v5080
        %v5117 = vsel %vm5109, 1.0, %v5081
        %5118 = vset.pattern.permute.xlu0 111
        %5119 = vperm.xlu0 %5118, %v1112
        %v5120 = vpop.permute.xlu0 %5119
        %vm5122 = vcmp.ge.f32.partialorder %v5120, %v1098
        %vm5123 = vcmp.ge.f32.partialorder %v5120, %v1099
        %vm5124 = vcmp.ge.f32.partialorder %v5120, %v1100
        %vm5125 = vcmp.ge.f32.partialorder %v5120, %v1101
        %vm5126 = vcmp.ge.f32.partialorder %v5120, %v1102
        %vm5127 = vcmp.ge.f32.partialorder %v5120, %v1103
        %vm5128 = vcmp.ge.f32.partialorder %v5120, %v1104
        %vm5129 = vcmp.ge.f32.partialorder %v5120, %v1105
        %vm5130 = vcmp.lt.f32.partialorder %v5120, %v1090
        %vm5131 = vcmp.lt.f32.partialorder %v5120, %v1091
        %vm5132 = vcmp.lt.f32.partialorder %v5120, %v1092
        %vm5133 = vcmp.lt.f32.partialorder %v5120, %v1093
        %vm5134 = vcmp.lt.f32.partialorder %v5120, %v1094
        %vm5135 = vcmp.lt.f32.partialorder %v5120, %v1095
        %vm5136 = vcmp.lt.f32.partialorder %v5120, %v1096
        %vm5137 = vcmp.lt.f32.partialorder %v5120, %v1097
        %vm5138 = vmand %vm5122, %vm5130
        %vm5139 = vmand %vm5123, %vm5131
        %vm5140 = vmand %vm5124, %vm5132
        %vm5141 = vmand %vm5125, %vm5133
        %vm5142 = vmand %vm5126, %vm5134
        %vm5143 = vmand %vm5127, %vm5135
        %vm5144 = vmand %vm5128, %vm5136
        %vm5145 = vmand %vm5129, %vm5137
        %v5146 = vsel %vm5138, 1.0, %v5110
        %v5147 = vsel %vm5139, 1.0, %v5111
        %v5148 = vsel %vm5140, 1.0, %v5112
        %v5149 = vsel %vm5141, 1.0, %v5113
        %v5150 = vsel %vm5142, 1.0, %v5114
        %v5151 = vsel %vm5143, 1.0, %v5115
        %v5152 = vsel %vm5144, 1.0, %v5116
        %v5153 = vsel %vm5145, 1.0, %v5117
        %5154 = vset.pattern.permute.xlu0 112
        %5155 = vperm.xlu0 %5154, %v1112
        %v5156 = vpop.permute.xlu0 %5155
        %vm5158 = vcmp.ge.f32.partialorder %v5156, %v1098
        %vm5159 = vcmp.ge.f32.partialorder %v5156, %v1099
        %vm5160 = vcmp.ge.f32.partialorder %v5156, %v1100
        %vm5161 = vcmp.ge.f32.partialorder %v5156, %v1101
        %vm5162 = vcmp.ge.f32.partialorder %v5156, %v1102
        %vm5163 = vcmp.ge.f32.partialorder %v5156, %v1103
        %vm5164 = vcmp.ge.f32.partialorder %v5156, %v1104
        %vm5165 = vcmp.ge.f32.partialorder %v5156, %v1105
        %vm5166 = vcmp.lt.f32.partialorder %v5156, %v1090
        %vm5167 = vcmp.lt.f32.partialorder %v5156, %v1091
        %vm5168 = vcmp.lt.f32.partialorder %v5156, %v1092
        %vm5169 = vcmp.lt.f32.partialorder %v5156, %v1093
        %vm5170 = vcmp.lt.f32.partialorder %v5156, %v1094
        %vm5171 = vcmp.lt.f32.partialorder %v5156, %v1095
        %vm5172 = vcmp.lt.f32.partialorder %v5156, %v1096
        %vm5173 = vcmp.lt.f32.partialorder %v5156, %v1097
        %vm5174 = vmand %vm5158, %vm5166
        %vm5175 = vmand %vm5159, %vm5167
        %vm5176 = vmand %vm5160, %vm5168
        %vm5177 = vmand %vm5161, %vm5169
        %vm5178 = vmand %vm5162, %vm5170
        %vm5179 = vmand %vm5163, %vm5171
        %vm5180 = vmand %vm5164, %vm5172
        %vm5181 = vmand %vm5165, %vm5173
        %v5182 = vsel %vm5174, 1.0, %v5146
        %v5183 = vsel %vm5175, 1.0, %v5147
        %v5184 = vsel %vm5176, 1.0, %v5148
        %v5185 = vsel %vm5177, 1.0, %v5149
        %v5186 = vsel %vm5178, 1.0, %v5150
        %v5187 = vsel %vm5179, 1.0, %v5151
        %v5188 = vsel %vm5180, 1.0, %v5152
        %v5189 = vsel %vm5181, 1.0, %v5153
        %5190 = vset.pattern.permute.xlu0 113
        %5191 = vperm.xlu0 %5190, %v1112
        %v5192 = vpop.permute.xlu0 %5191
        %vm5194 = vcmp.ge.f32.partialorder %v5192, %v1098
        %vm5195 = vcmp.ge.f32.partialorder %v5192, %v1099
        %vm5196 = vcmp.ge.f32.partialorder %v5192, %v1100
        %vm5197 = vcmp.ge.f32.partialorder %v5192, %v1101
        %vm5198 = vcmp.ge.f32.partialorder %v5192, %v1102
        %vm5199 = vcmp.ge.f32.partialorder %v5192, %v1103
        %vm5200 = vcmp.ge.f32.partialorder %v5192, %v1104
        %vm5201 = vcmp.ge.f32.partialorder %v5192, %v1105
        %vm5202 = vcmp.lt.f32.partialorder %v5192, %v1090
        %vm5203 = vcmp.lt.f32.partialorder %v5192, %v1091
        %vm5204 = vcmp.lt.f32.partialorder %v5192, %v1092
        %vm5205 = vcmp.lt.f32.partialorder %v5192, %v1093
        %vm5206 = vcmp.lt.f32.partialorder %v5192, %v1094
        %vm5207 = vcmp.lt.f32.partialorder %v5192, %v1095
        %vm5208 = vcmp.lt.f32.partialorder %v5192, %v1096
        %vm5209 = vcmp.lt.f32.partialorder %v5192, %v1097
        %vm5210 = vmand %vm5194, %vm5202
        %vm5211 = vmand %vm5195, %vm5203
        %vm5212 = vmand %vm5196, %vm5204
        %vm5213 = vmand %vm5197, %vm5205
        %vm5214 = vmand %vm5198, %vm5206
        %vm5215 = vmand %vm5199, %vm5207
        %vm5216 = vmand %vm5200, %vm5208
        %vm5217 = vmand %vm5201, %vm5209
        %v5218 = vsel %vm5210, 1.0, %v5182
        %v5219 = vsel %vm5211, 1.0, %v5183
        %v5220 = vsel %vm5212, 1.0, %v5184
        %v5221 = vsel %vm5213, 1.0, %v5185
        %v5222 = vsel %vm5214, 1.0, %v5186
        %v5223 = vsel %vm5215, 1.0, %v5187
        %v5224 = vsel %vm5216, 1.0, %v5188
        %v5225 = vsel %vm5217, 1.0, %v5189
        %5226 = vset.pattern.permute.xlu0 114
        %5227 = vperm.xlu0 %5226, %v1112
        %v5228 = vpop.permute.xlu0 %5227
        %vm5230 = vcmp.ge.f32.partialorder %v5228, %v1098
        %vm5231 = vcmp.ge.f32.partialorder %v5228, %v1099
        %vm5232 = vcmp.ge.f32.partialorder %v5228, %v1100
        %vm5233 = vcmp.ge.f32.partialorder %v5228, %v1101
        %vm5234 = vcmp.ge.f32.partialorder %v5228, %v1102
        %vm5235 = vcmp.ge.f32.partialorder %v5228, %v1103
        %vm5236 = vcmp.ge.f32.partialorder %v5228, %v1104
        %vm5237 = vcmp.ge.f32.partialorder %v5228, %v1105
        %vm5238 = vcmp.lt.f32.partialorder %v5228, %v1090
        %vm5239 = vcmp.lt.f32.partialorder %v5228, %v1091
        %vm5240 = vcmp.lt.f32.partialorder %v5228, %v1092
        %vm5241 = vcmp.lt.f32.partialorder %v5228, %v1093
        %vm5242 = vcmp.lt.f32.partialorder %v5228, %v1094
        %vm5243 = vcmp.lt.f32.partialorder %v5228, %v1095
        %vm5244 = vcmp.lt.f32.partialorder %v5228, %v1096
        %vm5245 = vcmp.lt.f32.partialorder %v5228, %v1097
        %vm5246 = vmand %vm5230, %vm5238
        %vm5247 = vmand %vm5231, %vm5239
        %vm5248 = vmand %vm5232, %vm5240
        %vm5249 = vmand %vm5233, %vm5241
        %vm5250 = vmand %vm5234, %vm5242
        %vm5251 = vmand %vm5235, %vm5243
        %vm5252 = vmand %vm5236, %vm5244
        %vm5253 = vmand %vm5237, %vm5245
        %v5254 = vsel %vm5246, 1.0, %v5218
        %v5255 = vsel %vm5247, 1.0, %v5219
        %v5256 = vsel %vm5248, 1.0, %v5220
        %v5257 = vsel %vm5249, 1.0, %v5221
        %v5258 = vsel %vm5250, 1.0, %v5222
        %v5259 = vsel %vm5251, 1.0, %v5223
        %v5260 = vsel %vm5252, 1.0, %v5224
        %v5261 = vsel %vm5253, 1.0, %v5225
        %5262 = vset.pattern.permute.xlu0 115
        %5263 = vperm.xlu0 %5262, %v1112
        %v5264 = vpop.permute.xlu0 %5263
        %vm5266 = vcmp.ge.f32.partialorder %v5264, %v1098
        %vm5267 = vcmp.ge.f32.partialorder %v5264, %v1099
        %vm5268 = vcmp.ge.f32.partialorder %v5264, %v1100
        %vm5269 = vcmp.ge.f32.partialorder %v5264, %v1101
        %vm5270 = vcmp.ge.f32.partialorder %v5264, %v1102
        %vm5271 = vcmp.ge.f32.partialorder %v5264, %v1103
        %vm5272 = vcmp.ge.f32.partialorder %v5264, %v1104
        %vm5273 = vcmp.ge.f32.partialorder %v5264, %v1105
        %vm5274 = vcmp.lt.f32.partialorder %v5264, %v1090
        %vm5275 = vcmp.lt.f32.partialorder %v5264, %v1091
        %vm5276 = vcmp.lt.f32.partialorder %v5264, %v1092
        %vm5277 = vcmp.lt.f32.partialorder %v5264, %v1093
        %vm5278 = vcmp.lt.f32.partialorder %v5264, %v1094
        %vm5279 = vcmp.lt.f32.partialorder %v5264, %v1095
        %vm5280 = vcmp.lt.f32.partialorder %v5264, %v1096
        %vm5281 = vcmp.lt.f32.partialorder %v5264, %v1097
        %vm5282 = vmand %vm5266, %vm5274
        %vm5283 = vmand %vm5267, %vm5275
        %vm5284 = vmand %vm5268, %vm5276
        %vm5285 = vmand %vm5269, %vm5277
        %vm5286 = vmand %vm5270, %vm5278
        %vm5287 = vmand %vm5271, %vm5279
        %vm5288 = vmand %vm5272, %vm5280
        %vm5289 = vmand %vm5273, %vm5281
        %v5290 = vsel %vm5282, 1.0, %v5254
        %v5291 = vsel %vm5283, 1.0, %v5255
        %v5292 = vsel %vm5284, 1.0, %v5256
        %v5293 = vsel %vm5285, 1.0, %v5257
        %v5294 = vsel %vm5286, 1.0, %v5258
        %v5295 = vsel %vm5287, 1.0, %v5259
        %v5296 = vsel %vm5288, 1.0, %v5260
        %v5297 = vsel %vm5289, 1.0, %v5261
        %5298 = vset.pattern.permute.xlu0 116
        %5299 = vperm.xlu0 %5298, %v1112
        %v5300 = vpop.permute.xlu0 %5299
        %vm5302 = vcmp.ge.f32.partialorder %v5300, %v1098
        %vm5303 = vcmp.ge.f32.partialorder %v5300, %v1099
        %vm5304 = vcmp.ge.f32.partialorder %v5300, %v1100
        %vm5305 = vcmp.ge.f32.partialorder %v5300, %v1101
        %vm5306 = vcmp.ge.f32.partialorder %v5300, %v1102
        %vm5307 = vcmp.ge.f32.partialorder %v5300, %v1103
        %vm5308 = vcmp.ge.f32.partialorder %v5300, %v1104
        %vm5309 = vcmp.ge.f32.partialorder %v5300, %v1105
        %vm5310 = vcmp.lt.f32.partialorder %v5300, %v1090
        %vm5311 = vcmp.lt.f32.partialorder %v5300, %v1091
        %vm5312 = vcmp.lt.f32.partialorder %v5300, %v1092
        %vm5313 = vcmp.lt.f32.partialorder %v5300, %v1093
        %vm5314 = vcmp.lt.f32.partialorder %v5300, %v1094
        %vm5315 = vcmp.lt.f32.partialorder %v5300, %v1095
        %vm5316 = vcmp.lt.f32.partialorder %v5300, %v1096
        %vm5317 = vcmp.lt.f32.partialorder %v5300, %v1097
        %vm5318 = vmand %vm5302, %vm5310
        %vm5319 = vmand %vm5303, %vm5311
        %vm5320 = vmand %vm5304, %vm5312
        %vm5321 = vmand %vm5305, %vm5313
        %vm5322 = vmand %vm5306, %vm5314
        %vm5323 = vmand %vm5307, %vm5315
        %vm5324 = vmand %vm5308, %vm5316
        %vm5325 = vmand %vm5309, %vm5317
        %v5326 = vsel %vm5318, 1.0, %v5290
        %v5327 = vsel %vm5319, 1.0, %v5291
        %v5328 = vsel %vm5320, 1.0, %v5292
        %v5329 = vsel %vm5321, 1.0, %v5293
        %v5330 = vsel %vm5322, 1.0, %v5294
        %v5331 = vsel %vm5323, 1.0, %v5295
        %v5332 = vsel %vm5324, 1.0, %v5296
        %v5333 = vsel %vm5325, 1.0, %v5297
        %5334 = vset.pattern.permute.xlu0 117
        %5335 = vperm.xlu0 %5334, %v1112
        %v5336 = vpop.permute.xlu0 %5335
        %vm5338 = vcmp.ge.f32.partialorder %v5336, %v1098
        %vm5339 = vcmp.ge.f32.partialorder %v5336, %v1099
        %vm5340 = vcmp.ge.f32.partialorder %v5336, %v1100
        %vm5341 = vcmp.ge.f32.partialorder %v5336, %v1101
        %vm5342 = vcmp.ge.f32.partialorder %v5336, %v1102
        %vm5343 = vcmp.ge.f32.partialorder %v5336, %v1103
        %vm5344 = vcmp.ge.f32.partialorder %v5336, %v1104
        %vm5345 = vcmp.ge.f32.partialorder %v5336, %v1105
        %vm5346 = vcmp.lt.f32.partialorder %v5336, %v1090
        %vm5347 = vcmp.lt.f32.partialorder %v5336, %v1091
        %vm5348 = vcmp.lt.f32.partialorder %v5336, %v1092
        %vm5349 = vcmp.lt.f32.partialorder %v5336, %v1093
        %vm5350 = vcmp.lt.f32.partialorder %v5336, %v1094
        %vm5351 = vcmp.lt.f32.partialorder %v5336, %v1095
        %vm5352 = vcmp.lt.f32.partialorder %v5336, %v1096
        %vm5353 = vcmp.lt.f32.partialorder %v5336, %v1097
        %vm5354 = vmand %vm5338, %vm5346
        %vm5355 = vmand %vm5339, %vm5347
        %vm5356 = vmand %vm5340, %vm5348
        %vm5357 = vmand %vm5341, %vm5349
        %vm5358 = vmand %vm5342, %vm5350
        %vm5359 = vmand %vm5343, %vm5351
        %vm5360 = vmand %vm5344, %vm5352
        %vm5361 = vmand %vm5345, %vm5353
        %v5362 = vsel %vm5354, 1.0, %v5326
        %v5363 = vsel %vm5355, 1.0, %v5327
        %v5364 = vsel %vm5356, 1.0, %v5328
        %v5365 = vsel %vm5357, 1.0, %v5329
        %v5366 = vsel %vm5358, 1.0, %v5330
        %v5367 = vsel %vm5359, 1.0, %v5331
        %v5368 = vsel %vm5360, 1.0, %v5332
        %v5369 = vsel %vm5361, 1.0, %v5333
        %5370 = vset.pattern.permute.xlu0 118
        %5371 = vperm.xlu0 %5370, %v1112
        %v5372 = vpop.permute.xlu0 %5371
        %vm5374 = vcmp.ge.f32.partialorder %v5372, %v1098
        %vm5375 = vcmp.ge.f32.partialorder %v5372, %v1099
        %vm5376 = vcmp.ge.f32.partialorder %v5372, %v1100
        %vm5377 = vcmp.ge.f32.partialorder %v5372, %v1101
        %vm5378 = vcmp.ge.f32.partialorder %v5372, %v1102
        %vm5379 = vcmp.ge.f32.partialorder %v5372, %v1103
        %vm5380 = vcmp.ge.f32.partialorder %v5372, %v1104
        %vm5381 = vcmp.ge.f32.partialorder %v5372, %v1105
        %vm5382 = vcmp.lt.f32.partialorder %v5372, %v1090
        %vm5383 = vcmp.lt.f32.partialorder %v5372, %v1091
        %vm5384 = vcmp.lt.f32.partialorder %v5372, %v1092
        %vm5385 = vcmp.lt.f32.partialorder %v5372, %v1093
        %vm5386 = vcmp.lt.f32.partialorder %v5372, %v1094
        %vm5387 = vcmp.lt.f32.partialorder %v5372, %v1095
        %vm5388 = vcmp.lt.f32.partialorder %v5372, %v1096
        %vm5389 = vcmp.lt.f32.partialorder %v5372, %v1097
        %vm5390 = vmand %vm5374, %vm5382
        %vm5391 = vmand %vm5375, %vm5383
        %vm5392 = vmand %vm5376, %vm5384
        %vm5393 = vmand %vm5377, %vm5385
        %vm5394 = vmand %vm5378, %vm5386
        %vm5395 = vmand %vm5379, %vm5387
        %vm5396 = vmand %vm5380, %vm5388
        %vm5397 = vmand %vm5381, %vm5389
        %v5398 = vsel %vm5390, 1.0, %v5362
        %v5399 = vsel %vm5391, 1.0, %v5363
        %v5400 = vsel %vm5392, 1.0, %v5364
        %v5401 = vsel %vm5393, 1.0, %v5365
        %v5402 = vsel %vm5394, 1.0, %v5366
        %v5403 = vsel %vm5395, 1.0, %v5367
        %v5404 = vsel %vm5396, 1.0, %v5368
        %v5405 = vsel %vm5397, 1.0, %v5369
        %5406 = vset.pattern.permute.xlu0 119
        %5407 = vperm.xlu0 %5406, %v1112
        %v5408 = vpop.permute.xlu0 %5407
        %vm5410 = vcmp.ge.f32.partialorder %v5408, %v1098
        %vm5411 = vcmp.ge.f32.partialorder %v5408, %v1099
        %vm5412 = vcmp.ge.f32.partialorder %v5408, %v1100
        %vm5413 = vcmp.ge.f32.partialorder %v5408, %v1101
        %vm5414 = vcmp.ge.f32.partialorder %v5408, %v1102
        %vm5415 = vcmp.ge.f32.partialorder %v5408, %v1103
        %vm5416 = vcmp.ge.f32.partialorder %v5408, %v1104
        %vm5417 = vcmp.ge.f32.partialorder %v5408, %v1105
        %vm5418 = vcmp.lt.f32.partialorder %v5408, %v1090
        %vm5419 = vcmp.lt.f32.partialorder %v5408, %v1091
        %vm5420 = vcmp.lt.f32.partialorder %v5408, %v1092
        %vm5421 = vcmp.lt.f32.partialorder %v5408, %v1093
        %vm5422 = vcmp.lt.f32.partialorder %v5408, %v1094
        %vm5423 = vcmp.lt.f32.partialorder %v5408, %v1095
        %vm5424 = vcmp.lt.f32.partialorder %v5408, %v1096
        %vm5425 = vcmp.lt.f32.partialorder %v5408, %v1097
        %vm5426 = vmand %vm5410, %vm5418
        %vm5427 = vmand %vm5411, %vm5419
        %vm5428 = vmand %vm5412, %vm5420
        %vm5429 = vmand %vm5413, %vm5421
        %vm5430 = vmand %vm5414, %vm5422
        %vm5431 = vmand %vm5415, %vm5423
        %vm5432 = vmand %vm5416, %vm5424
        %vm5433 = vmand %vm5417, %vm5425
        %v5434 = vsel %vm5426, 1.0, %v5398
        %v5435 = vsel %vm5427, 1.0, %v5399
        %v5436 = vsel %vm5428, 1.0, %v5400
        %v5437 = vsel %vm5429, 1.0, %v5401
        %v5438 = vsel %vm5430, 1.0, %v5402
        %v5439 = vsel %vm5431, 1.0, %v5403
        %v5440 = vsel %vm5432, 1.0, %v5404
        %v5441 = vsel %vm5433, 1.0, %v5405
        %5442 = vset.pattern.permute.xlu0 120
        %5443 = vperm.xlu0 %5442, %v1112
        %v5444 = vpop.permute.xlu0 %5443
        %vm5446 = vcmp.ge.f32.partialorder %v5444, %v1098
        %vm5447 = vcmp.ge.f32.partialorder %v5444, %v1099
        %vm5448 = vcmp.ge.f32.partialorder %v5444, %v1100
        %vm5449 = vcmp.ge.f32.partialorder %v5444, %v1101
        %vm5450 = vcmp.ge.f32.partialorder %v5444, %v1102
        %vm5451 = vcmp.ge.f32.partialorder %v5444, %v1103
        %vm5452 = vcmp.ge.f32.partialorder %v5444, %v1104
        %vm5453 = vcmp.ge.f32.partialorder %v5444, %v1105
        %vm5454 = vcmp.lt.f32.partialorder %v5444, %v1090
        %vm5455 = vcmp.lt.f32.partialorder %v5444, %v1091
        %vm5456 = vcmp.lt.f32.partialorder %v5444, %v1092
        %vm5457 = vcmp.lt.f32.partialorder %v5444, %v1093
        %vm5458 = vcmp.lt.f32.partialorder %v5444, %v1094
        %vm5459 = vcmp.lt.f32.partialorder %v5444, %v1095
        %vm5460 = vcmp.lt.f32.partialorder %v5444, %v1096
        %vm5461 = vcmp.lt.f32.partialorder %v5444, %v1097
        %vm5462 = vmand %vm5446, %vm5454
        %vm5463 = vmand %vm5447, %vm5455
        %vm5464 = vmand %vm5448, %vm5456
        %vm5465 = vmand %vm5449, %vm5457
        %vm5466 = vmand %vm5450, %vm5458
        %vm5467 = vmand %vm5451, %vm5459
        %vm5468 = vmand %vm5452, %vm5460
        %vm5469 = vmand %vm5453, %vm5461
        %v5470 = vsel %vm5462, 1.0, %v5434
        %v5471 = vsel %vm5463, 1.0, %v5435
        %v5472 = vsel %vm5464, 1.0, %v5436
        %v5473 = vsel %vm5465, 1.0, %v5437
        %v5474 = vsel %vm5466, 1.0, %v5438
        %v5475 = vsel %vm5467, 1.0, %v5439
        %v5476 = vsel %vm5468, 1.0, %v5440
        %v5477 = vsel %vm5469, 1.0, %v5441
        %5478 = vset.pattern.permute.xlu0 121
        %5479 = vperm.xlu0 %5478, %v1112
        %v5480 = vpop.permute.xlu0 %5479
        %vm5482 = vcmp.ge.f32.partialorder %v5480, %v1098
        %vm5483 = vcmp.ge.f32.partialorder %v5480, %v1099
        %vm5484 = vcmp.ge.f32.partialorder %v5480, %v1100
        %vm5485 = vcmp.ge.f32.partialorder %v5480, %v1101
        %vm5486 = vcmp.ge.f32.partialorder %v5480, %v1102
        %vm5487 = vcmp.ge.f32.partialorder %v5480, %v1103
        %vm5488 = vcmp.ge.f32.partialorder %v5480, %v1104
        %vm5489 = vcmp.ge.f32.partialorder %v5480, %v1105
        %vm5490 = vcmp.lt.f32.partialorder %v5480, %v1090
        %vm5491 = vcmp.lt.f32.partialorder %v5480, %v1091
        %vm5492 = vcmp.lt.f32.partialorder %v5480, %v1092
        %vm5493 = vcmp.lt.f32.partialorder %v5480, %v1093
        %vm5494 = vcmp.lt.f32.partialorder %v5480, %v1094
        %vm5495 = vcmp.lt.f32.partialorder %v5480, %v1095
        %vm5496 = vcmp.lt.f32.partialorder %v5480, %v1096
        %vm5497 = vcmp.lt.f32.partialorder %v5480, %v1097
        %vm5498 = vmand %vm5482, %vm5490
        %vm5499 = vmand %vm5483, %vm5491
        %vm5500 = vmand %vm5484, %vm5492
        %vm5501 = vmand %vm5485, %vm5493
        %vm5502 = vmand %vm5486, %vm5494
        %vm5503 = vmand %vm5487, %vm5495
        %vm5504 = vmand %vm5488, %vm5496
        %vm5505 = vmand %vm5489, %vm5497
        %v5506 = vsel %vm5498, 1.0, %v5470
        %v5507 = vsel %vm5499, 1.0, %v5471
        %v5508 = vsel %vm5500, 1.0, %v5472
        %v5509 = vsel %vm5501, 1.0, %v5473
        %v5510 = vsel %vm5502, 1.0, %v5474
        %v5511 = vsel %vm5503, 1.0, %v5475
        %v5512 = vsel %vm5504, 1.0, %v5476
        %v5513 = vsel %vm5505, 1.0, %v5477
        %5514 = vset.pattern.permute.xlu0 122
        %5515 = vperm.xlu0 %5514, %v1112
        %v5516 = vpop.permute.xlu0 %5515
        %vm5518 = vcmp.ge.f32.partialorder %v5516, %v1098
        %vm5519 = vcmp.ge.f32.partialorder %v5516, %v1099
        %vm5520 = vcmp.ge.f32.partialorder %v5516, %v1100
        %vm5521 = vcmp.ge.f32.partialorder %v5516, %v1101
        %vm5522 = vcmp.ge.f32.partialorder %v5516, %v1102
        %vm5523 = vcmp.ge.f32.partialorder %v5516, %v1103
        %vm5524 = vcmp.ge.f32.partialorder %v5516, %v1104
        %vm5525 = vcmp.ge.f32.partialorder %v5516, %v1105
        %vm5526 = vcmp.lt.f32.partialorder %v5516, %v1090
        %vm5527 = vcmp.lt.f32.partialorder %v5516, %v1091
        %vm5528 = vcmp.lt.f32.partialorder %v5516, %v1092
        %vm5529 = vcmp.lt.f32.partialorder %v5516, %v1093
        %vm5530 = vcmp.lt.f32.partialorder %v5516, %v1094
        %vm5531 = vcmp.lt.f32.partialorder %v5516, %v1095
        %vm5532 = vcmp.lt.f32.partialorder %v5516, %v1096
        %vm5533 = vcmp.lt.f32.partialorder %v5516, %v1097
        %vm5534 = vmand %vm5518, %vm5526
        %vm5535 = vmand %vm5519, %vm5527
        %vm5536 = vmand %vm5520, %vm5528
        %vm5537 = vmand %vm5521, %vm5529
        %vm5538 = vmand %vm5522, %vm5530
        %vm5539 = vmand %vm5523, %vm5531
        %vm5540 = vmand %vm5524, %vm5532
        %vm5541 = vmand %vm5525, %vm5533
        %v5542 = vsel %vm5534, 1.0, %v5506
        %v5543 = vsel %vm5535, 1.0, %v5507
        %v5544 = vsel %vm5536, 1.0, %v5508
        %v5545 = vsel %vm5537, 1.0, %v5509
        %v5546 = vsel %vm5538, 1.0, %v5510
        %v5547 = vsel %vm5539, 1.0, %v5511
        %v5548 = vsel %vm5540, 1.0, %v5512
        %v5549 = vsel %vm5541, 1.0, %v5513
        %5550 = vset.pattern.permute.xlu0 123
        %5551 = vperm.xlu0 %5550, %v1112
        %v5552 = vpop.permute.xlu0 %5551
        %vm5554 = vcmp.ge.f32.partialorder %v5552, %v1098
        %vm5555 = vcmp.ge.f32.partialorder %v5552, %v1099
        %vm5556 = vcmp.ge.f32.partialorder %v5552, %v1100
        %vm5557 = vcmp.ge.f32.partialorder %v5552, %v1101
        %vm5558 = vcmp.ge.f32.partialorder %v5552, %v1102
        %vm5559 = vcmp.ge.f32.partialorder %v5552, %v1103
        %vm5560 = vcmp.ge.f32.partialorder %v5552, %v1104
        %vm5561 = vcmp.ge.f32.partialorder %v5552, %v1105
        %vm5562 = vcmp.lt.f32.partialorder %v5552, %v1090
        %vm5563 = vcmp.lt.f32.partialorder %v5552, %v1091
        %vm5564 = vcmp.lt.f32.partialorder %v5552, %v1092
        %vm5565 = vcmp.lt.f32.partialorder %v5552, %v1093
        %vm5566 = vcmp.lt.f32.partialorder %v5552, %v1094
        %vm5567 = vcmp.lt.f32.partialorder %v5552, %v1095
        %vm5568 = vcmp.lt.f32.partialorder %v5552, %v1096
        %vm5569 = vcmp.lt.f32.partialorder %v5552, %v1097
        %vm5570 = vmand %vm5554, %vm5562
        %vm5571 = vmand %vm5555, %vm5563
        %vm5572 = vmand %vm5556, %vm5564
        %vm5573 = vmand %vm5557, %vm5565
        %vm5574 = vmand %vm5558, %vm5566
        %vm5575 = vmand %vm5559, %vm5567
        %vm5576 = vmand %vm5560, %vm5568
        %vm5577 = vmand %vm5561, %vm5569
        %v5578 = vsel %vm5570, 1.0, %v5542
        %v5579 = vsel %vm5571, 1.0, %v5543
        %v5580 = vsel %vm5572, 1.0, %v5544
        %v5581 = vsel %vm5573, 1.0, %v5545
        %v5582 = vsel %vm5574, 1.0, %v5546
        %v5583 = vsel %vm5575, 1.0, %v5547
        %v5584 = vsel %vm5576, 1.0, %v5548
        %v5585 = vsel %vm5577, 1.0, %v5549
        %5586 = vset.pattern.permute.xlu0 124
        %5587 = vperm.xlu0 %5586, %v1112
        %v5588 = vpop.permute.xlu0 %5587
        %vm5590 = vcmp.ge.f32.partialorder %v5588, %v1098
        %vm5591 = vcmp.ge.f32.partialorder %v5588, %v1099
        %vm5592 = vcmp.ge.f32.partialorder %v5588, %v1100
        %vm5593 = vcmp.ge.f32.partialorder %v5588, %v1101
        %vm5594 = vcmp.ge.f32.partialorder %v5588, %v1102
        %vm5595 = vcmp.ge.f32.partialorder %v5588, %v1103
        %vm5596 = vcmp.ge.f32.partialorder %v5588, %v1104
        %vm5597 = vcmp.ge.f32.partialorder %v5588, %v1105
        %vm5598 = vcmp.lt.f32.partialorder %v5588, %v1090
        %vm5599 = vcmp.lt.f32.partialorder %v5588, %v1091
        %vm5600 = vcmp.lt.f32.partialorder %v5588, %v1092
        %vm5601 = vcmp.lt.f32.partialorder %v5588, %v1093
        %vm5602 = vcmp.lt.f32.partialorder %v5588, %v1094
        %vm5603 = vcmp.lt.f32.partialorder %v5588, %v1095
        %vm5604 = vcmp.lt.f32.partialorder %v5588, %v1096
        %vm5605 = vcmp.lt.f32.partialorder %v5588, %v1097
        %vm5606 = vmand %vm5590, %vm5598
        %vm5607 = vmand %vm5591, %vm5599
        %vm5608 = vmand %vm5592, %vm5600
        %vm5609 = vmand %vm5593, %vm5601
        %vm5610 = vmand %vm5594, %vm5602
        %vm5611 = vmand %vm5595, %vm5603
        %vm5612 = vmand %vm5596, %vm5604
        %vm5613 = vmand %vm5597, %vm5605
        %v5614 = vsel %vm5606, 1.0, %v5578
        %v5615 = vsel %vm5607, 1.0, %v5579
        %v5616 = vsel %vm5608, 1.0, %v5580
        %v5617 = vsel %vm5609, 1.0, %v5581
        %v5618 = vsel %vm5610, 1.0, %v5582
        %v5619 = vsel %vm5611, 1.0, %v5583
        %v5620 = vsel %vm5612, 1.0, %v5584
        %v5621 = vsel %vm5613, 1.0, %v5585
        %5622 = vset.pattern.permute.xlu0 125
        %5623 = vperm.xlu0 %5622, %v1112
        %v5624 = vpop.permute.xlu0 %5623
        %vm5626 = vcmp.ge.f32.partialorder %v5624, %v1098
        %vm5627 = vcmp.ge.f32.partialorder %v5624, %v1099
        %vm5628 = vcmp.ge.f32.partialorder %v5624, %v1100
        %vm5629 = vcmp.ge.f32.partialorder %v5624, %v1101
        %vm5630 = vcmp.ge.f32.partialorder %v5624, %v1102
        %vm5631 = vcmp.ge.f32.partialorder %v5624, %v1103
        %vm5632 = vcmp.ge.f32.partialorder %v5624, %v1104
        %vm5633 = vcmp.ge.f32.partialorder %v5624, %v1105
        %vm5634 = vcmp.lt.f32.partialorder %v5624, %v1090
        %vm5635 = vcmp.lt.f32.partialorder %v5624, %v1091
        %vm5636 = vcmp.lt.f32.partialorder %v5624, %v1092
        %vm5637 = vcmp.lt.f32.partialorder %v5624, %v1093
        %vm5638 = vcmp.lt.f32.partialorder %v5624, %v1094
        %vm5639 = vcmp.lt.f32.partialorder %v5624, %v1095
        %vm5640 = vcmp.lt.f32.partialorder %v5624, %v1096
        %vm5641 = vcmp.lt.f32.partialorder %v5624, %v1097
        %vm5642 = vmand %vm5626, %vm5634
        %vm5643 = vmand %vm5627, %vm5635
        %vm5644 = vmand %vm5628, %vm5636
        %vm5645 = vmand %vm5629, %vm5637
        %vm5646 = vmand %vm5630, %vm5638
        %vm5647 = vmand %vm5631, %vm5639
        %vm5648 = vmand %vm5632, %vm5640
        %vm5649 = vmand %vm5633, %vm5641
        %v5650 = vsel %vm5642, 1.0, %v5614
        %v5651 = vsel %vm5643, 1.0, %v5615
        %v5652 = vsel %vm5644, 1.0, %v5616
        %v5653 = vsel %vm5645, 1.0, %v5617
        %v5654 = vsel %vm5646, 1.0, %v5618
        %v5655 = vsel %vm5647, 1.0, %v5619
        %v5656 = vsel %vm5648, 1.0, %v5620
        %v5657 = vsel %vm5649, 1.0, %v5621
        %5658 = vset.pattern.permute.xlu0 126
        %5659 = vperm.xlu0 %5658, %v1112
        %v5660 = vpop.permute.xlu0 %5659
        %vm5662 = vcmp.ge.f32.partialorder %v5660, %v1098
        %vm5663 = vcmp.ge.f32.partialorder %v5660, %v1099
        %vm5664 = vcmp.ge.f32.partialorder %v5660, %v1100
        %vm5665 = vcmp.ge.f32.partialorder %v5660, %v1101
        %vm5666 = vcmp.ge.f32.partialorder %v5660, %v1102
        %vm5667 = vcmp.ge.f32.partialorder %v5660, %v1103
        %vm5668 = vcmp.ge.f32.partialorder %v5660, %v1104
        %vm5669 = vcmp.ge.f32.partialorder %v5660, %v1105
        %vm5670 = vcmp.lt.f32.partialorder %v5660, %v1090
        %vm5671 = vcmp.lt.f32.partialorder %v5660, %v1091
        %vm5672 = vcmp.lt.f32.partialorder %v5660, %v1092
        %vm5673 = vcmp.lt.f32.partialorder %v5660, %v1093
        %vm5674 = vcmp.lt.f32.partialorder %v5660, %v1094
        %vm5675 = vcmp.lt.f32.partialorder %v5660, %v1095
        %vm5676 = vcmp.lt.f32.partialorder %v5660, %v1096
        %vm5677 = vcmp.lt.f32.partialorder %v5660, %v1097
        %vm5678 = vmand %vm5662, %vm5670
        %vm5679 = vmand %vm5663, %vm5671
        %vm5680 = vmand %vm5664, %vm5672
        %vm5681 = vmand %vm5665, %vm5673
        %vm5682 = vmand %vm5666, %vm5674
        %vm5683 = vmand %vm5667, %vm5675
        %vm5684 = vmand %vm5668, %vm5676
        %vm5685 = vmand %vm5669, %vm5677
        %v5686 = vsel %vm5678, 1.0, %v5650
        %v5687 = vsel %vm5679, 1.0, %v5651
        %v5688 = vsel %vm5680, 1.0, %v5652
        %v5689 = vsel %vm5681, 1.0, %v5653
        %v5690 = vsel %vm5682, 1.0, %v5654
        %v5691 = vsel %vm5683, 1.0, %v5655
        %v5692 = vsel %vm5684, 1.0, %v5656
        %v5693 = vsel %vm5685, 1.0, %v5657
        %5694 = vset.pattern.permute.xlu0 127
        %5695 = vperm.xlu0 %5694, %v1112
        %v5696 = vpop.permute.xlu0 %5695
        %vm5698 = vcmp.ge.f32.partialorder %v5696, %v1098
        %vm5699 = vcmp.ge.f32.partialorder %v5696, %v1099
        %vm5700 = vcmp.ge.f32.partialorder %v5696, %v1100
        %vm5701 = vcmp.ge.f32.partialorder %v5696, %v1101
        %vm5702 = vcmp.ge.f32.partialorder %v5696, %v1102
        %vm5703 = vcmp.ge.f32.partialorder %v5696, %v1103
        %vm5704 = vcmp.ge.f32.partialorder %v5696, %v1104
        %vm5705 = vcmp.ge.f32.partialorder %v5696, %v1105
        %vm5706 = vcmp.lt.f32.partialorder %v5696, %v1090
        %vm5707 = vcmp.lt.f32.partialorder %v5696, %v1091
        %vm5708 = vcmp.lt.f32.partialorder %v5696, %v1092
        %vm5709 = vcmp.lt.f32.partialorder %v5696, %v1093
        %vm5710 = vcmp.lt.f32.partialorder %v5696, %v1094
        %vm5711 = vcmp.lt.f32.partialorder %v5696, %v1095
        %vm5712 = vcmp.lt.f32.partialorder %v5696, %v1096
        %vm5713 = vcmp.lt.f32.partialorder %v5696, %v1097
        %vm5714 = vmand %vm5698, %vm5706
        %vm5715 = vmand %vm5699, %vm5707
        %vm5716 = vmand %vm5700, %vm5708
        %vm5717 = vmand %vm5701, %vm5709
        %vm5718 = vmand %vm5702, %vm5710
        %vm5719 = vmand %vm5703, %vm5711
        %vm5720 = vmand %vm5704, %vm5712
        %vm5721 = vmand %vm5705, %vm5713
        %v5722 = vsel %vm5714, 1.0, %v5686
        %v5723 = vsel %vm5715, 1.0, %v5687
        %v5724 = vsel %vm5716, 1.0, %v5688
        %v5725 = vsel %vm5717, 1.0, %v5689
        %v5726 = vsel %vm5718, 1.0, %v5690
        %v5727 = vsel %vm5719, 1.0, %v5691
        %v5728 = vsel %vm5720, 1.0, %v5692
        %v5729 = vsel %vm5721, 1.0, %v5693
        %5730 = vst [vmem:[#allocation5] sm:$0xff] %v5722
        %5731 = vst [vmem:[#allocation5 + $0x8] sm:$0xff] %v5723
        %5732 = vst [vmem:[#allocation5 + $0x10] sm:$0xff] %v5724
        %5733 = vst [vmem:[#allocation5 + $0x18] sm:$0xff] %v5725
        %5734 = vst [vmem:[#allocation5 + $0x20] sm:$0xff] %v5726
        %5735 = vst [vmem:[#allocation5 + $0x28] sm:$0xff] %v5727
        %5736 = vst [vmem:[#allocation5 + $0x30] sm:$0xff] %v5728
        %5737 = vst [vmem:[#allocation5 + $0x38] sm:$0xff] %v5729
        %p5738 = scmp.eq.s32.totalorder %s23, 3
        // Predicated region
        $region41: #{tpu_custom_call.1} parent=27 // pred_check
          %p5739 = pneg %p5738
        $region42: #{tpu_custom_call.1} parent=27 // pred_check_branch
          %5741 = sbr.rel (%p5739) target = $region44
        $region43: #{tpu_custom_call.1} parent=27 // pred_region
          %v5742 = vld [vmem:[#allocation5] sm:$0xff]
          %v5743 = vld [vmem:[#allocation5 + $0x8] sm:$0xff]
          %v5744 = vld [vmem:[#allocation5 + $0x10] sm:$0xff]
          %v5745 = vld [vmem:[#allocation5 + $0x18] sm:$0xff]
          %v5746 = vld [vmem:[#allocation5 + $0x20] sm:$0xff]
          %v5747 = vld [vmem:[#allocation5 + $0x28] sm:$0xff]
          %v5748 = vld [vmem:[#allocation5 + $0x30] sm:$0xff]
          %v5749 = vld [vmem:[#allocation5 + $0x38] sm:$0xff]
          %vm5750 = vcmp.gt.f32.partialorder %v5742, 0.5
          %vm5751 = vcmp.gt.f32.partialorder %v5743, 0.5
          %vm5752 = vcmp.gt.f32.partialorder %v5744, 0.5
          %vm5753 = vcmp.gt.f32.partialorder %v5745, 0.5
          %vm5754 = vcmp.gt.f32.partialorder %v5746, 0.5
          %vm5755 = vcmp.gt.f32.partialorder %v5747, 0.5
          %vm5756 = vcmp.gt.f32.partialorder %v5748, 0.5
          %vm5757 = vcmp.gt.f32.partialorder %v5749, 0.5
          %v5758 = vld [vmem:[#allocation4] sm:$0xff]
          %v5759 = vld [vmem:[#allocation4 + $0x8] sm:$0xff]
          %v5760 = vld [vmem:[#allocation4 + $0x10] sm:$0xff]
          %v5761 = vld [vmem:[#allocation4 + $0x18] sm:$0xff]
          %v5762 = vld [vmem:[#allocation4 + $0x20] sm:$0xff]
          %v5763 = vld [vmem:[#allocation4 + $0x28] sm:$0xff]
          %v5764 = vld [vmem:[#allocation4 + $0x30] sm:$0xff]
          %v5765 = vld [vmem:[#allocation4 + $0x38] sm:$0xff]
          %v5766 = vsel %vm5750, %v5758, 0.0
          %v5767 = vsel %vm5751, %v5759, 0.0
          %v5768 = vsel %vm5752, %v5760, 0.0
          %v5769 = vsel %vm5753, %v5761, 0.0
          %v5770 = vsel %vm5754, %v5762, 0.0
          %v5771 = vsel %vm5755, %v5763, 0.0
          %v5772 = vsel %vm5756, %v5764, 0.0
          %v5773 = vsel %vm5757, %v5765, 0.0
          %5774 = vst [vmem:[#allocation11] sm:$0xff] %v5766
          %5775 = vst [vmem:[#allocation11 + $0x8] sm:$0xff] %v5767
          %5776 = vst [vmem:[#allocation11 + $0x10] sm:$0xff] %v5768
          %5777 = vst [vmem:[#allocation11 + $0x18] sm:$0xff] %v5769
          %5778 = vst [vmem:[#allocation11 + $0x20] sm:$0xff] %v5770
          %5779 = vst [vmem:[#allocation11 + $0x28] sm:$0xff] %v5771
          %5780 = vst [vmem:[#allocation11 + $0x30] sm:$0xff] %v5772
          %5781 = vst [vmem:[#allocation11 + $0x38] sm:$0xff] %v5773
        $region44: #{tpu_custom_call.1} parent=27 // pred_fallthru
          _
        // Predicated region
        $region45: #{tpu_custom_call.1} parent=27 // pred_check
          %p5782 = pneg %p102
        $region46: #{tpu_custom_call.1} parent=27 // pred_check_branch
          %5784 = sbr.rel (%p5782) target = $region48
        $region47: #{tpu_custom_call.1} parent=27 // pred_region
          %s5786 = ssub.s32 1024, 1024
          %5787 = vsyncadd [#allocation8], %s5786
          %s5788 = smul.addr %s22, 8
          %s5789 = smul.addr %s5788, 128
          %s5790 = scalar_lea.hbm %s2, %s5789
          %s5792 = sshll.u32 [#allocation11], 4
          %s5793 = int_to_ptr.vmem [resolvable:$true] %s5792
          %5795 = dma.vmem_to_hbm [thread:$0]  %s5793, 1024, %s5790, [#allocation8]
        $region48: #{tpu_custom_call.1} parent=27 // pred_fallthru
          _
        // Predicated region
        $region49: #{tpu_custom_call.1} parent=27 // pred_check
          %p5796 = pneg %p102
        $region50: #{tpu_custom_call.1} parent=27 // pred_check_branch
          %5798 = sbr.rel (%p5796) target = $region52
        $region51: #{tpu_custom_call.1} parent=27 // pred_region
          %5799 = dma.done [#allocation8], 1024
        $region52: #{tpu_custom_call.1} parent=27 // pred_fallthru
          _
      $region28: #{tpu_custom_call.1} parent=5 // pred_fallthru
        _
      %p5800 = scmp.le.s32.totalorder 2, %s13
      // Predicated region
      $region53: #{tpu_custom_call.1} parent=5 // pred_check
        %p5801 = pneg %p5800
      $region54: #{tpu_custom_call.1} parent=5 // pred_check_branch
        %5803 = sbr.rel (%p5801) target = $region56
      $region55: #{tpu_custom_call.1} parent=5 // pred_region
        %s5804 = ssub.s32 %s13, 2
      $region56: #{tpu_custom_call.1} parent=5 // pred_fallthru
        _
    $region6: #{tpu_custom_call.1} parent=1 // loop_footer
      %s17 = sadd.s32 1, %s13
    $region7: #{tpu_custom_call.1} parent=1 // loop_footer_branch
      %12 = sbr.rel target = $region3
    $region8: #{tpu_custom_call.1} parent=1 // loop_exit
      _
    %5805 = vsyncpa [#allocation7], 1
    %s5806 = scalar_lea.sflag [#allocation7], 1
    %5807 = vsyncpa %s5806, 1
    %5808 = vsyncpa [#allocation10], 1
    %s5809 = scalar_lea.sflag [#allocation10], 1
    %5810 = vsyncpa %s5809, 1
    %5811 = vsyncpa [#allocation8], 1
    %s5812 = scalar_lea.sflag [#allocation8], 1
    %5813 = vsyncpa %s5812, 1

</llo_original>
